<compile_context>
chip_gen: v7x
topology: tpu7x:2x2x1
jax: 0.10.0
libtpu: 0.0.40
codegen_flags: <defaults>
</compile_context>

<pallas_src>
import numpy as np
import jax
import jax.numpy as jnp
from jax.experimental import pallas as pl
from jax.experimental.pallas import tpu as pltpu


# --------------------------------------------------------------------------
# tiling helpers
# --------------------------------------------------------------------------
def _pick_row_tile(M, cap=1024):
    """Largest row tile <= cap that evenly tiles M (multiple of 8 when tiled)."""
    if M <= cap:
        return M
    for t in range(cap - cap % 8, 7, -8):
        if M % t == 0:
            return t
    return M  # TODO(synk): masked tail handling for pathological M


def _pick_window_batch(NW, nW_per_img, N, need_mask, max_rows=512):
    """Largest window batch WB dividing NW with WB*N <= max_rows.

    When a shift mask is used, WB must also be compatible with the per-image
    window period so the mask can be addressed via the BlockSpec index_map.
    """
    best = 1
    for wb in range(1, NW + 1):
        if NW % wb:
            continue
        if need_mask and not (wb % nW_per_img == 0 or nW_per_img % wb == 0):
            continue
        if wb * N <= max_rows:
            best = wb
    return best


# --------------------------------------------------------------------------
# standalone LayerNorm kernel (only needed when spatial padding is required,
# because the reference normalizes BEFORE zero-padding)
# --------------------------------------------------------------------------
def _layernorm_kernel(x_ref, g_ref, b_ref, o_ref):
    x = x_ref[...].astype(jnp.float32)
    mu = jnp.mean(x, axis=-1, keepdims=True)
    var = jnp.mean(jnp.square(x - mu), axis=-1, keepdims=True)
    y = (x - mu) * jax.lax.rsqrt(var + 1e-5)
    o_ref[...] = (y * g_ref[0] + b_ref[0]).astype(o_ref.dtype)


def layernorm(x2d, gamma, beta):
    M, C = x2d.shape
    tile_m = _pick_row_tile(M)
    return pl.pallas_call(
        _layernorm_kernel,
        out_shape=jax.ShapeDtypeStruct((M, C), x2d.dtype),
        grid=(M // tile_m,),
        in_specs=[
            pl.BlockSpec((tile_m, C), lambda i: (i, 0)),
            pl.BlockSpec((1, C), lambda i: (0, 0)),
            pl.BlockSpec((1, C), lambda i: (0, 0)),
        ],
        out_specs=pl.BlockSpec((tile_m, C), lambda i: (i, 0)),
        compiler_params=pltpu.CompilerParams(dimension_semantics=("parallel",)),
    )(x2d, gamma.reshape(1, C), beta.reshape(1, C))


# --------------------------------------------------------------------------
# window attention kernel: [optional fused LN1] + QKV + per-head attention
# (window-batched einsums) + output projection.
# --------------------------------------------------------------------------
def _make_window_attn_kernel(num_heads, head_dim, has_mask, fuse_ln):
    C = num_heads * head_dim

    def kernel(*refs):
        it = iter(refs)
        x_ref = next(it)
        mask_ref = next(it) if has_mask else None
        g_ref = next(it) if fuse_ln else None
        b_ref = next(it) if fuse_ln else None
        qkvw_ref = next(it)
        qkvb_ref = next(it)
        projw_ref = next(it)
        projb_ref = next(it)
        bias_ref = next(it)
        o_ref = next(it)

        WB, N, _ = x_ref.shape
        dt = x_ref.dtype

        x = x_ref[...]                                          # (WB, N, C)
        if fuse_ln:
            xf = x.astype(jnp.float32)
            mu = jnp.mean(xf, axis=-1, keepdims=True)
            var = jnp.mean(jnp.square(xf - mu), axis=-1, keepdims=True)
            xn = (xf - mu) * jax.lax.rsqrt(var + 1e-5) * g_ref[0] + b_ref[0]
            x = xn.astype(dt)

        x2 = x.reshape(WB * N, C)
        qkv = jnp.dot(x2, qkvw_ref[...], preferred_element_type=jnp.float32)
        qkv = (qkv + qkvb_ref[0]).astype(dt).reshape(WB, N, 3 * C)

        bias = bias_ref[...].astype(jnp.float32)                # (H, N, N)
        mask = mask_ref[...].astype(jnp.float32) if has_mask else None
        projw = projw_ref[...]                                  # (C, C)

        out = None
        for h in range(num_heads):
            lo = h * head_dim
            hi = lo + head_dim
            q = qkv[:, :, lo:hi]                                # (WB, N, d)
            k = qkv[:, :, C + lo:C + hi]
            v = qkv[:, :, 2 * C + lo:2 * C + hi]
            # q is already scaled (scale folded into the qkv weights).
            logits = jnp.einsum('wnd,wmd->wnm', q, k,
                                preferred_element_type=jnp.float32)
            logits = logits + bias[h][None, :, :]
            if has_mask:
                logits = logits + mask
            p = jax.nn.softmax(logits, axis=-1).astype(dt)
            pv = jnp.einsum('wnm,wmd->wnd', p, v,
                            preferred_element_type=jnp.float32)
            pv = pv.reshape(WB * N, head_dim).astype(dt)
            # accumulate projected heads: concat_h(pv_h) @ W == sum_h pv_h @ W[h]
            contrib = jnp.dot(pv, projw[lo:hi, :],
                              preferred_element_type=jnp.float32)
            out = contrib if out is None else out + contrib

        out = out + projb_ref[0]
        o_ref[...] = out.reshape(WB, N, C).astype(o_ref.dtype)

    return kernel


def window_attention(xw, mask, nW_per_img, gamma1, beta1, qkv_w, qkv_b,
                     proj_w, proj_b, rel_bias, num_heads, fuse_ln):
    NW, N, C = xw.shape
    head_dim = C // num_heads
    has_mask = mask is not None
    WB = _pick_window_batch(NW, nW_per_img, N, has_mask)

    kernel = _make_window_attn_kernel(num_heads, head_dim, has_mask, fuse_ln)

    args = [xw]
    in_specs = [pl.BlockSpec((WB, N, C), lambda i: (i, 0, 0))]

    if has_mask:
        if WB % nW_per_img == 0:
            # one grid step covers a whole number of images -> constant mask tile
            mask_arg = jnp.tile(mask, (WB // nW_per_img, 1, 1))
            in_specs.append(pl.BlockSpec((WB, N, N), lambda i: (0, 0, 0)))
        else:
            # nW_per_img % WB == 0 -> index the per-image mask by grid step
            ratio = nW_per_img // WB
            mask_arg = mask
            in_specs.append(
                pl.BlockSpec((WB, N, N), lambda i, r=ratio: (i % r, 0, 0)))
        args.append(mask_arg)

    if fuse_ln:
        args += [gamma1.reshape(1, C), beta1.reshape(1, C)]
        in_specs += [pl.BlockSpec((1, C), lambda i: (0, 0)),
                     pl.BlockSpec((1, C), lambda i: (0, 0))]

    args += [qkv_w, qkv_b.reshape(1, 3 * C), proj_w, proj_b.reshape(1, C),
             rel_bias]
    in_specs += [pl.BlockSpec((C, 3 * C), lambda i: (0, 0)),
                 pl.BlockSpec((1, 3 * C), lambda i: (0, 0)),
                 pl.BlockSpec((C, C), lambda i: (0, 0)),
                 pl.BlockSpec((1, C), lambda i: (0, 0)),
                 pl.BlockSpec((num_heads, N, N), lambda i: (0, 0, 0))]

    return pl.pallas_call(
        kernel,
        out_shape=jax.ShapeDtypeStruct((NW, N, C), xw.dtype),
        grid=(NW // WB,),
        in_specs=in_specs,
        out_specs=pl.BlockSpec((WB, N, C), lambda i: (i, 0, 0)),
        compiler_params=pltpu.CompilerParams(dimension_semantics=("parallel",)),
    )(*args)


# --------------------------------------------------------------------------
# fused block tail:  x = shortcut + attn ;  out = x + MLP(LN2(x))
# --------------------------------------------------------------------------
def _block_tail_kernel(s_ref, a_ref, g_ref, b_ref, w1_ref, b1_ref, w2_ref,
                       b2_ref, o_ref):
    x = s_ref[...].astype(jnp.float32) + a_ref[...].astype(jnp.float32)
    mu = jnp.mean(x, axis=-1, keepdims=True)
    var = jnp.mean(jnp.square(x - mu), axis=-1, keepdims=True)
    xn = ((x - mu) * jax.lax.rsqrt(var + 1e-5) * g_ref[0] + b_ref[0])
    xn = xn.astype(s_ref.dtype)
    h = jnp.dot(xn, w1_ref[...], preferred_element_type=jnp.float32) + b1_ref[0]
    # exact (erf) GELU, matching torch.nn.GELU default; computed in f32
    h = 0.5 * h * (1.0 + jax.lax.erf(h * jnp.float32(0.7071067811865476)))
    h = h.astype(s_ref.dtype)
    y = jnp.dot(h, w2_ref[...], preferred_element_type=jnp.float32) + b2_ref[0]
    o_ref[...] = (x + y).astype(o_ref.dtype)


def block_tail(shortcut2d, attn2d, gamma2, beta2, w1, b1, w2, b2):
    M, C = shortcut2d.shape
    Hd = w1.shape[1]
    tile_m = _pick_row_tile(M)
    # TODO(synk): for production Swin dims (C=768, Hd=3072) on v7x (64 MiB VMEM),
    # store w1/w2 in bf16 or add a hidden-dim grid axis + f32 accumulator.
    return pl.pallas_call(
        _block_tail_kernel,
        out_shape=jax.ShapeDtypeStruct((M, C), shortcut2d.dtype),
        grid=(M // tile_m,),
        in_specs=[
            pl.BlockSpec((tile_m, C), lambda i: (i, 0)),
            pl.BlockSpec((tile_m, C), lambda i: (i, 0)),
            pl.BlockSpec((1, C), lambda i: (0, 0)),
            pl.BlockSpec((1, C), lambda i: (0, 0)),
            pl.BlockSpec((C, Hd), lambda i: (0, 0)),
            pl.BlockSpec((1, Hd), lambda i: (0, 0)),
            pl.BlockSpec((Hd, C), lambda i: (0, 0)),
            pl.BlockSpec((1, C), lambda i: (0, 0)),
        ],
        out_specs=pl.BlockSpec((tile_m, C), lambda i: (i, 0)),
        compiler_params=pltpu.CompilerParams(dimension_semantics=("parallel",)),
    )(shortcut2d, attn2d, gamma2.reshape(1, C), beta2.reshape(1, C),
      w1, b1.reshape(1, Hd), w2, b2.reshape(1, C))


# --------------------------------------------------------------------------
# pure-JAX glue: window partition / reverse, block & layer orchestration
# --------------------------------------------------------------------------
def window_partition(x, ws):
    B, H, W, C = x.shape
    x = x.reshape(B, H // ws, ws, W // ws, ws, C)
    return x.transpose(0, 1, 3, 2, 4, 5).reshape(-1, ws, ws, C)


def window_reverse(windows, ws, H, W):
    B = windows.shape[0] // (H * W // ws // ws)
    x = windows.reshape(B, H // ws, W // ws, ws, ws, -1)
    return x.transpose(0, 1, 3, 2, 4, 5).reshape(B, H, W, -1)


def swin_block_forward(x, H, W, p, window_size, shift_size, num_heads,
                       attn_mask_nw, rel_bias, qkv_w_scaled, qkv_b_scaled):
    B, L, C = x.shape
    assert L == H * W
    shortcut2d = x.reshape(B * L, C)

    pad_r = (window_size - W % window_size) % window_size
    pad_b = (window_size - H % window_size) % window_size
    # LN is per-token so it commutes with roll/partition; it does NOT commute
    # with zero-padding, so fall back to a standalone LN pass when padding.
    fuse_ln = (pad_r == 0 and pad_b == 0)

    if fuse_ln:
        xs = x.reshape(B, H, W, C)
    else:
        xs = layernorm(shortcut2d, p['norm1_g'], p['norm1_b'])
        xs = xs.reshape(B, H, W, C)
        xs = jnp.pad(xs, ((0, 0), (0, pad_b), (0, pad_r), (0, 0)))
    _, Hp, Wp, _ = xs.shape

    if shift_size > 0:
        xs = jnp.roll(xs, shift=(-shift_size, -shift_size), axis=(1, 2))

    N = window_size * window_size
    xw = window_partition(xs, window_size).reshape(-1, N, C)
    nW_per_img = (Hp // window_size) * (Wp // window_size)
    mask = attn_mask_nw if shift_size > 0 else None

    attn = window_attention(xw, mask, nW_per_img, p['norm1_g'], p['norm1_b'],
                            qkv_w_scaled, qkv_b_scaled, p['proj_w'],
                            p['proj_b'], rel_bias, num_heads, fuse_ln)

    attn = attn.reshape(-1, window_size, window_size, C)
    xsp = window_reverse(attn, window_size, Hp, Wp)
    if shift_size > 0:
        xsp = jnp.roll(xsp, shift=(shift_size, shift_size), axis=(1, 2))
    if pad_r > 0 or pad_b > 0:
        xsp = xsp[:, :H, :W, :]
    attn2d = xsp.reshape(B * L, C)

    # drop_path = Identity (rate 0): fused residual + norm2 + MLP + residual
    out = block_tail(shortcut2d, attn2d, p['norm2_g'], p['norm2_b'],
                     p['fc1_w'], p['fc1_b'], p['fc2_w'], p['fc2_b'])
    return out.reshape(B, L, C)


def basic_layer_forward(x, H, W, blocks_params, window_size, num_heads):
    shift_size = window_size // 2
    Hp = int(np.ceil(H / window_size)) * window_size
    Wp = int(np.ceil(W / window_size)) * window_size
    N = window_size * window_size

    # SW-MSA attention mask, shape (nW_per_img, N, N)  (numpy, host-side)
    img_mask = np.zeros((1, Hp, Wp, 1), np.float32)
    h_slices = (slice(0, -window_size), slice(-window_size, -shift_size),
                slice(-shift_size, None))
    w_slices = (slice(0, -window_size), slice(-window_size, -shift_size),
                slice(-shift_size, None))
    cnt = 0
    for hs in h_slices:
        for ws_ in w_slices:
            img_mask[:, hs, ws_, :] = cnt
            cnt += 1
    mw = img_mask.reshape(1, Hp // window_size, window_size,
                          Wp // window_size, window_size, 1)
    mw = mw.transpose(0, 1, 3, 2, 4, 5).reshape(-1, N)
    attn_mask = mw[:, None, :] - mw[:, :, None]
    attn_mask = np.where(attn_mask != 0, np.float32(-100.0),
                         np.float32(0.0)).astype(np.float32)
    attn_mask = jnp.asarray(attn_mask)

    # per-block one-time prep: fold q scale into qkv weights, gather rel bias
    prepped = []
    for p in blocks_params:
        C = p['qkv_w'].shape[0]
        head_dim = C // num_heads
        scale = head_dim ** (-0.5)
        col_scale = jnp.concatenate(
            [jnp.full((C,), scale, jnp.float32), jnp.ones((2 * C,), jnp.float32)])
        qkv_w_s = (p['qkv_w'] * col_scale[None, :]).astype(p['qkv_w'].dtype)
        qkv_b_s = (p['qkv_b'] * col_scale).astype(p['qkv_b'].dtype)
        rb = p['rel_bias_table'][p['rel_index'].reshape(-1)]
        rb = jnp.transpose(rb.reshape(N, N, num_heads), (2, 0, 1))
        rb = rb.astype(jnp.float32)
        prepped.append((qkv_w_s, qkv_b_s, rb))

    for i, (p, (qw, qb, rb)) in enumerate(zip(blocks_params, prepped)):
        ss = 0 if i % 2 == 0 else shift_size
        x = swin_block_forward(x, H, W, p, window_size, ss, num_heads,
                               attn_mask, rb, qw, qb)
    # downsample is None -> (x, H, W, x, H, W)
    return x, H, W, x, H, W


# --------------------------------------------------------------------------
# deterministic parameter init (shapes match the PyTorch module)
# --------------------------------------------------------------------------
def init_block_params(key, dim, num_heads, window_size, mlp_ratio=4.0):
    hidden = int(dim * mlp_ratio)
    ks = jax.random.split(key, 7)

    def nrm(k, shape, std=0.02):
        return (std * jax.random.normal(k, shape)).astype(jnp.float32)

    # relative_position_index exactly as in the PyTorch __init__
    ws = window_size
    coords = np.stack(np.meshgrid(np.arange(ws), np.arange(ws), indexing='ij'))
    cf = coords.reshape(2, -1)
    rel = cf[:, :, None] - cf[:, None, :]
    rel = rel.transpose(1, 2, 0).copy()
    rel[:, :, 0] += ws - 1
    rel[:, :, 1] += ws - 1
    rel[:, :, 0] *= 2 * ws - 1
    rel_index = rel.sum(-1)

    return dict(
        norm1_g=jnp.ones((dim,), jnp.float32),
        norm1_b=jnp.zeros((dim,), jnp.float32),
        qkv_w=nrm(ks[0], (dim, 3 * dim)),        # stored as (in, out) = W^T
        qkv_b=nrm(ks[1], (3 * dim,)),
        proj_w=nrm(ks[2], (dim, dim)),
        proj_b=nrm(ks[3], (dim,)),
        rel_bias_table=nrm(ks[4], ((2 * ws - 1) * (2 * ws - 1), num_heads)),
        rel_index=jnp.asarray(rel_index, jnp.int32),
        norm2_g=jnp.ones((dim,), jnp.float32),
        norm2_b=jnp.zeros((dim,), jnp.float32),
        fc1_w=nrm(ks[5], (dim, hidden)),
        fc1_b=jnp.zeros((hidden,), jnp.float32),
        fc2_w=nrm(ks[6], (hidden, dim)),
        fc2_b=jnp.zeros((dim,), jnp.float32),
    )


if __name__ == "__main__":
    B, H, W = 2, 8, 8
    dim, depth, num_heads, window_size = 32, 2, 4, 4

    key = jax.random.PRNGKey(0)
    kx, k0, k1 = jax.random.split(key, 3)
    x = jax.random.normal(kx, (B, H * W, dim), jnp.float32)
    blocks = [init_block_params(k, dim, num_heads, window_size)
              for k in (k0, k1)]

    out = basic_layer_forward(x, H, W, blocks, window_size, num_heads)
    jax.block_until_ready(out[0])
    assert out[0].shape == (B, H * W, dim)
    print("KERNEL_OK")
</pallas_src>

<mosaic_0001>
module attributes {stable_mosaic.version = 11 : i64} {
  func.func @kernel(%arg0: i32, %arg1: memref<8x16x32xf32, #tpu.memory_space<vmem>>, %arg2: memref<1x32xf32, #tpu.memory_space<vmem>>, %arg3: memref<1x32xf32, #tpu.memory_space<vmem>>, %arg4: memref<32x96xf32, #tpu.memory_space<vmem>>, %arg5: memref<1x96xf32, #tpu.memory_space<vmem>>, %arg6: memref<32x32xf32, #tpu.memory_space<vmem>>, %arg7: memref<1x32xf32, #tpu.memory_space<vmem>>, %arg8: memref<4x16x16xf32, #tpu.memory_space<vmem>>, %arg9: memref<8x16x32xf32, #tpu.memory_space<vmem>>) attributes {dimension_semantics = [#tpu.dimension_semantics<parallel>], iteration_bounds = array<i64: 1>, scalar_prefetch = 0 : i64, scratch_operands = 0 : i64, tpu.core_type = #tpu.core_type<tc>, window_params = [{transform_indices = @transform_0, window_bounds = array<i64: 8, 16, 32>}, {pipeline_mode = #tpu.pipeline_mode<synchronous>, transform_indices = @transform_1, window_bounds = array<i64: 1, 32>}, {pipeline_mode = #tpu.pipeline_mode<synchronous>, transform_indices = @transform_2, window_bounds = array<i64: 1, 32>}, {pipeline_mode = #tpu.pipeline_mode<synchronous>, transform_indices = @transform_3, window_bounds = array<i64: 32, 96>}, {pipeline_mode = #tpu.pipeline_mode<synchronous>, transform_indices = @transform_4, window_bounds = array<i64: 1, 96>}, {pipeline_mode = #tpu.pipeline_mode<synchronous>, transform_indices = @transform_5, window_bounds = array<i64: 32, 32>}, {pipeline_mode = #tpu.pipeline_mode<synchronous>, transform_indices = @transform_6, window_bounds = array<i64: 1, 32>}, {pipeline_mode = #tpu.pipeline_mode<synchronous>, transform_indices = @transform_7, window_bounds = array<i64: 4, 16, 16>}, {transform_indices = @transform_8, window_bounds = array<i64: 8, 16, 32>}]} {
    %c0 = arith.constant 0 : index
    %c0_0 = arith.constant 0 : index
    %c0_1 = arith.constant 0 : index
    %0 = vector.load %arg1[%c0, %c0_0, %c0_1] : memref<8x16x32xf32, #tpu.memory_space<vmem>>, vector<8x16x32xf32>
    %cst = arith.constant dense<0.000000e+00> : vector<8x16xf32>
    %1 = vector.multi_reduction <add>, %0, %cst [2] : vector<8x16x32xf32> to vector<8x16xf32>
    %2 = vector.shape_cast %1 : vector<8x16xf32> to vector<8x16x1xf32>
    %cst_2 = arith.constant 3.200000e+01 : f32
    %3 = vector.broadcast %cst_2 : f32 to vector<8x16x1xf32>
    %4 = arith.divf %2, %3 : vector<8x16x1xf32>
    %5 = vector.broadcast %4 : vector<8x16x1xf32> to vector<8x16x32xf32>
    %6 = arith.subf %0, %5 : vector<8x16x32xf32>
    %7 = arith.mulf %6, %6 : vector<8x16x32xf32>
    %cst_3 = arith.constant dense<0.000000e+00> : vector<8x16xf32>
    %8 = vector.multi_reduction <add>, %7, %cst_3 [2] : vector<8x16x32xf32> to vector<8x16xf32>
    %9 = vector.shape_cast %8 : vector<8x16xf32> to vector<8x16x1xf32>
    %cst_4 = arith.constant 3.200000e+01 : f32
    %10 = vector.broadcast %cst_4 : f32 to vector<8x16x1xf32>
    %11 = arith.divf %9, %10 : vector<8x16x1xf32>
    %12 = vector.broadcast %4 : vector<8x16x1xf32> to vector<8x16x32xf32>
    %13 = arith.subf %0, %12 : vector<8x16x32xf32>
    %cst_5 = arith.constant 9.99999974E-6 : f32
    %14 = vector.broadcast %cst_5 : f32 to vector<8x16x1xf32>
    %15 = arith.addf %11, %14 : vector<8x16x1xf32>
    %16 = math.rsqrt %15 : vector<8x16x1xf32>
    %17 = vector.broadcast %16 : vector<8x16x1xf32> to vector<8x16x32xf32>
    %18 = arith.mulf %13, %17 : vector<8x16x32xf32>
    %c0_6 = arith.constant 0 : index
    %c0_7 = arith.constant 0 : index
    %19 = vector.load %arg2[%c0_6, %c0_7] : memref<1x32xf32, #tpu.memory_space<vmem>>, vector<1x32xf32>
    %20 = vector.shape_cast %19 : vector<1x32xf32> to vector<32xf32>
    %21 = vector.shape_cast %20 : vector<32xf32> to vector<1x1x32xf32>
    %22 = vector.broadcast %21 : vector<1x1x32xf32> to vector<8x16x32xf32>
    %23 = arith.mulf %18, %22 : vector<8x16x32xf32>
    %c0_8 = arith.constant 0 : index
    %c0_9 = arith.constant 0 : index
    %24 = vector.load %arg3[%c0_8, %c0_9] : memref<1x32xf32, #tpu.memory_space<vmem>>, vector<1x32xf32>
    %25 = vector.shape_cast %24 : vector<1x32xf32> to vector<32xf32>
    %26 = vector.shape_cast %25 : vector<32xf32> to vector<1x1x32xf32>
    %27 = vector.broadcast %26 : vector<1x1x32xf32> to vector<8x16x32xf32>
    %28 = arith.addf %23, %27 : vector<8x16x32xf32>
    %29 = vector.shape_cast %28 : vector<8x16x32xf32> to vector<128x32xf32>
    %c0_10 = arith.constant 0 : index
    %c0_11 = arith.constant 0 : index
    %30 = vector.load %arg4[%c0_10, %c0_11] : memref<32x96xf32, #tpu.memory_space<vmem>>, vector<32x96xf32>
    %cst_12 = arith.constant dense<0.000000e+00> : vector<128x96xf32>
    %31 = tpu.matmul %29, %30, %cst_12 {dimension_numbers = #tpu.dot_dimension_numbers<[1], [0], [0], [1], [0, 0, 1, 1], [], []>} : vector<128x32xf32>, vector<32x96xf32>, vector<128x96xf32> -> vector<128x96xf32>
    %c0_13 = arith.constant 0 : index
    %c0_14 = arith.constant 0 : index
    %32 = vector.load %arg5[%c0_13, %c0_14] : memref<1x96xf32, #tpu.memory_space<vmem>>, vector<1x96xf32>
    %33 = vector.shape_cast %32 : vector<1x96xf32> to vector<96xf32>
    %34 = vector.shape_cast %33 : vector<96xf32> to vector<1x96xf32>
    %35 = vector.broadcast %34 : vector<1x96xf32> to vector<128x96xf32>
    %36 = arith.addf %31, %35 : vector<128x96xf32>
    %37 = vector.shape_cast %36 : vector<128x96xf32> to vector<8x16x96xf32>
    %c0_15 = arith.constant 0 : index
    %c0_16 = arith.constant 0 : index
    %c0_17 = arith.constant 0 : index
    %38 = vector.load %arg8[%c0_15, %c0_16, %c0_17] : memref<4x16x16xf32, #tpu.memory_space<vmem>>, vector<4x16x16xf32>
    %c0_18 = arith.constant 0 : index
    %c0_19 = arith.constant 0 : index
    %39 = vector.load %arg6[%c0_18, %c0_19] : memref<32x32xf32, #tpu.memory_space<vmem>>, vector<32x32xf32>
    %40 = vector.extract_strided_slice %37 {offsets = [0, 0, 0], sizes = [8, 16, 8], strides = [1, 1, 1]} : vector<8x16x96xf32> to vector<8x16x8xf32>
    %41 = vector.extract_strided_slice %37 {offsets = [0, 0, 32], sizes = [8, 16, 8], strides = [1, 1, 1]} : vector<8x16x96xf32> to vector<8x16x8xf32>
    %42 = vector.extract_strided_slice %37 {offsets = [0, 0, 64], sizes = [8, 16, 8], strides = [1, 1, 1]} : vector<8x16x96xf32> to vector<8x16x8xf32>
    "tpu.trace_start"() <{level = 10 : i32, message = "wnd,wmd->wnm"}> : () -> ()
    %cst_20 = arith.constant dense<0.000000e+00> : vector<8x16x16xf32>
    %43 = tpu.matmul %40, %41, %cst_20 {dimension_numbers = #tpu.dot_dimension_numbers<[2], [2], [1], [1], [0, 0, 0, 1, 1, 1], [0], [0]>} : vector<8x16x8xf32>, vector<8x16x8xf32>, vector<8x16x16xf32> -> vector<8x16x16xf32>
    "tpu.trace_stop"() : () -> ()
    %44 = vector.extract_strided_slice %38 {offsets = [0, 0, 0], sizes = [1, 16, 16], strides = [1, 1, 1]} : vector<4x16x16xf32> to vector<1x16x16xf32>
    %45 = vector.shape_cast %44 : vector<1x16x16xf32> to vector<16x16xf32>
    %46 = vector.shape_cast %45 : vector<16x16xf32> to vector<1x16x16xf32>
    %47 = vector.broadcast %46 : vector<1x16x16xf32> to vector<8x16x16xf32>
    %48 = arith.addf %43, %47 : vector<8x16x16xf32>
    %cst_21 = arith.constant dense<0xFF800000> : vector<8x16xf32>
    %49 = vector.multi_reduction <maximumf>, %48, %cst_21 [2] : vector<8x16x16xf32> to vector<8x16xf32>
    %cst_22 = arith.constant 0xFF800000 : f32
    %50 = vector.broadcast %cst_22 : f32 to vector<8x16xf32>
    %51 = arith.maximumf %50, %49 : vector<8x16xf32>
    %52 = vector.shape_cast %51 : vector<8x16xf32> to vector<8x16x1xf32>
    %53 = vector.broadcast %52 : vector<8x16x1xf32> to vector<8x16x16xf32>
    %54 = arith.subf %48, %53 : vector<8x16x16xf32>
    %55 = math.exp %54 : vector<8x16x16xf32>
    %cst_23 = arith.constant dense<0.000000e+00> : vector<8x16xf32>
    %56 = vector.multi_reduction <add>, %55, %cst_23 [2] : vector<8x16x16xf32> to vector<8x16xf32>
    %57 = vector.shape_cast %56 : vector<8x16xf32> to vector<8x16x1xf32>
    %58 = vector.broadcast %57 : vector<8x16x1xf32> to vector<8x16x16xf32>
    %59 = arith.divf %55, %58 : vector<8x16x16xf32>
    "tpu.trace_start"() <{level = 10 : i32, message = "wnm,wmd->wnd"}> : () -> ()
    %cst_24 = arith.constant dense<0.000000e+00> : vector<8x16x8xf32>
    %60 = tpu.matmul %59, %42, %cst_24 {dimension_numbers = #tpu.dot_dimension_numbers<[2], [1], [1], [2], [0, 0, 0, 1, 1, 2], [0], [0]>} : vector<8x16x16xf32>, vector<8x16x8xf32>, vector<8x16x8xf32> -> vector<8x16x8xf32>
    "tpu.trace_stop"() : () -> ()
    %61 = vector.shape_cast %60 : vector<8x16x8xf32> to vector<128x8xf32>
    %62 = vector.extract_strided_slice %39 {offsets = [0, 0], sizes = [8, 32], strides = [1, 1]} : vector<32x32xf32> to vector<8x32xf32>
    %cst_25 = arith.constant dense<0.000000e+00> : vector<128x32xf32>
    %63 = tpu.matmul %61, %62, %cst_25 {dimension_numbers = #tpu.dot_dimension_numbers<[1], [0], [0], [1], [0, 0, 1, 1], [], []>} : vector<128x8xf32>, vector<8x32xf32>, vector<128x32xf32> -> vector<128x32xf32>
    %64 = vector.extract_strided_slice %37 {offsets = [0, 0, 8], sizes = [8, 16, 8], strides = [1, 1, 1]} : vector<8x16x96xf32> to vector<8x16x8xf32>
    %65 = vector.extract_strided_slice %37 {offsets = [0, 0, 40], sizes = [8, 16, 8], strides = [1, 1, 1]} : vector<8x16x96xf32> to vector<8x16x8xf32>
    %66 = vector.extract_strided_slice %37 {offsets = [0, 0, 72], sizes = [8, 16, 8], strides = [1, 1, 1]} : vector<8x16x96xf32> to vector<8x16x8xf32>
    "tpu.trace_start"() <{level = 10 : i32, message = "wnd,wmd->wnm"}> : () -> ()
    %cst_26 = arith.constant dense<0.000000e+00> : vector<8x16x16xf32>
    %67 = tpu.matmul %64, %65, %cst_26 {dimension_numbers = #tpu.dot_dimension_numbers<[2], [2], [1], [1], [0, 0, 0, 1, 1, 1], [0], [0]>} : vector<8x16x8xf32>, vector<8x16x8xf32>, vector<8x16x16xf32> -> vector<8x16x16xf32>
    "tpu.trace_stop"() : () -> ()
    %68 = vector.extract_strided_slice %38 {offsets = [1, 0, 0], sizes = [1, 16, 16], strides = [1, 1, 1]} : vector<4x16x16xf32> to vector<1x16x16xf32>
    %69 = vector.shape_cast %68 : vector<1x16x16xf32> to vector<16x16xf32>
    %70 = vector.shape_cast %69 : vector<16x16xf32> to vector<1x16x16xf32>
    %71 = vector.broadcast %70 : vector<1x16x16xf32> to vector<8x16x16xf32>
    %72 = arith.addf %67, %71 : vector<8x16x16xf32>
    %cst_27 = arith.constant dense<0xFF800000> : vector<8x16xf32>
    %73 = vector.multi_reduction <maximumf>, %72, %cst_27 [2] : vector<8x16x16xf32> to vector<8x16xf32>
    %cst_28 = arith.constant 0xFF800000 : f32
    %74 = vector.broadcast %cst_28 : f32 to vector<8x16xf32>
    %75 = arith.maximumf %74, %73 : vector<8x16xf32>
    %76 = vector.shape_cast %75 : vector<8x16xf32> to vector<8x16x1xf32>
    %77 = vector.broadcast %76 : vector<8x16x1xf32> to vector<8x16x16xf32>
    %78 = arith.subf %72, %77 : vector<8x16x16xf32>
    %79 = math.exp %78 : vector<8x16x16xf32>
    %cst_29 = arith.constant dense<0.000000e+00> : vector<8x16xf32>
    %80 = vector.multi_reduction <add>, %79, %cst_29 [2] : vector<8x16x16xf32> to vector<8x16xf32>
    %81 = vector.shape_cast %80 : vector<8x16xf32> to vector<8x16x1xf32>
    %82 = vector.broadcast %81 : vector<8x16x1xf32> to vector<8x16x16xf32>
    %83 = arith.divf %79, %82 : vector<8x16x16xf32>
    "tpu.trace_start"() <{level = 10 : i32, message = "wnm,wmd->wnd"}> : () -> ()
    %cst_30 = arith.constant dense<0.000000e+00> : vector<8x16x8xf32>
    %84 = tpu.matmul %83, %66, %cst_30 {dimension_numbers = #tpu.dot_dimension_numbers<[2], [1], [1], [2], [0, 0, 0, 1, 1, 2], [0], [0]>} : vector<8x16x16xf32>, vector<8x16x8xf32>, vector<8x16x8xf32> -> vector<8x16x8xf32>
    "tpu.trace_stop"() : () -> ()
    %85 = vector.shape_cast %84 : vector<8x16x8xf32> to vector<128x8xf32>
    %86 = vector.extract_strided_slice %39 {offsets = [8, 0], sizes = [8, 32], strides = [1, 1]} : vector<32x32xf32> to vector<8x32xf32>
    %cst_31 = arith.constant dense<0.000000e+00> : vector<128x32xf32>
    %87 = tpu.matmul %85, %86, %cst_31 {dimension_numbers = #tpu.dot_dimension_numbers<[1], [0], [0], [1], [0, 0, 1, 1], [], []>} : vector<128x8xf32>, vector<8x32xf32>, vector<128x32xf32> -> vector<128x32xf32>
    %88 = arith.addf %63, %87 : vector<128x32xf32>
    %89 = vector.extract_strided_slice %37 {offsets = [0, 0, 16], sizes = [8, 16, 8], strides = [1, 1, 1]} : vector<8x16x96xf32> to vector<8x16x8xf32>
    %90 = vector.extract_strided_slice %37 {offsets = [0, 0, 48], sizes = [8, 16, 8], strides = [1, 1, 1]} : vector<8x16x96xf32> to vector<8x16x8xf32>
    %91 = vector.extract_strided_slice %37 {offsets = [0, 0, 80], sizes = [8, 16, 8], strides = [1, 1, 1]} : vector<8x16x96xf32> to vector<8x16x8xf32>
    "tpu.trace_start"() <{level = 10 : i32, message = "wnd,wmd->wnm"}> : () -> ()
    %cst_32 = arith.constant dense<0.000000e+00> : vector<8x16x16xf32>
    %92 = tpu.matmul %89, %90, %cst_32 {dimension_numbers = #tpu.dot_dimension_numbers<[2], [2], [1], [1], [0, 0, 0, 1, 1, 1], [0], [0]>} : vector<8x16x8xf32>, vector<8x16x8xf32>, vector<8x16x16xf32> -> vector<8x16x16xf32>
    "tpu.trace_stop"() : () -> ()
    %93 = vector.extract_strided_slice %38 {offsets = [2, 0, 0], sizes = [1, 16, 16], strides = [1, 1, 1]} : vector<4x16x16xf32> to vector<1x16x16xf32>
    %94 = vector.shape_cast %93 : vector<1x16x16xf32> to vector<16x16xf32>
    %95 = vector.shape_cast %94 : vector<16x16xf32> to vector<1x16x16xf32>
    %96 = vector.broadcast %95 : vector<1x16x16xf32> to vector<8x16x16xf32>
    %97 = arith.addf %92, %96 : vector<8x16x16xf32>
    %cst_33 = arith.constant dense<0xFF800000> : vector<8x16xf32>
    %98 = vector.multi_reduction <maximumf>, %97, %cst_33 [2] : vector<8x16x16xf32> to vector<8x16xf32>
    %cst_34 = arith.constant 0xFF800000 : f32
    %99 = vector.broadcast %cst_34 : f32 to vector<8x16xf32>
    %100 = arith.maximumf %99, %98 : vector<8x16xf32>
    %101 = vector.shape_cast %100 : vector<8x16xf32> to vector<8x16x1xf32>
    %102 = vector.broadcast %101 : vector<8x16x1xf32> to vector<8x16x16xf32>
    %103 = arith.subf %97, %102 : vector<8x16x16xf32>
    %104 = math.exp %103 : vector<8x16x16xf32>
    %cst_35 = arith.constant dense<0.000000e+00> : vector<8x16xf32>
    %105 = vector.multi_reduction <add>, %104, %cst_35 [2] : vector<8x16x16xf32> to vector<8x16xf32>
    %106 = vector.shape_cast %105 : vector<8x16xf32> to vector<8x16x1xf32>
    %107 = vector.broadcast %106 : vector<8x16x1xf32> to vector<8x16x16xf32>
    %108 = arith.divf %104, %107 : vector<8x16x16xf32>
    "tpu.trace_start"() <{level = 10 : i32, message = "wnm,wmd->wnd"}> : () -> ()
    %cst_36 = arith.constant dense<0.000000e+00> : vector<8x16x8xf32>
    %109 = tpu.matmul %108, %91, %cst_36 {dimension_numbers = #tpu.dot_dimension_numbers<[2], [1], [1], [2], [0, 0, 0, 1, 1, 2], [0], [0]>} : vector<8x16x16xf32>, vector<8x16x8xf32>, vector<8x16x8xf32> -> vector<8x16x8xf32>
    "tpu.trace_stop"() : () -> ()
    %110 = vector.shape_cast %109 : vector<8x16x8xf32> to vector<128x8xf32>
    %111 = vector.extract_strided_slice %39 {offsets = [16, 0], sizes = [8, 32], strides = [1, 1]} : vector<32x32xf32> to vector<8x32xf32>
    %cst_37 = arith.constant dense<0.000000e+00> : vector<128x32xf32>
    %112 = tpu.matmul %110, %111, %cst_37 {dimension_numbers = #tpu.dot_dimension_numbers<[1], [0], [0], [1], [0, 0, 1, 1], [], []>} : vector<128x8xf32>, vector<8x32xf32>, vector<128x32xf32> -> vector<128x32xf32>
    %113 = arith.addf %88, %112 : vector<128x32xf32>
    %114 = vector.extract_strided_slice %37 {offsets = [0, 0, 24], sizes = [8, 16, 8], strides = [1, 1, 1]} : vector<8x16x96xf32> to vector<8x16x8xf32>
    %115 = vector.extract_strided_slice %37 {offsets = [0, 0, 56], sizes = [8, 16, 8], strides = [1, 1, 1]} : vector<8x16x96xf32> to vector<8x16x8xf32>
    %116 = vector.extract_strided_slice %37 {offsets = [0, 0, 88], sizes = [8, 16, 8], strides = [1, 1, 1]} : vector<8x16x96xf32> to vector<8x16x8xf32>
    "tpu.trace_start"() <{level = 10 : i32, message = "wnd,wmd->wnm"}> : () -> ()
    %cst_38 = arith.constant dense<0.000000e+00> : vector<8x16x16xf32>
    %117 = tpu.matmul %114, %115, %cst_38 {dimension_numbers = #tpu.dot_dimension_numbers<[2], [2], [1], [1], [0, 0, 0, 1, 1, 1], [0], [0]>} : vector<8x16x8xf32>, vector<8x16x8xf32>, vector<8x16x16xf32> -> vector<8x16x16xf32>
    "tpu.trace_stop"() : () -> ()
    %118 = vector.extract_strided_slice %38 {offsets = [3, 0, 0], sizes = [1, 16, 16], strides = [1, 1, 1]} : vector<4x16x16xf32> to vector<1x16x16xf32>
    %119 = vector.shape_cast %118 : vector<1x16x16xf32> to vector<16x16xf32>
    %120 = vector.shape_cast %119 : vector<16x16xf32> to vector<1x16x16xf32>
    %121 = vector.broadcast %120 : vector<1x16x16xf32> to vector<8x16x16xf32>
    %122 = arith.addf %117, %121 : vector<8x16x16xf32>
    %cst_39 = arith.constant dense<0xFF800000> : vector<8x16xf32>
    %123 = vector.multi_reduction <maximumf>, %122, %cst_39 [2] : vector<8x16x16xf32> to vector<8x16xf32>
    %cst_40 = arith.constant 0xFF800000 : f32
    %124 = vector.broadcast %cst_40 : f32 to vector<8x16xf32>
    %125 = arith.maximumf %124, %123 : vector<8x16xf32>
    %126 = vector.shape_cast %125 : vector<8x16xf32> to vector<8x16x1xf32>
    %127 = vector.broadcast %126 : vector<8x16x1xf32> to vector<8x16x16xf32>
    %128 = arith.subf %122, %127 : vector<8x16x16xf32>
    %129 = math.exp %128 : vector<8x16x16xf32>
    %cst_41 = arith.constant dense<0.000000e+00> : vector<8x16xf32>
    %130 = vector.multi_reduction <add>, %129, %cst_41 [2] : vector<8x16x16xf32> to vector<8x16xf32>
    %131 = vector.shape_cast %130 : vector<8x16xf32> to vector<8x16x1xf32>
    %132 = vector.broadcast %131 : vector<8x16x1xf32> to vector<8x16x16xf32>
    %133 = arith.divf %129, %132 : vector<8x16x16xf32>
    "tpu.trace_start"() <{level = 10 : i32, message = "wnm,wmd->wnd"}> : () -> ()
    %cst_42 = arith.constant dense<0.000000e+00> : vector<8x16x8xf32>
    %134 = tpu.matmul %133, %116, %cst_42 {dimension_numbers = #tpu.dot_dimension_numbers<[2], [1], [1], [2], [0, 0, 0, 1, 1, 2], [0], [0]>} : vector<8x16x16xf32>, vector<8x16x8xf32>, vector<8x16x8xf32> -> vector<8x16x8xf32>
    "tpu.trace_stop"() : () -> ()
    %135 = vector.shape_cast %134 : vector<8x16x8xf32> to vector<128x8xf32>
    %136 = vector.extract_strided_slice %39 {offsets = [24, 0], sizes = [8, 32], strides = [1, 1]} : vector<32x32xf32> to vector<8x32xf32>
    %cst_43 = arith.constant dense<0.000000e+00> : vector<128x32xf32>
    %137 = tpu.matmul %135, %136, %cst_43 {dimension_numbers = #tpu.dot_dimension_numbers<[1], [0], [0], [1], [0, 0, 1, 1], [], []>} : vector<128x8xf32>, vector<8x32xf32>, vector<128x32xf32> -> vector<128x32xf32>
    %138 = arith.addf %113, %137 : vector<128x32xf32>
    %c0_44 = arith.constant 0 : index
    %c0_45 = arith.constant 0 : index
    %139 = vector.load %arg7[%c0_44, %c0_45] : memref<1x32xf32, #tpu.memory_space<vmem>>, vector<1x32xf32>
    %140 = vector.shape_cast %139 : vector<1x32xf32> to vector<32xf32>
    %141 = vector.shape_cast %140 : vector<32xf32> to vector<1x32xf32>
    %142 = vector.broadcast %141 : vector<1x32xf32> to vector<128x32xf32>
    %143 = arith.addf %138, %142 : vector<128x32xf32>
    %144 = vector.shape_cast %143 : vector<128x32xf32> to vector<8x16x32xf32>
    %c0_46 = arith.constant 0 : index
    %c0_47 = arith.constant 0 : index
    %c0_48 = arith.constant 0 : index
    %145 = vector.load %arg9[%c0_46, %c0_47, %c0_48] : memref<8x16x32xf32, #tpu.memory_space<vmem>>, vector<8x16x32xf32>
    tpu.vector_store %arg9[%c0_46, %c0_47, %c0_48], %144 {strides = array<i32>} : memref<8x16x32xf32, #tpu.memory_space<vmem>>, vector<8x16x32xf32>,
    return
  }
  func.func @transform_0(%arg0: i32) -> (i32, i32, i32) {
    %c0_i32 = arith.constant 0 : i32
    %c0_i32_0 = arith.constant 0 : i32
    %c0_i32_1 = arith.constant 0 : i32
    return %arg0, %c0_i32, %c0_i32_0 : i32, i32, i32
  }
  func.func @transform_1(%arg0: i32) -> (i32, i32) {
    %c0_i32 = arith.constant 0 : i32
    %c0_i32_0 = arith.constant 0 : i32
    %c0_i32_1 = arith.constant 0 : i32
    return %c0_i32, %c0_i32_0 : i32, i32
  }
  func.func @transform_2(%arg0: i32) -> (i32, i32) {
    %c0_i32 = arith.constant 0 : i32
    %c0_i32_0 = arith.constant 0 : i32
    %c0_i32_1 = arith.constant 0 : i32
    return %c0_i32, %c0_i32_0 : i32, i32
  }
  func.func @transform_3(%arg0: i32) -> (i32, i32) {
    %c0_i32 = arith.constant 0 : i32
    %c0_i32_0 = arith.constant 0 : i32
    %c0_i32_1 = arith.constant 0 : i32
    return %c0_i32, %c0_i32_0 : i32, i32
  }
  func.func @transform_4(%arg0: i32) -> (i32, i32) {
    %c0_i32 = arith.constant 0 : i32
    %c0_i32_0 = arith.constant 0 : i32
    %c0_i32_1 = arith.constant 0 : i32
    return %c0_i32, %c0_i32_0 : i32, i32
  }
  func.func @transform_5(%arg0: i32) -> (i32, i32) {
    %c0_i32 = arith.constant 0 : i32
    %c0_i32_0 = arith.constant 0 : i32
    %c0_i32_1 = arith.constant 0 : i32
    return %c0_i32, %c0_i32_0 : i32, i32
  }
  func.func @transform_6(%arg0: i32) -> (i32, i32) {
    %c0_i32 = arith.constant 0 : i32
    %c0_i32_0 = arith.constant 0 : i32
    %c0_i32_1 = arith.constant 0 : i32
    return %c0_i32, %c0_i32_0 : i32, i32
  }
  func.func @transform_7(%arg0: i32) -> (i32, i32, i32) {
    %c0_i32 = arith.constant 0 : i32
    %c0_i32_0 = arith.constant 0 : i32
    %c0_i32_1 = arith.constant 0 : i32
    %c0_i32_2 = arith.constant 0 : i32
    return %c0_i32, %c0_i32_0, %c0_i32_1 : i32, i32, i32
  }
  func.func @transform_8(%arg0: i32) -> (i32, i32, i32) {
    %c0_i32 = arith.constant 0 : i32
    %c0_i32_0 = arith.constant 0 : i32
    %c0_i32_1 = arith.constant 0 : i32
    return %arg0, %c0_i32, %c0_i32_0 : i32, i32, i32
  }
}

</mosaic_0001>

<llo_original>
// kernel: tpu_custom_call.1
$region0: #{tpu_custom_call.1}
  #allocation0 [shape = 'u32[]', space=smem, size = 0x4, offset = 0x4, fixed_abs, tag = 'smem constant byte address 0x4 - core index']
  #allocation1 [shape = 'u32[144,128]{1,0:T(1,128)}', space=vmem, size = 0x12000, scoped, tag = 'internal scratch']
  %s0 = inlined_call_operand.hbm [shape: f32[8,16,32], index: 0, kind: input, shape index: {}]
  %s1 = inlined_call_operand.vmem [shape: f32[1,32], index: 1, kind: input, shape index: {}]
  %s2 = inlined_call_operand.vmem [shape: f32[1,32], index: 2, kind: input, shape index: {}]
  %s3 = inlined_call_operand.hbm [shape: f32[32,96], index: 3, kind: input, shape index: {}]
  %s4 = inlined_call_operand.vmem [shape: f32[1,96], index: 4, kind: input, shape index: {}]
  %s5 = inlined_call_operand.hbm [shape: f32[32,32], index: 5, kind: input, shape index: {}]
  %s6 = inlined_call_operand.vmem [shape: f32[1,32], index: 6, kind: input, shape index: {}]
  %s7 = inlined_call_operand.hbm [shape: f32[4,16,16], index: 7, kind: input, shape index: {}]
  %s8 = inlined_call_operand.hbm [shape: f32[8,16,32], index: 8, kind: output, shape index: {}]
  %s9 = sld [smem:[#allocation0]]
  $region58: #{tpu_custom_call.1} parent=0
    _
  %s11 = ssub.s32 1, %s9
  %s12 = scalar_select 0, %s11, %s9
  $region1: #{tpu_custom_call.1} parent=0
    #allocation2 [shape = 'u8[65536]{0}', space=vmem, size = 0x10000, scoped, tag = 'input window, operand 0, single buffered']
    #allocation3 [shape = 's32[1]{0}', space=sflag, size = 0x4, scoped, tag = 'scoped memory for tpu_custom_call.1']
    #allocation4 [shape = 's32[1]{0}', space=sflag, size = 0x4, scoped, tag = 'scoped memory for tpu_custom_call.1']
    #allocation5 [shape = 'u8[16384]{0}', space=vmem, size = 0x4000, scoped, tag = 'input window, operand 3, single buffered']
    #allocation6 [shape = 's32[1]{0}', space=sflag, size = 0x4, scoped, tag = 'scoped memory for tpu_custom_call.1']
    #allocation7 [shape = 'u8[16384]{0}', space=vmem, size = 0x4000, scoped, tag = 'input window, operand 5, single buffered']
    #allocation8 [shape = 'u8[32768]{0}', space=vmem, size = 0x8000, scoped, tag = 'input window, operand 7, single buffered']
    #allocation9 [shape = 's32[1]{0}', space=sflag, size = 0x4, scoped, tag = 'scoped memory for tpu_custom_call.1']
    #allocation10 [shape = 'u8[65536]{0}', space=vmem, size = 0x10000, scoped, tag = 'output window, operand 0, single buffered']
    %13 = vsyncpa [#allocation3], 0
    %14 = vsyncpa [#allocation6], 0
    %15 = vsyncpa [#allocation9], 0
    %16 = vsyncpa [#allocation4], 0
    // Predicated region
    $region2: #{tpu_custom_call.1} parent=1 // pred_check
      _
    $region3: #{tpu_custom_call.1} parent=1 // pred_check_branch
      %18 = sbr.rel (0) target = $region5
    $region4: #{tpu_custom_call.1} parent=1 // pred_region
      %s20 = ssub.s32 2048, 2048
      %21 = vsyncadd [#allocation3], %s20
      %s22 = sshll.u32 [#allocation2], 4
      %s23 = int_to_ptr.vmem [resolvable:$true] %s22
      %28 = dma.hbm_to_vmem [thread:$0]  %s0, 2048, %s23, [#allocation3], 128, 128, 8
    $region5: #{tpu_custom_call.1} parent=1 // pred_fallthru
      _
    // Predicated region
    $region6: #{tpu_custom_call.1} parent=1 // pred_check
      _
    $region7: #{tpu_custom_call.1} parent=1 // pred_check_branch
      %30 = sbr.rel (0) target = $region9
    $region8: #{tpu_custom_call.1} parent=1 // pred_region
      _
    $region9: #{tpu_custom_call.1} parent=1 // pred_fallthru
      _
    // Predicated region
    $region10: #{tpu_custom_call.1} parent=1 // pred_check
      _
    $region11: #{tpu_custom_call.1} parent=1 // pred_check_branch
      %32 = sbr.rel (0) target = $region13
    $region12: #{tpu_custom_call.1} parent=1 // pred_region
      _
    $region13: #{tpu_custom_call.1} parent=1 // pred_fallthru
      _
    // Predicated region
    $region14: #{tpu_custom_call.1} parent=1 // pred_check
      _
    $region15: #{tpu_custom_call.1} parent=1 // pred_check_branch
      %34 = sbr.rel (0) target = $region17
    $region16: #{tpu_custom_call.1} parent=1 // pred_region
      %s36 = ssub.s32 512, 512
      %37 = vsyncadd [#allocation6], %s36
      %s38 = sshll.u32 [#allocation5], 4
      %s39 = int_to_ptr.vmem [resolvable:$true] %s38
      %44 = dma.hbm_to_vmem [thread:$0]  %s3, 512, %s39, [#allocation6], 128, 128, 8
    $region17: #{tpu_custom_call.1} parent=1 // pred_fallthru
      _
    // Predicated region
    $region18: #{tpu_custom_call.1} parent=1 // pred_check
      _
    $region19: #{tpu_custom_call.1} parent=1 // pred_check_branch
      %46 = sbr.rel (0) target = $region21
    $region20: #{tpu_custom_call.1} parent=1 // pred_region
      _
    $region21: #{tpu_custom_call.1} parent=1 // pred_fallthru
      _
    // Predicated region
    $region22: #{tpu_custom_call.1} parent=1 // pred_check
      _
    $region23: #{tpu_custom_call.1} parent=1 // pred_check_branch
      %48 = sbr.rel (0) target = $region25
    $region24: #{tpu_custom_call.1} parent=1 // pred_region
      %s50 = ssub.s32 512, 512
      %51 = vsyncadd [#allocation6], %s50
      %s52 = sshll.u32 [#allocation7], 4
      %s53 = int_to_ptr.vmem [resolvable:$true] %s52
      %58 = dma.hbm_to_vmem [thread:$0]  %s5, 512, %s53, [#allocation6], 128, 128, 8
    $region25: #{tpu_custom_call.1} parent=1 // pred_fallthru
      _
    // Predicated region
    $region26: #{tpu_custom_call.1} parent=1 // pred_check
      _
    $region27: #{tpu_custom_call.1} parent=1 // pred_check_branch
      %60 = sbr.rel (0) target = $region29
    $region28: #{tpu_custom_call.1} parent=1 // pred_region
      _
    $region29: #{tpu_custom_call.1} parent=1 // pred_fallthru
      _
    // Predicated region
    $region30: #{tpu_custom_call.1} parent=1 // pred_check
      _
    $region31: #{tpu_custom_call.1} parent=1 // pred_check_branch
      %62 = sbr.rel (0) target = $region33
    $region32: #{tpu_custom_call.1} parent=1 // pred_region
      %s64 = ssub.s32 1024, 1024
      %65 = vsyncadd [#allocation9], %s64
      %s66 = sshll.u32 [#allocation8], 4
      %s67 = int_to_ptr.vmem [resolvable:$true] %s66
      %72 = dma.hbm_to_vmem [thread:$0]  %s7, 1024, %s67, [#allocation9], 128, 128, 8
    $region33: #{tpu_custom_call.1} parent=1 // pred_fallthru
      _
    // Predicated region
    $region34: #{tpu_custom_call.1} parent=1 // pred_check
      _
    $region35: #{tpu_custom_call.1} parent=1 // pred_check_branch
      %74 = sbr.rel (0) target = $region37
    $region36: #{tpu_custom_call.1} parent=1 // pred_region
      %75 = dma.done [#allocation3], 2048
    $region37: #{tpu_custom_call.1} parent=1 // pred_fallthru
      _
    // Predicated region
    $region38: #{tpu_custom_call.1} parent=1 // pred_check
      _
    $region39: #{tpu_custom_call.1} parent=1 // pred_check_branch
      %77 = sbr.rel (0) target = $region41
    $region40: #{tpu_custom_call.1} parent=1 // pred_region
      %78 = dma.done [#allocation6], 512
    $region41: #{tpu_custom_call.1} parent=1 // pred_fallthru
      _
    // Predicated region
    $region42: #{tpu_custom_call.1} parent=1 // pred_check
      _
    $region43: #{tpu_custom_call.1} parent=1 // pred_check_branch
      %80 = sbr.rel (0) target = $region45
    $region44: #{tpu_custom_call.1} parent=1 // pred_region
      %81 = dma.done [#allocation6], 512
    $region45: #{tpu_custom_call.1} parent=1 // pred_fallthru
      _
    // Predicated region
    $region46: #{tpu_custom_call.1} parent=1 // pred_check
      _
    $region47: #{tpu_custom_call.1} parent=1 // pred_check_branch
      %83 = sbr.rel (0) target = $region49
    $region48: #{tpu_custom_call.1} parent=1 // pred_region
      %84 = dma.done [#allocation9], 1024
    $region49: #{tpu_custom_call.1} parent=1 // pred_fallthru
      _
    %v85 = vld [vmem:[#allocation2] sm:$0xff]
    %v86 = vld [vmem:[#allocation2 + $0x8] sm:$0xff]
    %v87 = vld [vmem:[#allocation2 + $0x10] sm:$0xff]
    %v88 = vld [vmem:[#allocation2 + $0x18] sm:$0xff]
    %v89 = vld [vmem:[#allocation2 + $0x20] sm:$0xff]
    %v90 = vld [vmem:[#allocation2 + $0x28] sm:$0xff]
    %v91 = vld [vmem:[#allocation2 + $0x30] sm:$0xff]
    %v92 = vld [vmem:[#allocation2 + $0x38] sm:$0xff]
    %v93 = vld [vmem:[#allocation2 + $0x40] sm:$0xff]
    %v94 = vld [vmem:[#allocation2 + $0x48] sm:$0xff]
    %v95 = vld [vmem:[#allocation2 + $0x50] sm:$0xff]
    %v96 = vld [vmem:[#allocation2 + $0x58] sm:$0xff]
    %v97 = vld [vmem:[#allocation2 + $0x60] sm:$0xff]
    %v98 = vld [vmem:[#allocation2 + $0x68] sm:$0xff]
    %v99 = vld [vmem:[#allocation2 + $0x70] sm:$0xff]
    %v100 = vld [vmem:[#allocation2 + $0x78] sm:$0xff]
    %vm101 = vcmask 261120
    %v102 = vsel %vm101, %v85, 0.0
    %103 = vadd.xlane.f32.xlu0 %v102
    %v104 = vpop.xlane.xlu0 %103
    %v105 = vsel %vm101, %v86, 0.0
    %106 = vadd.xlane.f32.xlu0 %v105
    %v107 = vpop.xlane.xlu0 %106
    %v108 = vsel %vm101, %v87, 0.0
    %109 = vadd.xlane.f32.xlu0 %v108
    %v110 = vpop.xlane.xlu0 %109
    %v111 = vsel %vm101, %v88, 0.0
    %112 = vadd.xlane.f32.xlu0 %v111
    %v113 = vpop.xlane.xlu0 %112
    %v114 = vsel %vm101, %v89, 0.0
    %115 = vadd.xlane.f32.xlu0 %v114
    %v116 = vpop.xlane.xlu0 %115
    %v117 = vsel %vm101, %v90, 0.0
    %118 = vadd.xlane.f32.xlu0 %v117
    %v119 = vpop.xlane.xlu0 %118
    %v120 = vsel %vm101, %v91, 0.0
    %121 = vadd.xlane.f32.xlu0 %v120
    %v122 = vpop.xlane.xlu0 %121
    %v123 = vsel %vm101, %v92, 0.0
    %124 = vadd.xlane.f32.xlu0 %v123
    %v125 = vpop.xlane.xlu0 %124
    %v126 = vsel %vm101, %v93, 0.0
    %127 = vadd.xlane.f32.xlu0 %v126
    %v128 = vpop.xlane.xlu0 %127
    %v129 = vsel %vm101, %v94, 0.0
    %130 = vadd.xlane.f32.xlu0 %v129
    %v131 = vpop.xlane.xlu0 %130
    %v132 = vsel %vm101, %v95, 0.0
    %133 = vadd.xlane.f32.xlu0 %v132
    %v134 = vpop.xlane.xlu0 %133
    %v135 = vsel %vm101, %v96, 0.0
    %136 = vadd.xlane.f32.xlu0 %v135
    %v137 = vpop.xlane.xlu0 %136
    %v138 = vsel %vm101, %v97, 0.0
    %139 = vadd.xlane.f32.xlu0 %v138
    %v140 = vpop.xlane.xlu0 %139
    %v141 = vsel %vm101, %v98, 0.0
    %142 = vadd.xlane.f32.xlu0 %v141
    %v143 = vpop.xlane.xlu0 %142
    %v144 = vsel %vm101, %v99, 0.0
    %145 = vadd.xlane.f32.xlu0 %v144
    %v146 = vpop.xlane.xlu0 %145
    %v147 = vsel %vm101, %v100, 0.0
    %148 = vadd.xlane.f32.xlu0 %v147
    %v149 = vpop.xlane.xlu0 %148
    %v150 = vrcp.pop 32.0
    %v151 = vmul.f32 %v104, %v150
    %v152 = vmul.f32 %v107, %v150
    %v153 = vmul.f32 %v110, %v150
    %v154 = vmul.f32 %v113, %v150
    %v155 = vmul.f32 %v116, %v150
    %v156 = vmul.f32 %v119, %v150
    %v157 = vmul.f32 %v122, %v150
    %v158 = vmul.f32 %v125, %v150
    %v159 = vmul.f32 %v128, %v150
    %v160 = vmul.f32 %v131, %v150
    %v161 = vmul.f32 %v134, %v150
    %v162 = vmul.f32 %v137, %v150
    %v163 = vmul.f32 %v140, %v150
    %v164 = vmul.f32 %v143, %v150
    %v165 = vmul.f32 %v146, %v150
    %v166 = vmul.f32 %v149, %v150
    %v167 = vsub.f32 %v85, %v151
    %v168 = vsub.f32 %v86, %v152
    %v169 = vsub.f32 %v87, %v153
    %v170 = vsub.f32 %v88, %v154
    %v171 = vsub.f32 %v89, %v155
    %v172 = vsub.f32 %v90, %v156
    %v173 = vsub.f32 %v91, %v157
    %v174 = vsub.f32 %v92, %v158
    %v175 = vsub.f32 %v93, %v159
    %v176 = vsub.f32 %v94, %v160
    %v177 = vsub.f32 %v95, %v161
    %v178 = vsub.f32 %v96, %v162
    %v179 = vsub.f32 %v97, %v163
    %v180 = vsub.f32 %v98, %v164
    %v181 = vsub.f32 %v99, %v165
    %v182 = vsub.f32 %v100, %v166
    %v183 = vmul.f32 %v167, %v167
    %v184 = vmul.f32 %v168, %v168
    %v185 = vmul.f32 %v169, %v169
    %v186 = vmul.f32 %v170, %v170
    %v187 = vmul.f32 %v171, %v171
    %v188 = vmul.f32 %v172, %v172
    %v189 = vmul.f32 %v173, %v173
    %v190 = vmul.f32 %v174, %v174
    %v191 = vmul.f32 %v175, %v175
    %v192 = vmul.f32 %v176, %v176
    %v193 = vmul.f32 %v177, %v177
    %v194 = vmul.f32 %v178, %v178
    %v195 = vmul.f32 %v179, %v179
    %v196 = vmul.f32 %v180, %v180
    %v197 = vmul.f32 %v181, %v181
    %v198 = vmul.f32 %v182, %v182
    %v199 = vsel %vm101, %v183, 0.0
    %200 = vadd.xlane.f32.xlu0 %v199
    %v201 = vpop.xlane.xlu0 %200
    %v202 = vsel %vm101, %v184, 0.0
    %203 = vadd.xlane.f32.xlu0 %v202
    %v204 = vpop.xlane.xlu0 %203
    %v205 = vsel %vm101, %v185, 0.0
    %206 = vadd.xlane.f32.xlu0 %v205
    %v207 = vpop.xlane.xlu0 %206
    %v208 = vsel %vm101, %v186, 0.0
    %209 = vadd.xlane.f32.xlu0 %v208
    %v210 = vpop.xlane.xlu0 %209
    %v211 = vsel %vm101, %v187, 0.0
    %212 = vadd.xlane.f32.xlu0 %v211
    %v213 = vpop.xlane.xlu0 %212
    %v214 = vsel %vm101, %v188, 0.0
    %215 = vadd.xlane.f32.xlu0 %v214
    %v216 = vpop.xlane.xlu0 %215
    %v217 = vsel %vm101, %v189, 0.0
    %218 = vadd.xlane.f32.xlu0 %v217
    %v219 = vpop.xlane.xlu0 %218
    %v220 = vsel %vm101, %v190, 0.0
    %221 = vadd.xlane.f32.xlu0 %v220
    %v222 = vpop.xlane.xlu0 %221
    %v223 = vsel %vm101, %v191, 0.0
    %224 = vadd.xlane.f32.xlu0 %v223
    %v225 = vpop.xlane.xlu0 %224
    %v226 = vsel %vm101, %v192, 0.0
    %227 = vadd.xlane.f32.xlu0 %v226
    %v228 = vpop.xlane.xlu0 %227
    %v229 = vsel %vm101, %v193, 0.0
    %230 = vadd.xlane.f32.xlu0 %v229
    %v231 = vpop.xlane.xlu0 %230
    %v232 = vsel %vm101, %v194, 0.0
    %233 = vadd.xlane.f32.xlu0 %v232
    %v234 = vpop.xlane.xlu0 %233
    %v235 = vsel %vm101, %v195, 0.0
    %236 = vadd.xlane.f32.xlu0 %v235
    %v237 = vpop.xlane.xlu0 %236
    %v238 = vsel %vm101, %v196, 0.0
    %239 = vadd.xlane.f32.xlu0 %v238
    %v240 = vpop.xlane.xlu0 %239
    %v241 = vsel %vm101, %v197, 0.0
    %242 = vadd.xlane.f32.xlu0 %v241
    %v243 = vpop.xlane.xlu0 %242
    %v244 = vsel %vm101, %v198, 0.0
    %245 = vadd.xlane.f32.xlu0 %v244
    %v246 = vpop.xlane.xlu0 %245
    %v247 = vmul.f32 %v201, %v150
    %v248 = vmul.f32 %v204, %v150
    %v249 = vmul.f32 %v207, %v150
    %v250 = vmul.f32 %v210, %v150
    %v251 = vmul.f32 %v213, %v150
    %v252 = vmul.f32 %v216, %v150
    %v253 = vmul.f32 %v219, %v150
    %v254 = vmul.f32 %v222, %v150
    %v255 = vmul.f32 %v225, %v150
    %v256 = vmul.f32 %v228, %v150
    %v257 = vmul.f32 %v231, %v150
    %v258 = vmul.f32 %v234, %v150
    %v259 = vmul.f32 %v237, %v150
    %v260 = vmul.f32 %v240, %v150
    %v261 = vmul.f32 %v243, %v150
    %v262 = vmul.f32 %v246, %v150
    %v263 = vadd.f32 %v247, 1e-05
    %v264 = vadd.f32 %v248, 1e-05
    %v265 = vadd.f32 %v249, 1e-05
    %v266 = vadd.f32 %v250, 1e-05
    %v267 = vadd.f32 %v251, 1e-05
    %v268 = vadd.f32 %v252, 1e-05
    %v269 = vadd.f32 %v253, 1e-05
    %v270 = vadd.f32 %v254, 1e-05
    %v271 = vadd.f32 %v255, 1e-05
    %v272 = vadd.f32 %v256, 1e-05
    %v273 = vadd.f32 %v257, 1e-05
    %v274 = vadd.f32 %v258, 1e-05
    %v275 = vadd.f32 %v259, 1e-05
    %v276 = vadd.f32 %v260, 1e-05
    %v277 = vadd.f32 %v261, 1e-05
    %v278 = vadd.f32 %v262, 1e-05
    %v279 = vrsqrt.pop %v263
    %v280 = vrsqrt.pop %v264
    %v281 = vrsqrt.pop %v265
    %v282 = vrsqrt.pop %v266
    %v283 = vrsqrt.pop %v267
    %v284 = vrsqrt.pop %v268
    %v285 = vrsqrt.pop %v269
    %v286 = vrsqrt.pop %v270
    %v287 = vrsqrt.pop %v271
    %v288 = vrsqrt.pop %v272
    %v289 = vrsqrt.pop %v273
    %v290 = vrsqrt.pop %v274
    %v291 = vrsqrt.pop %v275
    %v292 = vrsqrt.pop %v276
    %v293 = vrsqrt.pop %v277
    %v294 = vrsqrt.pop %v278
    %v295 = vmul.f32 %v167, %v279
    %v296 = vmul.f32 %v168, %v280
    %v297 = vmul.f32 %v169, %v281
    %v298 = vmul.f32 %v170, %v282
    %v299 = vmul.f32 %v171, %v283
    %v300 = vmul.f32 %v172, %v284
    %v301 = vmul.f32 %v173, %v285
    %v302 = vmul.f32 %v174, %v286
    %v303 = vmul.f32 %v175, %v287
    %v304 = vmul.f32 %v176, %v288
    %v305 = vmul.f32 %v177, %v289
    %v306 = vmul.f32 %v178, %v290
    %v307 = vmul.f32 %v179, %v291
    %v308 = vmul.f32 %v180, %v292
    %v309 = vmul.f32 %v181, %v293
    %v310 = vmul.f32 %v182, %v294
    %v311 = vld [vmem:[%s1] sm:$0x1]
    %v313 = vlaneseq
    %v314 = vshrl.u32 %v313, 7
    %v315 = vsub.s32 0, %v314
    %v316 = vrot.slane %v311, %v315
    %v318 = vmul.f32 %v295, %v316
    %v319 = vmul.f32 %v296, %v316
    %v320 = vmul.f32 %v297, %v316
    %v321 = vmul.f32 %v298, %v316
    %v322 = vmul.f32 %v299, %v316
    %v323 = vmul.f32 %v300, %v316
    %v324 = vmul.f32 %v301, %v316
    %v325 = vmul.f32 %v302, %v316
    %v326 = vmul.f32 %v303, %v316
    %v327 = vmul.f32 %v304, %v316
    %v328 = vmul.f32 %v305, %v316
    %v329 = vmul.f32 %v306, %v316
    %v330 = vmul.f32 %v307, %v316
    %v331 = vmul.f32 %v308, %v316
    %v332 = vmul.f32 %v309, %v316
    %v333 = vmul.f32 %v310, %v316
    %v334 = vld [vmem:[%s2] sm:$0x1]
    %v336 = vlaneseq
    %v337 = vshrl.u32 %v336, 7
    %v338 = vsub.s32 0, %v337
    %v339 = vrot.slane %v334, %v338
    %v341 = vadd.f32 %v318, %v339
    %v342 = vadd.f32 %v319, %v339
    %v343 = vadd.f32 %v320, %v339
    %v344 = vadd.f32 %v321, %v339
    %v345 = vadd.f32 %v322, %v339
    %v346 = vadd.f32 %v323, %v339
    %v347 = vadd.f32 %v324, %v339
    %v348 = vadd.f32 %v325, %v339
    %v349 = vadd.f32 %v326, %v339
    %v350 = vadd.f32 %v327, %v339
    %v351 = vadd.f32 %v328, %v339
    %v352 = vadd.f32 %v329, %v339
    %v353 = vadd.f32 %v330, %v339
    %v354 = vadd.f32 %v331, %v339
    %v355 = vadd.f32 %v332, %v339
    %v356 = vadd.f32 %v333, %v339
    %v357 = vld [vmem:[#allocation5] sm:$0xff]
    %v358 = vld [vmem:[#allocation5 + $0x8] sm:$0xff]
    %v359 = vld [vmem:[#allocation5 + $0x10] sm:$0xff]
    %v360 = vld [vmem:[#allocation5 + $0x18] sm:$0xff]
    %v361 = vld [vmem:[%s4] sm:$0x1]
    %v363 = vlaneseq
    %v364 = vshrl.u32 %v363, 7
    %v365 = vsub.s32 0, %v364
    %v366 = vrot.slane %v361, %v365
    %v369 = vsel %vm101, %v341, 0
    %v372 = vsel %vm101, %v342, 0
    %v375 = vsel %vm101, %v343, 0
    %v378 = vsel %vm101, %v344, 0
    %v381 = vsel %vm101, %v345, 0
    %v384 = vsel %vm101, %v346, 0
    %v387 = vsel %vm101, %v347, 0
    %v390 = vsel %vm101, %v348, 0
    %v393 = vsel %vm101, %v349, 0
    %v396 = vsel %vm101, %v350, 0
    %v399 = vsel %vm101, %v351, 0
    %v402 = vsel %vm101, %v352, 0
    %v405 = vsel %vm101, %v353, 0
    %v408 = vsel %vm101, %v354, 0
    %v411 = vsel %vm101, %v355, 0
    %v414 = vsel %vm101, %v356, 0
    %416 = vmatprep.subr.mxu0 0.0
    %417 = vmatpush1.msra.mxu0 %v357
    %418 = vmatprep.subr.mxu0 0.0
    %419 = vmatpush1.msra.mxu0 %v358
    %420 = vmatprep.subr.mxu0 0.0
    %421 = vmatpush1.msra.mxu0 %v359
    %422 = vmatprep.subr.mxu0 0.0
    %423 = vmatpush1.msra.mxu0 %v360
    %424 = vmatprep.subr.mxu0 0.0
    %425 = vmatpush1.msra.mxu0 0.0
    %426 = vmatprep.subr.mxu0 0.0
    %427 = vmatpush1.msra.mxu0 0.0
    %428 = vmatprep.subr.mxu0 0.0
    %429 = vmatpush1.msra.mxu0 0.0
    %430 = vmatprep.subr.mxu0 0.0
    %431 = vmatpush1.msra.mxu0 0.0
    %432 = vmatprep.subr.mxu0 0.0
    %433 = vmatpush1.msra.mxu0 0.0
    %434 = vmatprep.subr.mxu0 0.0
    %435 = vmatpush1.msra.mxu0 0.0
    %436 = vmatprep.subr.mxu0 0.0
    %437 = vmatpush1.msra.mxu0 0.0
    %438 = vmatprep.subr.mxu0 0.0
    %439 = vmatpush1.msra.mxu0 0.0
    %440 = vmatprep.subr.mxu0 0.0
    %441 = vmatpush1.msra.mxu0 0.0
    %442 = vmatprep.subr.mxu0 0.0
    %443 = vmatpush1.msra.mxu0 0.0
    %444 = vmatprep.subr.mxu0 0.0
    %445 = vmatpush1.msra.mxu0 0.0
    %446 = vmatprep.subr.mxu0 0.0
    %447 = vmatpush1.msra.mxu0 0.0
    %448 = vmatprep.subr.mxu0 0.0
    %449 = vmatpush1.msra.mxu0 0.0
    %450 = vmatprep.subr.mxu0 0.0
    %451 = vmatpush1.msra.mxu0 0.0
    %452 = vmatprep.subr.mxu0 0.0
    %453 = vmatpush1.msra.mxu0 0.0
    %454 = vmatprep.subr.mxu0 0.0
    %455 = vmatpush1.msra.mxu0 0.0
    %456 = vmatprep.subr.mxu0 0.0
    %457 = vmatpush1.msra.mxu0 0.0
    %458 = vmatprep.subr.mxu0 0.0
    %459 = vmatpush1.msra.mxu0 0.0
    %460 = vmatprep.subr.mxu0 0.0
    %461 = vmatpush1.msra.mxu0 0.0
    %462 = vmatprep.subr.mxu0 0.0
    %463 = vmatpush1.msra.mxu0 0.0
    %464 = vmatprep.subr.mxu0 0.0
    %465 = vmatpush1.msra.mxu0 0.0
    %466 = vmatprep.subr.mxu0 0.0
    %467 = vmatpush1.msra.mxu0 0.0
    %468 = vmatprep.subr.mxu0 0.0
    %469 = vmatpush1.msra.mxu0 0.0
    %470 = vmatprep.subr.mxu0 0.0
    %471 = vmatpush1.msra.mxu0 0.0
    %472 = vmatprep.subr.mxu0 0.0
    %473 = vmatpush1.msra.mxu0 0.0
    %474 = vmatprep.subr.mxu0 0.0
    %475 = vmatpush1.msra.mxu0 0.0
    %476 = vmatprep.subr.mxu0 0.0
    %477 = vmatpush1.msra.mxu0 0.0
    %478 = vmatprep.subr.mxu0 0.0
    %479 = vmatpush1.msra.mxu0 0.0
    %480 = vmatprep.mubr.f32.mxu0 0.0
    %481 = vmatmul.mubr.f32.gmra.mrb[0].mxu0 %v369
    %v482 = vpop.f32.mrb[0].mxu0
    %v483 = vadd.f32 %v366, %v482
    %v484 = vpop.f32.mrb[0].mxu0
    %485 = vmatprep.mubr.f32.mxu0 0.0
    %486 = vmatmul.mubr.f32.gmra.mrb[0].mxu0 %v372
    %v487 = vpop.f32.mrb[0].mxu0
    %v488 = vadd.f32 %v366, %v487
    %v489 = vpop.f32.mrb[0].mxu0
    %490 = vmatprep.mubr.f32.mxu0 0.0
    %491 = vmatmul.mubr.f32.gmra.mrb[0].mxu0 %v375
    %v492 = vpop.f32.mrb[0].mxu0
    %v493 = vadd.f32 %v366, %v492
    %v494 = vpop.f32.mrb[0].mxu0
    %495 = vmatprep.mubr.f32.mxu0 0.0
    %496 = vmatmul.mubr.f32.gmra.mrb[0].mxu0 %v378
    %v497 = vpop.f32.mrb[0].mxu0
    %v498 = vadd.f32 %v366, %v497
    %v499 = vpop.f32.mrb[0].mxu0
    %500 = vmatprep.mubr.f32.mxu0 0.0
    %501 = vmatmul.mubr.f32.gmra.mrb[0].mxu0 %v381
    %v502 = vpop.f32.mrb[0].mxu0
    %v503 = vadd.f32 %v366, %v502
    %v504 = vpop.f32.mrb[0].mxu0
    %505 = vmatprep.mubr.f32.mxu0 0.0
    %506 = vmatmul.mubr.f32.gmra.mrb[0].mxu0 %v384
    %v507 = vpop.f32.mrb[0].mxu0
    %v508 = vadd.f32 %v366, %v507
    %v509 = vpop.f32.mrb[0].mxu0
    %510 = vmatprep.mubr.f32.mxu0 0.0
    %511 = vmatmul.mubr.f32.gmra.mrb[0].mxu0 %v387
    %v512 = vpop.f32.mrb[0].mxu0
    %v513 = vadd.f32 %v366, %v512
    %v514 = vpop.f32.mrb[0].mxu0
    %515 = vmatprep.mubr.f32.mxu0 0.0
    %516 = vmatmul.mubr.f32.gmra.mrb[0].mxu0 %v390
    %v517 = vpop.f32.mrb[0].mxu0
    %v518 = vadd.f32 %v366, %v517
    %v519 = vpop.f32.mrb[0].mxu0
    %520 = vmatprep.mubr.f32.mxu0 0.0
    %521 = vmatmul.mubr.f32.gmra.mrb[0].mxu0 %v393
    %v522 = vpop.f32.mrb[0].mxu0
    %v523 = vadd.f32 %v366, %v522
    %v524 = vpop.f32.mrb[0].mxu0
    %525 = vmatprep.mubr.f32.mxu0 0.0
    %526 = vmatmul.mubr.f32.gmra.mrb[0].mxu0 %v396
    %v527 = vpop.f32.mrb[0].mxu0
    %v528 = vadd.f32 %v366, %v527
    %v529 = vpop.f32.mrb[0].mxu0
    %530 = vmatprep.mubr.f32.mxu0 0.0
    %531 = vmatmul.mubr.f32.gmra.mrb[0].mxu0 %v399
    %v532 = vpop.f32.mrb[0].mxu0
    %v533 = vadd.f32 %v366, %v532
    %v534 = vpop.f32.mrb[0].mxu0
    %535 = vmatprep.mubr.f32.mxu0 0.0
    %536 = vmatmul.mubr.f32.gmra.mrb[0].mxu0 %v402
    %v537 = vpop.f32.mrb[0].mxu0
    %v538 = vadd.f32 %v366, %v537
    %v539 = vpop.f32.mrb[0].mxu0
    %540 = vmatprep.mubr.f32.mxu0 0.0
    %541 = vmatmul.mubr.f32.gmra.mrb[0].mxu0 %v405
    %v542 = vpop.f32.mrb[0].mxu0
    %v543 = vadd.f32 %v366, %v542
    %v544 = vpop.f32.mrb[0].mxu0
    %545 = vmatprep.mubr.f32.mxu0 0.0
    %546 = vmatmul.mubr.f32.gmra.mrb[0].mxu0 %v408
    %v547 = vpop.f32.mrb[0].mxu0
    %v548 = vadd.f32 %v366, %v547
    %v549 = vpop.f32.mrb[0].mxu0
    %550 = vmatprep.mubr.f32.mxu0 0.0
    %551 = vmatmul.mubr.f32.gmra.mrb[0].mxu0 %v411
    %v552 = vpop.f32.mrb[0].mxu0
    %v553 = vadd.f32 %v366, %v552
    %v554 = vpop.f32.mrb[0].mxu0
    %555 = vmatprep.mubr.f32.mxu0 0.0
    %556 = vmatmul.mubr.f32.gmra.mrb[0].mxu0 %v414
    %v557 = vpop.f32.mrb[0].mxu0
    %v558 = vadd.f32 %v366, %v557
    %v559 = vpop.f32.mrb[0].mxu0
    %560 = vdwg.mxu0
    %v561 = vld [vmem:[#allocation8] sm:$0xff]
    %v562 = vld [vmem:[#allocation8 + $0x8] sm:$0xff]
    %v563 = vld [vmem:[#allocation8 + $0x10] sm:$0xff]
    %v564 = vld [vmem:[#allocation8 + $0x18] sm:$0xff]
    %v565 = vld [vmem:[#allocation8 + $0x20] sm:$0xff]
    %v566 = vld [vmem:[#allocation8 + $0x28] sm:$0xff]
    %v567 = vld [vmem:[#allocation8 + $0x30] sm:$0xff]
    %v568 = vld [vmem:[#allocation8 + $0x38] sm:$0xff]
    %v569 = vld [vmem:[#allocation7] sm:$0xff]
    %v570 = vld [vmem:[#allocation7 + $0x8] sm:$0xff]
    %v571 = vld [vmem:[#allocation7 + $0x10] sm:$0xff]
    %v572 = vld [vmem:[#allocation7 + $0x18] sm:$0xff]
    %575 = vrot.lane.b32.xlu0 %v483, 96
    %v576 = vpop.permute.xlu0 %575
    %577 = vrot.lane.b32.xlu0 %v488, 96
    %v578 = vpop.permute.xlu0 %577
    %vm579 = vcmask 64512
    %v580 = vsel %vm579, %v483, 0
    %v582 = vsel %vm579, %v488, 0
    %v584 = vsel %vm579, %v576, 0
    %v586 = vsel %vm579, %v578, 0
    %588 = vmatprep.subr.mxu0 0.0
    %589 = vmatpush1.xpose.msra.mxu0 %v584
    %590 = vmatprep.subr.mxu0 0.0
    %591 = vmatpush1.xpose.msra.mxu0 %v586
    %592 = vmatprep.subr.mxu0 0.0
    %593 = vmatpush1.xpose.msra.mxu0 0.0
    %594 = vmatprep.subr.mxu0 0.0
    %595 = vmatpush1.xpose.msra.mxu0 0.0
    %596 = vmatprep.subr.mxu0 0.0
    %597 = vmatpush1.xpose.msra.mxu0 0.0
    %598 = vmatprep.subr.mxu0 0.0
    %599 = vmatpush1.xpose.msra.mxu0 0.0
    %600 = vmatprep.subr.mxu0 0.0
    %601 = vmatpush1.xpose.msra.mxu0 0.0
    %602 = vmatprep.subr.mxu0 0.0
    %603 = vmatpush1.xpose.msra.mxu0 0.0
    %604 = vmatprep.subr.mxu0 0.0
    %605 = vmatpush1.xpose.msra.mxu0 0.0
    %606 = vmatprep.subr.mxu0 0.0
    %607 = vmatpush1.xpose.msra.mxu0 0.0
    %608 = vmatprep.subr.mxu0 0.0
    %609 = vmatpush1.xpose.msra.mxu0 0.0
    %610 = vmatprep.subr.mxu0 0.0
    %611 = vmatpush1.xpose.msra.mxu0 0.0
    %612 = vmatprep.subr.mxu0 0.0
    %613 = vmatpush1.xpose.msra.mxu0 0.0
    %614 = vmatprep.subr.mxu0 0.0
    %615 = vmatpush1.xpose.msra.mxu0 0.0
    %616 = vmatprep.subr.mxu0 0.0
    %617 = vmatpush1.xpose.msra.mxu0 0.0
    %618 = vmatprep.subr.mxu0 0.0
    %619 = vmatpush1.xpose.msra.mxu0 0.0
    %620 = vmatprep.subr.mxu0 0.0
    %621 = vmatpush1.xpose.msra.mxu0 0.0
    %622 = vmatprep.subr.mxu0 0.0
    %623 = vmatpush1.xpose.msra.mxu0 0.0
    %624 = vmatprep.subr.mxu0 0.0
    %625 = vmatpush1.xpose.msra.mxu0 0.0
    %626 = vmatprep.subr.mxu0 0.0
    %627 = vmatpush1.xpose.msra.mxu0 0.0
    %628 = vmatprep.subr.mxu0 0.0
    %629 = vmatpush1.xpose.msra.mxu0 0.0
    %630 = vmatprep.subr.mxu0 0.0
    %631 = vmatpush1.xpose.msra.mxu0 0.0
    %632 = vmatprep.subr.mxu0 0.0
    %633 = vmatpush1.xpose.msra.mxu0 0.0
    %634 = vmatprep.subr.mxu0 0.0
    %635 = vmatpush1.xpose.msra.mxu0 0.0
    %636 = vmatprep.subr.mxu0 0.0
    %637 = vmatpush1.xpose.msra.mxu0 0.0
    %638 = vmatprep.subr.mxu0 0.0
    %639 = vmatpush1.xpose.msra.mxu0 0.0
    %640 = vmatprep.subr.mxu0 0.0
    %641 = vmatpush1.xpose.msra.mxu0 0.0
    %642 = vmatprep.subr.mxu0 0.0
    %643 = vmatpush1.xpose.msra.mxu0 0.0
    %644 = vmatprep.subr.mxu0 0.0
    %645 = vmatpush1.xpose.msra.mxu0 0.0
    %646 = vmatprep.subr.mxu0 0.0
    %647 = vmatpush1.xpose.msra.mxu0 0.0
    %648 = vmatprep.subr.mxu0 0.0
    %649 = vmatpush1.xpose.msra.mxu0 0.0
    %650 = vmatprep.subr.mxu0 0.0
    %651 = vmatpush1.xpose.msra.mxu0 0.0
    %652 = vmatprep.mubr.f32.mxu0 0.0
    %653 = vmatmul.mubr.f32.gmra.mrb[0].mxu0 %v580
    %v654 = vpop.f32.mrb[0].mxu0
    %v655 = vadd.f32 %v561, %v654
    %v656 = vpop.f32.mrb[0].mxu0
    %657 = vmatprep.mubr.f32.mxu0 0.0
    %658 = vmatmul.mubr.f32.gmra.mrb[0].mxu0 %v582
    %v659 = vpop.f32.mrb[0].mxu0
    %v660 = vadd.f32 %v562, %v659
    %v661 = vpop.f32.mrb[0].mxu0
    %662 = vdwg.mxu0
    %665 = vrot.lane.b32.xlu0 %v493, 96
    %v666 = vpop.permute.xlu0 %665
    %667 = vrot.lane.b32.xlu0 %v498, 96
    %v668 = vpop.permute.xlu0 %667
    %v669 = vsel %vm579, %v493, 0
    %v671 = vsel %vm579, %v498, 0
    %v673 = vsel %vm579, %v666, 0
    %v675 = vsel %vm579, %v668, 0
    %677 = vmatprep.subr.mxu0 0.0
    %678 = vmatpush1.xpose.msra.mxu0 %v673
    %679 = vmatprep.subr.mxu0 0.0
    %680 = vmatpush1.xpose.msra.mxu0 %v675
    %681 = vmatprep.subr.mxu0 0.0
    %682 = vmatpush1.xpose.msra.mxu0 0.0
    %683 = vmatprep.subr.mxu0 0.0
    %684 = vmatpush1.xpose.msra.mxu0 0.0
    %685 = vmatprep.subr.mxu0 0.0
    %686 = vmatpush1.xpose.msra.mxu0 0.0
    %687 = vmatprep.subr.mxu0 0.0
    %688 = vmatpush1.xpose.msra.mxu0 0.0
    %689 = vmatprep.subr.mxu0 0.0
    %690 = vmatpush1.xpose.msra.mxu0 0.0
    %691 = vmatprep.subr.mxu0 0.0
    %692 = vmatpush1.xpose.msra.mxu0 0.0
    %693 = vmatprep.subr.mxu0 0.0
    %694 = vmatpush1.xpose.msra.mxu0 0.0
    %695 = vmatprep.subr.mxu0 0.0
    %696 = vmatpush1.xpose.msra.mxu0 0.0
    %697 = vmatprep.subr.mxu0 0.0
    %698 = vmatpush1.xpose.msra.mxu0 0.0
    %699 = vmatprep.subr.mxu0 0.0
    %700 = vmatpush1.xpose.msra.mxu0 0.0
    %701 = vmatprep.subr.mxu0 0.0
    %702 = vmatpush1.xpose.msra.mxu0 0.0
    %703 = vmatprep.subr.mxu0 0.0
    %704 = vmatpush1.xpose.msra.mxu0 0.0
    %705 = vmatprep.subr.mxu0 0.0
    %706 = vmatpush1.xpose.msra.mxu0 0.0
    %707 = vmatprep.subr.mxu0 0.0
    %708 = vmatpush1.xpose.msra.mxu0 0.0
    %709 = vmatprep.subr.mxu0 0.0
    %710 = vmatpush1.xpose.msra.mxu0 0.0
    %711 = vmatprep.subr.mxu0 0.0
    %712 = vmatpush1.xpose.msra.mxu0 0.0
    %713 = vmatprep.subr.mxu0 0.0
    %714 = vmatpush1.xpose.msra.mxu0 0.0
    %715 = vmatprep.subr.mxu0 0.0
    %716 = vmatpush1.xpose.msra.mxu0 0.0
    %717 = vmatprep.subr.mxu0 0.0
    %718 = vmatpush1.xpose.msra.mxu0 0.0
    %719 = vmatprep.subr.mxu0 0.0
    %720 = vmatpush1.xpose.msra.mxu0 0.0
    %721 = vmatprep.subr.mxu0 0.0
    %722 = vmatpush1.xpose.msra.mxu0 0.0
    %723 = vmatprep.subr.mxu0 0.0
    %724 = vmatpush1.xpose.msra.mxu0 0.0
    %725 = vmatprep.subr.mxu0 0.0
    %726 = vmatpush1.xpose.msra.mxu0 0.0
    %727 = vmatprep.subr.mxu0 0.0
    %728 = vmatpush1.xpose.msra.mxu0 0.0
    %729 = vmatprep.subr.mxu0 0.0
    %730 = vmatpush1.xpose.msra.mxu0 0.0
    %731 = vmatprep.subr.mxu0 0.0
    %732 = vmatpush1.xpose.msra.mxu0 0.0
    %733 = vmatprep.subr.mxu0 0.0
    %734 = vmatpush1.xpose.msra.mxu0 0.0
    %735 = vmatprep.subr.mxu0 0.0
    %736 = vmatpush1.xpose.msra.mxu0 0.0
    %737 = vmatprep.subr.mxu0 0.0
    %738 = vmatpush1.xpose.msra.mxu0 0.0
    %739 = vmatprep.subr.mxu0 0.0
    %740 = vmatpush1.xpose.msra.mxu0 0.0
    %741 = vmatprep.mubr.f32.mxu0 0.0
    %742 = vmatmul.mubr.f32.gmra.mrb[0].mxu0 %v669
    %v743 = vpop.f32.mrb[0].mxu0
    %v744 = vadd.f32 %v561, %v743
    %v745 = vpop.f32.mrb[0].mxu0
    %746 = vmatprep.mubr.f32.mxu0 0.0
    %747 = vmatmul.mubr.f32.gmra.mrb[0].mxu0 %v671
    %v748 = vpop.f32.mrb[0].mxu0
    %v749 = vadd.f32 %v562, %v748
    %v750 = vpop.f32.mrb[0].mxu0
    %751 = vdwg.mxu0
    %754 = vrot.lane.b32.xlu0 %v503, 96
    %v755 = vpop.permute.xlu0 %754
    %756 = vrot.lane.b32.xlu0 %v508, 96
    %v757 = vpop.permute.xlu0 %756
    %v758 = vsel %vm579, %v503, 0
    %v760 = vsel %vm579, %v508, 0
    %v762 = vsel %vm579, %v755, 0
    %v764 = vsel %vm579, %v757, 0
    %766 = vmatprep.subr.mxu0 0.0
    %767 = vmatpush1.xpose.msra.mxu0 %v762
    %768 = vmatprep.subr.mxu0 0.0
    %769 = vmatpush1.xpose.msra.mxu0 %v764
    %770 = vmatprep.subr.mxu0 0.0
    %771 = vmatpush1.xpose.msra.mxu0 0.0
    %772 = vmatprep.subr.mxu0 0.0
    %773 = vmatpush1.xpose.msra.mxu0 0.0
    %774 = vmatprep.subr.mxu0 0.0
    %775 = vmatpush1.xpose.msra.mxu0 0.0
    %776 = vmatprep.subr.mxu0 0.0
    %777 = vmatpush1.xpose.msra.mxu0 0.0
    %778 = vmatprep.subr.mxu0 0.0
    %779 = vmatpush1.xpose.msra.mxu0 0.0
    %780 = vmatprep.subr.mxu0 0.0
    %781 = vmatpush1.xpose.msra.mxu0 0.0
    %782 = vmatprep.subr.mxu0 0.0
    %783 = vmatpush1.xpose.msra.mxu0 0.0
    %784 = vmatprep.subr.mxu0 0.0
    %785 = vmatpush1.xpose.msra.mxu0 0.0
    %786 = vmatprep.subr.mxu0 0.0
    %787 = vmatpush1.xpose.msra.mxu0 0.0
    %788 = vmatprep.subr.mxu0 0.0
    %789 = vmatpush1.xpose.msra.mxu0 0.0
    %790 = vmatprep.subr.mxu0 0.0
    %791 = vmatpush1.xpose.msra.mxu0 0.0
    %792 = vmatprep.subr.mxu0 0.0
    %793 = vmatpush1.xpose.msra.mxu0 0.0
    %794 = vmatprep.subr.mxu0 0.0
    %795 = vmatpush1.xpose.msra.mxu0 0.0
    %796 = vmatprep.subr.mxu0 0.0
    %797 = vmatpush1.xpose.msra.mxu0 0.0
    %798 = vmatprep.subr.mxu0 0.0
    %799 = vmatpush1.xpose.msra.mxu0 0.0
    %800 = vmatprep.subr.mxu0 0.0
    %801 = vmatpush1.xpose.msra.mxu0 0.0
    %802 = vmatprep.subr.mxu0 0.0
    %803 = vmatpush1.xpose.msra.mxu0 0.0
    %804 = vmatprep.subr.mxu0 0.0
    %805 = vmatpush1.xpose.msra.mxu0 0.0
    %806 = vmatprep.subr.mxu0 0.0
    %807 = vmatpush1.xpose.msra.mxu0 0.0
    %808 = vmatprep.subr.mxu0 0.0
    %809 = vmatpush1.xpose.msra.mxu0 0.0
    %810 = vmatprep.subr.mxu0 0.0
    %811 = vmatpush1.xpose.msra.mxu0 0.0
    %812 = vmatprep.subr.mxu0 0.0
    %813 = vmatpush1.xpose.msra.mxu0 0.0
    %814 = vmatprep.subr.mxu0 0.0
    %815 = vmatpush1.xpose.msra.mxu0 0.0
    %816 = vmatprep.subr.mxu0 0.0
    %817 = vmatpush1.xpose.msra.mxu0 0.0
    %818 = vmatprep.subr.mxu0 0.0
    %819 = vmatpush1.xpose.msra.mxu0 0.0
    %820 = vmatprep.subr.mxu0 0.0
    %821 = vmatpush1.xpose.msra.mxu0 0.0
    %822 = vmatprep.subr.mxu0 0.0
    %823 = vmatpush1.xpose.msra.mxu0 0.0
    %824 = vmatprep.subr.mxu0 0.0
    %825 = vmatpush1.xpose.msra.mxu0 0.0
    %826 = vmatprep.subr.mxu0 0.0
    %827 = vmatpush1.xpose.msra.mxu0 0.0
    %828 = vmatprep.subr.mxu0 0.0
    %829 = vmatpush1.xpose.msra.mxu0 0.0
    %830 = vmatprep.mubr.f32.mxu0 0.0
    %831 = vmatmul.mubr.f32.gmra.mrb[0].mxu0 %v758
    %v832 = vpop.f32.mrb[0].mxu0
    %v833 = vadd.f32 %v561, %v832
    %v834 = vpop.f32.mrb[0].mxu0
    %835 = vmatprep.mubr.f32.mxu0 0.0
    %836 = vmatmul.mubr.f32.gmra.mrb[0].mxu0 %v760
    %v837 = vpop.f32.mrb[0].mxu0
    %v838 = vadd.f32 %v562, %v837
    %v839 = vpop.f32.mrb[0].mxu0
    %840 = vdwg.mxu0
    %843 = vrot.lane.b32.xlu0 %v513, 96
    %v844 = vpop.permute.xlu0 %843
    %845 = vrot.lane.b32.xlu0 %v518, 96
    %v846 = vpop.permute.xlu0 %845
    %v847 = vsel %vm579, %v513, 0
    %v849 = vsel %vm579, %v518, 0
    %v851 = vsel %vm579, %v844, 0
    %v853 = vsel %vm579, %v846, 0
    %855 = vmatprep.subr.mxu0 0.0
    %856 = vmatpush1.xpose.msra.mxu0 %v851
    %857 = vmatprep.subr.mxu0 0.0
    %858 = vmatpush1.xpose.msra.mxu0 %v853
    %859 = vmatprep.subr.mxu0 0.0
    %860 = vmatpush1.xpose.msra.mxu0 0.0
    %861 = vmatprep.subr.mxu0 0.0
    %862 = vmatpush1.xpose.msra.mxu0 0.0
    %863 = vmatprep.subr.mxu0 0.0
    %864 = vmatpush1.xpose.msra.mxu0 0.0
    %865 = vmatprep.subr.mxu0 0.0
    %866 = vmatpush1.xpose.msra.mxu0 0.0
    %867 = vmatprep.subr.mxu0 0.0
    %868 = vmatpush1.xpose.msra.mxu0 0.0
    %869 = vmatprep.subr.mxu0 0.0
    %870 = vmatpush1.xpose.msra.mxu0 0.0
    %871 = vmatprep.subr.mxu0 0.0
    %872 = vmatpush1.xpose.msra.mxu0 0.0
    %873 = vmatprep.subr.mxu0 0.0
    %874 = vmatpush1.xpose.msra.mxu0 0.0
    %875 = vmatprep.subr.mxu0 0.0
    %876 = vmatpush1.xpose.msra.mxu0 0.0
    %877 = vmatprep.subr.mxu0 0.0
    %878 = vmatpush1.xpose.msra.mxu0 0.0
    %879 = vmatprep.subr.mxu0 0.0
    %880 = vmatpush1.xpose.msra.mxu0 0.0
    %881 = vmatprep.subr.mxu0 0.0
    %882 = vmatpush1.xpose.msra.mxu0 0.0
    %883 = vmatprep.subr.mxu0 0.0
    %884 = vmatpush1.xpose.msra.mxu0 0.0
    %885 = vmatprep.subr.mxu0 0.0
    %886 = vmatpush1.xpose.msra.mxu0 0.0
    %887 = vmatprep.subr.mxu0 0.0
    %888 = vmatpush1.xpose.msra.mxu0 0.0
    %889 = vmatprep.subr.mxu0 0.0
    %890 = vmatpush1.xpose.msra.mxu0 0.0
    %891 = vmatprep.subr.mxu0 0.0
    %892 = vmatpush1.xpose.msra.mxu0 0.0
    %893 = vmatprep.subr.mxu0 0.0
    %894 = vmatpush1.xpose.msra.mxu0 0.0
    %895 = vmatprep.subr.mxu0 0.0
    %896 = vmatpush1.xpose.msra.mxu0 0.0
    %897 = vmatprep.subr.mxu0 0.0
    %898 = vmatpush1.xpose.msra.mxu0 0.0
    %899 = vmatprep.subr.mxu0 0.0
    %900 = vmatpush1.xpose.msra.mxu0 0.0
    %901 = vmatprep.subr.mxu0 0.0
    %902 = vmatpush1.xpose.msra.mxu0 0.0
    %903 = vmatprep.subr.mxu0 0.0
    %904 = vmatpush1.xpose.msra.mxu0 0.0
    %905 = vmatprep.subr.mxu0 0.0
    %906 = vmatpush1.xpose.msra.mxu0 0.0
    %907 = vmatprep.subr.mxu0 0.0
    %908 = vmatpush1.xpose.msra.mxu0 0.0
    %909 = vmatprep.subr.mxu0 0.0
    %910 = vmatpush1.xpose.msra.mxu0 0.0
    %911 = vmatprep.subr.mxu0 0.0
    %912 = vmatpush1.xpose.msra.mxu0 0.0
    %913 = vmatprep.subr.mxu0 0.0
    %914 = vmatpush1.xpose.msra.mxu0 0.0
    %915 = vmatprep.subr.mxu0 0.0
    %916 = vmatpush1.xpose.msra.mxu0 0.0
    %917 = vmatprep.subr.mxu0 0.0
    %918 = vmatpush1.xpose.msra.mxu0 0.0
    %919 = vmatprep.mubr.f32.mxu0 0.0
    %920 = vmatmul.mubr.f32.gmra.mrb[0].mxu0 %v847
    %v921 = vpop.f32.mrb[0].mxu0
    %v922 = vadd.f32 %v561, %v921
    %v923 = vpop.f32.mrb[0].mxu0
    %924 = vmatprep.mubr.f32.mxu0 0.0
    %925 = vmatmul.mubr.f32.gmra.mrb[0].mxu0 %v849
    %v926 = vpop.f32.mrb[0].mxu0
    %v927 = vadd.f32 %v562, %v926
    %v928 = vpop.f32.mrb[0].mxu0
    %929 = vdwg.mxu0
    %932 = vrot.lane.b32.xlu0 %v523, 96
    %v933 = vpop.permute.xlu0 %932
    %934 = vrot.lane.b32.xlu0 %v528, 96
    %v935 = vpop.permute.xlu0 %934
    %v936 = vsel %vm579, %v523, 0
    %v938 = vsel %vm579, %v528, 0
    %v940 = vsel %vm579, %v933, 0
    %v942 = vsel %vm579, %v935, 0
    %944 = vmatprep.subr.mxu0 0.0
    %945 = vmatpush1.xpose.msra.mxu0 %v940
    %946 = vmatprep.subr.mxu0 0.0
    %947 = vmatpush1.xpose.msra.mxu0 %v942
    %948 = vmatprep.subr.mxu0 0.0
    %949 = vmatpush1.xpose.msra.mxu0 0.0
    %950 = vmatprep.subr.mxu0 0.0
    %951 = vmatpush1.xpose.msra.mxu0 0.0
    %952 = vmatprep.subr.mxu0 0.0
    %953 = vmatpush1.xpose.msra.mxu0 0.0
    %954 = vmatprep.subr.mxu0 0.0
    %955 = vmatpush1.xpose.msra.mxu0 0.0
    %956 = vmatprep.subr.mxu0 0.0
    %957 = vmatpush1.xpose.msra.mxu0 0.0
    %958 = vmatprep.subr.mxu0 0.0
    %959 = vmatpush1.xpose.msra.mxu0 0.0
    %960 = vmatprep.subr.mxu0 0.0
    %961 = vmatpush1.xpose.msra.mxu0 0.0
    %962 = vmatprep.subr.mxu0 0.0
    %963 = vmatpush1.xpose.msra.mxu0 0.0
    %964 = vmatprep.subr.mxu0 0.0
    %965 = vmatpush1.xpose.msra.mxu0 0.0
    %966 = vmatprep.subr.mxu0 0.0
    %967 = vmatpush1.xpose.msra.mxu0 0.0
    %968 = vmatprep.subr.mxu0 0.0
    %969 = vmatpush1.xpose.msra.mxu0 0.0
    %970 = vmatprep.subr.mxu0 0.0
    %971 = vmatpush1.xpose.msra.mxu0 0.0
    %972 = vmatprep.subr.mxu0 0.0
    %973 = vmatpush1.xpose.msra.mxu0 0.0
    %974 = vmatprep.subr.mxu0 0.0
    %975 = vmatpush1.xpose.msra.mxu0 0.0
    %976 = vmatprep.subr.mxu0 0.0
    %977 = vmatpush1.xpose.msra.mxu0 0.0
    %978 = vmatprep.subr.mxu0 0.0
    %979 = vmatpush1.xpose.msra.mxu0 0.0
    %980 = vmatprep.subr.mxu0 0.0
    %981 = vmatpush1.xpose.msra.mxu0 0.0
    %982 = vmatprep.subr.mxu0 0.0
    %983 = vmatpush1.xpose.msra.mxu0 0.0
    %984 = vmatprep.subr.mxu0 0.0
    %985 = vmatpush1.xpose.msra.mxu0 0.0
    %986 = vmatprep.subr.mxu0 0.0
    %987 = vmatpush1.xpose.msra.mxu0 0.0
    %988 = vmatprep.subr.mxu0 0.0
    %989 = vmatpush1.xpose.msra.mxu0 0.0
    %990 = vmatprep.subr.mxu0 0.0
    %991 = vmatpush1.xpose.msra.mxu0 0.0
    %992 = vmatprep.subr.mxu0 0.0
    %993 = vmatpush1.xpose.msra.mxu0 0.0
    %994 = vmatprep.subr.mxu0 0.0
    %995 = vmatpush1.xpose.msra.mxu0 0.0
    %996 = vmatprep.subr.mxu0 0.0
    %997 = vmatpush1.xpose.msra.mxu0 0.0
    %998 = vmatprep.subr.mxu0 0.0
    %999 = vmatpush1.xpose.msra.mxu0 0.0
    %1000 = vmatprep.subr.mxu0 0.0
    %1001 = vmatpush1.xpose.msra.mxu0 0.0
    %1002 = vmatprep.subr.mxu0 0.0
    %1003 = vmatpush1.xpose.msra.mxu0 0.0
    %1004 = vmatprep.subr.mxu0 0.0
    %1005 = vmatpush1.xpose.msra.mxu0 0.0
    %1006 = vmatprep.subr.mxu0 0.0
    %1007 = vmatpush1.xpose.msra.mxu0 0.0
    %1008 = vmatprep.mubr.f32.mxu0 0.0
    %1009 = vmatmul.mubr.f32.gmra.mrb[0].mxu0 %v936
    %v1010 = vpop.f32.mrb[0].mxu0
    %v1011 = vadd.f32 %v561, %v1010
    %v1012 = vpop.f32.mrb[0].mxu0
    %1013 = vmatprep.mubr.f32.mxu0 0.0
    %1014 = vmatmul.mubr.f32.gmra.mrb[0].mxu0 %v938
    %v1015 = vpop.f32.mrb[0].mxu0
    %v1016 = vadd.f32 %v562, %v1015
    %v1017 = vpop.f32.mrb[0].mxu0
    %1018 = vdwg.mxu0
    %1021 = vrot.lane.b32.xlu0 %v533, 96
    %v1022 = vpop.permute.xlu0 %1021
    %1023 = vrot.lane.b32.xlu0 %v538, 96
    %v1024 = vpop.permute.xlu0 %1023
    %v1025 = vsel %vm579, %v533, 0
    %v1027 = vsel %vm579, %v538, 0
    %v1029 = vsel %vm579, %v1022, 0
    %v1031 = vsel %vm579, %v1024, 0
    %1033 = vmatprep.subr.mxu0 0.0
    %1034 = vmatpush1.xpose.msra.mxu0 %v1029
    %1035 = vmatprep.subr.mxu0 0.0
    %1036 = vmatpush1.xpose.msra.mxu0 %v1031
    %1037 = vmatprep.subr.mxu0 0.0
    %1038 = vmatpush1.xpose.msra.mxu0 0.0
    %1039 = vmatprep.subr.mxu0 0.0
    %1040 = vmatpush1.xpose.msra.mxu0 0.0
    %1041 = vmatprep.subr.mxu0 0.0
    %1042 = vmatpush1.xpose.msra.mxu0 0.0
    %1043 = vmatprep.subr.mxu0 0.0
    %1044 = vmatpush1.xpose.msra.mxu0 0.0
    %1045 = vmatprep.subr.mxu0 0.0
    %1046 = vmatpush1.xpose.msra.mxu0 0.0
    %1047 = vmatprep.subr.mxu0 0.0
    %1048 = vmatpush1.xpose.msra.mxu0 0.0
    %1049 = vmatprep.subr.mxu0 0.0
    %1050 = vmatpush1.xpose.msra.mxu0 0.0
    %1051 = vmatprep.subr.mxu0 0.0
    %1052 = vmatpush1.xpose.msra.mxu0 0.0
    %1053 = vmatprep.subr.mxu0 0.0
    %1054 = vmatpush1.xpose.msra.mxu0 0.0
    %1055 = vmatprep.subr.mxu0 0.0
    %1056 = vmatpush1.xpose.msra.mxu0 0.0
    %1057 = vmatprep.subr.mxu0 0.0
    %1058 = vmatpush1.xpose.msra.mxu0 0.0
    %1059 = vmatprep.subr.mxu0 0.0
    %1060 = vmatpush1.xpose.msra.mxu0 0.0
    %1061 = vmatprep.subr.mxu0 0.0
    %1062 = vmatpush1.xpose.msra.mxu0 0.0
    %1063 = vmatprep.subr.mxu0 0.0
    %1064 = vmatpush1.xpose.msra.mxu0 0.0
    %1065 = vmatprep.subr.mxu0 0.0
    %1066 = vmatpush1.xpose.msra.mxu0 0.0
    %1067 = vmatprep.subr.mxu0 0.0
    %1068 = vmatpush1.xpose.msra.mxu0 0.0
    %1069 = vmatprep.subr.mxu0 0.0
    %1070 = vmatpush1.xpose.msra.mxu0 0.0
    %1071 = vmatprep.subr.mxu0 0.0
    %1072 = vmatpush1.xpose.msra.mxu0 0.0
    %1073 = vmatprep.subr.mxu0 0.0
    %1074 = vmatpush1.xpose.msra.mxu0 0.0
    %1075 = vmatprep.subr.mxu0 0.0
    %1076 = vmatpush1.xpose.msra.mxu0 0.0
    %1077 = vmatprep.subr.mxu0 0.0
    %1078 = vmatpush1.xpose.msra.mxu0 0.0
    %1079 = vmatprep.subr.mxu0 0.0
    %1080 = vmatpush1.xpose.msra.mxu0 0.0
    %1081 = vmatprep.subr.mxu0 0.0
    %1082 = vmatpush1.xpose.msra.mxu0 0.0
    %1083 = vmatprep.subr.mxu0 0.0
    %1084 = vmatpush1.xpose.msra.mxu0 0.0
    %1085 = vmatprep.subr.mxu0 0.0
    %1086 = vmatpush1.xpose.msra.mxu0 0.0
    %1087 = vmatprep.subr.mxu0 0.0
    %1088 = vmatpush1.xpose.msra.mxu0 0.0
    %1089 = vmatprep.subr.mxu0 0.0
    %1090 = vmatpush1.xpose.msra.mxu0 0.0
    %1091 = vmatprep.subr.mxu0 0.0
    %1092 = vmatpush1.xpose.msra.mxu0 0.0
    %1093 = vmatprep.subr.mxu0 0.0
    %1094 = vmatpush1.xpose.msra.mxu0 0.0
    %1095 = vmatprep.subr.mxu0 0.0
    %1096 = vmatpush1.xpose.msra.mxu0 0.0
    %1097 = vmatprep.mubr.f32.mxu0 0.0
    %1098 = vmatmul.mubr.f32.gmra.mrb[0].mxu0 %v1025
    %v1099 = vpop.f32.mrb[0].mxu0
    %v1100 = vadd.f32 %v561, %v1099
    %v1101 = vpop.f32.mrb[0].mxu0
    %1102 = vmatprep.mubr.f32.mxu0 0.0
    %1103 = vmatmul.mubr.f32.gmra.mrb[0].mxu0 %v1027
    %v1104 = vpop.f32.mrb[0].mxu0
    %v1105 = vadd.f32 %v562, %v1104
    %v1106 = vpop.f32.mrb[0].mxu0
    %1107 = vdwg.mxu0
    %1110 = vrot.lane.b32.xlu0 %v543, 96
    %v1111 = vpop.permute.xlu0 %1110
    %1112 = vrot.lane.b32.xlu0 %v548, 96
    %v1113 = vpop.permute.xlu0 %1112
    %v1114 = vsel %vm579, %v543, 0
    %v1116 = vsel %vm579, %v548, 0
    %v1118 = vsel %vm579, %v1111, 0
    %v1120 = vsel %vm579, %v1113, 0
    %1122 = vmatprep.subr.mxu0 0.0
    %1123 = vmatpush1.xpose.msra.mxu0 %v1118
    %1124 = vmatprep.subr.mxu0 0.0
    %1125 = vmatpush1.xpose.msra.mxu0 %v1120
    %1126 = vmatprep.subr.mxu0 0.0
    %1127 = vmatpush1.xpose.msra.mxu0 0.0
    %1128 = vmatprep.subr.mxu0 0.0
    %1129 = vmatpush1.xpose.msra.mxu0 0.0
    %1130 = vmatprep.subr.mxu0 0.0
    %1131 = vmatpush1.xpose.msra.mxu0 0.0
    %1132 = vmatprep.subr.mxu0 0.0
    %1133 = vmatpush1.xpose.msra.mxu0 0.0
    %1134 = vmatprep.subr.mxu0 0.0
    %1135 = vmatpush1.xpose.msra.mxu0 0.0
    %1136 = vmatprep.subr.mxu0 0.0
    %1137 = vmatpush1.xpose.msra.mxu0 0.0
    %1138 = vmatprep.subr.mxu0 0.0
    %1139 = vmatpush1.xpose.msra.mxu0 0.0
    %1140 = vmatprep.subr.mxu0 0.0
    %1141 = vmatpush1.xpose.msra.mxu0 0.0
    %1142 = vmatprep.subr.mxu0 0.0
    %1143 = vmatpush1.xpose.msra.mxu0 0.0
    %1144 = vmatprep.subr.mxu0 0.0
    %1145 = vmatpush1.xpose.msra.mxu0 0.0
    %1146 = vmatprep.subr.mxu0 0.0
    %1147 = vmatpush1.xpose.msra.mxu0 0.0
    %1148 = vmatprep.subr.mxu0 0.0
    %1149 = vmatpush1.xpose.msra.mxu0 0.0
    %1150 = vmatprep.subr.mxu0 0.0
    %1151 = vmatpush1.xpose.msra.mxu0 0.0
    %1152 = vmatprep.subr.mxu0 0.0
    %1153 = vmatpush1.xpose.msra.mxu0 0.0
    %1154 = vmatprep.subr.mxu0 0.0
    %1155 = vmatpush1.xpose.msra.mxu0 0.0
    %1156 = vmatprep.subr.mxu0 0.0
    %1157 = vmatpush1.xpose.msra.mxu0 0.0
    %1158 = vmatprep.subr.mxu0 0.0
    %1159 = vmatpush1.xpose.msra.mxu0 0.0
    %1160 = vmatprep.subr.mxu0 0.0
    %1161 = vmatpush1.xpose.msra.mxu0 0.0
    %1162 = vmatprep.subr.mxu0 0.0
    %1163 = vmatpush1.xpose.msra.mxu0 0.0
    %1164 = vmatprep.subr.mxu0 0.0
    %1165 = vmatpush1.xpose.msra.mxu0 0.0
    %1166 = vmatprep.subr.mxu0 0.0
    %1167 = vmatpush1.xpose.msra.mxu0 0.0
    %1168 = vmatprep.subr.mxu0 0.0
    %1169 = vmatpush1.xpose.msra.mxu0 0.0
    %1170 = vmatprep.subr.mxu0 0.0
    %1171 = vmatpush1.xpose.msra.mxu0 0.0
    %1172 = vmatprep.subr.mxu0 0.0
    %1173 = vmatpush1.xpose.msra.mxu0 0.0
    %1174 = vmatprep.subr.mxu0 0.0
    %1175 = vmatpush1.xpose.msra.mxu0 0.0
    %1176 = vmatprep.subr.mxu0 0.0
    %1177 = vmatpush1.xpose.msra.mxu0 0.0
    %1178 = vmatprep.subr.mxu0 0.0
    %1179 = vmatpush1.xpose.msra.mxu0 0.0
    %1180 = vmatprep.subr.mxu0 0.0
    %1181 = vmatpush1.xpose.msra.mxu0 0.0
    %1182 = vmatprep.subr.mxu0 0.0
    %1183 = vmatpush1.xpose.msra.mxu0 0.0
    %1184 = vmatprep.subr.mxu0 0.0
    %1185 = vmatpush1.xpose.msra.mxu0 0.0
    %1186 = vmatprep.mubr.f32.mxu0 0.0
    %1187 = vmatmul.mubr.f32.gmra.mrb[0].mxu0 %v1114
    %v1188 = vpop.f32.mrb[0].mxu0
    %v1189 = vadd.f32 %v561, %v1188
    %v1190 = vpop.f32.mrb[0].mxu0
    %1191 = vmatprep.mubr.f32.mxu0 0.0
    %1192 = vmatmul.mubr.f32.gmra.mrb[0].mxu0 %v1116
    %v1193 = vpop.f32.mrb[0].mxu0
    %v1194 = vadd.f32 %v562, %v1193
    %v1195 = vpop.f32.mrb[0].mxu0
    %1196 = vdwg.mxu0
    %1199 = vrot.lane.b32.xlu0 %v553, 96
    %v1200 = vpop.permute.xlu0 %1199
    %1201 = vrot.lane.b32.xlu0 %v558, 96
    %v1202 = vpop.permute.xlu0 %1201
    %v1203 = vsel %vm579, %v553, 0
    %v1205 = vsel %vm579, %v558, 0
    %v1207 = vsel %vm579, %v1200, 0
    %v1209 = vsel %vm579, %v1202, 0
    %1211 = vmatprep.subr.mxu0 0.0
    %1212 = vmatpush1.xpose.msra.mxu0 %v1207
    %1213 = vmatprep.subr.mxu0 0.0
    %1214 = vmatpush1.xpose.msra.mxu0 %v1209
    %1215 = vmatprep.subr.mxu0 0.0
    %1216 = vmatpush1.xpose.msra.mxu0 0.0
    %1217 = vmatprep.subr.mxu0 0.0
    %1218 = vmatpush1.xpose.msra.mxu0 0.0
    %1219 = vmatprep.subr.mxu0 0.0
    %1220 = vmatpush1.xpose.msra.mxu0 0.0
    %1221 = vmatprep.subr.mxu0 0.0
    %1222 = vmatpush1.xpose.msra.mxu0 0.0
    %1223 = vmatprep.subr.mxu0 0.0
    %1224 = vmatpush1.xpose.msra.mxu0 0.0
    %1225 = vmatprep.subr.mxu0 0.0
    %1226 = vmatpush1.xpose.msra.mxu0 0.0
    %1227 = vmatprep.subr.mxu0 0.0
    %1228 = vmatpush1.xpose.msra.mxu0 0.0
    %1229 = vmatprep.subr.mxu0 0.0
    %1230 = vmatpush1.xpose.msra.mxu0 0.0
    %1231 = vmatprep.subr.mxu0 0.0
    %1232 = vmatpush1.xpose.msra.mxu0 0.0
    %1233 = vmatprep.subr.mxu0 0.0
    %1234 = vmatpush1.xpose.msra.mxu0 0.0
    %1235 = vmatprep.subr.mxu0 0.0
    %1236 = vmatpush1.xpose.msra.mxu0 0.0
    %1237 = vmatprep.subr.mxu0 0.0
    %1238 = vmatpush1.xpose.msra.mxu0 0.0
    %1239 = vmatprep.subr.mxu0 0.0
    %1240 = vmatpush1.xpose.msra.mxu0 0.0
    %1241 = vmatprep.subr.mxu0 0.0
    %1242 = vmatpush1.xpose.msra.mxu0 0.0
    %1243 = vmatprep.subr.mxu0 0.0
    %1244 = vmatpush1.xpose.msra.mxu0 0.0
    %1245 = vmatprep.subr.mxu0 0.0
    %1246 = vmatpush1.xpose.msra.mxu0 0.0
    %1247 = vmatprep.subr.mxu0 0.0
    %1248 = vmatpush1.xpose.msra.mxu0 0.0
    %1249 = vmatprep.subr.mxu0 0.0
    %1250 = vmatpush1.xpose.msra.mxu0 0.0
    %1251 = vmatprep.subr.mxu0 0.0
    %1252 = vmatpush1.xpose.msra.mxu0 0.0
    %1253 = vmatprep.subr.mxu0 0.0
    %1254 = vmatpush1.xpose.msra.mxu0 0.0
    %1255 = vmatprep.subr.mxu0 0.0
    %1256 = vmatpush1.xpose.msra.mxu0 0.0
    %1257 = vmatprep.subr.mxu0 0.0
    %1258 = vmatpush1.xpose.msra.mxu0 0.0
    %1259 = vmatprep.subr.mxu0 0.0
    %1260 = vmatpush1.xpose.msra.mxu0 0.0
    %1261 = vmatprep.subr.mxu0 0.0
    %1262 = vmatpush1.xpose.msra.mxu0 0.0
    %1263 = vmatprep.subr.mxu0 0.0
    %1264 = vmatpush1.xpose.msra.mxu0 0.0
    %1265 = vmatprep.subr.mxu0 0.0
    %1266 = vmatpush1.xpose.msra.mxu0 0.0
    %1267 = vmatprep.subr.mxu0 0.0
    %1268 = vmatpush1.xpose.msra.mxu0 0.0
    %1269 = vmatprep.subr.mxu0 0.0
    %1270 = vmatpush1.xpose.msra.mxu0 0.0
    %1271 = vmatprep.subr.mxu0 0.0
    %1272 = vmatpush1.xpose.msra.mxu0 0.0
    %1273 = vmatprep.subr.mxu0 0.0
    %1274 = vmatpush1.xpose.msra.mxu0 0.0
    %1275 = vmatprep.mubr.f32.mxu0 0.0
    %1276 = vmatmul.mubr.f32.gmra.mrb[0].mxu0 %v1203
    %v1277 = vpop.f32.mrb[0].mxu0
    %v1278 = vadd.f32 %v561, %v1277
    %v1279 = vpop.f32.mrb[0].mxu0
    %1280 = vmatprep.mubr.f32.mxu0 0.0
    %1281 = vmatmul.mubr.f32.gmra.mrb[0].mxu0 %v1205
    %v1282 = vpop.f32.mrb[0].mxu0
    %v1283 = vadd.f32 %v562, %v1282
    %v1284 = vpop.f32.mrb[0].mxu0
    %1285 = vdwg.mxu0
    %vm1286 = vcmask 130048
    %v1287 = vsel %vm1286, %v655, -inf
    %1288 = vmax.xlane.f32.xlu0 %v1287
    %v1289 = vpop.xlane.xlu0 %1288
    %v1290 = vsel %vm1286, %v660, -inf
    %1291 = vmax.xlane.f32.xlu0 %v1290
    %v1292 = vpop.xlane.xlu0 %1291
    %v1293 = vsel %vm1286, %v744, -inf
    %1294 = vmax.xlane.f32.xlu0 %v1293
    %v1295 = vpop.xlane.xlu0 %1294
    %v1296 = vsel %vm1286, %v749, -inf
    %1297 = vmax.xlane.f32.xlu0 %v1296
    %v1298 = vpop.xlane.xlu0 %1297
    %v1299 = vsel %vm1286, %v833, -inf
    %1300 = vmax.xlane.f32.xlu0 %v1299
    %v1301 = vpop.xlane.xlu0 %1300
    %v1302 = vsel %vm1286, %v838, -inf
    %1303 = vmax.xlane.f32.xlu0 %v1302
    %v1304 = vpop.xlane.xlu0 %1303
    %v1305 = vsel %vm1286, %v922, -inf
    %1306 = vmax.xlane.f32.xlu0 %v1305
    %v1307 = vpop.xlane.xlu0 %1306
    %v1308 = vsel %vm1286, %v927, -inf
    %1309 = vmax.xlane.f32.xlu0 %v1308
    %v1310 = vpop.xlane.xlu0 %1309
    %v1311 = vsel %vm1286, %v1011, -inf
    %1312 = vmax.xlane.f32.xlu0 %v1311
    %v1313 = vpop.xlane.xlu0 %1312
    %v1314 = vsel %vm1286, %v1016, -inf
    %1315 = vmax.xlane.f32.xlu0 %v1314
    %v1316 = vpop.xlane.xlu0 %1315
    %v1317 = vsel %vm1286, %v1100, -inf
    %1318 = vmax.xlane.f32.xlu0 %v1317
    %v1319 = vpop.xlane.xlu0 %1318
    %v1320 = vsel %vm1286, %v1105, -inf
    %1321 = vmax.xlane.f32.xlu0 %v1320
    %v1322 = vpop.xlane.xlu0 %1321
    %v1323 = vsel %vm1286, %v1189, -inf
    %1324 = vmax.xlane.f32.xlu0 %v1323
    %v1325 = vpop.xlane.xlu0 %1324
    %v1326 = vsel %vm1286, %v1194, -inf
    %1327 = vmax.xlane.f32.xlu0 %v1326
    %v1328 = vpop.xlane.xlu0 %1327
    %v1329 = vsel %vm1286, %v1278, -inf
    %1330 = vmax.xlane.f32.xlu0 %v1329
    %v1331 = vpop.xlane.xlu0 %1330
    %v1332 = vsel %vm1286, %v1283, -inf
    %1333 = vmax.xlane.f32.xlu0 %v1332
    %v1334 = vpop.xlane.xlu0 %1333
    %v1335 = vsub.f32 %v655, %v1289
    %v1336 = vsub.f32 %v660, %v1292
    %v1337 = vsub.f32 %v744, %v1295
    %v1338 = vsub.f32 %v749, %v1298
    %v1339 = vsub.f32 %v833, %v1301
    %v1340 = vsub.f32 %v838, %v1304
    %v1341 = vsub.f32 %v922, %v1307
    %v1342 = vsub.f32 %v927, %v1310
    %v1343 = vsub.f32 %v1011, %v1313
    %v1344 = vsub.f32 %v1016, %v1316
    %v1345 = vsub.f32 %v1100, %v1319
    %v1346 = vsub.f32 %v1105, %v1322
    %v1347 = vsub.f32 %v1189, %v1325
    %v1348 = vsub.f32 %v1194, %v1328
    %v1349 = vsub.f32 %v1278, %v1331
    %v1350 = vsub.f32 %v1283, %v1334
    %v1351 = vmul.f32 %v1335, 1.442695
    %v1352 = vpow.pop %v1351
    %v1353 = vmul.f32 %v1336, 1.442695
    %v1354 = vpow.pop %v1353
    %v1355 = vmul.f32 %v1337, 1.442695
    %v1356 = vpow.pop %v1355
    %v1357 = vmul.f32 %v1338, 1.442695
    %v1358 = vpow.pop %v1357
    %v1359 = vmul.f32 %v1339, 1.442695
    %v1360 = vpow.pop %v1359
    %v1361 = vmul.f32 %v1340, 1.442695
    %v1362 = vpow.pop %v1361
    %v1363 = vmul.f32 %v1341, 1.442695
    %v1364 = vpow.pop %v1363
    %v1365 = vmul.f32 %v1342, 1.442695
    %v1366 = vpow.pop %v1365
    %v1367 = vmul.f32 %v1343, 1.442695
    %v1368 = vpow.pop %v1367
    %v1369 = vmul.f32 %v1344, 1.442695
    %v1370 = vpow.pop %v1369
    %v1371 = vmul.f32 %v1345, 1.442695
    %v1372 = vpow.pop %v1371
    %v1373 = vmul.f32 %v1346, 1.442695
    %v1374 = vpow.pop %v1373
    %v1375 = vmul.f32 %v1347, 1.442695
    %v1376 = vpow.pop %v1375
    %v1377 = vmul.f32 %v1348, 1.442695
    %v1378 = vpow.pop %v1377
    %v1379 = vmul.f32 %v1349, 1.442695
    %v1380 = vpow.pop %v1379
    %v1381 = vmul.f32 %v1350, 1.442695
    %v1382 = vpow.pop %v1381
    %v1383 = vsel %vm1286, %v1352, 0.0
    %1384 = vadd.xlane.f32.xlu0 %v1383
    %v1385 = vpop.xlane.xlu0 %1384
    %v1386 = vsel %vm1286, %v1354, 0.0
    %1387 = vadd.xlane.f32.xlu0 %v1386
    %v1388 = vpop.xlane.xlu0 %1387
    %v1389 = vsel %vm1286, %v1356, 0.0
    %1390 = vadd.xlane.f32.xlu0 %v1389
    %v1391 = vpop.xlane.xlu0 %1390
    %v1392 = vsel %vm1286, %v1358, 0.0
    %1393 = vadd.xlane.f32.xlu0 %v1392
    %v1394 = vpop.xlane.xlu0 %1393
    %v1395 = vsel %vm1286, %v1360, 0.0
    %1396 = vadd.xlane.f32.xlu0 %v1395
    %v1397 = vpop.xlane.xlu0 %1396
    %v1398 = vsel %vm1286, %v1362, 0.0
    %1399 = vadd.xlane.f32.xlu0 %v1398
    %v1400 = vpop.xlane.xlu0 %1399
    %v1401 = vsel %vm1286, %v1364, 0.0
    %1402 = vadd.xlane.f32.xlu0 %v1401
    %v1403 = vpop.xlane.xlu0 %1402
    %v1404 = vsel %vm1286, %v1366, 0.0
    %1405 = vadd.xlane.f32.xlu0 %v1404
    %v1406 = vpop.xlane.xlu0 %1405
    %v1407 = vsel %vm1286, %v1368, 0.0
    %1408 = vadd.xlane.f32.xlu0 %v1407
    %v1409 = vpop.xlane.xlu0 %1408
    %v1410 = vsel %vm1286, %v1370, 0.0
    %1411 = vadd.xlane.f32.xlu0 %v1410
    %v1412 = vpop.xlane.xlu0 %1411
    %v1413 = vsel %vm1286, %v1372, 0.0
    %1414 = vadd.xlane.f32.xlu0 %v1413
    %v1415 = vpop.xlane.xlu0 %1414
    %v1416 = vsel %vm1286, %v1374, 0.0
    %1417 = vadd.xlane.f32.xlu0 %v1416
    %v1418 = vpop.xlane.xlu0 %1417
    %v1419 = vsel %vm1286, %v1376, 0.0
    %1420 = vadd.xlane.f32.xlu0 %v1419
    %v1421 = vpop.xlane.xlu0 %1420
    %v1422 = vsel %vm1286, %v1378, 0.0
    %1423 = vadd.xlane.f32.xlu0 %v1422
    %v1424 = vpop.xlane.xlu0 %1423
    %v1425 = vsel %vm1286, %v1380, 0.0
    %1426 = vadd.xlane.f32.xlu0 %v1425
    %v1427 = vpop.xlane.xlu0 %1426
    %v1428 = vsel %vm1286, %v1382, 0.0
    %1429 = vadd.xlane.f32.xlu0 %v1428
    %v1430 = vpop.xlane.xlu0 %1429
    %v1431 = vrcp.pop %v1385
    %v1432 = vmul.f32 %v1352, %v1431
    %v1433 = vrcp.pop %v1388
    %v1434 = vmul.f32 %v1354, %v1433
    %v1435 = vrcp.pop %v1391
    %v1436 = vmul.f32 %v1356, %v1435
    %v1437 = vrcp.pop %v1394
    %v1438 = vmul.f32 %v1358, %v1437
    %v1439 = vrcp.pop %v1397
    %v1440 = vmul.f32 %v1360, %v1439
    %v1441 = vrcp.pop %v1400
    %v1442 = vmul.f32 %v1362, %v1441
    %v1443 = vrcp.pop %v1403
    %v1444 = vmul.f32 %v1364, %v1443
    %v1445 = vrcp.pop %v1406
    %v1446 = vmul.f32 %v1366, %v1445
    %v1447 = vrcp.pop %v1409
    %v1448 = vmul.f32 %v1368, %v1447
    %v1449 = vrcp.pop %v1412
    %v1450 = vmul.f32 %v1370, %v1449
    %v1451 = vrcp.pop %v1415
    %v1452 = vmul.f32 %v1372, %v1451
    %v1453 = vrcp.pop %v1418
    %v1454 = vmul.f32 %v1374, %v1453
    %v1455 = vrcp.pop %v1421
    %v1456 = vmul.f32 %v1376, %v1455
    %v1457 = vrcp.pop %v1424
    %v1458 = vmul.f32 %v1378, %v1457
    %v1459 = vrcp.pop %v1427
    %v1460 = vmul.f32 %v1380, %v1459
    %v1461 = vrcp.pop %v1430
    %v1462 = vmul.f32 %v1382, %v1461
    %1463 = vrot.lane.b32.xlu0 %v483, 64
    %v1464 = vpop.permute.xlu0 %1463
    %1465 = vrot.lane.b32.xlu0 %v488, 64
    %v1466 = vpop.permute.xlu0 %1465
    %v1470 = vsel %vm1286, %v1432, 0
    %v1473 = vsel %vm1286, %v1434, 0
    %1475 = vmatprep.subr.mxu0 0.0
    %1476 = vmatpush1.msra.mxu0 %v1464
    %1477 = vmatprep.subr.mxu0 0.0
    %1478 = vmatpush1.msra.mxu0 %v1466
    %1479 = vmatprep.subr.mxu0 0.0
    %1480 = vmatpush1.msra.mxu0 0.0
    %1481 = vmatprep.subr.mxu0 0.0
    %1482 = vmatpush1.msra.mxu0 0.0
    %1483 = vmatprep.subr.mxu0 0.0
    %1484 = vmatpush1.msra.mxu0 0.0
    %1485 = vmatprep.subr.mxu0 0.0
    %1486 = vmatpush1.msra.mxu0 0.0
    %1487 = vmatprep.subr.mxu0 0.0
    %1488 = vmatpush1.msra.mxu0 0.0
    %1489 = vmatprep.subr.mxu0 0.0
    %1490 = vmatpush1.msra.mxu0 0.0
    %1491 = vmatprep.subr.mxu0 0.0
    %1492 = vmatpush1.msra.mxu0 0.0
    %1493 = vmatprep.subr.mxu0 0.0
    %1494 = vmatpush1.msra.mxu0 0.0
    %1495 = vmatprep.subr.mxu0 0.0
    %1496 = vmatpush1.msra.mxu0 0.0
    %1497 = vmatprep.subr.mxu0 0.0
    %1498 = vmatpush1.msra.mxu0 0.0
    %1499 = vmatprep.subr.mxu0 0.0
    %1500 = vmatpush1.msra.mxu0 0.0
    %1501 = vmatprep.subr.mxu0 0.0
    %1502 = vmatpush1.msra.mxu0 0.0
    %1503 = vmatprep.subr.mxu0 0.0
    %1504 = vmatpush1.msra.mxu0 0.0
    %1505 = vmatprep.subr.mxu0 0.0
    %1506 = vmatpush1.msra.mxu0 0.0
    %1507 = vmatprep.subr.mxu0 0.0
    %1508 = vmatpush1.msra.mxu0 0.0
    %1509 = vmatprep.subr.mxu0 0.0
    %1510 = vmatpush1.msra.mxu0 0.0
    %1511 = vmatprep.subr.mxu0 0.0
    %1512 = vmatpush1.msra.mxu0 0.0
    %1513 = vmatprep.subr.mxu0 0.0
    %1514 = vmatpush1.msra.mxu0 0.0
    %1515 = vmatprep.subr.mxu0 0.0
    %1516 = vmatpush1.msra.mxu0 0.0
    %1517 = vmatprep.subr.mxu0 0.0
    %1518 = vmatpush1.msra.mxu0 0.0
    %1519 = vmatprep.subr.mxu0 0.0
    %1520 = vmatpush1.msra.mxu0 0.0
    %1521 = vmatprep.subr.mxu0 0.0
    %1522 = vmatpush1.msra.mxu0 0.0
    %1523 = vmatprep.subr.mxu0 0.0
    %1524 = vmatpush1.msra.mxu0 0.0
    %1525 = vmatprep.subr.mxu0 0.0
    %1526 = vmatpush1.msra.mxu0 0.0
    %1527 = vmatprep.subr.mxu0 0.0
    %1528 = vmatpush1.msra.mxu0 0.0
    %1529 = vmatprep.subr.mxu0 0.0
    %1530 = vmatpush1.msra.mxu0 0.0
    %1531 = vmatprep.subr.mxu0 0.0
    %1532 = vmatpush1.msra.mxu0 0.0
    %1533 = vmatprep.subr.mxu0 0.0
    %1534 = vmatpush1.msra.mxu0 0.0
    %1535 = vmatprep.subr.mxu0 0.0
    %1536 = vmatpush1.msra.mxu0 0.0
    %1537 = vmatprep.subr.mxu0 0.0
    %1538 = vmatpush1.msra.mxu0 0.0
    %1539 = vmatprep.mubr.f32.mxu0 0.0
    %1540 = vmatmul.mubr.f32.gmra.mrb[0].mxu0 %v1470
    %v1541 = vpop.f32.mrb[0].mxu0
    %v1542 = vadd.f32 0.0, %v1541
    %v1543 = vpop.f32.mrb[0].mxu0
    %1544 = vmatprep.mubr.f32.mxu0 0.0
    %1545 = vmatmul.mubr.f32.gmra.mrb[0].mxu0 %v1473
    %v1546 = vpop.f32.mrb[0].mxu0
    %v1547 = vadd.f32 0.0, %v1546
    %v1548 = vpop.f32.mrb[0].mxu0
    %1549 = vdwg.mxu0
    %1550 = vrot.lane.b32.xlu0 %v493, 64
    %v1551 = vpop.permute.xlu0 %1550
    %1552 = vrot.lane.b32.xlu0 %v498, 64
    %v1553 = vpop.permute.xlu0 %1552
    %v1557 = vsel %vm1286, %v1436, 0
    %v1560 = vsel %vm1286, %v1438, 0
    %1562 = vmatprep.subr.mxu0 0.0
    %1563 = vmatpush1.msra.mxu0 %v1551
    %1564 = vmatprep.subr.mxu0 0.0
    %1565 = vmatpush1.msra.mxu0 %v1553
    %1566 = vmatprep.subr.mxu0 0.0
    %1567 = vmatpush1.msra.mxu0 0.0
    %1568 = vmatprep.subr.mxu0 0.0
    %1569 = vmatpush1.msra.mxu0 0.0
    %1570 = vmatprep.subr.mxu0 0.0
    %1571 = vmatpush1.msra.mxu0 0.0
    %1572 = vmatprep.subr.mxu0 0.0
    %1573 = vmatpush1.msra.mxu0 0.0
    %1574 = vmatprep.subr.mxu0 0.0
    %1575 = vmatpush1.msra.mxu0 0.0
    %1576 = vmatprep.subr.mxu0 0.0
    %1577 = vmatpush1.msra.mxu0 0.0
    %1578 = vmatprep.subr.mxu0 0.0
    %1579 = vmatpush1.msra.mxu0 0.0
    %1580 = vmatprep.subr.mxu0 0.0
    %1581 = vmatpush1.msra.mxu0 0.0
    %1582 = vmatprep.subr.mxu0 0.0
    %1583 = vmatpush1.msra.mxu0 0.0
    %1584 = vmatprep.subr.mxu0 0.0
    %1585 = vmatpush1.msra.mxu0 0.0
    %1586 = vmatprep.subr.mxu0 0.0
    %1587 = vmatpush1.msra.mxu0 0.0
    %1588 = vmatprep.subr.mxu0 0.0
    %1589 = vmatpush1.msra.mxu0 0.0
    %1590 = vmatprep.subr.mxu0 0.0
    %1591 = vmatpush1.msra.mxu0 0.0
    %1592 = vmatprep.subr.mxu0 0.0
    %1593 = vmatpush1.msra.mxu0 0.0
    %1594 = vmatprep.subr.mxu0 0.0
    %1595 = vmatpush1.msra.mxu0 0.0
    %1596 = vmatprep.subr.mxu0 0.0
    %1597 = vmatpush1.msra.mxu0 0.0
    %1598 = vmatprep.subr.mxu0 0.0
    %1599 = vmatpush1.msra.mxu0 0.0
    %1600 = vmatprep.subr.mxu0 0.0
    %1601 = vmatpush1.msra.mxu0 0.0
    %1602 = vmatprep.subr.mxu0 0.0
    %1603 = vmatpush1.msra.mxu0 0.0
    %1604 = vmatprep.subr.mxu0 0.0
    %1605 = vmatpush1.msra.mxu0 0.0
    %1606 = vmatprep.subr.mxu0 0.0
    %1607 = vmatpush1.msra.mxu0 0.0
    %1608 = vmatprep.subr.mxu0 0.0
    %1609 = vmatpush1.msra.mxu0 0.0
    %1610 = vmatprep.subr.mxu0 0.0
    %1611 = vmatpush1.msra.mxu0 0.0
    %1612 = vmatprep.subr.mxu0 0.0
    %1613 = vmatpush1.msra.mxu0 0.0
    %1614 = vmatprep.subr.mxu0 0.0
    %1615 = vmatpush1.msra.mxu0 0.0
    %1616 = vmatprep.subr.mxu0 0.0
    %1617 = vmatpush1.msra.mxu0 0.0
    %1618 = vmatprep.subr.mxu0 0.0
    %1619 = vmatpush1.msra.mxu0 0.0
    %1620 = vmatprep.subr.mxu0 0.0
    %1621 = vmatpush1.msra.mxu0 0.0
    %1622 = vmatprep.subr.mxu0 0.0
    %1623 = vmatpush1.msra.mxu0 0.0
    %1624 = vmatprep.subr.mxu0 0.0
    %1625 = vmatpush1.msra.mxu0 0.0
    %1626 = vmatprep.mubr.f32.mxu0 0.0
    %1627 = vmatmul.mubr.f32.gmra.mrb[0].mxu0 %v1557
    %v1628 = vpop.f32.mrb[0].mxu0
    %v1629 = vadd.f32 0.0, %v1628
    %v1630 = vpop.f32.mrb[0].mxu0
    %1631 = vmatprep.mubr.f32.mxu0 0.0
    %1632 = vmatmul.mubr.f32.gmra.mrb[0].mxu0 %v1560
    %v1633 = vpop.f32.mrb[0].mxu0
    %v1634 = vadd.f32 0.0, %v1633
    %v1635 = vpop.f32.mrb[0].mxu0
    %1636 = vdwg.mxu0
    %1637 = vrot.lane.b32.xlu0 %v503, 64
    %v1638 = vpop.permute.xlu0 %1637
    %1639 = vrot.lane.b32.xlu0 %v508, 64
    %v1640 = vpop.permute.xlu0 %1639
    %v1644 = vsel %vm1286, %v1440, 0
    %v1647 = vsel %vm1286, %v1442, 0
    %1649 = vmatprep.subr.mxu0 0.0
    %1650 = vmatpush1.msra.mxu0 %v1638
    %1651 = vmatprep.subr.mxu0 0.0
    %1652 = vmatpush1.msra.mxu0 %v1640
    %1653 = vmatprep.subr.mxu0 0.0
    %1654 = vmatpush1.msra.mxu0 0.0
    %1655 = vmatprep.subr.mxu0 0.0
    %1656 = vmatpush1.msra.mxu0 0.0
    %1657 = vmatprep.subr.mxu0 0.0
    %1658 = vmatpush1.msra.mxu0 0.0
    %1659 = vmatprep.subr.mxu0 0.0
    %1660 = vmatpush1.msra.mxu0 0.0
    %1661 = vmatprep.subr.mxu0 0.0
    %1662 = vmatpush1.msra.mxu0 0.0
    %1663 = vmatprep.subr.mxu0 0.0
    %1664 = vmatpush1.msra.mxu0 0.0
    %1665 = vmatprep.subr.mxu0 0.0
    %1666 = vmatpush1.msra.mxu0 0.0
    %1667 = vmatprep.subr.mxu0 0.0
    %1668 = vmatpush1.msra.mxu0 0.0
    %1669 = vmatprep.subr.mxu0 0.0
    %1670 = vmatpush1.msra.mxu0 0.0
    %1671 = vmatprep.subr.mxu0 0.0
    %1672 = vmatpush1.msra.mxu0 0.0
    %1673 = vmatprep.subr.mxu0 0.0
    %1674 = vmatpush1.msra.mxu0 0.0
    %1675 = vmatprep.subr.mxu0 0.0
    %1676 = vmatpush1.msra.mxu0 0.0
    %1677 = vmatprep.subr.mxu0 0.0
    %1678 = vmatpush1.msra.mxu0 0.0
    %1679 = vmatprep.subr.mxu0 0.0
    %1680 = vmatpush1.msra.mxu0 0.0
    %1681 = vmatprep.subr.mxu0 0.0
    %1682 = vmatpush1.msra.mxu0 0.0
    %1683 = vmatprep.subr.mxu0 0.0
    %1684 = vmatpush1.msra.mxu0 0.0
    %1685 = vmatprep.subr.mxu0 0.0
    %1686 = vmatpush1.msra.mxu0 0.0
    %1687 = vmatprep.subr.mxu0 0.0
    %1688 = vmatpush1.msra.mxu0 0.0
    %1689 = vmatprep.subr.mxu0 0.0
    %1690 = vmatpush1.msra.mxu0 0.0
    %1691 = vmatprep.subr.mxu0 0.0
    %1692 = vmatpush1.msra.mxu0 0.0
    %1693 = vmatprep.subr.mxu0 0.0
    %1694 = vmatpush1.msra.mxu0 0.0
    %1695 = vmatprep.subr.mxu0 0.0
    %1696 = vmatpush1.msra.mxu0 0.0
    %1697 = vmatprep.subr.mxu0 0.0
    %1698 = vmatpush1.msra.mxu0 0.0
    %1699 = vmatprep.subr.mxu0 0.0
    %1700 = vmatpush1.msra.mxu0 0.0
    %1701 = vmatprep.subr.mxu0 0.0
    %1702 = vmatpush1.msra.mxu0 0.0
    %1703 = vmatprep.subr.mxu0 0.0
    %1704 = vmatpush1.msra.mxu0 0.0
    %1705 = vmatprep.subr.mxu0 0.0
    %1706 = vmatpush1.msra.mxu0 0.0
    %1707 = vmatprep.subr.mxu0 0.0
    %1708 = vmatpush1.msra.mxu0 0.0
    %1709 = vmatprep.subr.mxu0 0.0
    %1710 = vmatpush1.msra.mxu0 0.0
    %1711 = vmatprep.subr.mxu0 0.0
    %1712 = vmatpush1.msra.mxu0 0.0
    %1713 = vmatprep.mubr.f32.mxu0 0.0
    %1714 = vmatmul.mubr.f32.gmra.mrb[0].mxu0 %v1644
    %v1715 = vpop.f32.mrb[0].mxu0
    %v1716 = vadd.f32 0.0, %v1715
    %v1717 = vpop.f32.mrb[0].mxu0
    %1718 = vmatprep.mubr.f32.mxu0 0.0
    %1719 = vmatmul.mubr.f32.gmra.mrb[0].mxu0 %v1647
    %v1720 = vpop.f32.mrb[0].mxu0
    %v1721 = vadd.f32 0.0, %v1720
    %v1722 = vpop.f32.mrb[0].mxu0
    %1723 = vdwg.mxu0
    %1724 = vrot.lane.b32.xlu0 %v513, 64
    %v1725 = vpop.permute.xlu0 %1724
    %1726 = vrot.lane.b32.xlu0 %v518, 64
    %v1727 = vpop.permute.xlu0 %1726
    %v1731 = vsel %vm1286, %v1444, 0
    %v1734 = vsel %vm1286, %v1446, 0
    %1736 = vmatprep.subr.mxu0 0.0
    %1737 = vmatpush1.msra.mxu0 %v1725
    %1738 = vmatprep.subr.mxu0 0.0
    %1739 = vmatpush1.msra.mxu0 %v1727
    %1740 = vmatprep.subr.mxu0 0.0
    %1741 = vmatpush1.msra.mxu0 0.0
    %1742 = vmatprep.subr.mxu0 0.0
    %1743 = vmatpush1.msra.mxu0 0.0
    %1744 = vmatprep.subr.mxu0 0.0
    %1745 = vmatpush1.msra.mxu0 0.0
    %1746 = vmatprep.subr.mxu0 0.0
    %1747 = vmatpush1.msra.mxu0 0.0
    %1748 = vmatprep.subr.mxu0 0.0
    %1749 = vmatpush1.msra.mxu0 0.0
    %1750 = vmatprep.subr.mxu0 0.0
    %1751 = vmatpush1.msra.mxu0 0.0
    %1752 = vmatprep.subr.mxu0 0.0
    %1753 = vmatpush1.msra.mxu0 0.0
    %1754 = vmatprep.subr.mxu0 0.0
    %1755 = vmatpush1.msra.mxu0 0.0
    %1756 = vmatprep.subr.mxu0 0.0
    %1757 = vmatpush1.msra.mxu0 0.0
    %1758 = vmatprep.subr.mxu0 0.0
    %1759 = vmatpush1.msra.mxu0 0.0
    %1760 = vmatprep.subr.mxu0 0.0
    %1761 = vmatpush1.msra.mxu0 0.0
    %1762 = vmatprep.subr.mxu0 0.0
    %1763 = vmatpush1.msra.mxu0 0.0
    %1764 = vmatprep.subr.mxu0 0.0
    %1765 = vmatpush1.msra.mxu0 0.0
    %1766 = vmatprep.subr.mxu0 0.0
    %1767 = vmatpush1.msra.mxu0 0.0
    %1768 = vmatprep.subr.mxu0 0.0
    %1769 = vmatpush1.msra.mxu0 0.0
    %1770 = vmatprep.subr.mxu0 0.0
    %1771 = vmatpush1.msra.mxu0 0.0
    %1772 = vmatprep.subr.mxu0 0.0
    %1773 = vmatpush1.msra.mxu0 0.0
    %1774 = vmatprep.subr.mxu0 0.0
    %1775 = vmatpush1.msra.mxu0 0.0
    %1776 = vmatprep.subr.mxu0 0.0
    %1777 = vmatpush1.msra.mxu0 0.0
    %1778 = vmatprep.subr.mxu0 0.0
    %1779 = vmatpush1.msra.mxu0 0.0
    %1780 = vmatprep.subr.mxu0 0.0
    %1781 = vmatpush1.msra.mxu0 0.0
    %1782 = vmatprep.subr.mxu0 0.0
    %1783 = vmatpush1.msra.mxu0 0.0
    %1784 = vmatprep.subr.mxu0 0.0
    %1785 = vmatpush1.msra.mxu0 0.0
    %1786 = vmatprep.subr.mxu0 0.0
    %1787 = vmatpush1.msra.mxu0 0.0
    %1788 = vmatprep.subr.mxu0 0.0
    %1789 = vmatpush1.msra.mxu0 0.0
    %1790 = vmatprep.subr.mxu0 0.0
    %1791 = vmatpush1.msra.mxu0 0.0
    %1792 = vmatprep.subr.mxu0 0.0
    %1793 = vmatpush1.msra.mxu0 0.0
    %1794 = vmatprep.subr.mxu0 0.0
    %1795 = vmatpush1.msra.mxu0 0.0
    %1796 = vmatprep.subr.mxu0 0.0
    %1797 = vmatpush1.msra.mxu0 0.0
    %1798 = vmatprep.subr.mxu0 0.0
    %1799 = vmatpush1.msra.mxu0 0.0
    %1800 = vmatprep.mubr.f32.mxu0 0.0
    %1801 = vmatmul.mubr.f32.gmra.mrb[0].mxu0 %v1731
    %v1802 = vpop.f32.mrb[0].mxu0
    %v1803 = vadd.f32 0.0, %v1802
    %v1804 = vpop.f32.mrb[0].mxu0
    %1805 = vmatprep.mubr.f32.mxu0 0.0
    %1806 = vmatmul.mubr.f32.gmra.mrb[0].mxu0 %v1734
    %v1807 = vpop.f32.mrb[0].mxu0
    %v1808 = vadd.f32 0.0, %v1807
    %v1809 = vpop.f32.mrb[0].mxu0
    %1810 = vdwg.mxu0
    %1811 = vrot.lane.b32.xlu0 %v523, 64
    %v1812 = vpop.permute.xlu0 %1811
    %1813 = vrot.lane.b32.xlu0 %v528, 64
    %v1814 = vpop.permute.xlu0 %1813
    %v1818 = vsel %vm1286, %v1448, 0
    %v1821 = vsel %vm1286, %v1450, 0
    %1823 = vmatprep.subr.mxu0 0.0
    %1824 = vmatpush1.msra.mxu0 %v1812
    %1825 = vmatprep.subr.mxu0 0.0
    %1826 = vmatpush1.msra.mxu0 %v1814
    %1827 = vmatprep.subr.mxu0 0.0
    %1828 = vmatpush1.msra.mxu0 0.0
    %1829 = vmatprep.subr.mxu0 0.0
    %1830 = vmatpush1.msra.mxu0 0.0
    %1831 = vmatprep.subr.mxu0 0.0
    %1832 = vmatpush1.msra.mxu0 0.0
    %1833 = vmatprep.subr.mxu0 0.0
    %1834 = vmatpush1.msra.mxu0 0.0
    %1835 = vmatprep.subr.mxu0 0.0
    %1836 = vmatpush1.msra.mxu0 0.0
    %1837 = vmatprep.subr.mxu0 0.0
    %1838 = vmatpush1.msra.mxu0 0.0
    %1839 = vmatprep.subr.mxu0 0.0
    %1840 = vmatpush1.msra.mxu0 0.0
    %1841 = vmatprep.subr.mxu0 0.0
    %1842 = vmatpush1.msra.mxu0 0.0
    %1843 = vmatprep.subr.mxu0 0.0
    %1844 = vmatpush1.msra.mxu0 0.0
    %1845 = vmatprep.subr.mxu0 0.0
    %1846 = vmatpush1.msra.mxu0 0.0
    %1847 = vmatprep.subr.mxu0 0.0
    %1848 = vmatpush1.msra.mxu0 0.0
    %1849 = vmatprep.subr.mxu0 0.0
    %1850 = vmatpush1.msra.mxu0 0.0
    %1851 = vmatprep.subr.mxu0 0.0
    %1852 = vmatpush1.msra.mxu0 0.0
    %1853 = vmatprep.subr.mxu0 0.0
    %1854 = vmatpush1.msra.mxu0 0.0
    %1855 = vmatprep.subr.mxu0 0.0
    %1856 = vmatpush1.msra.mxu0 0.0
    %1857 = vmatprep.subr.mxu0 0.0
    %1858 = vmatpush1.msra.mxu0 0.0
    %1859 = vmatprep.subr.mxu0 0.0
    %1860 = vmatpush1.msra.mxu0 0.0
    %1861 = vmatprep.subr.mxu0 0.0
    %1862 = vmatpush1.msra.mxu0 0.0
    %1863 = vmatprep.subr.mxu0 0.0
    %1864 = vmatpush1.msra.mxu0 0.0
    %1865 = vmatprep.subr.mxu0 0.0
    %1866 = vmatpush1.msra.mxu0 0.0
    %1867 = vmatprep.subr.mxu0 0.0
    %1868 = vmatpush1.msra.mxu0 0.0
    %1869 = vmatprep.subr.mxu0 0.0
    %1870 = vmatpush1.msra.mxu0 0.0
    %1871 = vmatprep.subr.mxu0 0.0
    %1872 = vmatpush1.msra.mxu0 0.0
    %1873 = vmatprep.subr.mxu0 0.0
    %1874 = vmatpush1.msra.mxu0 0.0
    %1875 = vmatprep.subr.mxu0 0.0
    %1876 = vmatpush1.msra.mxu0 0.0
    %1877 = vmatprep.subr.mxu0 0.0
    %1878 = vmatpush1.msra.mxu0 0.0
    %1879 = vmatprep.subr.mxu0 0.0
    %1880 = vmatpush1.msra.mxu0 0.0
    %1881 = vmatprep.subr.mxu0 0.0
    %1882 = vmatpush1.msra.mxu0 0.0
    %1883 = vmatprep.subr.mxu0 0.0
    %1884 = vmatpush1.msra.mxu0 0.0
    %1885 = vmatprep.subr.mxu0 0.0
    %1886 = vmatpush1.msra.mxu0 0.0
    %1887 = vmatprep.mubr.f32.mxu0 0.0
    %1888 = vmatmul.mubr.f32.gmra.mrb[0].mxu0 %v1818
    %v1889 = vpop.f32.mrb[0].mxu0
    %v1890 = vadd.f32 0.0, %v1889
    %v1891 = vpop.f32.mrb[0].mxu0
    %1892 = vmatprep.mubr.f32.mxu0 0.0
    %1893 = vmatmul.mubr.f32.gmra.mrb[0].mxu0 %v1821
    %v1894 = vpop.f32.mrb[0].mxu0
    %v1895 = vadd.f32 0.0, %v1894
    %v1896 = vpop.f32.mrb[0].mxu0
    %1897 = vdwg.mxu0
    %1898 = vrot.lane.b32.xlu0 %v533, 64
    %v1899 = vpop.permute.xlu0 %1898
    %1900 = vrot.lane.b32.xlu0 %v538, 64
    %v1901 = vpop.permute.xlu0 %1900
    %v1905 = vsel %vm1286, %v1452, 0
    %v1908 = vsel %vm1286, %v1454, 0
    %1910 = vmatprep.subr.mxu0 0.0
    %1911 = vmatpush1.msra.mxu0 %v1899
    %1912 = vmatprep.subr.mxu0 0.0
    %1913 = vmatpush1.msra.mxu0 %v1901
    %1914 = vmatprep.subr.mxu0 0.0
    %1915 = vmatpush1.msra.mxu0 0.0
    %1916 = vmatprep.subr.mxu0 0.0
    %1917 = vmatpush1.msra.mxu0 0.0
    %1918 = vmatprep.subr.mxu0 0.0
    %1919 = vmatpush1.msra.mxu0 0.0
    %1920 = vmatprep.subr.mxu0 0.0
    %1921 = vmatpush1.msra.mxu0 0.0
    %1922 = vmatprep.subr.mxu0 0.0
    %1923 = vmatpush1.msra.mxu0 0.0
    %1924 = vmatprep.subr.mxu0 0.0
    %1925 = vmatpush1.msra.mxu0 0.0
    %1926 = vmatprep.subr.mxu0 0.0
    %1927 = vmatpush1.msra.mxu0 0.0
    %1928 = vmatprep.subr.mxu0 0.0
    %1929 = vmatpush1.msra.mxu0 0.0
    %1930 = vmatprep.subr.mxu0 0.0
    %1931 = vmatpush1.msra.mxu0 0.0
    %1932 = vmatprep.subr.mxu0 0.0
    %1933 = vmatpush1.msra.mxu0 0.0
    %1934 = vmatprep.subr.mxu0 0.0
    %1935 = vmatpush1.msra.mxu0 0.0
    %1936 = vmatprep.subr.mxu0 0.0
    %1937 = vmatpush1.msra.mxu0 0.0
    %1938 = vmatprep.subr.mxu0 0.0
    %1939 = vmatpush1.msra.mxu0 0.0
    %1940 = vmatprep.subr.mxu0 0.0
    %1941 = vmatpush1.msra.mxu0 0.0
    %1942 = vmatprep.subr.mxu0 0.0
    %1943 = vmatpush1.msra.mxu0 0.0
    %1944 = vmatprep.subr.mxu0 0.0
    %1945 = vmatpush1.msra.mxu0 0.0
    %1946 = vmatprep.subr.mxu0 0.0
    %1947 = vmatpush1.msra.mxu0 0.0
    %1948 = vmatprep.subr.mxu0 0.0
    %1949 = vmatpush1.msra.mxu0 0.0
    %1950 = vmatprep.subr.mxu0 0.0
    %1951 = vmatpush1.msra.mxu0 0.0
    %1952 = vmatprep.subr.mxu0 0.0
    %1953 = vmatpush1.msra.mxu0 0.0
    %1954 = vmatprep.subr.mxu0 0.0
    %1955 = vmatpush1.msra.mxu0 0.0
    %1956 = vmatprep.subr.mxu0 0.0
    %1957 = vmatpush1.msra.mxu0 0.0
    %1958 = vmatprep.subr.mxu0 0.0
    %1959 = vmatpush1.msra.mxu0 0.0
    %1960 = vmatprep.subr.mxu0 0.0
    %1961 = vmatpush1.msra.mxu0 0.0
    %1962 = vmatprep.subr.mxu0 0.0
    %1963 = vmatpush1.msra.mxu0 0.0
    %1964 = vmatprep.subr.mxu0 0.0
    %1965 = vmatpush1.msra.mxu0 0.0
    %1966 = vmatprep.subr.mxu0 0.0
    %1967 = vmatpush1.msra.mxu0 0.0
    %1968 = vmatprep.subr.mxu0 0.0
    %1969 = vmatpush1.msra.mxu0 0.0
    %1970 = vmatprep.subr.mxu0 0.0
    %1971 = vmatpush1.msra.mxu0 0.0
    %1972 = vmatprep.subr.mxu0 0.0
    %1973 = vmatpush1.msra.mxu0 0.0
    %1974 = vmatprep.mubr.f32.mxu0 0.0
    %1975 = vmatmul.mubr.f32.gmra.mrb[0].mxu0 %v1905
    %v1976 = vpop.f32.mrb[0].mxu0
    %v1977 = vadd.f32 0.0, %v1976
    %v1978 = vpop.f32.mrb[0].mxu0
    %1979 = vmatprep.mubr.f32.mxu0 0.0
    %1980 = vmatmul.mubr.f32.gmra.mrb[0].mxu0 %v1908
    %v1981 = vpop.f32.mrb[0].mxu0
    %v1982 = vadd.f32 0.0, %v1981
    %v1983 = vpop.f32.mrb[0].mxu0
    %1984 = vdwg.mxu0
    %1985 = vrot.lane.b32.xlu0 %v543, 64
    %v1986 = vpop.permute.xlu0 %1985
    %1987 = vrot.lane.b32.xlu0 %v548, 64
    %v1988 = vpop.permute.xlu0 %1987
    %v1992 = vsel %vm1286, %v1456, 0
    %v1995 = vsel %vm1286, %v1458, 0
    %1997 = vmatprep.subr.mxu0 0.0
    %1998 = vmatpush1.msra.mxu0 %v1986
    %1999 = vmatprep.subr.mxu0 0.0
    %2000 = vmatpush1.msra.mxu0 %v1988
    %2001 = vmatprep.subr.mxu0 0.0
    %2002 = vmatpush1.msra.mxu0 0.0
    %2003 = vmatprep.subr.mxu0 0.0
    %2004 = vmatpush1.msra.mxu0 0.0
    %2005 = vmatprep.subr.mxu0 0.0
    %2006 = vmatpush1.msra.mxu0 0.0
    %2007 = vmatprep.subr.mxu0 0.0
    %2008 = vmatpush1.msra.mxu0 0.0
    %2009 = vmatprep.subr.mxu0 0.0
    %2010 = vmatpush1.msra.mxu0 0.0
    %2011 = vmatprep.subr.mxu0 0.0
    %2012 = vmatpush1.msra.mxu0 0.0
    %2013 = vmatprep.subr.mxu0 0.0
    %2014 = vmatpush1.msra.mxu0 0.0
    %2015 = vmatprep.subr.mxu0 0.0
    %2016 = vmatpush1.msra.mxu0 0.0
    %2017 = vmatprep.subr.mxu0 0.0
    %2018 = vmatpush1.msra.mxu0 0.0
    %2019 = vmatprep.subr.mxu0 0.0
    %2020 = vmatpush1.msra.mxu0 0.0
    %2021 = vmatprep.subr.mxu0 0.0
    %2022 = vmatpush1.msra.mxu0 0.0
    %2023 = vmatprep.subr.mxu0 0.0
    %2024 = vmatpush1.msra.mxu0 0.0
    %2025 = vmatprep.subr.mxu0 0.0
    %2026 = vmatpush1.msra.mxu0 0.0
    %2027 = vmatprep.subr.mxu0 0.0
    %2028 = vmatpush1.msra.mxu0 0.0
    %2029 = vmatprep.subr.mxu0 0.0
    %2030 = vmatpush1.msra.mxu0 0.0
    %2031 = vmatprep.subr.mxu0 0.0
    %2032 = vmatpush1.msra.mxu0 0.0
    %2033 = vmatprep.subr.mxu0 0.0
    %2034 = vmatpush1.msra.mxu0 0.0
    %2035 = vmatprep.subr.mxu0 0.0
    %2036 = vmatpush1.msra.mxu0 0.0
    %2037 = vmatprep.subr.mxu0 0.0
    %2038 = vmatpush1.msra.mxu0 0.0
    %2039 = vmatprep.subr.mxu0 0.0
    %2040 = vmatpush1.msra.mxu0 0.0
    %2041 = vmatprep.subr.mxu0 0.0
    %2042 = vmatpush1.msra.mxu0 0.0
    %2043 = vmatprep.subr.mxu0 0.0
    %2044 = vmatpush1.msra.mxu0 0.0
    %2045 = vmatprep.subr.mxu0 0.0
    %2046 = vmatpush1.msra.mxu0 0.0
    %2047 = vmatprep.subr.mxu0 0.0
    %2048 = vmatpush1.msra.mxu0 0.0
    %2049 = vmatprep.subr.mxu0 0.0
    %2050 = vmatpush1.msra.mxu0 0.0
    %2051 = vmatprep.subr.mxu0 0.0
    %2052 = vmatpush1.msra.mxu0 0.0
    %2053 = vmatprep.subr.mxu0 0.0
    %2054 = vmatpush1.msra.mxu0 0.0
    %2055 = vmatprep.subr.mxu0 0.0
    %2056 = vmatpush1.msra.mxu0 0.0
    %2057 = vmatprep.subr.mxu0 0.0
    %2058 = vmatpush1.msra.mxu0 0.0
    %2059 = vmatprep.subr.mxu0 0.0
    %2060 = vmatpush1.msra.mxu0 0.0
    %2061 = vmatprep.mubr.f32.mxu0 0.0
    %2062 = vmatmul.mubr.f32.gmra.mrb[0].mxu0 %v1992
    %v2063 = vpop.f32.mrb[0].mxu0
    %v2064 = vadd.f32 0.0, %v2063
    %v2065 = vpop.f32.mrb[0].mxu0
    %2066 = vmatprep.mubr.f32.mxu0 0.0
    %2067 = vmatmul.mubr.f32.gmra.mrb[0].mxu0 %v1995
    %v2068 = vpop.f32.mrb[0].mxu0
    %v2069 = vadd.f32 0.0, %v2068
    %v2070 = vpop.f32.mrb[0].mxu0
    %2071 = vdwg.mxu0
    %2072 = vrot.lane.b32.xlu0 %v553, 64
    %v2073 = vpop.permute.xlu0 %2072
    %2074 = vrot.lane.b32.xlu0 %v558, 64
    %v2075 = vpop.permute.xlu0 %2074
    %v2079 = vsel %vm1286, %v1460, 0
    %v2082 = vsel %vm1286, %v1462, 0
    %2084 = vmatprep.subr.mxu0 0.0
    %2085 = vmatpush1.msra.mxu0 %v2073
    %2086 = vmatprep.subr.mxu0 0.0
    %2087 = vmatpush1.msra.mxu0 %v2075
    %2088 = vmatprep.subr.mxu0 0.0
    %2089 = vmatpush1.msra.mxu0 0.0
    %2090 = vmatprep.subr.mxu0 0.0
    %2091 = vmatpush1.msra.mxu0 0.0
    %2092 = vmatprep.subr.mxu0 0.0
    %2093 = vmatpush1.msra.mxu0 0.0
    %2094 = vmatprep.subr.mxu0 0.0
    %2095 = vmatpush1.msra.mxu0 0.0
    %2096 = vmatprep.subr.mxu0 0.0
    %2097 = vmatpush1.msra.mxu0 0.0
    %2098 = vmatprep.subr.mxu0 0.0
    %2099 = vmatpush1.msra.mxu0 0.0
    %2100 = vmatprep.subr.mxu0 0.0
    %2101 = vmatpush1.msra.mxu0 0.0
    %2102 = vmatprep.subr.mxu0 0.0
    %2103 = vmatpush1.msra.mxu0 0.0
    %2104 = vmatprep.subr.mxu0 0.0
    %2105 = vmatpush1.msra.mxu0 0.0
    %2106 = vmatprep.subr.mxu0 0.0
    %2107 = vmatpush1.msra.mxu0 0.0
    %2108 = vmatprep.subr.mxu0 0.0
    %2109 = vmatpush1.msra.mxu0 0.0
    %2110 = vmatprep.subr.mxu0 0.0
    %2111 = vmatpush1.msra.mxu0 0.0
    %2112 = vmatprep.subr.mxu0 0.0
    %2113 = vmatpush1.msra.mxu0 0.0
    %2114 = vmatprep.subr.mxu0 0.0
    %2115 = vmatpush1.msra.mxu0 0.0
    %2116 = vmatprep.subr.mxu0 0.0
    %2117 = vmatpush1.msra.mxu0 0.0
    %2118 = vmatprep.subr.mxu0 0.0
    %2119 = vmatpush1.msra.mxu0 0.0
    %2120 = vmatprep.subr.mxu0 0.0
    %2121 = vmatpush1.msra.mxu0 0.0
    %2122 = vmatprep.subr.mxu0 0.0
    %2123 = vmatpush1.msra.mxu0 0.0
    %2124 = vmatprep.subr.mxu0 0.0
    %2125 = vmatpush1.msra.mxu0 0.0
    %2126 = vmatprep.subr.mxu0 0.0
    %2127 = vmatpush1.msra.mxu0 0.0
    %2128 = vmatprep.subr.mxu0 0.0
    %2129 = vmatpush1.msra.mxu0 0.0
    %2130 = vmatprep.subr.mxu0 0.0
    %2131 = vmatpush1.msra.mxu0 0.0
    %2132 = vmatprep.subr.mxu0 0.0
    %2133 = vmatpush1.msra.mxu0 0.0
    %2134 = vmatprep.subr.mxu0 0.0
    %2135 = vmatpush1.msra.mxu0 0.0
    %2136 = vmatprep.subr.mxu0 0.0
    %2137 = vmatpush1.msra.mxu0 0.0
    %2138 = vmatprep.subr.mxu0 0.0
    %2139 = vmatpush1.msra.mxu0 0.0
    %2140 = vmatprep.subr.mxu0 0.0
    %2141 = vmatpush1.msra.mxu0 0.0
    %2142 = vmatprep.subr.mxu0 0.0
    %2143 = vmatpush1.msra.mxu0 0.0
    %2144 = vmatprep.subr.mxu0 0.0
    %2145 = vmatpush1.msra.mxu0 0.0
    %2146 = vmatprep.subr.mxu0 0.0
    %2147 = vmatpush1.msra.mxu0 0.0
    %2148 = vmatprep.mubr.f32.mxu0 0.0
    %2149 = vmatmul.mubr.f32.gmra.mrb[0].mxu0 %v2079
    %v2150 = vpop.f32.mrb[0].mxu0
    %v2151 = vadd.f32 0.0, %v2150
    %v2152 = vpop.f32.mrb[0].mxu0
    %2153 = vmatprep.mubr.f32.mxu0 0.0
    %2154 = vmatmul.mubr.f32.gmra.mrb[0].mxu0 %v2082
    %v2155 = vpop.f32.mrb[0].mxu0
    %v2156 = vadd.f32 0.0, %v2155
    %v2157 = vpop.f32.mrb[0].mxu0
    %2158 = vdwg.mxu0
    %2159 = vrot.lane.b32.xlu0 %v483, 120
    %v2160 = vpop.permute.xlu0 %2159
    %2161 = vrot.lane.b32.xlu0 %v488, 120
    %v2162 = vpop.permute.xlu0 %2161
    %2163 = vrot.lane.b32.xlu0 %v483, 88
    %v2164 = vpop.permute.xlu0 %2163
    %2165 = vrot.lane.b32.xlu0 %v488, 88
    %v2166 = vpop.permute.xlu0 %2165
    %v2167 = vsel %vm579, %v2160, 0
    %v2169 = vsel %vm579, %v2162, 0
    %v2171 = vsel %vm579, %v2164, 0
    %v2173 = vsel %vm579, %v2166, 0
    %2175 = vmatprep.subr.mxu0 0.0
    %2176 = vmatpush1.xpose.msra.mxu0 %v2171
    %2177 = vmatprep.subr.mxu0 0.0
    %2178 = vmatpush1.xpose.msra.mxu0 %v2173
    %2179 = vmatprep.subr.mxu0 0.0
    %2180 = vmatpush1.xpose.msra.mxu0 0.0
    %2181 = vmatprep.subr.mxu0 0.0
    %2182 = vmatpush1.xpose.msra.mxu0 0.0
    %2183 = vmatprep.subr.mxu0 0.0
    %2184 = vmatpush1.xpose.msra.mxu0 0.0
    %2185 = vmatprep.subr.mxu0 0.0
    %2186 = vmatpush1.xpose.msra.mxu0 0.0
    %2187 = vmatprep.subr.mxu0 0.0
    %2188 = vmatpush1.xpose.msra.mxu0 0.0
    %2189 = vmatprep.subr.mxu0 0.0
    %2190 = vmatpush1.xpose.msra.mxu0 0.0
    %2191 = vmatprep.subr.mxu0 0.0
    %2192 = vmatpush1.xpose.msra.mxu0 0.0
    %2193 = vmatprep.subr.mxu0 0.0
    %2194 = vmatpush1.xpose.msra.mxu0 0.0
    %2195 = vmatprep.subr.mxu0 0.0
    %2196 = vmatpush1.xpose.msra.mxu0 0.0
    %2197 = vmatprep.subr.mxu0 0.0
    %2198 = vmatpush1.xpose.msra.mxu0 0.0
    %2199 = vmatprep.subr.mxu0 0.0
    %2200 = vmatpush1.xpose.msra.mxu0 0.0
    %2201 = vmatprep.subr.mxu0 0.0
    %2202 = vmatpush1.xpose.msra.mxu0 0.0
    %2203 = vmatprep.subr.mxu0 0.0
    %2204 = vmatpush1.xpose.msra.mxu0 0.0
    %2205 = vmatprep.subr.mxu0 0.0
    %2206 = vmatpush1.xpose.msra.mxu0 0.0
    %2207 = vmatprep.subr.mxu0 0.0
    %2208 = vmatpush1.xpose.msra.mxu0 0.0
    %2209 = vmatprep.subr.mxu0 0.0
    %2210 = vmatpush1.xpose.msra.mxu0 0.0
    %2211 = vmatprep.subr.mxu0 0.0
    %2212 = vmatpush1.xpose.msra.mxu0 0.0
    %2213 = vmatprep.subr.mxu0 0.0
    %2214 = vmatpush1.xpose.msra.mxu0 0.0
    %2215 = vmatprep.subr.mxu0 0.0
    %2216 = vmatpush1.xpose.msra.mxu0 0.0
    %2217 = vmatprep.subr.mxu0 0.0
    %2218 = vmatpush1.xpose.msra.mxu0 0.0
    %2219 = vmatprep.subr.mxu0 0.0
    %2220 = vmatpush1.xpose.msra.mxu0 0.0
    %2221 = vmatprep.subr.mxu0 0.0
    %2222 = vmatpush1.xpose.msra.mxu0 0.0
    %2223 = vmatprep.subr.mxu0 0.0
    %2224 = vmatpush1.xpose.msra.mxu0 0.0
    %2225 = vmatprep.subr.mxu0 0.0
    %2226 = vmatpush1.xpose.msra.mxu0 0.0
    %2227 = vmatprep.subr.mxu0 0.0
    %2228 = vmatpush1.xpose.msra.mxu0 0.0
    %2229 = vmatprep.subr.mxu0 0.0
    %2230 = vmatpush1.xpose.msra.mxu0 0.0
    %2231 = vmatprep.subr.mxu0 0.0
    %2232 = vmatpush1.xpose.msra.mxu0 0.0
    %2233 = vmatprep.subr.mxu0 0.0
    %2234 = vmatpush1.xpose.msra.mxu0 0.0
    %2235 = vmatprep.subr.mxu0 0.0
    %2236 = vmatpush1.xpose.msra.mxu0 0.0
    %2237 = vmatprep.subr.mxu0 0.0
    %2238 = vmatpush1.xpose.msra.mxu0 0.0
    %2239 = vmatprep.mubr.f32.mxu0 0.0
    %2240 = vmatmul.mubr.f32.gmra.mrb[0].mxu0 %v2167
    %v2241 = vpop.f32.mrb[0].mxu0
    %v2242 = vadd.f32 %v563, %v2241
    %v2243 = vpop.f32.mrb[0].mxu0
    %2244 = vmatprep.mubr.f32.mxu0 0.0
    %2245 = vmatmul.mubr.f32.gmra.mrb[0].mxu0 %v2169
    %v2246 = vpop.f32.mrb[0].mxu0
    %v2247 = vadd.f32 %v564, %v2246
    %v2248 = vpop.f32.mrb[0].mxu0
    %2249 = vdwg.mxu0
    %2250 = vrot.lane.b32.xlu0 %v493, 120
    %v2251 = vpop.permute.xlu0 %2250
    %2252 = vrot.lane.b32.xlu0 %v498, 120
    %v2253 = vpop.permute.xlu0 %2252
    %2254 = vrot.lane.b32.xlu0 %v493, 88
    %v2255 = vpop.permute.xlu0 %2254
    %2256 = vrot.lane.b32.xlu0 %v498, 88
    %v2257 = vpop.permute.xlu0 %2256
    %v2258 = vsel %vm579, %v2251, 0
    %v2260 = vsel %vm579, %v2253, 0
    %v2262 = vsel %vm579, %v2255, 0
    %v2264 = vsel %vm579, %v2257, 0
    %2266 = vmatprep.subr.mxu0 0.0
    %2267 = vmatpush1.xpose.msra.mxu0 %v2262
    %2268 = vmatprep.subr.mxu0 0.0
    %2269 = vmatpush1.xpose.msra.mxu0 %v2264
    %2270 = vmatprep.subr.mxu0 0.0
    %2271 = vmatpush1.xpose.msra.mxu0 0.0
    %2272 = vmatprep.subr.mxu0 0.0
    %2273 = vmatpush1.xpose.msra.mxu0 0.0
    %2274 = vmatprep.subr.mxu0 0.0
    %2275 = vmatpush1.xpose.msra.mxu0 0.0
    %2276 = vmatprep.subr.mxu0 0.0
    %2277 = vmatpush1.xpose.msra.mxu0 0.0
    %2278 = vmatprep.subr.mxu0 0.0
    %2279 = vmatpush1.xpose.msra.mxu0 0.0
    %2280 = vmatprep.subr.mxu0 0.0
    %2281 = vmatpush1.xpose.msra.mxu0 0.0
    %2282 = vmatprep.subr.mxu0 0.0
    %2283 = vmatpush1.xpose.msra.mxu0 0.0
    %2284 = vmatprep.subr.mxu0 0.0
    %2285 = vmatpush1.xpose.msra.mxu0 0.0
    %2286 = vmatprep.subr.mxu0 0.0
    %2287 = vmatpush1.xpose.msra.mxu0 0.0
    %2288 = vmatprep.subr.mxu0 0.0
    %2289 = vmatpush1.xpose.msra.mxu0 0.0
    %2290 = vmatprep.subr.mxu0 0.0
    %2291 = vmatpush1.xpose.msra.mxu0 0.0
    %2292 = vmatprep.subr.mxu0 0.0
    %2293 = vmatpush1.xpose.msra.mxu0 0.0
    %2294 = vmatprep.subr.mxu0 0.0
    %2295 = vmatpush1.xpose.msra.mxu0 0.0
    %2296 = vmatprep.subr.mxu0 0.0
    %2297 = vmatpush1.xpose.msra.mxu0 0.0
    %2298 = vmatprep.subr.mxu0 0.0
    %2299 = vmatpush1.xpose.msra.mxu0 0.0
    %2300 = vmatprep.subr.mxu0 0.0
    %2301 = vmatpush1.xpose.msra.mxu0 0.0
    %2302 = vmatprep.subr.mxu0 0.0
    %2303 = vmatpush1.xpose.msra.mxu0 0.0
    %2304 = vmatprep.subr.mxu0 0.0
    %2305 = vmatpush1.xpose.msra.mxu0 0.0
    %2306 = vmatprep.subr.mxu0 0.0
    %2307 = vmatpush1.xpose.msra.mxu0 0.0
    %2308 = vmatprep.subr.mxu0 0.0
    %2309 = vmatpush1.xpose.msra.mxu0 0.0
    %2310 = vmatprep.subr.mxu0 0.0
    %2311 = vmatpush1.xpose.msra.mxu0 0.0
    %2312 = vmatprep.subr.mxu0 0.0
    %2313 = vmatpush1.xpose.msra.mxu0 0.0
    %2314 = vmatprep.subr.mxu0 0.0
    %2315 = vmatpush1.xpose.msra.mxu0 0.0
    %2316 = vmatprep.subr.mxu0 0.0
    %2317 = vmatpush1.xpose.msra.mxu0 0.0
    %2318 = vmatprep.subr.mxu0 0.0
    %2319 = vmatpush1.xpose.msra.mxu0 0.0
    %2320 = vmatprep.subr.mxu0 0.0
    %2321 = vmatpush1.xpose.msra.mxu0 0.0
    %2322 = vmatprep.subr.mxu0 0.0
    %2323 = vmatpush1.xpose.msra.mxu0 0.0
    %2324 = vmatprep.subr.mxu0 0.0
    %2325 = vmatpush1.xpose.msra.mxu0 0.0
    %2326 = vmatprep.subr.mxu0 0.0
    %2327 = vmatpush1.xpose.msra.mxu0 0.0
    %2328 = vmatprep.subr.mxu0 0.0
    %2329 = vmatpush1.xpose.msra.mxu0 0.0
    %2330 = vmatprep.mubr.f32.mxu0 0.0
    %2331 = vmatmul.mubr.f32.gmra.mrb[0].mxu0 %v2258
    %v2332 = vpop.f32.mrb[0].mxu0
    %v2333 = vadd.f32 %v563, %v2332
    %v2334 = vpop.f32.mrb[0].mxu0
    %2335 = vmatprep.mubr.f32.mxu0 0.0
    %2336 = vmatmul.mubr.f32.gmra.mrb[0].mxu0 %v2260
    %v2337 = vpop.f32.mrb[0].mxu0
    %v2338 = vadd.f32 %v564, %v2337
    %v2339 = vpop.f32.mrb[0].mxu0
    %2340 = vdwg.mxu0
    %2341 = vrot.lane.b32.xlu0 %v503, 120
    %v2342 = vpop.permute.xlu0 %2341
    %2343 = vrot.lane.b32.xlu0 %v508, 120
    %v2344 = vpop.permute.xlu0 %2343
    %2345 = vrot.lane.b32.xlu0 %v503, 88
    %v2346 = vpop.permute.xlu0 %2345
    %2347 = vrot.lane.b32.xlu0 %v508, 88
    %v2348 = vpop.permute.xlu0 %2347
    %v2349 = vsel %vm579, %v2342, 0
    %v2351 = vsel %vm579, %v2344, 0
    %v2353 = vsel %vm579, %v2346, 0
    %v2355 = vsel %vm579, %v2348, 0
    %2357 = vmatprep.subr.mxu0 0.0
    %2358 = vmatpush1.xpose.msra.mxu0 %v2353
    %2359 = vmatprep.subr.mxu0 0.0
    %2360 = vmatpush1.xpose.msra.mxu0 %v2355
    %2361 = vmatprep.subr.mxu0 0.0
    %2362 = vmatpush1.xpose.msra.mxu0 0.0
    %2363 = vmatprep.subr.mxu0 0.0
    %2364 = vmatpush1.xpose.msra.mxu0 0.0
    %2365 = vmatprep.subr.mxu0 0.0
    %2366 = vmatpush1.xpose.msra.mxu0 0.0
    %2367 = vmatprep.subr.mxu0 0.0
    %2368 = vmatpush1.xpose.msra.mxu0 0.0
    %2369 = vmatprep.subr.mxu0 0.0
    %2370 = vmatpush1.xpose.msra.mxu0 0.0
    %2371 = vmatprep.subr.mxu0 0.0
    %2372 = vmatpush1.xpose.msra.mxu0 0.0
    %2373 = vmatprep.subr.mxu0 0.0
    %2374 = vmatpush1.xpose.msra.mxu0 0.0
    %2375 = vmatprep.subr.mxu0 0.0
    %2376 = vmatpush1.xpose.msra.mxu0 0.0
    %2377 = vmatprep.subr.mxu0 0.0
    %2378 = vmatpush1.xpose.msra.mxu0 0.0
    %2379 = vmatprep.subr.mxu0 0.0
    %2380 = vmatpush1.xpose.msra.mxu0 0.0
    %2381 = vmatprep.subr.mxu0 0.0
    %2382 = vmatpush1.xpose.msra.mxu0 0.0
    %2383 = vmatprep.subr.mxu0 0.0
    %2384 = vmatpush1.xpose.msra.mxu0 0.0
    %2385 = vmatprep.subr.mxu0 0.0
    %2386 = vmatpush1.xpose.msra.mxu0 0.0
    %2387 = vmatprep.subr.mxu0 0.0
    %2388 = vmatpush1.xpose.msra.mxu0 0.0
    %2389 = vmatprep.subr.mxu0 0.0
    %2390 = vmatpush1.xpose.msra.mxu0 0.0
    %2391 = vmatprep.subr.mxu0 0.0
    %2392 = vmatpush1.xpose.msra.mxu0 0.0
    %2393 = vmatprep.subr.mxu0 0.0
    %2394 = vmatpush1.xpose.msra.mxu0 0.0
    %2395 = vmatprep.subr.mxu0 0.0
    %2396 = vmatpush1.xpose.msra.mxu0 0.0
    %2397 = vmatprep.subr.mxu0 0.0
    %2398 = vmatpush1.xpose.msra.mxu0 0.0
    %2399 = vmatprep.subr.mxu0 0.0
    %2400 = vmatpush1.xpose.msra.mxu0 0.0
    %2401 = vmatprep.subr.mxu0 0.0
    %2402 = vmatpush1.xpose.msra.mxu0 0.0
    %2403 = vmatprep.subr.mxu0 0.0
    %2404 = vmatpush1.xpose.msra.mxu0 0.0
    %2405 = vmatprep.subr.mxu0 0.0
    %2406 = vmatpush1.xpose.msra.mxu0 0.0
    %2407 = vmatprep.subr.mxu0 0.0
    %2408 = vmatpush1.xpose.msra.mxu0 0.0
    %2409 = vmatprep.subr.mxu0 0.0
    %2410 = vmatpush1.xpose.msra.mxu0 0.0
    %2411 = vmatprep.subr.mxu0 0.0
    %2412 = vmatpush1.xpose.msra.mxu0 0.0
    %2413 = vmatprep.subr.mxu0 0.0
    %2414 = vmatpush1.xpose.msra.mxu0 0.0
    %2415 = vmatprep.subr.mxu0 0.0
    %2416 = vmatpush1.xpose.msra.mxu0 0.0
    %2417 = vmatprep.subr.mxu0 0.0
    %2418 = vmatpush1.xpose.msra.mxu0 0.0
    %2419 = vmatprep.subr.mxu0 0.0
    %2420 = vmatpush1.xpose.msra.mxu0 0.0
    %2421 = vmatprep.mubr.f32.mxu0 0.0
    %2422 = vmatmul.mubr.f32.gmra.mrb[0].mxu0 %v2349
    %v2423 = vpop.f32.mrb[0].mxu0
    %v2424 = vadd.f32 %v563, %v2423
    %v2425 = vpop.f32.mrb[0].mxu0
    %2426 = vmatprep.mubr.f32.mxu0 0.0
    %2427 = vmatmul.mubr.f32.gmra.mrb[0].mxu0 %v2351
    %v2428 = vpop.f32.mrb[0].mxu0
    %v2429 = vadd.f32 %v564, %v2428
    %v2430 = vpop.f32.mrb[0].mxu0
    %2431 = vdwg.mxu0
    %2432 = vrot.lane.b32.xlu0 %v513, 120
    %v2433 = vpop.permute.xlu0 %2432
    %2434 = vrot.lane.b32.xlu0 %v518, 120
    %v2435 = vpop.permute.xlu0 %2434
    %2436 = vrot.lane.b32.xlu0 %v513, 88
    %v2437 = vpop.permute.xlu0 %2436
    %2438 = vrot.lane.b32.xlu0 %v518, 88
    %v2439 = vpop.permute.xlu0 %2438
    %v2440 = vsel %vm579, %v2433, 0
    %v2442 = vsel %vm579, %v2435, 0
    %v2444 = vsel %vm579, %v2437, 0
    %v2446 = vsel %vm579, %v2439, 0
    %2448 = vmatprep.subr.mxu0 0.0
    %2449 = vmatpush1.xpose.msra.mxu0 %v2444
    %2450 = vmatprep.subr.mxu0 0.0
    %2451 = vmatpush1.xpose.msra.mxu0 %v2446
    %2452 = vmatprep.subr.mxu0 0.0
    %2453 = vmatpush1.xpose.msra.mxu0 0.0
    %2454 = vmatprep.subr.mxu0 0.0
    %2455 = vmatpush1.xpose.msra.mxu0 0.0
    %2456 = vmatprep.subr.mxu0 0.0
    %2457 = vmatpush1.xpose.msra.mxu0 0.0
    %2458 = vmatprep.subr.mxu0 0.0
    %2459 = vmatpush1.xpose.msra.mxu0 0.0
    %2460 = vmatprep.subr.mxu0 0.0
    %2461 = vmatpush1.xpose.msra.mxu0 0.0
    %2462 = vmatprep.subr.mxu0 0.0
    %2463 = vmatpush1.xpose.msra.mxu0 0.0
    %2464 = vmatprep.subr.mxu0 0.0
    %2465 = vmatpush1.xpose.msra.mxu0 0.0
    %2466 = vmatprep.subr.mxu0 0.0
    %2467 = vmatpush1.xpose.msra.mxu0 0.0
    %2468 = vmatprep.subr.mxu0 0.0
    %2469 = vmatpush1.xpose.msra.mxu0 0.0
    %2470 = vmatprep.subr.mxu0 0.0
    %2471 = vmatpush1.xpose.msra.mxu0 0.0
    %2472 = vmatprep.subr.mxu0 0.0
    %2473 = vmatpush1.xpose.msra.mxu0 0.0
    %2474 = vmatprep.subr.mxu0 0.0
    %2475 = vmatpush1.xpose.msra.mxu0 0.0
    %2476 = vmatprep.subr.mxu0 0.0
    %2477 = vmatpush1.xpose.msra.mxu0 0.0
    %2478 = vmatprep.subr.mxu0 0.0
    %2479 = vmatpush1.xpose.msra.mxu0 0.0
    %2480 = vmatprep.subr.mxu0 0.0
    %2481 = vmatpush1.xpose.msra.mxu0 0.0
    %2482 = vmatprep.subr.mxu0 0.0
    %2483 = vmatpush1.xpose.msra.mxu0 0.0
    %2484 = vmatprep.subr.mxu0 0.0
    %2485 = vmatpush1.xpose.msra.mxu0 0.0
    %2486 = vmatprep.subr.mxu0 0.0
    %2487 = vmatpush1.xpose.msra.mxu0 0.0
    %2488 = vmatprep.subr.mxu0 0.0
    %2489 = vmatpush1.xpose.msra.mxu0 0.0
    %2490 = vmatprep.subr.mxu0 0.0
    %2491 = vmatpush1.xpose.msra.mxu0 0.0
    %2492 = vmatprep.subr.mxu0 0.0
    %2493 = vmatpush1.xpose.msra.mxu0 0.0
    %2494 = vmatprep.subr.mxu0 0.0
    %2495 = vmatpush1.xpose.msra.mxu0 0.0
    %2496 = vmatprep.subr.mxu0 0.0
    %2497 = vmatpush1.xpose.msra.mxu0 0.0
    %2498 = vmatprep.subr.mxu0 0.0
    %2499 = vmatpush1.xpose.msra.mxu0 0.0
    %2500 = vmatprep.subr.mxu0 0.0
    %2501 = vmatpush1.xpose.msra.mxu0 0.0
    %2502 = vmatprep.subr.mxu0 0.0
    %2503 = vmatpush1.xpose.msra.mxu0 0.0
    %2504 = vmatprep.subr.mxu0 0.0
    %2505 = vmatpush1.xpose.msra.mxu0 0.0
    %2506 = vmatprep.subr.mxu0 0.0
    %2507 = vmatpush1.xpose.msra.mxu0 0.0
    %2508 = vmatprep.subr.mxu0 0.0
    %2509 = vmatpush1.xpose.msra.mxu0 0.0
    %2510 = vmatprep.subr.mxu0 0.0
    %2511 = vmatpush1.xpose.msra.mxu0 0.0
    %2512 = vmatprep.mubr.f32.mxu0 0.0
    %2513 = vmatmul.mubr.f32.gmra.mrb[0].mxu0 %v2440
    %v2514 = vpop.f32.mrb[0].mxu0
    %v2515 = vadd.f32 %v563, %v2514
    %v2516 = vpop.f32.mrb[0].mxu0
    %2517 = vmatprep.mubr.f32.mxu0 0.0
    %2518 = vmatmul.mubr.f32.gmra.mrb[0].mxu0 %v2442
    %v2519 = vpop.f32.mrb[0].mxu0
    %v2520 = vadd.f32 %v564, %v2519
    %v2521 = vpop.f32.mrb[0].mxu0
    %2522 = vdwg.mxu0
    %2523 = vrot.lane.b32.xlu0 %v523, 120
    %v2524 = vpop.permute.xlu0 %2523
    %2525 = vrot.lane.b32.xlu0 %v528, 120
    %v2526 = vpop.permute.xlu0 %2525
    %2527 = vrot.lane.b32.xlu0 %v523, 88
    %v2528 = vpop.permute.xlu0 %2527
    %2529 = vrot.lane.b32.xlu0 %v528, 88
    %v2530 = vpop.permute.xlu0 %2529
    %v2531 = vsel %vm579, %v2524, 0
    %v2533 = vsel %vm579, %v2526, 0
    %v2535 = vsel %vm579, %v2528, 0
    %v2537 = vsel %vm579, %v2530, 0
    %2539 = vmatprep.subr.mxu0 0.0
    %2540 = vmatpush1.xpose.msra.mxu0 %v2535
    %2541 = vmatprep.subr.mxu0 0.0
    %2542 = vmatpush1.xpose.msra.mxu0 %v2537
    %2543 = vmatprep.subr.mxu0 0.0
    %2544 = vmatpush1.xpose.msra.mxu0 0.0
    %2545 = vmatprep.subr.mxu0 0.0
    %2546 = vmatpush1.xpose.msra.mxu0 0.0
    %2547 = vmatprep.subr.mxu0 0.0
    %2548 = vmatpush1.xpose.msra.mxu0 0.0
    %2549 = vmatprep.subr.mxu0 0.0
    %2550 = vmatpush1.xpose.msra.mxu0 0.0
    %2551 = vmatprep.subr.mxu0 0.0
    %2552 = vmatpush1.xpose.msra.mxu0 0.0
    %2553 = vmatprep.subr.mxu0 0.0
    %2554 = vmatpush1.xpose.msra.mxu0 0.0
    %2555 = vmatprep.subr.mxu0 0.0
    %2556 = vmatpush1.xpose.msra.mxu0 0.0
    %2557 = vmatprep.subr.mxu0 0.0
    %2558 = vmatpush1.xpose.msra.mxu0 0.0
    %2559 = vmatprep.subr.mxu0 0.0
    %2560 = vmatpush1.xpose.msra.mxu0 0.0
    %2561 = vmatprep.subr.mxu0 0.0
    %2562 = vmatpush1.xpose.msra.mxu0 0.0
    %2563 = vmatprep.subr.mxu0 0.0
    %2564 = vmatpush1.xpose.msra.mxu0 0.0
    %2565 = vmatprep.subr.mxu0 0.0
    %2566 = vmatpush1.xpose.msra.mxu0 0.0
    %2567 = vmatprep.subr.mxu0 0.0
    %2568 = vmatpush1.xpose.msra.mxu0 0.0
    %2569 = vmatprep.subr.mxu0 0.0
    %2570 = vmatpush1.xpose.msra.mxu0 0.0
    %2571 = vmatprep.subr.mxu0 0.0
    %2572 = vmatpush1.xpose.msra.mxu0 0.0
    %2573 = vmatprep.subr.mxu0 0.0
    %2574 = vmatpush1.xpose.msra.mxu0 0.0
    %2575 = vmatprep.subr.mxu0 0.0
    %2576 = vmatpush1.xpose.msra.mxu0 0.0
    %2577 = vmatprep.subr.mxu0 0.0
    %2578 = vmatpush1.xpose.msra.mxu0 0.0
    %2579 = vmatprep.subr.mxu0 0.0
    %2580 = vmatpush1.xpose.msra.mxu0 0.0
    %2581 = vmatprep.subr.mxu0 0.0
    %2582 = vmatpush1.xpose.msra.mxu0 0.0
    %2583 = vmatprep.subr.mxu0 0.0
    %2584 = vmatpush1.xpose.msra.mxu0 0.0
    %2585 = vmatprep.subr.mxu0 0.0
    %2586 = vmatpush1.xpose.msra.mxu0 0.0
    %2587 = vmatprep.subr.mxu0 0.0
    %2588 = vmatpush1.xpose.msra.mxu0 0.0
    %2589 = vmatprep.subr.mxu0 0.0
    %2590 = vmatpush1.xpose.msra.mxu0 0.0
    %2591 = vmatprep.subr.mxu0 0.0
    %2592 = vmatpush1.xpose.msra.mxu0 0.0
    %2593 = vmatprep.subr.mxu0 0.0
    %2594 = vmatpush1.xpose.msra.mxu0 0.0
    %2595 = vmatprep.subr.mxu0 0.0
    %2596 = vmatpush1.xpose.msra.mxu0 0.0
    %2597 = vmatprep.subr.mxu0 0.0
    %2598 = vmatpush1.xpose.msra.mxu0 0.0
    %2599 = vmatprep.subr.mxu0 0.0
    %2600 = vmatpush1.xpose.msra.mxu0 0.0
    %2601 = vmatprep.subr.mxu0 0.0
    %2602 = vmatpush1.xpose.msra.mxu0 0.0
    %2603 = vmatprep.mubr.f32.mxu0 0.0
    %2604 = vmatmul.mubr.f32.gmra.mrb[0].mxu0 %v2531
    %v2605 = vpop.f32.mrb[0].mxu0
    %v2606 = vadd.f32 %v563, %v2605
    %v2607 = vpop.f32.mrb[0].mxu0
    %2608 = vmatprep.mubr.f32.mxu0 0.0
    %2609 = vmatmul.mubr.f32.gmra.mrb[0].mxu0 %v2533
    %v2610 = vpop.f32.mrb[0].mxu0
    %v2611 = vadd.f32 %v564, %v2610
    %v2612 = vpop.f32.mrb[0].mxu0
    %2613 = vdwg.mxu0
    %2614 = vrot.lane.b32.xlu0 %v533, 120
    %v2615 = vpop.permute.xlu0 %2614
    %2616 = vrot.lane.b32.xlu0 %v538, 120
    %v2617 = vpop.permute.xlu0 %2616
    %2618 = vrot.lane.b32.xlu0 %v533, 88
    %v2619 = vpop.permute.xlu0 %2618
    %2620 = vrot.lane.b32.xlu0 %v538, 88
    %v2621 = vpop.permute.xlu0 %2620
    %v2622 = vsel %vm579, %v2615, 0
    %v2624 = vsel %vm579, %v2617, 0
    %v2626 = vsel %vm579, %v2619, 0
    %v2628 = vsel %vm579, %v2621, 0
    %2630 = vmatprep.subr.mxu0 0.0
    %2631 = vmatpush1.xpose.msra.mxu0 %v2626
    %2632 = vmatprep.subr.mxu0 0.0
    %2633 = vmatpush1.xpose.msra.mxu0 %v2628
    %2634 = vmatprep.subr.mxu0 0.0
    %2635 = vmatpush1.xpose.msra.mxu0 0.0
    %2636 = vmatprep.subr.mxu0 0.0
    %2637 = vmatpush1.xpose.msra.mxu0 0.0
    %2638 = vmatprep.subr.mxu0 0.0
    %2639 = vmatpush1.xpose.msra.mxu0 0.0
    %2640 = vmatprep.subr.mxu0 0.0
    %2641 = vmatpush1.xpose.msra.mxu0 0.0
    %2642 = vmatprep.subr.mxu0 0.0
    %2643 = vmatpush1.xpose.msra.mxu0 0.0
    %2644 = vmatprep.subr.mxu0 0.0
    %2645 = vmatpush1.xpose.msra.mxu0 0.0
    %2646 = vmatprep.subr.mxu0 0.0
    %2647 = vmatpush1.xpose.msra.mxu0 0.0
    %2648 = vmatprep.subr.mxu0 0.0
    %2649 = vmatpush1.xpose.msra.mxu0 0.0
    %2650 = vmatprep.subr.mxu0 0.0
    %2651 = vmatpush1.xpose.msra.mxu0 0.0
    %2652 = vmatprep.subr.mxu0 0.0
    %2653 = vmatpush1.xpose.msra.mxu0 0.0
    %2654 = vmatprep.subr.mxu0 0.0
    %2655 = vmatpush1.xpose.msra.mxu0 0.0
    %2656 = vmatprep.subr.mxu0 0.0
    %2657 = vmatpush1.xpose.msra.mxu0 0.0
    %2658 = vmatprep.subr.mxu0 0.0
    %2659 = vmatpush1.xpose.msra.mxu0 0.0
    %2660 = vmatprep.subr.mxu0 0.0
    %2661 = vmatpush1.xpose.msra.mxu0 0.0
    %2662 = vmatprep.subr.mxu0 0.0
    %2663 = vmatpush1.xpose.msra.mxu0 0.0
    %2664 = vmatprep.subr.mxu0 0.0
    %2665 = vmatpush1.xpose.msra.mxu0 0.0
    %2666 = vmatprep.subr.mxu0 0.0
    %2667 = vmatpush1.xpose.msra.mxu0 0.0
    %2668 = vmatprep.subr.mxu0 0.0
    %2669 = vmatpush1.xpose.msra.mxu0 0.0
    %2670 = vmatprep.subr.mxu0 0.0
    %2671 = vmatpush1.xpose.msra.mxu0 0.0
    %2672 = vmatprep.subr.mxu0 0.0
    %2673 = vmatpush1.xpose.msra.mxu0 0.0
    %2674 = vmatprep.subr.mxu0 0.0
    %2675 = vmatpush1.xpose.msra.mxu0 0.0
    %2676 = vmatprep.subr.mxu0 0.0
    %2677 = vmatpush1.xpose.msra.mxu0 0.0
    %2678 = vmatprep.subr.mxu0 0.0
    %2679 = vmatpush1.xpose.msra.mxu0 0.0
    %2680 = vmatprep.subr.mxu0 0.0
    %2681 = vmatpush1.xpose.msra.mxu0 0.0
    %2682 = vmatprep.subr.mxu0 0.0
    %2683 = vmatpush1.xpose.msra.mxu0 0.0
    %2684 = vmatprep.subr.mxu0 0.0
    %2685 = vmatpush1.xpose.msra.mxu0 0.0
    %2686 = vmatprep.subr.mxu0 0.0
    %2687 = vmatpush1.xpose.msra.mxu0 0.0
    %2688 = vmatprep.subr.mxu0 0.0
    %2689 = vmatpush1.xpose.msra.mxu0 0.0
    %2690 = vmatprep.subr.mxu0 0.0
    %2691 = vmatpush1.xpose.msra.mxu0 0.0
    %2692 = vmatprep.subr.mxu0 0.0
    %2693 = vmatpush1.xpose.msra.mxu0 0.0
    %2694 = vmatprep.mubr.f32.mxu0 0.0
    %2695 = vmatmul.mubr.f32.gmra.mrb[0].mxu0 %v2622
    %v2696 = vpop.f32.mrb[0].mxu0
    %v2697 = vadd.f32 %v563, %v2696
    %v2698 = vpop.f32.mrb[0].mxu0
    %2699 = vmatprep.mubr.f32.mxu0 0.0
    %2700 = vmatmul.mubr.f32.gmra.mrb[0].mxu0 %v2624
    %v2701 = vpop.f32.mrb[0].mxu0
    %v2702 = vadd.f32 %v564, %v2701
    %v2703 = vpop.f32.mrb[0].mxu0
    %2704 = vdwg.mxu0
    %2705 = vrot.lane.b32.xlu0 %v543, 120
    %v2706 = vpop.permute.xlu0 %2705
    %2707 = vrot.lane.b32.xlu0 %v548, 120
    %v2708 = vpop.permute.xlu0 %2707
    %2709 = vrot.lane.b32.xlu0 %v543, 88
    %v2710 = vpop.permute.xlu0 %2709
    %2711 = vrot.lane.b32.xlu0 %v548, 88
    %v2712 = vpop.permute.xlu0 %2711
    %v2713 = vsel %vm579, %v2706, 0
    %v2715 = vsel %vm579, %v2708, 0
    %v2717 = vsel %vm579, %v2710, 0
    %v2719 = vsel %vm579, %v2712, 0
    %2721 = vmatprep.subr.mxu0 0.0
    %2722 = vmatpush1.xpose.msra.mxu0 %v2717
    %2723 = vmatprep.subr.mxu0 0.0
    %2724 = vmatpush1.xpose.msra.mxu0 %v2719
    %2725 = vmatprep.subr.mxu0 0.0
    %2726 = vmatpush1.xpose.msra.mxu0 0.0
    %2727 = vmatprep.subr.mxu0 0.0
    %2728 = vmatpush1.xpose.msra.mxu0 0.0
    %2729 = vmatprep.subr.mxu0 0.0
    %2730 = vmatpush1.xpose.msra.mxu0 0.0
    %2731 = vmatprep.subr.mxu0 0.0
    %2732 = vmatpush1.xpose.msra.mxu0 0.0
    %2733 = vmatprep.subr.mxu0 0.0
    %2734 = vmatpush1.xpose.msra.mxu0 0.0
    %2735 = vmatprep.subr.mxu0 0.0
    %2736 = vmatpush1.xpose.msra.mxu0 0.0
    %2737 = vmatprep.subr.mxu0 0.0
    %2738 = vmatpush1.xpose.msra.mxu0 0.0
    %2739 = vmatprep.subr.mxu0 0.0
    %2740 = vmatpush1.xpose.msra.mxu0 0.0
    %2741 = vmatprep.subr.mxu0 0.0
    %2742 = vmatpush1.xpose.msra.mxu0 0.0
    %2743 = vmatprep.subr.mxu0 0.0
    %2744 = vmatpush1.xpose.msra.mxu0 0.0
    %2745 = vmatprep.subr.mxu0 0.0
    %2746 = vmatpush1.xpose.msra.mxu0 0.0
    %2747 = vmatprep.subr.mxu0 0.0
    %2748 = vmatpush1.xpose.msra.mxu0 0.0
    %2749 = vmatprep.subr.mxu0 0.0
    %2750 = vmatpush1.xpose.msra.mxu0 0.0
    %2751 = vmatprep.subr.mxu0 0.0
    %2752 = vmatpush1.xpose.msra.mxu0 0.0
    %2753 = vmatprep.subr.mxu0 0.0
    %2754 = vmatpush1.xpose.msra.mxu0 0.0
    %2755 = vmatprep.subr.mxu0 0.0
    %2756 = vmatpush1.xpose.msra.mxu0 0.0
    %2757 = vmatprep.subr.mxu0 0.0
    %2758 = vmatpush1.xpose.msra.mxu0 0.0
    %2759 = vmatprep.subr.mxu0 0.0
    %2760 = vmatpush1.xpose.msra.mxu0 0.0
    %2761 = vmatprep.subr.mxu0 0.0
    %2762 = vmatpush1.xpose.msra.mxu0 0.0
    %2763 = vmatprep.subr.mxu0 0.0
    %2764 = vmatpush1.xpose.msra.mxu0 0.0
    %2765 = vmatprep.subr.mxu0 0.0
    %2766 = vmatpush1.xpose.msra.mxu0 0.0
    %2767 = vmatprep.subr.mxu0 0.0
    %2768 = vmatpush1.xpose.msra.mxu0 0.0
    %2769 = vmatprep.subr.mxu0 0.0
    %2770 = vmatpush1.xpose.msra.mxu0 0.0
    %2771 = vmatprep.subr.mxu0 0.0
    %2772 = vmatpush1.xpose.msra.mxu0 0.0
    %2773 = vmatprep.subr.mxu0 0.0
    %2774 = vmatpush1.xpose.msra.mxu0 0.0
    %2775 = vmatprep.subr.mxu0 0.0
    %2776 = vmatpush1.xpose.msra.mxu0 0.0
    %2777 = vmatprep.subr.mxu0 0.0
    %2778 = vmatpush1.xpose.msra.mxu0 0.0
    %2779 = vmatprep.subr.mxu0 0.0
    %2780 = vmatpush1.xpose.msra.mxu0 0.0
    %2781 = vmatprep.subr.mxu0 0.0
    %2782 = vmatpush1.xpose.msra.mxu0 0.0
    %2783 = vmatprep.subr.mxu0 0.0
    %2784 = vmatpush1.xpose.msra.mxu0 0.0
    %2785 = vmatprep.mubr.f32.mxu0 0.0
    %2786 = vmatmul.mubr.f32.gmra.mrb[0].mxu0 %v2713
    %v2787 = vpop.f32.mrb[0].mxu0
    %v2788 = vadd.f32 %v563, %v2787
    %v2789 = vpop.f32.mrb[0].mxu0
    %2790 = vmatprep.mubr.f32.mxu0 0.0
    %2791 = vmatmul.mubr.f32.gmra.mrb[0].mxu0 %v2715
    %v2792 = vpop.f32.mrb[0].mxu0
    %v2793 = vadd.f32 %v564, %v2792
    %v2794 = vpop.f32.mrb[0].mxu0
    %2795 = vdwg.mxu0
    %2796 = vrot.lane.b32.xlu0 %v553, 120
    %v2797 = vpop.permute.xlu0 %2796
    %2798 = vrot.lane.b32.xlu0 %v558, 120
    %v2799 = vpop.permute.xlu0 %2798
    %2800 = vrot.lane.b32.xlu0 %v553, 88
    %v2801 = vpop.permute.xlu0 %2800
    %2802 = vrot.lane.b32.xlu0 %v558, 88
    %v2803 = vpop.permute.xlu0 %2802
    %v2804 = vsel %vm579, %v2797, 0
    %v2806 = vsel %vm579, %v2799, 0
    %v2808 = vsel %vm579, %v2801, 0
    %v2810 = vsel %vm579, %v2803, 0
    %2812 = vmatprep.subr.mxu0 0.0
    %2813 = vmatpush1.xpose.msra.mxu0 %v2808
    %2814 = vmatprep.subr.mxu0 0.0
    %2815 = vmatpush1.xpose.msra.mxu0 %v2810
    %2816 = vmatprep.subr.mxu0 0.0
    %2817 = vmatpush1.xpose.msra.mxu0 0.0
    %2818 = vmatprep.subr.mxu0 0.0
    %2819 = vmatpush1.xpose.msra.mxu0 0.0
    %2820 = vmatprep.subr.mxu0 0.0
    %2821 = vmatpush1.xpose.msra.mxu0 0.0
    %2822 = vmatprep.subr.mxu0 0.0
    %2823 = vmatpush1.xpose.msra.mxu0 0.0
    %2824 = vmatprep.subr.mxu0 0.0
    %2825 = vmatpush1.xpose.msra.mxu0 0.0
    %2826 = vmatprep.subr.mxu0 0.0
    %2827 = vmatpush1.xpose.msra.mxu0 0.0
    %2828 = vmatprep.subr.mxu0 0.0
    %2829 = vmatpush1.xpose.msra.mxu0 0.0
    %2830 = vmatprep.subr.mxu0 0.0
    %2831 = vmatpush1.xpose.msra.mxu0 0.0
    %2832 = vmatprep.subr.mxu0 0.0
    %2833 = vmatpush1.xpose.msra.mxu0 0.0
    %2834 = vmatprep.subr.mxu0 0.0
    %2835 = vmatpush1.xpose.msra.mxu0 0.0
    %2836 = vmatprep.subr.mxu0 0.0
    %2837 = vmatpush1.xpose.msra.mxu0 0.0
    %2838 = vmatprep.subr.mxu0 0.0
    %2839 = vmatpush1.xpose.msra.mxu0 0.0
    %2840 = vmatprep.subr.mxu0 0.0
    %2841 = vmatpush1.xpose.msra.mxu0 0.0
    %2842 = vmatprep.subr.mxu0 0.0
    %2843 = vmatpush1.xpose.msra.mxu0 0.0
    %2844 = vmatprep.subr.mxu0 0.0
    %2845 = vmatpush1.xpose.msra.mxu0 0.0
    %2846 = vmatprep.subr.mxu0 0.0
    %2847 = vmatpush1.xpose.msra.mxu0 0.0
    %2848 = vmatprep.subr.mxu0 0.0
    %2849 = vmatpush1.xpose.msra.mxu0 0.0
    %2850 = vmatprep.subr.mxu0 0.0
    %2851 = vmatpush1.xpose.msra.mxu0 0.0
    %2852 = vmatprep.subr.mxu0 0.0
    %2853 = vmatpush1.xpose.msra.mxu0 0.0
    %2854 = vmatprep.subr.mxu0 0.0
    %2855 = vmatpush1.xpose.msra.mxu0 0.0
    %2856 = vmatprep.subr.mxu0 0.0
    %2857 = vmatpush1.xpose.msra.mxu0 0.0
    %2858 = vmatprep.subr.mxu0 0.0
    %2859 = vmatpush1.xpose.msra.mxu0 0.0
    %2860 = vmatprep.subr.mxu0 0.0
    %2861 = vmatpush1.xpose.msra.mxu0 0.0
    %2862 = vmatprep.subr.mxu0 0.0
    %2863 = vmatpush1.xpose.msra.mxu0 0.0
    %2864 = vmatprep.subr.mxu0 0.0
    %2865 = vmatpush1.xpose.msra.mxu0 0.0
    %2866 = vmatprep.subr.mxu0 0.0
    %2867 = vmatpush1.xpose.msra.mxu0 0.0
    %2868 = vmatprep.subr.mxu0 0.0
    %2869 = vmatpush1.xpose.msra.mxu0 0.0
    %2870 = vmatprep.subr.mxu0 0.0
    %2871 = vmatpush1.xpose.msra.mxu0 0.0
    %2872 = vmatprep.subr.mxu0 0.0
    %2873 = vmatpush1.xpose.msra.mxu0 0.0
    %2874 = vmatprep.subr.mxu0 0.0
    %2875 = vmatpush1.xpose.msra.mxu0 0.0
    %2876 = vmatprep.mubr.f32.mxu0 0.0
    %2877 = vmatmul.mubr.f32.gmra.mrb[0].mxu0 %v2804
    %v2878 = vpop.f32.mrb[0].mxu0
    %v2879 = vadd.f32 %v563, %v2878
    %v2880 = vpop.f32.mrb[0].mxu0
    %2881 = vmatprep.mubr.f32.mxu0 0.0
    %2882 = vmatmul.mubr.f32.gmra.mrb[0].mxu0 %v2806
    %v2883 = vpop.f32.mrb[0].mxu0
    %v2884 = vadd.f32 %v564, %v2883
    %v2885 = vpop.f32.mrb[0].mxu0
    %2886 = vdwg.mxu0
    %v2887 = vsel %vm1286, %v2242, -inf
    %2888 = vmax.xlane.f32.xlu0 %v2887
    %v2889 = vpop.xlane.xlu0 %2888
    %v2890 = vsel %vm1286, %v2247, -inf
    %2891 = vmax.xlane.f32.xlu0 %v2890
    %v2892 = vpop.xlane.xlu0 %2891
    %v2893 = vsel %vm1286, %v2333, -inf
    %2894 = vmax.xlane.f32.xlu0 %v2893
    %v2895 = vpop.xlane.xlu0 %2894
    %v2896 = vsel %vm1286, %v2338, -inf
    %2897 = vmax.xlane.f32.xlu0 %v2896
    %v2898 = vpop.xlane.xlu0 %2897
    %v2899 = vsel %vm1286, %v2424, -inf
    %2900 = vmax.xlane.f32.xlu0 %v2899
    %v2901 = vpop.xlane.xlu0 %2900
    %v2902 = vsel %vm1286, %v2429, -inf
    %2903 = vmax.xlane.f32.xlu0 %v2902
    %v2904 = vpop.xlane.xlu0 %2903
    %v2905 = vsel %vm1286, %v2515, -inf
    %2906 = vmax.xlane.f32.xlu0 %v2905
    %v2907 = vpop.xlane.xlu0 %2906
    %v2908 = vsel %vm1286, %v2520, -inf
    %2909 = vmax.xlane.f32.xlu0 %v2908
    %v2910 = vpop.xlane.xlu0 %2909
    %v2911 = vsel %vm1286, %v2606, -inf
    %2912 = vmax.xlane.f32.xlu0 %v2911
    %v2913 = vpop.xlane.xlu0 %2912
    %v2914 = vsel %vm1286, %v2611, -inf
    %2915 = vmax.xlane.f32.xlu0 %v2914
    %v2916 = vpop.xlane.xlu0 %2915
    %v2917 = vsel %vm1286, %v2697, -inf
    %2918 = vmax.xlane.f32.xlu0 %v2917
    %v2919 = vpop.xlane.xlu0 %2918
    %v2920 = vsel %vm1286, %v2702, -inf
    %2921 = vmax.xlane.f32.xlu0 %v2920
    %v2922 = vpop.xlane.xlu0 %2921
    %v2923 = vsel %vm1286, %v2788, -inf
    %2924 = vmax.xlane.f32.xlu0 %v2923
    %v2925 = vpop.xlane.xlu0 %2924
    %v2926 = vsel %vm1286, %v2793, -inf
    %2927 = vmax.xlane.f32.xlu0 %v2926
    %v2928 = vpop.xlane.xlu0 %2927
    %v2929 = vsel %vm1286, %v2879, -inf
    %2930 = vmax.xlane.f32.xlu0 %v2929
    %v2931 = vpop.xlane.xlu0 %2930
    %v2932 = vsel %vm1286, %v2884, -inf
    %2933 = vmax.xlane.f32.xlu0 %v2932
    %v2934 = vpop.xlane.xlu0 %2933
    %v2935 = vsub.f32 %v2242, %v2889
    %v2936 = vsub.f32 %v2247, %v2892
    %v2937 = vsub.f32 %v2333, %v2895
    %v2938 = vsub.f32 %v2338, %v2898
    %v2939 = vsub.f32 %v2424, %v2901
    %v2940 = vsub.f32 %v2429, %v2904
    %v2941 = vsub.f32 %v2515, %v2907
    %v2942 = vsub.f32 %v2520, %v2910
    %v2943 = vsub.f32 %v2606, %v2913
    %v2944 = vsub.f32 %v2611, %v2916
    %v2945 = vsub.f32 %v2697, %v2919
    %v2946 = vsub.f32 %v2702, %v2922
    %v2947 = vsub.f32 %v2788, %v2925
    %v2948 = vsub.f32 %v2793, %v2928
    %v2949 = vsub.f32 %v2879, %v2931
    %v2950 = vsub.f32 %v2884, %v2934
    %v2951 = vmul.f32 %v2935, 1.442695
    %v2952 = vpow.pop %v2951
    %v2953 = vmul.f32 %v2936, 1.442695
    %v2954 = vpow.pop %v2953
    %v2955 = vmul.f32 %v2937, 1.442695
    %v2956 = vpow.pop %v2955
    %v2957 = vmul.f32 %v2938, 1.442695
    %v2958 = vpow.pop %v2957
    %v2959 = vmul.f32 %v2939, 1.442695
    %v2960 = vpow.pop %v2959
    %v2961 = vmul.f32 %v2940, 1.442695
    %v2962 = vpow.pop %v2961
    %v2963 = vmul.f32 %v2941, 1.442695
    %v2964 = vpow.pop %v2963
    %v2965 = vmul.f32 %v2942, 1.442695
    %v2966 = vpow.pop %v2965
    %v2967 = vmul.f32 %v2943, 1.442695
    %v2968 = vpow.pop %v2967
    %v2969 = vmul.f32 %v2944, 1.442695
    %v2970 = vpow.pop %v2969
    %v2971 = vmul.f32 %v2945, 1.442695
    %v2972 = vpow.pop %v2971
    %v2973 = vmul.f32 %v2946, 1.442695
    %v2974 = vpow.pop %v2973
    %v2975 = vmul.f32 %v2947, 1.442695
    %v2976 = vpow.pop %v2975
    %v2977 = vmul.f32 %v2948, 1.442695
    %v2978 = vpow.pop %v2977
    %v2979 = vmul.f32 %v2949, 1.442695
    %v2980 = vpow.pop %v2979
    %v2981 = vmul.f32 %v2950, 1.442695
    %v2982 = vpow.pop %v2981
    %v2983 = vsel %vm1286, %v2952, 0.0
    %2984 = vadd.xlane.f32.xlu0 %v2983
    %v2985 = vpop.xlane.xlu0 %2984
    %v2986 = vsel %vm1286, %v2954, 0.0
    %2987 = vadd.xlane.f32.xlu0 %v2986
    %v2988 = vpop.xlane.xlu0 %2987
    %v2989 = vsel %vm1286, %v2956, 0.0
    %2990 = vadd.xlane.f32.xlu0 %v2989
    %v2991 = vpop.xlane.xlu0 %2990
    %v2992 = vsel %vm1286, %v2958, 0.0
    %2993 = vadd.xlane.f32.xlu0 %v2992
    %v2994 = vpop.xlane.xlu0 %2993
    %v2995 = vsel %vm1286, %v2960, 0.0
    %2996 = vadd.xlane.f32.xlu0 %v2995
    %v2997 = vpop.xlane.xlu0 %2996
    %v2998 = vsel %vm1286, %v2962, 0.0
    %2999 = vadd.xlane.f32.xlu0 %v2998
    %v3000 = vpop.xlane.xlu0 %2999
    %v3001 = vsel %vm1286, %v2964, 0.0
    %3002 = vadd.xlane.f32.xlu0 %v3001
    %v3003 = vpop.xlane.xlu0 %3002
    %v3004 = vsel %vm1286, %v2966, 0.0
    %3005 = vadd.xlane.f32.xlu0 %v3004
    %v3006 = vpop.xlane.xlu0 %3005
    %v3007 = vsel %vm1286, %v2968, 0.0
    %3008 = vadd.xlane.f32.xlu0 %v3007
    %v3009 = vpop.xlane.xlu0 %3008
    %v3010 = vsel %vm1286, %v2970, 0.0
    %3011 = vadd.xlane.f32.xlu0 %v3010
    %v3012 = vpop.xlane.xlu0 %3011
    %v3013 = vsel %vm1286, %v2972, 0.0
    %3014 = vadd.xlane.f32.xlu0 %v3013
    %v3015 = vpop.xlane.xlu0 %3014
    %v3016 = vsel %vm1286, %v2974, 0.0
    %3017 = vadd.xlane.f32.xlu0 %v3016
    %v3018 = vpop.xlane.xlu0 %3017
    %v3019 = vsel %vm1286, %v2976, 0.0
    %3020 = vadd.xlane.f32.xlu0 %v3019
    %v3021 = vpop.xlane.xlu0 %3020
    %v3022 = vsel %vm1286, %v2978, 0.0
    %3023 = vadd.xlane.f32.xlu0 %v3022
    %v3024 = vpop.xlane.xlu0 %3023
    %v3025 = vsel %vm1286, %v2980, 0.0
    %3026 = vadd.xlane.f32.xlu0 %v3025
    %v3027 = vpop.xlane.xlu0 %3026
    %v3028 = vsel %vm1286, %v2982, 0.0
    %3029 = vadd.xlane.f32.xlu0 %v3028
    %v3030 = vpop.xlane.xlu0 %3029
    %v3031 = vrcp.pop %v2985
    %v3032 = vmul.f32 %v2952, %v3031
    %v3033 = vrcp.pop %v2988
    %v3034 = vmul.f32 %v2954, %v3033
    %v3035 = vrcp.pop %v2991
    %v3036 = vmul.f32 %v2956, %v3035
    %v3037 = vrcp.pop %v2994
    %v3038 = vmul.f32 %v2958, %v3037
    %v3039 = vrcp.pop %v2997
    %v3040 = vmul.f32 %v2960, %v3039
    %v3041 = vrcp.pop %v3000
    %v3042 = vmul.f32 %v2962, %v3041
    %v3043 = vrcp.pop %v3003
    %v3044 = vmul.f32 %v2964, %v3043
    %v3045 = vrcp.pop %v3006
    %v3046 = vmul.f32 %v2966, %v3045
    %v3047 = vrcp.pop %v3009
    %v3048 = vmul.f32 %v2968, %v3047
    %v3049 = vrcp.pop %v3012
    %v3050 = vmul.f32 %v2970, %v3049
    %v3051 = vrcp.pop %v3015
    %v3052 = vmul.f32 %v2972, %v3051
    %v3053 = vrcp.pop %v3018
    %v3054 = vmul.f32 %v2974, %v3053
    %v3055 = vrcp.pop %v3021
    %v3056 = vmul.f32 %v2976, %v3055
    %v3057 = vrcp.pop %v3024
    %v3058 = vmul.f32 %v2978, %v3057
    %v3059 = vrcp.pop %v3027
    %v3060 = vmul.f32 %v2980, %v3059
    %v3061 = vrcp.pop %v3030
    %v3062 = vmul.f32 %v2982, %v3061
    %3063 = vrot.lane.b32.xlu0 %v483, 56
    %v3064 = vpop.permute.xlu0 %3063
    %3065 = vrot.lane.b32.xlu0 %v488, 56
    %v3066 = vpop.permute.xlu0 %3065
    %v3070 = vsel %vm1286, %v3032, 0
    %v3073 = vsel %vm1286, %v3034, 0
    %3075 = vmatprep.subr.mxu0 0.0
    %3076 = vmatpush1.msra.mxu0 %v3064
    %3077 = vmatprep.subr.mxu0 0.0
    %3078 = vmatpush1.msra.mxu0 %v3066
    %3079 = vmatprep.subr.mxu0 0.0
    %3080 = vmatpush1.msra.mxu0 0.0
    %3081 = vmatprep.subr.mxu0 0.0
    %3082 = vmatpush1.msra.mxu0 0.0
    %3083 = vmatprep.subr.mxu0 0.0
    %3084 = vmatpush1.msra.mxu0 0.0
    %3085 = vmatprep.subr.mxu0 0.0
    %3086 = vmatpush1.msra.mxu0 0.0
    %3087 = vmatprep.subr.mxu0 0.0
    %3088 = vmatpush1.msra.mxu0 0.0
    %3089 = vmatprep.subr.mxu0 0.0
    %3090 = vmatpush1.msra.mxu0 0.0
    %3091 = vmatprep.subr.mxu0 0.0
    %3092 = vmatpush1.msra.mxu0 0.0
    %3093 = vmatprep.subr.mxu0 0.0
    %3094 = vmatpush1.msra.mxu0 0.0
    %3095 = vmatprep.subr.mxu0 0.0
    %3096 = vmatpush1.msra.mxu0 0.0
    %3097 = vmatprep.subr.mxu0 0.0
    %3098 = vmatpush1.msra.mxu0 0.0
    %3099 = vmatprep.subr.mxu0 0.0
    %3100 = vmatpush1.msra.mxu0 0.0
    %3101 = vmatprep.subr.mxu0 0.0
    %3102 = vmatpush1.msra.mxu0 0.0
    %3103 = vmatprep.subr.mxu0 0.0
    %3104 = vmatpush1.msra.mxu0 0.0
    %3105 = vmatprep.subr.mxu0 0.0
    %3106 = vmatpush1.msra.mxu0 0.0
    %3107 = vmatprep.subr.mxu0 0.0
    %3108 = vmatpush1.msra.mxu0 0.0
    %3109 = vmatprep.subr.mxu0 0.0
    %3110 = vmatpush1.msra.mxu0 0.0
    %3111 = vmatprep.subr.mxu0 0.0
    %3112 = vmatpush1.msra.mxu0 0.0
    %3113 = vmatprep.subr.mxu0 0.0
    %3114 = vmatpush1.msra.mxu0 0.0
    %3115 = vmatprep.subr.mxu0 0.0
    %3116 = vmatpush1.msra.mxu0 0.0
    %3117 = vmatprep.subr.mxu0 0.0
    %3118 = vmatpush1.msra.mxu0 0.0
    %3119 = vmatprep.subr.mxu0 0.0
    %3120 = vmatpush1.msra.mxu0 0.0
    %3121 = vmatprep.subr.mxu0 0.0
    %3122 = vmatpush1.msra.mxu0 0.0
    %3123 = vmatprep.subr.mxu0 0.0
    %3124 = vmatpush1.msra.mxu0 0.0
    %3125 = vmatprep.subr.mxu0 0.0
    %3126 = vmatpush1.msra.mxu0 0.0
    %3127 = vmatprep.subr.mxu0 0.0
    %3128 = vmatpush1.msra.mxu0 0.0
    %3129 = vmatprep.subr.mxu0 0.0
    %3130 = vmatpush1.msra.mxu0 0.0
    %3131 = vmatprep.subr.mxu0 0.0
    %3132 = vmatpush1.msra.mxu0 0.0
    %3133 = vmatprep.subr.mxu0 0.0
    %3134 = vmatpush1.msra.mxu0 0.0
    %3135 = vmatprep.subr.mxu0 0.0
    %3136 = vmatpush1.msra.mxu0 0.0
    %3137 = vmatprep.subr.mxu0 0.0
    %3138 = vmatpush1.msra.mxu0 0.0
    %3139 = vmatprep.mubr.f32.mxu0 0.0
    %3140 = vmatmul.mubr.f32.gmra.mrb[0].mxu0 %v3070
    %v3141 = vpop.f32.mrb[0].mxu0
    %v3142 = vadd.f32 0.0, %v3141
    %v3143 = vpop.f32.mrb[0].mxu0
    %3144 = vmatprep.mubr.f32.mxu0 0.0
    %3145 = vmatmul.mubr.f32.gmra.mrb[0].mxu0 %v3073
    %v3146 = vpop.f32.mrb[0].mxu0
    %v3147 = vadd.f32 0.0, %v3146
    %v3148 = vpop.f32.mrb[0].mxu0
    %3149 = vdwg.mxu0
    %3150 = vrot.lane.b32.xlu0 %v493, 56
    %v3151 = vpop.permute.xlu0 %3150
    %3152 = vrot.lane.b32.xlu0 %v498, 56
    %v3153 = vpop.permute.xlu0 %3152
    %v3157 = vsel %vm1286, %v3036, 0
    %v3160 = vsel %vm1286, %v3038, 0
    %3162 = vmatprep.subr.mxu0 0.0
    %3163 = vmatpush1.msra.mxu0 %v3151
    %3164 = vmatprep.subr.mxu0 0.0
    %3165 = vmatpush1.msra.mxu0 %v3153
    %3166 = vmatprep.subr.mxu0 0.0
    %3167 = vmatpush1.msra.mxu0 0.0
    %3168 = vmatprep.subr.mxu0 0.0
    %3169 = vmatpush1.msra.mxu0 0.0
    %3170 = vmatprep.subr.mxu0 0.0
    %3171 = vmatpush1.msra.mxu0 0.0
    %3172 = vmatprep.subr.mxu0 0.0
    %3173 = vmatpush1.msra.mxu0 0.0
    %3174 = vmatprep.subr.mxu0 0.0
    %3175 = vmatpush1.msra.mxu0 0.0
    %3176 = vmatprep.subr.mxu0 0.0
    %3177 = vmatpush1.msra.mxu0 0.0
    %3178 = vmatprep.subr.mxu0 0.0
    %3179 = vmatpush1.msra.mxu0 0.0
    %3180 = vmatprep.subr.mxu0 0.0
    %3181 = vmatpush1.msra.mxu0 0.0
    %3182 = vmatprep.subr.mxu0 0.0
    %3183 = vmatpush1.msra.mxu0 0.0
    %3184 = vmatprep.subr.mxu0 0.0
    %3185 = vmatpush1.msra.mxu0 0.0
    %3186 = vmatprep.subr.mxu0 0.0
    %3187 = vmatpush1.msra.mxu0 0.0
    %3188 = vmatprep.subr.mxu0 0.0
    %3189 = vmatpush1.msra.mxu0 0.0
    %3190 = vmatprep.subr.mxu0 0.0
    %3191 = vmatpush1.msra.mxu0 0.0
    %3192 = vmatprep.subr.mxu0 0.0
    %3193 = vmatpush1.msra.mxu0 0.0
    %3194 = vmatprep.subr.mxu0 0.0
    %3195 = vmatpush1.msra.mxu0 0.0
    %3196 = vmatprep.subr.mxu0 0.0
    %3197 = vmatpush1.msra.mxu0 0.0
    %3198 = vmatprep.subr.mxu0 0.0
    %3199 = vmatpush1.msra.mxu0 0.0
    %3200 = vmatprep.subr.mxu0 0.0
    %3201 = vmatpush1.msra.mxu0 0.0
    %3202 = vmatprep.subr.mxu0 0.0
    %3203 = vmatpush1.msra.mxu0 0.0
    %3204 = vmatprep.subr.mxu0 0.0
    %3205 = vmatpush1.msra.mxu0 0.0
    %3206 = vmatprep.subr.mxu0 0.0
    %3207 = vmatpush1.msra.mxu0 0.0
    %3208 = vmatprep.subr.mxu0 0.0
    %3209 = vmatpush1.msra.mxu0 0.0
    %3210 = vmatprep.subr.mxu0 0.0
    %3211 = vmatpush1.msra.mxu0 0.0
    %3212 = vmatprep.subr.mxu0 0.0
    %3213 = vmatpush1.msra.mxu0 0.0
    %3214 = vmatprep.subr.mxu0 0.0
    %3215 = vmatpush1.msra.mxu0 0.0
    %3216 = vmatprep.subr.mxu0 0.0
    %3217 = vmatpush1.msra.mxu0 0.0
    %3218 = vmatprep.subr.mxu0 0.0
    %3219 = vmatpush1.msra.mxu0 0.0
    %3220 = vmatprep.subr.mxu0 0.0
    %3221 = vmatpush1.msra.mxu0 0.0
    %3222 = vmatprep.subr.mxu0 0.0
    %3223 = vmatpush1.msra.mxu0 0.0
    %3224 = vmatprep.subr.mxu0 0.0
    %3225 = vmatpush1.msra.mxu0 0.0
    %3226 = vmatprep.mubr.f32.mxu0 0.0
    %3227 = vmatmul.mubr.f32.gmra.mrb[0].mxu0 %v3157
    %v3228 = vpop.f32.mrb[0].mxu0
    %v3229 = vadd.f32 0.0, %v3228
    %v3230 = vpop.f32.mrb[0].mxu0
    %3231 = vmatprep.mubr.f32.mxu0 0.0
    %3232 = vmatmul.mubr.f32.gmra.mrb[0].mxu0 %v3160
    %v3233 = vpop.f32.mrb[0].mxu0
    %v3234 = vadd.f32 0.0, %v3233
    %v3235 = vpop.f32.mrb[0].mxu0
    %3236 = vdwg.mxu0
    %3237 = vrot.lane.b32.xlu0 %v503, 56
    %v3238 = vpop.permute.xlu0 %3237
    %3239 = vrot.lane.b32.xlu0 %v508, 56
    %v3240 = vpop.permute.xlu0 %3239
    %v3244 = vsel %vm1286, %v3040, 0
    %v3247 = vsel %vm1286, %v3042, 0
    %3249 = vmatprep.subr.mxu0 0.0
    %3250 = vmatpush1.msra.mxu0 %v3238
    %3251 = vmatprep.subr.mxu0 0.0
    %3252 = vmatpush1.msra.mxu0 %v3240
    %3253 = vmatprep.subr.mxu0 0.0
    %3254 = vmatpush1.msra.mxu0 0.0
    %3255 = vmatprep.subr.mxu0 0.0
    %3256 = vmatpush1.msra.mxu0 0.0
    %3257 = vmatprep.subr.mxu0 0.0
    %3258 = vmatpush1.msra.mxu0 0.0
    %3259 = vmatprep.subr.mxu0 0.0
    %3260 = vmatpush1.msra.mxu0 0.0
    %3261 = vmatprep.subr.mxu0 0.0
    %3262 = vmatpush1.msra.mxu0 0.0
    %3263 = vmatprep.subr.mxu0 0.0
    %3264 = vmatpush1.msra.mxu0 0.0
    %3265 = vmatprep.subr.mxu0 0.0
    %3266 = vmatpush1.msra.mxu0 0.0
    %3267 = vmatprep.subr.mxu0 0.0
    %3268 = vmatpush1.msra.mxu0 0.0
    %3269 = vmatprep.subr.mxu0 0.0
    %3270 = vmatpush1.msra.mxu0 0.0
    %3271 = vmatprep.subr.mxu0 0.0
    %3272 = vmatpush1.msra.mxu0 0.0
    %3273 = vmatprep.subr.mxu0 0.0
    %3274 = vmatpush1.msra.mxu0 0.0
    %3275 = vmatprep.subr.mxu0 0.0
    %3276 = vmatpush1.msra.mxu0 0.0
    %3277 = vmatprep.subr.mxu0 0.0
    %3278 = vmatpush1.msra.mxu0 0.0
    %3279 = vmatprep.subr.mxu0 0.0
    %3280 = vmatpush1.msra.mxu0 0.0
    %3281 = vmatprep.subr.mxu0 0.0
    %3282 = vmatpush1.msra.mxu0 0.0
    %3283 = vmatprep.subr.mxu0 0.0
    %3284 = vmatpush1.msra.mxu0 0.0
    %3285 = vmatprep.subr.mxu0 0.0
    %3286 = vmatpush1.msra.mxu0 0.0
    %3287 = vmatprep.subr.mxu0 0.0
    %3288 = vmatpush1.msra.mxu0 0.0
    %3289 = vmatprep.subr.mxu0 0.0
    %3290 = vmatpush1.msra.mxu0 0.0
    %3291 = vmatprep.subr.mxu0 0.0
    %3292 = vmatpush1.msra.mxu0 0.0
    %3293 = vmatprep.subr.mxu0 0.0
    %3294 = vmatpush1.msra.mxu0 0.0
    %3295 = vmatprep.subr.mxu0 0.0
    %3296 = vmatpush1.msra.mxu0 0.0
    %3297 = vmatprep.subr.mxu0 0.0
    %3298 = vmatpush1.msra.mxu0 0.0
    %3299 = vmatprep.subr.mxu0 0.0
    %3300 = vmatpush1.msra.mxu0 0.0
    %3301 = vmatprep.subr.mxu0 0.0
    %3302 = vmatpush1.msra.mxu0 0.0
    %3303 = vmatprep.subr.mxu0 0.0
    %3304 = vmatpush1.msra.mxu0 0.0
    %3305 = vmatprep.subr.mxu0 0.0
    %3306 = vmatpush1.msra.mxu0 0.0
    %3307 = vmatprep.subr.mxu0 0.0
    %3308 = vmatpush1.msra.mxu0 0.0
    %3309 = vmatprep.subr.mxu0 0.0
    %3310 = vmatpush1.msra.mxu0 0.0
    %3311 = vmatprep.subr.mxu0 0.0
    %3312 = vmatpush1.msra.mxu0 0.0
    %3313 = vmatprep.mubr.f32.mxu0 0.0
    %3314 = vmatmul.mubr.f32.gmra.mrb[0].mxu0 %v3244
    %v3315 = vpop.f32.mrb[0].mxu0
    %v3316 = vadd.f32 0.0, %v3315
    %v3317 = vpop.f32.mrb[0].mxu0
    %3318 = vmatprep.mubr.f32.mxu0 0.0
    %3319 = vmatmul.mubr.f32.gmra.mrb[0].mxu0 %v3247
    %v3320 = vpop.f32.mrb[0].mxu0
    %v3321 = vadd.f32 0.0, %v3320
    %v3322 = vpop.f32.mrb[0].mxu0
    %3323 = vdwg.mxu0
    %3324 = vrot.lane.b32.xlu0 %v513, 56
    %v3325 = vpop.permute.xlu0 %3324
    %3326 = vrot.lane.b32.xlu0 %v518, 56
    %v3327 = vpop.permute.xlu0 %3326
    %v3331 = vsel %vm1286, %v3044, 0
    %v3334 = vsel %vm1286, %v3046, 0
    %3336 = vmatprep.subr.mxu0 0.0
    %3337 = vmatpush1.msra.mxu0 %v3325
    %3338 = vmatprep.subr.mxu0 0.0
    %3339 = vmatpush1.msra.mxu0 %v3327
    %3340 = vmatprep.subr.mxu0 0.0
    %3341 = vmatpush1.msra.mxu0 0.0
    %3342 = vmatprep.subr.mxu0 0.0
    %3343 = vmatpush1.msra.mxu0 0.0
    %3344 = vmatprep.subr.mxu0 0.0
    %3345 = vmatpush1.msra.mxu0 0.0
    %3346 = vmatprep.subr.mxu0 0.0
    %3347 = vmatpush1.msra.mxu0 0.0
    %3348 = vmatprep.subr.mxu0 0.0
    %3349 = vmatpush1.msra.mxu0 0.0
    %3350 = vmatprep.subr.mxu0 0.0
    %3351 = vmatpush1.msra.mxu0 0.0
    %3352 = vmatprep.subr.mxu0 0.0
    %3353 = vmatpush1.msra.mxu0 0.0
    %3354 = vmatprep.subr.mxu0 0.0
    %3355 = vmatpush1.msra.mxu0 0.0
    %3356 = vmatprep.subr.mxu0 0.0
    %3357 = vmatpush1.msra.mxu0 0.0
    %3358 = vmatprep.subr.mxu0 0.0
    %3359 = vmatpush1.msra.mxu0 0.0
    %3360 = vmatprep.subr.mxu0 0.0
    %3361 = vmatpush1.msra.mxu0 0.0
    %3362 = vmatprep.subr.mxu0 0.0
    %3363 = vmatpush1.msra.mxu0 0.0
    %3364 = vmatprep.subr.mxu0 0.0
    %3365 = vmatpush1.msra.mxu0 0.0
    %3366 = vmatprep.subr.mxu0 0.0
    %3367 = vmatpush1.msra.mxu0 0.0
    %3368 = vmatprep.subr.mxu0 0.0
    %3369 = vmatpush1.msra.mxu0 0.0
    %3370 = vmatprep.subr.mxu0 0.0
    %3371 = vmatpush1.msra.mxu0 0.0
    %3372 = vmatprep.subr.mxu0 0.0
    %3373 = vmatpush1.msra.mxu0 0.0
    %3374 = vmatprep.subr.mxu0 0.0
    %3375 = vmatpush1.msra.mxu0 0.0
    %3376 = vmatprep.subr.mxu0 0.0
    %3377 = vmatpush1.msra.mxu0 0.0
    %3378 = vmatprep.subr.mxu0 0.0
    %3379 = vmatpush1.msra.mxu0 0.0
    %3380 = vmatprep.subr.mxu0 0.0
    %3381 = vmatpush1.msra.mxu0 0.0
    %3382 = vmatprep.subr.mxu0 0.0
    %3383 = vmatpush1.msra.mxu0 0.0
    %3384 = vmatprep.subr.mxu0 0.0
    %3385 = vmatpush1.msra.mxu0 0.0
    %3386 = vmatprep.subr.mxu0 0.0
    %3387 = vmatpush1.msra.mxu0 0.0
    %3388 = vmatprep.subr.mxu0 0.0
    %3389 = vmatpush1.msra.mxu0 0.0
    %3390 = vmatprep.subr.mxu0 0.0
    %3391 = vmatpush1.msra.mxu0 0.0
    %3392 = vmatprep.subr.mxu0 0.0
    %3393 = vmatpush1.msra.mxu0 0.0
    %3394 = vmatprep.subr.mxu0 0.0
    %3395 = vmatpush1.msra.mxu0 0.0
    %3396 = vmatprep.subr.mxu0 0.0
    %3397 = vmatpush1.msra.mxu0 0.0
    %3398 = vmatprep.subr.mxu0 0.0
    %3399 = vmatpush1.msra.mxu0 0.0
    %3400 = vmatprep.mubr.f32.mxu0 0.0
    %3401 = vmatmul.mubr.f32.gmra.mrb[0].mxu0 %v3331
    %v3402 = vpop.f32.mrb[0].mxu0
    %v3403 = vadd.f32 0.0, %v3402
    %v3404 = vpop.f32.mrb[0].mxu0
    %3405 = vmatprep.mubr.f32.mxu0 0.0
    %3406 = vmatmul.mubr.f32.gmra.mrb[0].mxu0 %v3334
    %v3407 = vpop.f32.mrb[0].mxu0
    %v3408 = vadd.f32 0.0, %v3407
    %v3409 = vpop.f32.mrb[0].mxu0
    %3410 = vdwg.mxu0
    %3411 = vrot.lane.b32.xlu0 %v523, 56
    %v3412 = vpop.permute.xlu0 %3411
    %3413 = vrot.lane.b32.xlu0 %v528, 56
    %v3414 = vpop.permute.xlu0 %3413
    %v3418 = vsel %vm1286, %v3048, 0
    %v3421 = vsel %vm1286, %v3050, 0
    %3423 = vmatprep.subr.mxu0 0.0
    %3424 = vmatpush1.msra.mxu0 %v3412
    %3425 = vmatprep.subr.mxu0 0.0
    %3426 = vmatpush1.msra.mxu0 %v3414
    %3427 = vmatprep.subr.mxu0 0.0
    %3428 = vmatpush1.msra.mxu0 0.0
    %3429 = vmatprep.subr.mxu0 0.0
    %3430 = vmatpush1.msra.mxu0 0.0
    %3431 = vmatprep.subr.mxu0 0.0
    %3432 = vmatpush1.msra.mxu0 0.0
    %3433 = vmatprep.subr.mxu0 0.0
    %3434 = vmatpush1.msra.mxu0 0.0
    %3435 = vmatprep.subr.mxu0 0.0
    %3436 = vmatpush1.msra.mxu0 0.0
    %3437 = vmatprep.subr.mxu0 0.0
    %3438 = vmatpush1.msra.mxu0 0.0
    %3439 = vmatprep.subr.mxu0 0.0
    %3440 = vmatpush1.msra.mxu0 0.0
    %3441 = vmatprep.subr.mxu0 0.0
    %3442 = vmatpush1.msra.mxu0 0.0
    %3443 = vmatprep.subr.mxu0 0.0
    %3444 = vmatpush1.msra.mxu0 0.0
    %3445 = vmatprep.subr.mxu0 0.0
    %3446 = vmatpush1.msra.mxu0 0.0
    %3447 = vmatprep.subr.mxu0 0.0
    %3448 = vmatpush1.msra.mxu0 0.0
    %3449 = vmatprep.subr.mxu0 0.0
    %3450 = vmatpush1.msra.mxu0 0.0
    %3451 = vmatprep.subr.mxu0 0.0
    %3452 = vmatpush1.msra.mxu0 0.0
    %3453 = vmatprep.subr.mxu0 0.0
    %3454 = vmatpush1.msra.mxu0 0.0
    %3455 = vmatprep.subr.mxu0 0.0
    %3456 = vmatpush1.msra.mxu0 0.0
    %3457 = vmatprep.subr.mxu0 0.0
    %3458 = vmatpush1.msra.mxu0 0.0
    %3459 = vmatprep.subr.mxu0 0.0
    %3460 = vmatpush1.msra.mxu0 0.0
    %3461 = vmatprep.subr.mxu0 0.0
    %3462 = vmatpush1.msra.mxu0 0.0
    %3463 = vmatprep.subr.mxu0 0.0
    %3464 = vmatpush1.msra.mxu0 0.0
    %3465 = vmatprep.subr.mxu0 0.0
    %3466 = vmatpush1.msra.mxu0 0.0
    %3467 = vmatprep.subr.mxu0 0.0
    %3468 = vmatpush1.msra.mxu0 0.0
    %3469 = vmatprep.subr.mxu0 0.0
    %3470 = vmatpush1.msra.mxu0 0.0
    %3471 = vmatprep.subr.mxu0 0.0
    %3472 = vmatpush1.msra.mxu0 0.0
    %3473 = vmatprep.subr.mxu0 0.0
    %3474 = vmatpush1.msra.mxu0 0.0
    %3475 = vmatprep.subr.mxu0 0.0
    %3476 = vmatpush1.msra.mxu0 0.0
    %3477 = vmatprep.subr.mxu0 0.0
    %3478 = vmatpush1.msra.mxu0 0.0
    %3479 = vmatprep.subr.mxu0 0.0
    %3480 = vmatpush1.msra.mxu0 0.0
    %3481 = vmatprep.subr.mxu0 0.0
    %3482 = vmatpush1.msra.mxu0 0.0
    %3483 = vmatprep.subr.mxu0 0.0
    %3484 = vmatpush1.msra.mxu0 0.0
    %3485 = vmatprep.subr.mxu0 0.0
    %3486 = vmatpush1.msra.mxu0 0.0
    %3487 = vmatprep.mubr.f32.mxu0 0.0
    %3488 = vmatmul.mubr.f32.gmra.mrb[0].mxu0 %v3418
    %v3489 = vpop.f32.mrb[0].mxu0
    %v3490 = vadd.f32 0.0, %v3489
    %v3491 = vpop.f32.mrb[0].mxu0
    %3492 = vmatprep.mubr.f32.mxu0 0.0
    %3493 = vmatmul.mubr.f32.gmra.mrb[0].mxu0 %v3421
    %v3494 = vpop.f32.mrb[0].mxu0
    %v3495 = vadd.f32 0.0, %v3494
    %v3496 = vpop.f32.mrb[0].mxu0
    %3497 = vdwg.mxu0
    %3498 = vrot.lane.b32.xlu0 %v533, 56
    %v3499 = vpop.permute.xlu0 %3498
    %3500 = vrot.lane.b32.xlu0 %v538, 56
    %v3501 = vpop.permute.xlu0 %3500
    %v3505 = vsel %vm1286, %v3052, 0
    %v3508 = vsel %vm1286, %v3054, 0
    %3510 = vmatprep.subr.mxu0 0.0
    %3511 = vmatpush1.msra.mxu0 %v3499
    %3512 = vmatprep.subr.mxu0 0.0
    %3513 = vmatpush1.msra.mxu0 %v3501
    %3514 = vmatprep.subr.mxu0 0.0
    %3515 = vmatpush1.msra.mxu0 0.0
    %3516 = vmatprep.subr.mxu0 0.0
    %3517 = vmatpush1.msra.mxu0 0.0
    %3518 = vmatprep.subr.mxu0 0.0
    %3519 = vmatpush1.msra.mxu0 0.0
    %3520 = vmatprep.subr.mxu0 0.0
    %3521 = vmatpush1.msra.mxu0 0.0
    %3522 = vmatprep.subr.mxu0 0.0
    %3523 = vmatpush1.msra.mxu0 0.0
    %3524 = vmatprep.subr.mxu0 0.0
    %3525 = vmatpush1.msra.mxu0 0.0
    %3526 = vmatprep.subr.mxu0 0.0
    %3527 = vmatpush1.msra.mxu0 0.0
    %3528 = vmatprep.subr.mxu0 0.0
    %3529 = vmatpush1.msra.mxu0 0.0
    %3530 = vmatprep.subr.mxu0 0.0
    %3531 = vmatpush1.msra.mxu0 0.0
    %3532 = vmatprep.subr.mxu0 0.0
    %3533 = vmatpush1.msra.mxu0 0.0
    %3534 = vmatprep.subr.mxu0 0.0
    %3535 = vmatpush1.msra.mxu0 0.0
    %3536 = vmatprep.subr.mxu0 0.0
    %3537 = vmatpush1.msra.mxu0 0.0
    %3538 = vmatprep.subr.mxu0 0.0
    %3539 = vmatpush1.msra.mxu0 0.0
    %3540 = vmatprep.subr.mxu0 0.0
    %3541 = vmatpush1.msra.mxu0 0.0
    %3542 = vmatprep.subr.mxu0 0.0
    %3543 = vmatpush1.msra.mxu0 0.0
    %3544 = vmatprep.subr.mxu0 0.0
    %3545 = vmatpush1.msra.mxu0 0.0
    %3546 = vmatprep.subr.mxu0 0.0
    %3547 = vmatpush1.msra.mxu0 0.0
    %3548 = vmatprep.subr.mxu0 0.0
    %3549 = vmatpush1.msra.mxu0 0.0
    %3550 = vmatprep.subr.mxu0 0.0
    %3551 = vmatpush1.msra.mxu0 0.0
    %3552 = vmatprep.subr.mxu0 0.0
    %3553 = vmatpush1.msra.mxu0 0.0
    %3554 = vmatprep.subr.mxu0 0.0
    %3555 = vmatpush1.msra.mxu0 0.0
    %3556 = vmatprep.subr.mxu0 0.0
    %3557 = vmatpush1.msra.mxu0 0.0
    %3558 = vmatprep.subr.mxu0 0.0
    %3559 = vmatpush1.msra.mxu0 0.0
    %3560 = vmatprep.subr.mxu0 0.0
    %3561 = vmatpush1.msra.mxu0 0.0
    %3562 = vmatprep.subr.mxu0 0.0
    %3563 = vmatpush1.msra.mxu0 0.0
    %3564 = vmatprep.subr.mxu0 0.0
    %3565 = vmatpush1.msra.mxu0 0.0
    %3566 = vmatprep.subr.mxu0 0.0
    %3567 = vmatpush1.msra.mxu0 0.0
    %3568 = vmatprep.subr.mxu0 0.0
    %3569 = vmatpush1.msra.mxu0 0.0
    %3570 = vmatprep.subr.mxu0 0.0
    %3571 = vmatpush1.msra.mxu0 0.0
    %3572 = vmatprep.subr.mxu0 0.0
    %3573 = vmatpush1.msra.mxu0 0.0
    %3574 = vmatprep.mubr.f32.mxu0 0.0
    %3575 = vmatmul.mubr.f32.gmra.mrb[0].mxu0 %v3505
    %v3576 = vpop.f32.mrb[0].mxu0
    %v3577 = vadd.f32 0.0, %v3576
    %v3578 = vpop.f32.mrb[0].mxu0
    %3579 = vmatprep.mubr.f32.mxu0 0.0
    %3580 = vmatmul.mubr.f32.gmra.mrb[0].mxu0 %v3508
    %v3581 = vpop.f32.mrb[0].mxu0
    %v3582 = vadd.f32 0.0, %v3581
    %v3583 = vpop.f32.mrb[0].mxu0
    %3584 = vdwg.mxu0
    %3585 = vrot.lane.b32.xlu0 %v543, 56
    %v3586 = vpop.permute.xlu0 %3585
    %3587 = vrot.lane.b32.xlu0 %v548, 56
    %v3588 = vpop.permute.xlu0 %3587
    %v3592 = vsel %vm1286, %v3056, 0
    %v3595 = vsel %vm1286, %v3058, 0
    %3597 = vmatprep.subr.mxu0 0.0
    %3598 = vmatpush1.msra.mxu0 %v3586
    %3599 = vmatprep.subr.mxu0 0.0
    %3600 = vmatpush1.msra.mxu0 %v3588
    %3601 = vmatprep.subr.mxu0 0.0
    %3602 = vmatpush1.msra.mxu0 0.0
    %3603 = vmatprep.subr.mxu0 0.0
    %3604 = vmatpush1.msra.mxu0 0.0
    %3605 = vmatprep.subr.mxu0 0.0
    %3606 = vmatpush1.msra.mxu0 0.0
    %3607 = vmatprep.subr.mxu0 0.0
    %3608 = vmatpush1.msra.mxu0 0.0
    %3609 = vmatprep.subr.mxu0 0.0
    %3610 = vmatpush1.msra.mxu0 0.0
    %3611 = vmatprep.subr.mxu0 0.0
    %3612 = vmatpush1.msra.mxu0 0.0
    %3613 = vmatprep.subr.mxu0 0.0
    %3614 = vmatpush1.msra.mxu0 0.0
    %3615 = vmatprep.subr.mxu0 0.0
    %3616 = vmatpush1.msra.mxu0 0.0
    %3617 = vmatprep.subr.mxu0 0.0
    %3618 = vmatpush1.msra.mxu0 0.0
    %3619 = vmatprep.subr.mxu0 0.0
    %3620 = vmatpush1.msra.mxu0 0.0
    %3621 = vmatprep.subr.mxu0 0.0
    %3622 = vmatpush1.msra.mxu0 0.0
    %3623 = vmatprep.subr.mxu0 0.0
    %3624 = vmatpush1.msra.mxu0 0.0
    %3625 = vmatprep.subr.mxu0 0.0
    %3626 = vmatpush1.msra.mxu0 0.0
    %3627 = vmatprep.subr.mxu0 0.0
    %3628 = vmatpush1.msra.mxu0 0.0
    %3629 = vmatprep.subr.mxu0 0.0
    %3630 = vmatpush1.msra.mxu0 0.0
    %3631 = vmatprep.subr.mxu0 0.0
    %3632 = vmatpush1.msra.mxu0 0.0
    %3633 = vmatprep.subr.mxu0 0.0
    %3634 = vmatpush1.msra.mxu0 0.0
    %3635 = vmatprep.subr.mxu0 0.0
    %3636 = vmatpush1.msra.mxu0 0.0
    %3637 = vmatprep.subr.mxu0 0.0
    %3638 = vmatpush1.msra.mxu0 0.0
    %3639 = vmatprep.subr.mxu0 0.0
    %3640 = vmatpush1.msra.mxu0 0.0
    %3641 = vmatprep.subr.mxu0 0.0
    %3642 = vmatpush1.msra.mxu0 0.0
    %3643 = vmatprep.subr.mxu0 0.0
    %3644 = vmatpush1.msra.mxu0 0.0
    %3645 = vmatprep.subr.mxu0 0.0
    %3646 = vmatpush1.msra.mxu0 0.0
    %3647 = vmatprep.subr.mxu0 0.0
    %3648 = vmatpush1.msra.mxu0 0.0
    %3649 = vmatprep.subr.mxu0 0.0
    %3650 = vmatpush1.msra.mxu0 0.0
    %3651 = vmatprep.subr.mxu0 0.0
    %3652 = vmatpush1.msra.mxu0 0.0
    %3653 = vmatprep.subr.mxu0 0.0
    %3654 = vmatpush1.msra.mxu0 0.0
    %3655 = vmatprep.subr.mxu0 0.0
    %3656 = vmatpush1.msra.mxu0 0.0
    %3657 = vmatprep.subr.mxu0 0.0
    %3658 = vmatpush1.msra.mxu0 0.0
    %3659 = vmatprep.subr.mxu0 0.0
    %3660 = vmatpush1.msra.mxu0 0.0
    %3661 = vmatprep.mubr.f32.mxu0 0.0
    %3662 = vmatmul.mubr.f32.gmra.mrb[0].mxu0 %v3592
    %v3663 = vpop.f32.mrb[0].mxu0
    %v3664 = vadd.f32 0.0, %v3663
    %v3665 = vpop.f32.mrb[0].mxu0
    %3666 = vmatprep.mubr.f32.mxu0 0.0
    %3667 = vmatmul.mubr.f32.gmra.mrb[0].mxu0 %v3595
    %v3668 = vpop.f32.mrb[0].mxu0
    %v3669 = vadd.f32 0.0, %v3668
    %v3670 = vpop.f32.mrb[0].mxu0
    %3671 = vdwg.mxu0
    %3672 = vrot.lane.b32.xlu0 %v553, 56
    %v3673 = vpop.permute.xlu0 %3672
    %3674 = vrot.lane.b32.xlu0 %v558, 56
    %v3675 = vpop.permute.xlu0 %3674
    %v3679 = vsel %vm1286, %v3060, 0
    %v3682 = vsel %vm1286, %v3062, 0
    %3684 = vmatprep.subr.mxu0 0.0
    %3685 = vmatpush1.msra.mxu0 %v3673
    %3686 = vmatprep.subr.mxu0 0.0
    %3687 = vmatpush1.msra.mxu0 %v3675
    %3688 = vmatprep.subr.mxu0 0.0
    %3689 = vmatpush1.msra.mxu0 0.0
    %3690 = vmatprep.subr.mxu0 0.0
    %3691 = vmatpush1.msra.mxu0 0.0
    %3692 = vmatprep.subr.mxu0 0.0
    %3693 = vmatpush1.msra.mxu0 0.0
    %3694 = vmatprep.subr.mxu0 0.0
    %3695 = vmatpush1.msra.mxu0 0.0
    %3696 = vmatprep.subr.mxu0 0.0
    %3697 = vmatpush1.msra.mxu0 0.0
    %3698 = vmatprep.subr.mxu0 0.0
    %3699 = vmatpush1.msra.mxu0 0.0
    %3700 = vmatprep.subr.mxu0 0.0
    %3701 = vmatpush1.msra.mxu0 0.0
    %3702 = vmatprep.subr.mxu0 0.0
    %3703 = vmatpush1.msra.mxu0 0.0
    %3704 = vmatprep.subr.mxu0 0.0
    %3705 = vmatpush1.msra.mxu0 0.0
    %3706 = vmatprep.subr.mxu0 0.0
    %3707 = vmatpush1.msra.mxu0 0.0
    %3708 = vmatprep.subr.mxu0 0.0
    %3709 = vmatpush1.msra.mxu0 0.0
    %3710 = vmatprep.subr.mxu0 0.0
    %3711 = vmatpush1.msra.mxu0 0.0
    %3712 = vmatprep.subr.mxu0 0.0
    %3713 = vmatpush1.msra.mxu0 0.0
    %3714 = vmatprep.subr.mxu0 0.0
    %3715 = vmatpush1.msra.mxu0 0.0
    %3716 = vmatprep.subr.mxu0 0.0
    %3717 = vmatpush1.msra.mxu0 0.0
    %3718 = vmatprep.subr.mxu0 0.0
    %3719 = vmatpush1.msra.mxu0 0.0
    %3720 = vmatprep.subr.mxu0 0.0
    %3721 = vmatpush1.msra.mxu0 0.0
    %3722 = vmatprep.subr.mxu0 0.0
    %3723 = vmatpush1.msra.mxu0 0.0
    %3724 = vmatprep.subr.mxu0 0.0
    %3725 = vmatpush1.msra.mxu0 0.0
    %3726 = vmatprep.subr.mxu0 0.0
    %3727 = vmatpush1.msra.mxu0 0.0
    %3728 = vmatprep.subr.mxu0 0.0
    %3729 = vmatpush1.msra.mxu0 0.0
    %3730 = vmatprep.subr.mxu0 0.0
    %3731 = vmatpush1.msra.mxu0 0.0
    %3732 = vmatprep.subr.mxu0 0.0
    %3733 = vmatpush1.msra.mxu0 0.0
    %3734 = vmatprep.subr.mxu0 0.0
    %3735 = vmatpush1.msra.mxu0 0.0
    %3736 = vmatprep.subr.mxu0 0.0
    %3737 = vmatpush1.msra.mxu0 0.0
    %3738 = vmatprep.subr.mxu0 0.0
    %3739 = vmatpush1.msra.mxu0 0.0
    %3740 = vmatprep.subr.mxu0 0.0
    %3741 = vmatpush1.msra.mxu0 0.0
    %3742 = vmatprep.subr.mxu0 0.0
    %3743 = vmatpush1.msra.mxu0 0.0
    %3744 = vmatprep.subr.mxu0 0.0
    %3745 = vmatpush1.msra.mxu0 0.0
    %3746 = vmatprep.subr.mxu0 0.0
    %3747 = vmatpush1.msra.mxu0 0.0
    %3748 = vmatprep.mubr.f32.mxu0 0.0
    %3749 = vmatmul.mubr.f32.gmra.mrb[0].mxu0 %v3679
    %v3750 = vpop.f32.mrb[0].mxu0
    %v3751 = vadd.f32 0.0, %v3750
    %v3752 = vpop.f32.mrb[0].mxu0
    %3753 = vmatprep.mubr.f32.mxu0 0.0
    %3754 = vmatmul.mubr.f32.gmra.mrb[0].mxu0 %v3682
    %v3755 = vpop.f32.mrb[0].mxu0
    %v3756 = vadd.f32 0.0, %v3755
    %v3757 = vpop.f32.mrb[0].mxu0
    %3758 = vdwg.mxu0
    %v3760 = vsel %vm579, %v3142, 0
    %v3763 = vsel %vm579, %v3147, 0
    %v3766 = vsel %vm579, %v3229, 0
    %v3769 = vsel %vm579, %v3234, 0
    %v3772 = vsel %vm579, %v3316, 0
    %v3775 = vsel %vm579, %v3321, 0
    %v3778 = vsel %vm579, %v3403, 0
    %v3781 = vsel %vm579, %v3408, 0
    %v3784 = vsel %vm579, %v3490, 0
    %v3787 = vsel %vm579, %v3495, 0
    %v3790 = vsel %vm579, %v3577, 0
    %v3793 = vsel %vm579, %v3582, 0
    %v3796 = vsel %vm579, %v3664, 0
    %v3799 = vsel %vm579, %v3669, 0
    %v3802 = vsel %vm579, %v3751, 0
    %v3805 = vsel %vm579, %v3756, 0
    %3807 = vmatprep.subr.mxu0 0.0
    %3808 = vmatpush1.msra.mxu0 %v570
    %3809 = vmatprep.subr.mxu0 0.0
    %3810 = vmatpush1.msra.mxu0 0.0
    %3811 = vmatprep.subr.mxu0 0.0
    %3812 = vmatpush1.msra.mxu0 0.0
    %3813 = vmatprep.subr.mxu0 0.0
    %3814 = vmatpush1.msra.mxu0 0.0
    %3815 = vmatprep.subr.mxu0 0.0
    %3816 = vmatpush1.msra.mxu0 0.0
    %3817 = vmatprep.subr.mxu0 0.0
    %3818 = vmatpush1.msra.mxu0 0.0
    %3819 = vmatprep.subr.mxu0 0.0
    %3820 = vmatpush1.msra.mxu0 0.0
    %3821 = vmatprep.subr.mxu0 0.0
    %3822 = vmatpush1.msra.mxu0 0.0
    %3823 = vmatprep.subr.mxu0 0.0
    %3824 = vmatpush1.msra.mxu0 0.0
    %3825 = vmatprep.subr.mxu0 0.0
    %3826 = vmatpush1.msra.mxu0 0.0
    %3827 = vmatprep.subr.mxu0 0.0
    %3828 = vmatpush1.msra.mxu0 0.0
    %3829 = vmatprep.subr.mxu0 0.0
    %3830 = vmatpush1.msra.mxu0 0.0
    %3831 = vmatprep.subr.mxu0 0.0
    %3832 = vmatpush1.msra.mxu0 0.0
    %3833 = vmatprep.subr.mxu0 0.0
    %3834 = vmatpush1.msra.mxu0 0.0
    %3835 = vmatprep.subr.mxu0 0.0
    %3836 = vmatpush1.msra.mxu0 0.0
    %3837 = vmatprep.subr.mxu0 0.0
    %3838 = vmatpush1.msra.mxu0 0.0
    %3839 = vmatprep.subr.mxu0 0.0
    %3840 = vmatpush1.msra.mxu0 0.0
    %3841 = vmatprep.subr.mxu0 0.0
    %3842 = vmatpush1.msra.mxu0 0.0
    %3843 = vmatprep.subr.mxu0 0.0
    %3844 = vmatpush1.msra.mxu0 0.0
    %3845 = vmatprep.subr.mxu0 0.0
    %3846 = vmatpush1.msra.mxu0 0.0
    %3847 = vmatprep.subr.mxu0 0.0
    %3848 = vmatpush1.msra.mxu0 0.0
    %3849 = vmatprep.subr.mxu0 0.0
    %3850 = vmatpush1.msra.mxu0 0.0
    %3851 = vmatprep.subr.mxu0 0.0
    %3852 = vmatpush1.msra.mxu0 0.0
    %3853 = vmatprep.subr.mxu0 0.0
    %3854 = vmatpush1.msra.mxu0 0.0
    %3855 = vmatprep.subr.mxu0 0.0
    %3856 = vmatpush1.msra.mxu0 0.0
    %3857 = vmatprep.subr.mxu0 0.0
    %3858 = vmatpush1.msra.mxu0 0.0
    %3859 = vmatprep.subr.mxu0 0.0
    %3860 = vmatpush1.msra.mxu0 0.0
    %3861 = vmatprep.subr.mxu0 0.0
    %3862 = vmatpush1.msra.mxu0 0.0
    %3863 = vmatprep.subr.mxu0 0.0
    %3864 = vmatpush1.msra.mxu0 0.0
    %3865 = vmatprep.subr.mxu0 0.0
    %3866 = vmatpush1.msra.mxu0 0.0
    %3867 = vmatprep.subr.mxu0 0.0
    %3868 = vmatpush1.msra.mxu0 0.0
    %3869 = vmatprep.subr.mxu0 0.0
    %3870 = vmatpush1.msra.mxu0 0.0
    %3871 = vmatprep.mubr.f32.mxu0 0.0
    %3872 = vmatmul.mubr.f32.gmra.mrb[0].mxu0 %v3760
    %v3873 = vpop.f32.mrb[0].mxu0
    %v3874 = vadd.f32 0.0, %v3873
    %v3875 = vpop.f32.mrb[0].mxu0
    %3876 = vmatprep.mubr.f32.mxu0 0.0
    %3877 = vmatmul.mubr.f32.gmra.mrb[0].mxu0 %v3763
    %v3878 = vpop.f32.mrb[0].mxu0
    %v3879 = vadd.f32 0.0, %v3878
    %v3880 = vpop.f32.mrb[0].mxu0
    %3881 = vmatprep.mubr.f32.mxu0 0.0
    %3882 = vmatmul.mubr.f32.gmra.mrb[0].mxu0 %v3766
    %v3883 = vpop.f32.mrb[0].mxu0
    %v3884 = vadd.f32 0.0, %v3883
    %v3885 = vpop.f32.mrb[0].mxu0
    %3886 = vmatprep.mubr.f32.mxu0 0.0
    %3887 = vmatmul.mubr.f32.gmra.mrb[0].mxu0 %v3769
    %v3888 = vpop.f32.mrb[0].mxu0
    %v3889 = vadd.f32 0.0, %v3888
    %v3890 = vpop.f32.mrb[0].mxu0
    %3891 = vmatprep.mubr.f32.mxu0 0.0
    %3892 = vmatmul.mubr.f32.gmra.mrb[0].mxu0 %v3772
    %v3893 = vpop.f32.mrb[0].mxu0
    %v3894 = vadd.f32 0.0, %v3893
    %v3895 = vpop.f32.mrb[0].mxu0
    %3896 = vmatprep.mubr.f32.mxu0 0.0
    %3897 = vmatmul.mubr.f32.gmra.mrb[0].mxu0 %v3775
    %v3898 = vpop.f32.mrb[0].mxu0
    %v3899 = vadd.f32 0.0, %v3898
    %v3900 = vpop.f32.mrb[0].mxu0
    %3901 = vmatprep.mubr.f32.mxu0 0.0
    %3902 = vmatmul.mubr.f32.gmra.mrb[0].mxu0 %v3778
    %v3903 = vpop.f32.mrb[0].mxu0
    %v3904 = vadd.f32 0.0, %v3903
    %v3905 = vpop.f32.mrb[0].mxu0
    %3906 = vmatprep.mubr.f32.mxu0 0.0
    %3907 = vmatmul.mubr.f32.gmra.mrb[0].mxu0 %v3781
    %v3908 = vpop.f32.mrb[0].mxu0
    %v3909 = vadd.f32 0.0, %v3908
    %v3910 = vpop.f32.mrb[0].mxu0
    %3911 = vmatprep.mubr.f32.mxu0 0.0
    %3912 = vmatmul.mubr.f32.gmra.mrb[0].mxu0 %v3784
    %v3913 = vpop.f32.mrb[0].mxu0
    %v3914 = vadd.f32 0.0, %v3913
    %v3915 = vpop.f32.mrb[0].mxu0
    %3916 = vmatprep.mubr.f32.mxu0 0.0
    %3917 = vmatmul.mubr.f32.gmra.mrb[0].mxu0 %v3787
    %v3918 = vpop.f32.mrb[0].mxu0
    %v3919 = vadd.f32 0.0, %v3918
    %v3920 = vpop.f32.mrb[0].mxu0
    %3921 = vmatprep.mubr.f32.mxu0 0.0
    %3922 = vmatmul.mubr.f32.gmra.mrb[0].mxu0 %v3790
    %v3923 = vpop.f32.mrb[0].mxu0
    %v3924 = vadd.f32 0.0, %v3923
    %v3925 = vpop.f32.mrb[0].mxu0
    %3926 = vmatprep.mubr.f32.mxu0 0.0
    %3927 = vmatmul.mubr.f32.gmra.mrb[0].mxu0 %v3793
    %v3928 = vpop.f32.mrb[0].mxu0
    %v3929 = vadd.f32 0.0, %v3928
    %v3930 = vpop.f32.mrb[0].mxu0
    %3931 = vmatprep.mubr.f32.mxu0 0.0
    %3932 = vmatmul.mubr.f32.gmra.mrb[0].mxu0 %v3796
    %v3933 = vpop.f32.mrb[0].mxu0
    %v3934 = vadd.f32 0.0, %v3933
    %v3935 = vpop.f32.mrb[0].mxu0
    %3936 = vmatprep.mubr.f32.mxu0 0.0
    %3937 = vmatmul.mubr.f32.gmra.mrb[0].mxu0 %v3799
    %v3938 = vpop.f32.mrb[0].mxu0
    %v3939 = vadd.f32 0.0, %v3938
    %v3940 = vpop.f32.mrb[0].mxu0
    %3941 = vmatprep.mubr.f32.mxu0 0.0
    %3942 = vmatmul.mubr.f32.gmra.mrb[0].mxu0 %v3802
    %v3943 = vpop.f32.mrb[0].mxu0
    %v3944 = vadd.f32 0.0, %v3943
    %v3945 = vpop.f32.mrb[0].mxu0
    %3946 = vmatprep.mubr.f32.mxu0 0.0
    %3947 = vmatmul.mubr.f32.gmra.mrb[0].mxu0 %v3805
    %v3948 = vpop.f32.mrb[0].mxu0
    %v3949 = vadd.f32 0.0, %v3948
    %v3950 = vpop.f32.mrb[0].mxu0
    %3951 = vdwg.mxu0
    %v3953 = vsel %vm579, %v1542, 0
    %v3956 = vsel %vm579, %v1547, 0
    %v3959 = vsel %vm579, %v1629, 0
    %v3962 = vsel %vm579, %v1634, 0
    %v3965 = vsel %vm579, %v1716, 0
    %v3968 = vsel %vm579, %v1721, 0
    %v3971 = vsel %vm579, %v1803, 0
    %v3974 = vsel %vm579, %v1808, 0
    %v3977 = vsel %vm579, %v1890, 0
    %v3980 = vsel %vm579, %v1895, 0
    %v3983 = vsel %vm579, %v1977, 0
    %v3986 = vsel %vm579, %v1982, 0
    %v3989 = vsel %vm579, %v2064, 0
    %v3992 = vsel %vm579, %v2069, 0
    %v3995 = vsel %vm579, %v2151, 0
    %v3998 = vsel %vm579, %v2156, 0
    %4000 = vmatprep.subr.mxu0 0.0
    %4001 = vmatpush1.msra.mxu0 %v569
    %4002 = vmatprep.subr.mxu0 0.0
    %4003 = vmatpush1.msra.mxu0 0.0
    %4004 = vmatprep.subr.mxu0 0.0
    %4005 = vmatpush1.msra.mxu0 0.0
    %4006 = vmatprep.subr.mxu0 0.0
    %4007 = vmatpush1.msra.mxu0 0.0
    %4008 = vmatprep.subr.mxu0 0.0
    %4009 = vmatpush1.msra.mxu0 0.0
    %4010 = vmatprep.subr.mxu0 0.0
    %4011 = vmatpush1.msra.mxu0 0.0
    %4012 = vmatprep.subr.mxu0 0.0
    %4013 = vmatpush1.msra.mxu0 0.0
    %4014 = vmatprep.subr.mxu0 0.0
    %4015 = vmatpush1.msra.mxu0 0.0
    %4016 = vmatprep.subr.mxu0 0.0
    %4017 = vmatpush1.msra.mxu0 0.0
    %4018 = vmatprep.subr.mxu0 0.0
    %4019 = vmatpush1.msra.mxu0 0.0
    %4020 = vmatprep.subr.mxu0 0.0
    %4021 = vmatpush1.msra.mxu0 0.0
    %4022 = vmatprep.subr.mxu0 0.0
    %4023 = vmatpush1.msra.mxu0 0.0
    %4024 = vmatprep.subr.mxu0 0.0
    %4025 = vmatpush1.msra.mxu0 0.0
    %4026 = vmatprep.subr.mxu0 0.0
    %4027 = vmatpush1.msra.mxu0 0.0
    %4028 = vmatprep.subr.mxu0 0.0
    %4029 = vmatpush1.msra.mxu0 0.0
    %4030 = vmatprep.subr.mxu0 0.0
    %4031 = vmatpush1.msra.mxu0 0.0
    %4032 = vmatprep.subr.mxu0 0.0
    %4033 = vmatpush1.msra.mxu0 0.0
    %4034 = vmatprep.subr.mxu0 0.0
    %4035 = vmatpush1.msra.mxu0 0.0
    %4036 = vmatprep.subr.mxu0 0.0
    %4037 = vmatpush1.msra.mxu0 0.0
    %4038 = vmatprep.subr.mxu0 0.0
    %4039 = vmatpush1.msra.mxu0 0.0
    %4040 = vmatprep.subr.mxu0 0.0
    %4041 = vmatpush1.msra.mxu0 0.0
    %4042 = vmatprep.subr.mxu0 0.0
    %4043 = vmatpush1.msra.mxu0 0.0
    %4044 = vmatprep.subr.mxu0 0.0
    %4045 = vmatpush1.msra.mxu0 0.0
    %4046 = vmatprep.subr.mxu0 0.0
    %4047 = vmatpush1.msra.mxu0 0.0
    %4048 = vmatprep.subr.mxu0 0.0
    %4049 = vmatpush1.msra.mxu0 0.0
    %4050 = vmatprep.subr.mxu0 0.0
    %4051 = vmatpush1.msra.mxu0 0.0
    %4052 = vmatprep.subr.mxu0 0.0
    %4053 = vmatpush1.msra.mxu0 0.0
    %4054 = vmatprep.subr.mxu0 0.0
    %4055 = vmatpush1.msra.mxu0 0.0
    %4056 = vmatprep.subr.mxu0 0.0
    %4057 = vmatpush1.msra.mxu0 0.0
    %4058 = vmatprep.subr.mxu0 0.0
    %4059 = vmatpush1.msra.mxu0 0.0
    %4060 = vmatprep.subr.mxu0 0.0
    %4061 = vmatpush1.msra.mxu0 0.0
    %4062 = vmatprep.subr.mxu0 0.0
    %4063 = vmatpush1.msra.mxu0 0.0
    %4064 = vmatprep.mubr.f32.mxu0 0.0
    %4065 = vmatmul.mubr.f32.gmra.mrb[0].mxu0 %v3953
    %v4066 = vpop.f32.mrb[0].mxu0
    %v4067 = vadd.f32 %v3874, %v4066
    %v4068 = vpop.f32.mrb[0].mxu0
    %4069 = vmatprep.mubr.f32.mxu0 0.0
    %4070 = vmatmul.mubr.f32.gmra.mrb[0].mxu0 %v3956
    %v4071 = vpop.f32.mrb[0].mxu0
    %v4072 = vadd.f32 %v3879, %v4071
    %v4073 = vpop.f32.mrb[0].mxu0
    %4074 = vmatprep.mubr.f32.mxu0 0.0
    %4075 = vmatmul.mubr.f32.gmra.mrb[0].mxu0 %v3959
    %v4076 = vpop.f32.mrb[0].mxu0
    %v4077 = vadd.f32 %v3884, %v4076
    %v4078 = vpop.f32.mrb[0].mxu0
    %4079 = vmatprep.mubr.f32.mxu0 0.0
    %4080 = vmatmul.mubr.f32.gmra.mrb[0].mxu0 %v3962
    %v4081 = vpop.f32.mrb[0].mxu0
    %v4082 = vadd.f32 %v3889, %v4081
    %v4083 = vpop.f32.mrb[0].mxu0
    %4084 = vmatprep.mubr.f32.mxu0 0.0
    %4085 = vmatmul.mubr.f32.gmra.mrb[0].mxu0 %v3965
    %v4086 = vpop.f32.mrb[0].mxu0
    %v4087 = vadd.f32 %v3894, %v4086
    %v4088 = vpop.f32.mrb[0].mxu0
    %4089 = vmatprep.mubr.f32.mxu0 0.0
    %4090 = vmatmul.mubr.f32.gmra.mrb[0].mxu0 %v3968
    %v4091 = vpop.f32.mrb[0].mxu0
    %v4092 = vadd.f32 %v3899, %v4091
    %v4093 = vpop.f32.mrb[0].mxu0
    %4094 = vmatprep.mubr.f32.mxu0 0.0
    %4095 = vmatmul.mubr.f32.gmra.mrb[0].mxu0 %v3971
    %v4096 = vpop.f32.mrb[0].mxu0
    %v4097 = vadd.f32 %v3904, %v4096
    %v4098 = vpop.f32.mrb[0].mxu0
    %4099 = vmatprep.mubr.f32.mxu0 0.0
    %4100 = vmatmul.mubr.f32.gmra.mrb[0].mxu0 %v3974
    %v4101 = vpop.f32.mrb[0].mxu0
    %v4102 = vadd.f32 %v3909, %v4101
    %v4103 = vpop.f32.mrb[0].mxu0
    %4104 = vmatprep.mubr.f32.mxu0 0.0
    %4105 = vmatmul.mubr.f32.gmra.mrb[0].mxu0 %v3977
    %v4106 = vpop.f32.mrb[0].mxu0
    %v4107 = vadd.f32 %v3914, %v4106
    %v4108 = vpop.f32.mrb[0].mxu0
    %4109 = vmatprep.mubr.f32.mxu0 0.0
    %4110 = vmatmul.mubr.f32.gmra.mrb[0].mxu0 %v3980
    %v4111 = vpop.f32.mrb[0].mxu0
    %v4112 = vadd.f32 %v3919, %v4111
    %v4113 = vpop.f32.mrb[0].mxu0
    %4114 = vmatprep.mubr.f32.mxu0 0.0
    %4115 = vmatmul.mubr.f32.gmra.mrb[0].mxu0 %v3983
    %v4116 = vpop.f32.mrb[0].mxu0
    %v4117 = vadd.f32 %v3924, %v4116
    %v4118 = vpop.f32.mrb[0].mxu0
    %4119 = vmatprep.mubr.f32.mxu0 0.0
    %4120 = vmatmul.mubr.f32.gmra.mrb[0].mxu0 %v3986
    %v4121 = vpop.f32.mrb[0].mxu0
    %v4122 = vadd.f32 %v3929, %v4121
    %v4123 = vpop.f32.mrb[0].mxu0
    %4124 = vmatprep.mubr.f32.mxu0 0.0
    %4125 = vmatmul.mubr.f32.gmra.mrb[0].mxu0 %v3989
    %v4126 = vpop.f32.mrb[0].mxu0
    %v4127 = vadd.f32 %v3934, %v4126
    %v4128 = vpop.f32.mrb[0].mxu0
    %4129 = vmatprep.mubr.f32.mxu0 0.0
    %4130 = vmatmul.mubr.f32.gmra.mrb[0].mxu0 %v3992
    %v4131 = vpop.f32.mrb[0].mxu0
    %v4132 = vadd.f32 %v3939, %v4131
    %v4133 = vpop.f32.mrb[0].mxu0
    %4134 = vmatprep.mubr.f32.mxu0 0.0
    %4135 = vmatmul.mubr.f32.gmra.mrb[0].mxu0 %v3995
    %v4136 = vpop.f32.mrb[0].mxu0
    %v4137 = vadd.f32 %v3944, %v4136
    %v4138 = vpop.f32.mrb[0].mxu0
    %4139 = vmatprep.mubr.f32.mxu0 0.0
    %4140 = vmatmul.mubr.f32.gmra.mrb[0].mxu0 %v3998
    %v4141 = vpop.f32.mrb[0].mxu0
    %v4142 = vadd.f32 %v3949, %v4141
    %v4143 = vpop.f32.mrb[0].mxu0
    %4144 = vdwg.mxu0
    %4145 = vrot.lane.b32.xlu0 %v483, 112
    %v4146 = vpop.permute.xlu0 %4145
    %4147 = vrot.lane.b32.xlu0 %v488, 112
    %v4148 = vpop.permute.xlu0 %4147
    %4149 = vrot.lane.b32.xlu0 %v483, 80
    %v4150 = vpop.permute.xlu0 %4149
    %4151 = vrot.lane.b32.xlu0 %v488, 80
    %v4152 = vpop.permute.xlu0 %4151
    %v4153 = vsel %vm579, %v4146, 0
    %v4155 = vsel %vm579, %v4148, 0
    %v4157 = vsel %vm579, %v4150, 0
    %v4159 = vsel %vm579, %v4152, 0
    %4161 = vmatprep.subr.mxu0 0.0
    %4162 = vmatpush1.xpose.msra.mxu0 %v4157
    %4163 = vmatprep.subr.mxu0 0.0
    %4164 = vmatpush1.xpose.msra.mxu0 %v4159
    %4165 = vmatprep.subr.mxu0 0.0
    %4166 = vmatpush1.xpose.msra.mxu0 0.0
    %4167 = vmatprep.subr.mxu0 0.0
    %4168 = vmatpush1.xpose.msra.mxu0 0.0
    %4169 = vmatprep.subr.mxu0 0.0
    %4170 = vmatpush1.xpose.msra.mxu0 0.0
    %4171 = vmatprep.subr.mxu0 0.0
    %4172 = vmatpush1.xpose.msra.mxu0 0.0
    %4173 = vmatprep.subr.mxu0 0.0
    %4174 = vmatpush1.xpose.msra.mxu0 0.0
    %4175 = vmatprep.subr.mxu0 0.0
    %4176 = vmatpush1.xpose.msra.mxu0 0.0
    %4177 = vmatprep.subr.mxu0 0.0
    %4178 = vmatpush1.xpose.msra.mxu0 0.0
    %4179 = vmatprep.subr.mxu0 0.0
    %4180 = vmatpush1.xpose.msra.mxu0 0.0
    %4181 = vmatprep.subr.mxu0 0.0
    %4182 = vmatpush1.xpose.msra.mxu0 0.0
    %4183 = vmatprep.subr.mxu0 0.0
    %4184 = vmatpush1.xpose.msra.mxu0 0.0
    %4185 = vmatprep.subr.mxu0 0.0
    %4186 = vmatpush1.xpose.msra.mxu0 0.0
    %4187 = vmatprep.subr.mxu0 0.0
    %4188 = vmatpush1.xpose.msra.mxu0 0.0
    %4189 = vmatprep.subr.mxu0 0.0
    %4190 = vmatpush1.xpose.msra.mxu0 0.0
    %4191 = vmatprep.subr.mxu0 0.0
    %4192 = vmatpush1.xpose.msra.mxu0 0.0
    %4193 = vmatprep.subr.mxu0 0.0
    %4194 = vmatpush1.xpose.msra.mxu0 0.0
    %4195 = vmatprep.subr.mxu0 0.0
    %4196 = vmatpush1.xpose.msra.mxu0 0.0
    %4197 = vmatprep.subr.mxu0 0.0
    %4198 = vmatpush1.xpose.msra.mxu0 0.0
    %4199 = vmatprep.subr.mxu0 0.0
    %4200 = vmatpush1.xpose.msra.mxu0 0.0
    %4201 = vmatprep.subr.mxu0 0.0
    %4202 = vmatpush1.xpose.msra.mxu0 0.0
    %4203 = vmatprep.subr.mxu0 0.0
    %4204 = vmatpush1.xpose.msra.mxu0 0.0
    %4205 = vmatprep.subr.mxu0 0.0
    %4206 = vmatpush1.xpose.msra.mxu0 0.0
    %4207 = vmatprep.subr.mxu0 0.0
    %4208 = vmatpush1.xpose.msra.mxu0 0.0
    %4209 = vmatprep.subr.mxu0 0.0
    %4210 = vmatpush1.xpose.msra.mxu0 0.0
    %4211 = vmatprep.subr.mxu0 0.0
    %4212 = vmatpush1.xpose.msra.mxu0 0.0
    %4213 = vmatprep.subr.mxu0 0.0
    %4214 = vmatpush1.xpose.msra.mxu0 0.0
    %4215 = vmatprep.subr.mxu0 0.0
    %4216 = vmatpush1.xpose.msra.mxu0 0.0
    %4217 = vmatprep.subr.mxu0 0.0
    %4218 = vmatpush1.xpose.msra.mxu0 0.0
    %4219 = vmatprep.subr.mxu0 0.0
    %4220 = vmatpush1.xpose.msra.mxu0 0.0
    %4221 = vmatprep.subr.mxu0 0.0
    %4222 = vmatpush1.xpose.msra.mxu0 0.0
    %4223 = vmatprep.subr.mxu0 0.0
    %4224 = vmatpush1.xpose.msra.mxu0 0.0
    %4225 = vmatprep.mubr.f32.mxu0 0.0
    %4226 = vmatmul.mubr.f32.gmra.mrb[0].mxu0 %v4153
    %v4227 = vpop.f32.mrb[0].mxu0
    %v4228 = vadd.f32 %v565, %v4227
    %v4229 = vpop.f32.mrb[0].mxu0
    %4230 = vmatprep.mubr.f32.mxu0 0.0
    %4231 = vmatmul.mubr.f32.gmra.mrb[0].mxu0 %v4155
    %v4232 = vpop.f32.mrb[0].mxu0
    %v4233 = vadd.f32 %v566, %v4232
    %v4234 = vpop.f32.mrb[0].mxu0
    %4235 = vdwg.mxu0
    %4236 = vrot.lane.b32.xlu0 %v493, 112
    %v4237 = vpop.permute.xlu0 %4236
    %4238 = vrot.lane.b32.xlu0 %v498, 112
    %v4239 = vpop.permute.xlu0 %4238
    %4240 = vrot.lane.b32.xlu0 %v493, 80
    %v4241 = vpop.permute.xlu0 %4240
    %4242 = vrot.lane.b32.xlu0 %v498, 80
    %v4243 = vpop.permute.xlu0 %4242
    %v4244 = vsel %vm579, %v4237, 0
    %v4246 = vsel %vm579, %v4239, 0
    %v4248 = vsel %vm579, %v4241, 0
    %v4250 = vsel %vm579, %v4243, 0
    %4252 = vmatprep.subr.mxu0 0.0
    %4253 = vmatpush1.xpose.msra.mxu0 %v4248
    %4254 = vmatprep.subr.mxu0 0.0
    %4255 = vmatpush1.xpose.msra.mxu0 %v4250
    %4256 = vmatprep.subr.mxu0 0.0
    %4257 = vmatpush1.xpose.msra.mxu0 0.0
    %4258 = vmatprep.subr.mxu0 0.0
    %4259 = vmatpush1.xpose.msra.mxu0 0.0
    %4260 = vmatprep.subr.mxu0 0.0
    %4261 = vmatpush1.xpose.msra.mxu0 0.0
    %4262 = vmatprep.subr.mxu0 0.0
    %4263 = vmatpush1.xpose.msra.mxu0 0.0
    %4264 = vmatprep.subr.mxu0 0.0
    %4265 = vmatpush1.xpose.msra.mxu0 0.0
    %4266 = vmatprep.subr.mxu0 0.0
    %4267 = vmatpush1.xpose.msra.mxu0 0.0
    %4268 = vmatprep.subr.mxu0 0.0
    %4269 = vmatpush1.xpose.msra.mxu0 0.0
    %4270 = vmatprep.subr.mxu0 0.0
    %4271 = vmatpush1.xpose.msra.mxu0 0.0
    %4272 = vmatprep.subr.mxu0 0.0
    %4273 = vmatpush1.xpose.msra.mxu0 0.0
    %4274 = vmatprep.subr.mxu0 0.0
    %4275 = vmatpush1.xpose.msra.mxu0 0.0
    %4276 = vmatprep.subr.mxu0 0.0
    %4277 = vmatpush1.xpose.msra.mxu0 0.0
    %4278 = vmatprep.subr.mxu0 0.0
    %4279 = vmatpush1.xpose.msra.mxu0 0.0
    %4280 = vmatprep.subr.mxu0 0.0
    %4281 = vmatpush1.xpose.msra.mxu0 0.0
    %4282 = vmatprep.subr.mxu0 0.0
    %4283 = vmatpush1.xpose.msra.mxu0 0.0
    %4284 = vmatprep.subr.mxu0 0.0
    %4285 = vmatpush1.xpose.msra.mxu0 0.0
    %4286 = vmatprep.subr.mxu0 0.0
    %4287 = vmatpush1.xpose.msra.mxu0 0.0
    %4288 = vmatprep.subr.mxu0 0.0
    %4289 = vmatpush1.xpose.msra.mxu0 0.0
    %4290 = vmatprep.subr.mxu0 0.0
    %4291 = vmatpush1.xpose.msra.mxu0 0.0
    %4292 = vmatprep.subr.mxu0 0.0
    %4293 = vmatpush1.xpose.msra.mxu0 0.0
    %4294 = vmatprep.subr.mxu0 0.0
    %4295 = vmatpush1.xpose.msra.mxu0 0.0
    %4296 = vmatprep.subr.mxu0 0.0
    %4297 = vmatpush1.xpose.msra.mxu0 0.0
    %4298 = vmatprep.subr.mxu0 0.0
    %4299 = vmatpush1.xpose.msra.mxu0 0.0
    %4300 = vmatprep.subr.mxu0 0.0
    %4301 = vmatpush1.xpose.msra.mxu0 0.0
    %4302 = vmatprep.subr.mxu0 0.0
    %4303 = vmatpush1.xpose.msra.mxu0 0.0
    %4304 = vmatprep.subr.mxu0 0.0
    %4305 = vmatpush1.xpose.msra.mxu0 0.0
    %4306 = vmatprep.subr.mxu0 0.0
    %4307 = vmatpush1.xpose.msra.mxu0 0.0
    %4308 = vmatprep.subr.mxu0 0.0
    %4309 = vmatpush1.xpose.msra.mxu0 0.0
    %4310 = vmatprep.subr.mxu0 0.0
    %4311 = vmatpush1.xpose.msra.mxu0 0.0
    %4312 = vmatprep.subr.mxu0 0.0
    %4313 = vmatpush1.xpose.msra.mxu0 0.0
    %4314 = vmatprep.subr.mxu0 0.0
    %4315 = vmatpush1.xpose.msra.mxu0 0.0
    %4316 = vmatprep.mubr.f32.mxu0 0.0
    %4317 = vmatmul.mubr.f32.gmra.mrb[0].mxu0 %v4244
    %v4318 = vpop.f32.mrb[0].mxu0
    %v4319 = vadd.f32 %v565, %v4318
    %v4320 = vpop.f32.mrb[0].mxu0
    %4321 = vmatprep.mubr.f32.mxu0 0.0
    %4322 = vmatmul.mubr.f32.gmra.mrb[0].mxu0 %v4246
    %v4323 = vpop.f32.mrb[0].mxu0
    %v4324 = vadd.f32 %v566, %v4323
    %v4325 = vpop.f32.mrb[0].mxu0
    %4326 = vdwg.mxu0
    %4327 = vrot.lane.b32.xlu0 %v503, 112
    %v4328 = vpop.permute.xlu0 %4327
    %4329 = vrot.lane.b32.xlu0 %v508, 112
    %v4330 = vpop.permute.xlu0 %4329
    %4331 = vrot.lane.b32.xlu0 %v503, 80
    %v4332 = vpop.permute.xlu0 %4331
    %4333 = vrot.lane.b32.xlu0 %v508, 80
    %v4334 = vpop.permute.xlu0 %4333
    %v4335 = vsel %vm579, %v4328, 0
    %v4337 = vsel %vm579, %v4330, 0
    %v4339 = vsel %vm579, %v4332, 0
    %v4341 = vsel %vm579, %v4334, 0
    %4343 = vmatprep.subr.mxu0 0.0
    %4344 = vmatpush1.xpose.msra.mxu0 %v4339
    %4345 = vmatprep.subr.mxu0 0.0
    %4346 = vmatpush1.xpose.msra.mxu0 %v4341
    %4347 = vmatprep.subr.mxu0 0.0
    %4348 = vmatpush1.xpose.msra.mxu0 0.0
    %4349 = vmatprep.subr.mxu0 0.0
    %4350 = vmatpush1.xpose.msra.mxu0 0.0
    %4351 = vmatprep.subr.mxu0 0.0
    %4352 = vmatpush1.xpose.msra.mxu0 0.0
    %4353 = vmatprep.subr.mxu0 0.0
    %4354 = vmatpush1.xpose.msra.mxu0 0.0
    %4355 = vmatprep.subr.mxu0 0.0
    %4356 = vmatpush1.xpose.msra.mxu0 0.0
    %4357 = vmatprep.subr.mxu0 0.0
    %4358 = vmatpush1.xpose.msra.mxu0 0.0
    %4359 = vmatprep.subr.mxu0 0.0
    %4360 = vmatpush1.xpose.msra.mxu0 0.0
    %4361 = vmatprep.subr.mxu0 0.0
    %4362 = vmatpush1.xpose.msra.mxu0 0.0
    %4363 = vmatprep.subr.mxu0 0.0
    %4364 = vmatpush1.xpose.msra.mxu0 0.0
    %4365 = vmatprep.subr.mxu0 0.0
    %4366 = vmatpush1.xpose.msra.mxu0 0.0
    %4367 = vmatprep.subr.mxu0 0.0
    %4368 = vmatpush1.xpose.msra.mxu0 0.0
    %4369 = vmatprep.subr.mxu0 0.0
    %4370 = vmatpush1.xpose.msra.mxu0 0.0
    %4371 = vmatprep.subr.mxu0 0.0
    %4372 = vmatpush1.xpose.msra.mxu0 0.0
    %4373 = vmatprep.subr.mxu0 0.0
    %4374 = vmatpush1.xpose.msra.mxu0 0.0
    %4375 = vmatprep.subr.mxu0 0.0
    %4376 = vmatpush1.xpose.msra.mxu0 0.0
    %4377 = vmatprep.subr.mxu0 0.0
    %4378 = vmatpush1.xpose.msra.mxu0 0.0
    %4379 = vmatprep.subr.mxu0 0.0
    %4380 = vmatpush1.xpose.msra.mxu0 0.0
    %4381 = vmatprep.subr.mxu0 0.0
    %4382 = vmatpush1.xpose.msra.mxu0 0.0
    %4383 = vmatprep.subr.mxu0 0.0
    %4384 = vmatpush1.xpose.msra.mxu0 0.0
    %4385 = vmatprep.subr.mxu0 0.0
    %4386 = vmatpush1.xpose.msra.mxu0 0.0
    %4387 = vmatprep.subr.mxu0 0.0
    %4388 = vmatpush1.xpose.msra.mxu0 0.0
    %4389 = vmatprep.subr.mxu0 0.0
    %4390 = vmatpush1.xpose.msra.mxu0 0.0
    %4391 = vmatprep.subr.mxu0 0.0
    %4392 = vmatpush1.xpose.msra.mxu0 0.0
    %4393 = vmatprep.subr.mxu0 0.0
    %4394 = vmatpush1.xpose.msra.mxu0 0.0
    %4395 = vmatprep.subr.mxu0 0.0
    %4396 = vmatpush1.xpose.msra.mxu0 0.0
    %4397 = vmatprep.subr.mxu0 0.0
    %4398 = vmatpush1.xpose.msra.mxu0 0.0
    %4399 = vmatprep.subr.mxu0 0.0
    %4400 = vmatpush1.xpose.msra.mxu0 0.0
    %4401 = vmatprep.subr.mxu0 0.0
    %4402 = vmatpush1.xpose.msra.mxu0 0.0
    %4403 = vmatprep.subr.mxu0 0.0
    %4404 = vmatpush1.xpose.msra.mxu0 0.0
    %4405 = vmatprep.subr.mxu0 0.0
    %4406 = vmatpush1.xpose.msra.mxu0 0.0
    %4407 = vmatprep.mubr.f32.mxu0 0.0
    %4408 = vmatmul.mubr.f32.gmra.mrb[0].mxu0 %v4335
    %v4409 = vpop.f32.mrb[0].mxu0
    %v4410 = vadd.f32 %v565, %v4409
    %v4411 = vpop.f32.mrb[0].mxu0
    %4412 = vmatprep.mubr.f32.mxu0 0.0
    %4413 = vmatmul.mubr.f32.gmra.mrb[0].mxu0 %v4337
    %v4414 = vpop.f32.mrb[0].mxu0
    %v4415 = vadd.f32 %v566, %v4414
    %v4416 = vpop.f32.mrb[0].mxu0
    %4417 = vdwg.mxu0
    %4418 = vrot.lane.b32.xlu0 %v513, 112
    %v4419 = vpop.permute.xlu0 %4418
    %4420 = vrot.lane.b32.xlu0 %v518, 112
    %v4421 = vpop.permute.xlu0 %4420
    %4422 = vrot.lane.b32.xlu0 %v513, 80
    %v4423 = vpop.permute.xlu0 %4422
    %4424 = vrot.lane.b32.xlu0 %v518, 80
    %v4425 = vpop.permute.xlu0 %4424
    %v4426 = vsel %vm579, %v4419, 0
    %v4428 = vsel %vm579, %v4421, 0
    %v4430 = vsel %vm579, %v4423, 0
    %v4432 = vsel %vm579, %v4425, 0
    %4434 = vmatprep.subr.mxu0 0.0
    %4435 = vmatpush1.xpose.msra.mxu0 %v4430
    %4436 = vmatprep.subr.mxu0 0.0
    %4437 = vmatpush1.xpose.msra.mxu0 %v4432
    %4438 = vmatprep.subr.mxu0 0.0
    %4439 = vmatpush1.xpose.msra.mxu0 0.0
    %4440 = vmatprep.subr.mxu0 0.0
    %4441 = vmatpush1.xpose.msra.mxu0 0.0
    %4442 = vmatprep.subr.mxu0 0.0
    %4443 = vmatpush1.xpose.msra.mxu0 0.0
    %4444 = vmatprep.subr.mxu0 0.0
    %4445 = vmatpush1.xpose.msra.mxu0 0.0
    %4446 = vmatprep.subr.mxu0 0.0
    %4447 = vmatpush1.xpose.msra.mxu0 0.0
    %4448 = vmatprep.subr.mxu0 0.0
    %4449 = vmatpush1.xpose.msra.mxu0 0.0
    %4450 = vmatprep.subr.mxu0 0.0
    %4451 = vmatpush1.xpose.msra.mxu0 0.0
    %4452 = vmatprep.subr.mxu0 0.0
    %4453 = vmatpush1.xpose.msra.mxu0 0.0
    %4454 = vmatprep.subr.mxu0 0.0
    %4455 = vmatpush1.xpose.msra.mxu0 0.0
    %4456 = vmatprep.subr.mxu0 0.0
    %4457 = vmatpush1.xpose.msra.mxu0 0.0
    %4458 = vmatprep.subr.mxu0 0.0
    %4459 = vmatpush1.xpose.msra.mxu0 0.0
    %4460 = vmatprep.subr.mxu0 0.0
    %4461 = vmatpush1.xpose.msra.mxu0 0.0
    %4462 = vmatprep.subr.mxu0 0.0
    %4463 = vmatpush1.xpose.msra.mxu0 0.0
    %4464 = vmatprep.subr.mxu0 0.0
    %4465 = vmatpush1.xpose.msra.mxu0 0.0
    %4466 = vmatprep.subr.mxu0 0.0
    %4467 = vmatpush1.xpose.msra.mxu0 0.0
    %4468 = vmatprep.subr.mxu0 0.0
    %4469 = vmatpush1.xpose.msra.mxu0 0.0
    %4470 = vmatprep.subr.mxu0 0.0
    %4471 = vmatpush1.xpose.msra.mxu0 0.0
    %4472 = vmatprep.subr.mxu0 0.0
    %4473 = vmatpush1.xpose.msra.mxu0 0.0
    %4474 = vmatprep.subr.mxu0 0.0
    %4475 = vmatpush1.xpose.msra.mxu0 0.0
    %4476 = vmatprep.subr.mxu0 0.0
    %4477 = vmatpush1.xpose.msra.mxu0 0.0
    %4478 = vmatprep.subr.mxu0 0.0
    %4479 = vmatpush1.xpose.msra.mxu0 0.0
    %4480 = vmatprep.subr.mxu0 0.0
    %4481 = vmatpush1.xpose.msra.mxu0 0.0
    %4482 = vmatprep.subr.mxu0 0.0
    %4483 = vmatpush1.xpose.msra.mxu0 0.0
    %4484 = vmatprep.subr.mxu0 0.0
    %4485 = vmatpush1.xpose.msra.mxu0 0.0
    %4486 = vmatprep.subr.mxu0 0.0
    %4487 = vmatpush1.xpose.msra.mxu0 0.0
    %4488 = vmatprep.subr.mxu0 0.0
    %4489 = vmatpush1.xpose.msra.mxu0 0.0
    %4490 = vmatprep.subr.mxu0 0.0
    %4491 = vmatpush1.xpose.msra.mxu0 0.0
    %4492 = vmatprep.subr.mxu0 0.0
    %4493 = vmatpush1.xpose.msra.mxu0 0.0
    %4494 = vmatprep.subr.mxu0 0.0
    %4495 = vmatpush1.xpose.msra.mxu0 0.0
    %4496 = vmatprep.subr.mxu0 0.0
    %4497 = vmatpush1.xpose.msra.mxu0 0.0
    %4498 = vmatprep.mubr.f32.mxu0 0.0
    %4499 = vmatmul.mubr.f32.gmra.mrb[0].mxu0 %v4426
    %v4500 = vpop.f32.mrb[0].mxu0
    %v4501 = vadd.f32 %v565, %v4500
    %v4502 = vpop.f32.mrb[0].mxu0
    %4503 = vmatprep.mubr.f32.mxu0 0.0
    %4504 = vmatmul.mubr.f32.gmra.mrb[0].mxu0 %v4428
    %v4505 = vpop.f32.mrb[0].mxu0
    %v4506 = vadd.f32 %v566, %v4505
    %v4507 = vpop.f32.mrb[0].mxu0
    %4508 = vdwg.mxu0
    %4509 = vrot.lane.b32.xlu0 %v523, 112
    %v4510 = vpop.permute.xlu0 %4509
    %4511 = vrot.lane.b32.xlu0 %v528, 112
    %v4512 = vpop.permute.xlu0 %4511
    %4513 = vrot.lane.b32.xlu0 %v523, 80
    %v4514 = vpop.permute.xlu0 %4513
    %4515 = vrot.lane.b32.xlu0 %v528, 80
    %v4516 = vpop.permute.xlu0 %4515
    %v4517 = vsel %vm579, %v4510, 0
    %v4519 = vsel %vm579, %v4512, 0
    %v4521 = vsel %vm579, %v4514, 0
    %v4523 = vsel %vm579, %v4516, 0
    %4525 = vmatprep.subr.mxu0 0.0
    %4526 = vmatpush1.xpose.msra.mxu0 %v4521
    %4527 = vmatprep.subr.mxu0 0.0
    %4528 = vmatpush1.xpose.msra.mxu0 %v4523
    %4529 = vmatprep.subr.mxu0 0.0
    %4530 = vmatpush1.xpose.msra.mxu0 0.0
    %4531 = vmatprep.subr.mxu0 0.0
    %4532 = vmatpush1.xpose.msra.mxu0 0.0
    %4533 = vmatprep.subr.mxu0 0.0
    %4534 = vmatpush1.xpose.msra.mxu0 0.0
    %4535 = vmatprep.subr.mxu0 0.0
    %4536 = vmatpush1.xpose.msra.mxu0 0.0
    %4537 = vmatprep.subr.mxu0 0.0
    %4538 = vmatpush1.xpose.msra.mxu0 0.0
    %4539 = vmatprep.subr.mxu0 0.0
    %4540 = vmatpush1.xpose.msra.mxu0 0.0
    %4541 = vmatprep.subr.mxu0 0.0
    %4542 = vmatpush1.xpose.msra.mxu0 0.0
    %4543 = vmatprep.subr.mxu0 0.0
    %4544 = vmatpush1.xpose.msra.mxu0 0.0
    %4545 = vmatprep.subr.mxu0 0.0
    %4546 = vmatpush1.xpose.msra.mxu0 0.0
    %4547 = vmatprep.subr.mxu0 0.0
    %4548 = vmatpush1.xpose.msra.mxu0 0.0
    %4549 = vmatprep.subr.mxu0 0.0
    %4550 = vmatpush1.xpose.msra.mxu0 0.0
    %4551 = vmatprep.subr.mxu0 0.0
    %4552 = vmatpush1.xpose.msra.mxu0 0.0
    %4553 = vmatprep.subr.mxu0 0.0
    %4554 = vmatpush1.xpose.msra.mxu0 0.0
    %4555 = vmatprep.subr.mxu0 0.0
    %4556 = vmatpush1.xpose.msra.mxu0 0.0
    %4557 = vmatprep.subr.mxu0 0.0
    %4558 = vmatpush1.xpose.msra.mxu0 0.0
    %4559 = vmatprep.subr.mxu0 0.0
    %4560 = vmatpush1.xpose.msra.mxu0 0.0
    %4561 = vmatprep.subr.mxu0 0.0
    %4562 = vmatpush1.xpose.msra.mxu0 0.0
    %4563 = vmatprep.subr.mxu0 0.0
    %4564 = vmatpush1.xpose.msra.mxu0 0.0
    %4565 = vmatprep.subr.mxu0 0.0
    %4566 = vmatpush1.xpose.msra.mxu0 0.0
    %4567 = vmatprep.subr.mxu0 0.0
    %4568 = vmatpush1.xpose.msra.mxu0 0.0
    %4569 = vmatprep.subr.mxu0 0.0
    %4570 = vmatpush1.xpose.msra.mxu0 0.0
    %4571 = vmatprep.subr.mxu0 0.0
    %4572 = vmatpush1.xpose.msra.mxu0 0.0
    %4573 = vmatprep.subr.mxu0 0.0
    %4574 = vmatpush1.xpose.msra.mxu0 0.0
    %4575 = vmatprep.subr.mxu0 0.0
    %4576 = vmatpush1.xpose.msra.mxu0 0.0
    %4577 = vmatprep.subr.mxu0 0.0
    %4578 = vmatpush1.xpose.msra.mxu0 0.0
    %4579 = vmatprep.subr.mxu0 0.0
    %4580 = vmatpush1.xpose.msra.mxu0 0.0
    %4581 = vmatprep.subr.mxu0 0.0
    %4582 = vmatpush1.xpose.msra.mxu0 0.0
    %4583 = vmatprep.subr.mxu0 0.0
    %4584 = vmatpush1.xpose.msra.mxu0 0.0
    %4585 = vmatprep.subr.mxu0 0.0
    %4586 = vmatpush1.xpose.msra.mxu0 0.0
    %4587 = vmatprep.subr.mxu0 0.0
    %4588 = vmatpush1.xpose.msra.mxu0 0.0
    %4589 = vmatprep.mubr.f32.mxu0 0.0
    %4590 = vmatmul.mubr.f32.gmra.mrb[0].mxu0 %v4517
    %v4591 = vpop.f32.mrb[0].mxu0
    %v4592 = vadd.f32 %v565, %v4591
    %v4593 = vpop.f32.mrb[0].mxu0
    %4594 = vmatprep.mubr.f32.mxu0 0.0
    %4595 = vmatmul.mubr.f32.gmra.mrb[0].mxu0 %v4519
    %v4596 = vpop.f32.mrb[0].mxu0
    %v4597 = vadd.f32 %v566, %v4596
    %v4598 = vpop.f32.mrb[0].mxu0
    %4599 = vdwg.mxu0
    %4600 = vrot.lane.b32.xlu0 %v533, 112
    %v4601 = vpop.permute.xlu0 %4600
    %4602 = vrot.lane.b32.xlu0 %v538, 112
    %v4603 = vpop.permute.xlu0 %4602
    %4604 = vrot.lane.b32.xlu0 %v533, 80
    %v4605 = vpop.permute.xlu0 %4604
    %4606 = vrot.lane.b32.xlu0 %v538, 80
    %v4607 = vpop.permute.xlu0 %4606
    %v4608 = vsel %vm579, %v4601, 0
    %v4610 = vsel %vm579, %v4603, 0
    %v4612 = vsel %vm579, %v4605, 0
    %v4614 = vsel %vm579, %v4607, 0
    %4616 = vmatprep.subr.mxu0 0.0
    %4617 = vmatpush1.xpose.msra.mxu0 %v4612
    %4618 = vmatprep.subr.mxu0 0.0
    %4619 = vmatpush1.xpose.msra.mxu0 %v4614
    %4620 = vmatprep.subr.mxu0 0.0
    %4621 = vmatpush1.xpose.msra.mxu0 0.0
    %4622 = vmatprep.subr.mxu0 0.0
    %4623 = vmatpush1.xpose.msra.mxu0 0.0
    %4624 = vmatprep.subr.mxu0 0.0
    %4625 = vmatpush1.xpose.msra.mxu0 0.0
    %4626 = vmatprep.subr.mxu0 0.0
    %4627 = vmatpush1.xpose.msra.mxu0 0.0
    %4628 = vmatprep.subr.mxu0 0.0
    %4629 = vmatpush1.xpose.msra.mxu0 0.0
    %4630 = vmatprep.subr.mxu0 0.0
    %4631 = vmatpush1.xpose.msra.mxu0 0.0
    %4632 = vmatprep.subr.mxu0 0.0
    %4633 = vmatpush1.xpose.msra.mxu0 0.0
    %4634 = vmatprep.subr.mxu0 0.0
    %4635 = vmatpush1.xpose.msra.mxu0 0.0
    %4636 = vmatprep.subr.mxu0 0.0
    %4637 = vmatpush1.xpose.msra.mxu0 0.0
    %4638 = vmatprep.subr.mxu0 0.0
    %4639 = vmatpush1.xpose.msra.mxu0 0.0
    %4640 = vmatprep.subr.mxu0 0.0
    %4641 = vmatpush1.xpose.msra.mxu0 0.0
    %4642 = vmatprep.subr.mxu0 0.0
    %4643 = vmatpush1.xpose.msra.mxu0 0.0
    %4644 = vmatprep.subr.mxu0 0.0
    %4645 = vmatpush1.xpose.msra.mxu0 0.0
    %4646 = vmatprep.subr.mxu0 0.0
    %4647 = vmatpush1.xpose.msra.mxu0 0.0
    %4648 = vmatprep.subr.mxu0 0.0
    %4649 = vmatpush1.xpose.msra.mxu0 0.0
    %4650 = vmatprep.subr.mxu0 0.0
    %4651 = vmatpush1.xpose.msra.mxu0 0.0
    %4652 = vmatprep.subr.mxu0 0.0
    %4653 = vmatpush1.xpose.msra.mxu0 0.0
    %4654 = vmatprep.subr.mxu0 0.0
    %4655 = vmatpush1.xpose.msra.mxu0 0.0
    %4656 = vmatprep.subr.mxu0 0.0
    %4657 = vmatpush1.xpose.msra.mxu0 0.0
    %4658 = vmatprep.subr.mxu0 0.0
    %4659 = vmatpush1.xpose.msra.mxu0 0.0
    %4660 = vmatprep.subr.mxu0 0.0
    %4661 = vmatpush1.xpose.msra.mxu0 0.0
    %4662 = vmatprep.subr.mxu0 0.0
    %4663 = vmatpush1.xpose.msra.mxu0 0.0
    %4664 = vmatprep.subr.mxu0 0.0
    %4665 = vmatpush1.xpose.msra.mxu0 0.0
    %4666 = vmatprep.subr.mxu0 0.0
    %4667 = vmatpush1.xpose.msra.mxu0 0.0
    %4668 = vmatprep.subr.mxu0 0.0
    %4669 = vmatpush1.xpose.msra.mxu0 0.0
    %4670 = vmatprep.subr.mxu0 0.0
    %4671 = vmatpush1.xpose.msra.mxu0 0.0
    %4672 = vmatprep.subr.mxu0 0.0
    %4673 = vmatpush1.xpose.msra.mxu0 0.0
    %4674 = vmatprep.subr.mxu0 0.0
    %4675 = vmatpush1.xpose.msra.mxu0 0.0
    %4676 = vmatprep.subr.mxu0 0.0
    %4677 = vmatpush1.xpose.msra.mxu0 0.0
    %4678 = vmatprep.subr.mxu0 0.0
    %4679 = vmatpush1.xpose.msra.mxu0 0.0
    %4680 = vmatprep.mubr.f32.mxu0 0.0
    %4681 = vmatmul.mubr.f32.gmra.mrb[0].mxu0 %v4608
    %v4682 = vpop.f32.mrb[0].mxu0
    %v4683 = vadd.f32 %v565, %v4682
    %v4684 = vpop.f32.mrb[0].mxu0
    %4685 = vmatprep.mubr.f32.mxu0 0.0
    %4686 = vmatmul.mubr.f32.gmra.mrb[0].mxu0 %v4610
    %v4687 = vpop.f32.mrb[0].mxu0
    %v4688 = vadd.f32 %v566, %v4687
    %v4689 = vpop.f32.mrb[0].mxu0
    %4690 = vdwg.mxu0
    %4691 = vrot.lane.b32.xlu0 %v543, 112
    %v4692 = vpop.permute.xlu0 %4691
    %4693 = vrot.lane.b32.xlu0 %v548, 112
    %v4694 = vpop.permute.xlu0 %4693
    %4695 = vrot.lane.b32.xlu0 %v543, 80
    %v4696 = vpop.permute.xlu0 %4695
    %4697 = vrot.lane.b32.xlu0 %v548, 80
    %v4698 = vpop.permute.xlu0 %4697
    %v4699 = vsel %vm579, %v4692, 0
    %v4701 = vsel %vm579, %v4694, 0
    %v4703 = vsel %vm579, %v4696, 0
    %v4705 = vsel %vm579, %v4698, 0
    %4707 = vmatprep.subr.mxu0 0.0
    %4708 = vmatpush1.xpose.msra.mxu0 %v4703
    %4709 = vmatprep.subr.mxu0 0.0
    %4710 = vmatpush1.xpose.msra.mxu0 %v4705
    %4711 = vmatprep.subr.mxu0 0.0
    %4712 = vmatpush1.xpose.msra.mxu0 0.0
    %4713 = vmatprep.subr.mxu0 0.0
    %4714 = vmatpush1.xpose.msra.mxu0 0.0
    %4715 = vmatprep.subr.mxu0 0.0
    %4716 = vmatpush1.xpose.msra.mxu0 0.0
    %4717 = vmatprep.subr.mxu0 0.0
    %4718 = vmatpush1.xpose.msra.mxu0 0.0
    %4719 = vmatprep.subr.mxu0 0.0
    %4720 = vmatpush1.xpose.msra.mxu0 0.0
    %4721 = vmatprep.subr.mxu0 0.0
    %4722 = vmatpush1.xpose.msra.mxu0 0.0
    %4723 = vmatprep.subr.mxu0 0.0
    %4724 = vmatpush1.xpose.msra.mxu0 0.0
    %4725 = vmatprep.subr.mxu0 0.0
    %4726 = vmatpush1.xpose.msra.mxu0 0.0
    %4727 = vmatprep.subr.mxu0 0.0
    %4728 = vmatpush1.xpose.msra.mxu0 0.0
    %4729 = vmatprep.subr.mxu0 0.0
    %4730 = vmatpush1.xpose.msra.mxu0 0.0
    %4731 = vmatprep.subr.mxu0 0.0
    %4732 = vmatpush1.xpose.msra.mxu0 0.0
    %4733 = vmatprep.subr.mxu0 0.0
    %4734 = vmatpush1.xpose.msra.mxu0 0.0
    %4735 = vmatprep.subr.mxu0 0.0
    %4736 = vmatpush1.xpose.msra.mxu0 0.0
    %4737 = vmatprep.subr.mxu0 0.0
    %4738 = vmatpush1.xpose.msra.mxu0 0.0
    %4739 = vmatprep.subr.mxu0 0.0
    %4740 = vmatpush1.xpose.msra.mxu0 0.0
    %4741 = vmatprep.subr.mxu0 0.0
    %4742 = vmatpush1.xpose.msra.mxu0 0.0
    %4743 = vmatprep.subr.mxu0 0.0
    %4744 = vmatpush1.xpose.msra.mxu0 0.0
    %4745 = vmatprep.subr.mxu0 0.0
    %4746 = vmatpush1.xpose.msra.mxu0 0.0
    %4747 = vmatprep.subr.mxu0 0.0
    %4748 = vmatpush1.xpose.msra.mxu0 0.0
    %4749 = vmatprep.subr.mxu0 0.0
    %4750 = vmatpush1.xpose.msra.mxu0 0.0
    %4751 = vmatprep.subr.mxu0 0.0
    %4752 = vmatpush1.xpose.msra.mxu0 0.0
    %4753 = vmatprep.subr.mxu0 0.0
    %4754 = vmatpush1.xpose.msra.mxu0 0.0
    %4755 = vmatprep.subr.mxu0 0.0
    %4756 = vmatpush1.xpose.msra.mxu0 0.0
    %4757 = vmatprep.subr.mxu0 0.0
    %4758 = vmatpush1.xpose.msra.mxu0 0.0
    %4759 = vmatprep.subr.mxu0 0.0
    %4760 = vmatpush1.xpose.msra.mxu0 0.0
    %4761 = vmatprep.subr.mxu0 0.0
    %4762 = vmatpush1.xpose.msra.mxu0 0.0
    %4763 = vmatprep.subr.mxu0 0.0
    %4764 = vmatpush1.xpose.msra.mxu0 0.0
    %4765 = vmatprep.subr.mxu0 0.0
    %4766 = vmatpush1.xpose.msra.mxu0 0.0
    %4767 = vmatprep.subr.mxu0 0.0
    %4768 = vmatpush1.xpose.msra.mxu0 0.0
    %4769 = vmatprep.subr.mxu0 0.0
    %4770 = vmatpush1.xpose.msra.mxu0 0.0
    %4771 = vmatprep.mubr.f32.mxu0 0.0
    %4772 = vmatmul.mubr.f32.gmra.mrb[0].mxu0 %v4699
    %v4773 = vpop.f32.mrb[0].mxu0
    %v4774 = vadd.f32 %v565, %v4773
    %v4775 = vpop.f32.mrb[0].mxu0
    %4776 = vmatprep.mubr.f32.mxu0 0.0
    %4777 = vmatmul.mubr.f32.gmra.mrb[0].mxu0 %v4701
    %v4778 = vpop.f32.mrb[0].mxu0
    %v4779 = vadd.f32 %v566, %v4778
    %v4780 = vpop.f32.mrb[0].mxu0
    %4781 = vdwg.mxu0
    %4782 = vrot.lane.b32.xlu0 %v553, 112
    %v4783 = vpop.permute.xlu0 %4782
    %4784 = vrot.lane.b32.xlu0 %v558, 112
    %v4785 = vpop.permute.xlu0 %4784
    %4786 = vrot.lane.b32.xlu0 %v553, 80
    %v4787 = vpop.permute.xlu0 %4786
    %4788 = vrot.lane.b32.xlu0 %v558, 80
    %v4789 = vpop.permute.xlu0 %4788
    %v4790 = vsel %vm579, %v4783, 0
    %v4792 = vsel %vm579, %v4785, 0
    %v4794 = vsel %vm579, %v4787, 0
    %v4796 = vsel %vm579, %v4789, 0
    %4798 = vmatprep.subr.mxu0 0.0
    %4799 = vmatpush1.xpose.msra.mxu0 %v4794
    %4800 = vmatprep.subr.mxu0 0.0
    %4801 = vmatpush1.xpose.msra.mxu0 %v4796
    %4802 = vmatprep.subr.mxu0 0.0
    %4803 = vmatpush1.xpose.msra.mxu0 0.0
    %4804 = vmatprep.subr.mxu0 0.0
    %4805 = vmatpush1.xpose.msra.mxu0 0.0
    %4806 = vmatprep.subr.mxu0 0.0
    %4807 = vmatpush1.xpose.msra.mxu0 0.0
    %4808 = vmatprep.subr.mxu0 0.0
    %4809 = vmatpush1.xpose.msra.mxu0 0.0
    %4810 = vmatprep.subr.mxu0 0.0
    %4811 = vmatpush1.xpose.msra.mxu0 0.0
    %4812 = vmatprep.subr.mxu0 0.0
    %4813 = vmatpush1.xpose.msra.mxu0 0.0
    %4814 = vmatprep.subr.mxu0 0.0
    %4815 = vmatpush1.xpose.msra.mxu0 0.0
    %4816 = vmatprep.subr.mxu0 0.0
    %4817 = vmatpush1.xpose.msra.mxu0 0.0
    %4818 = vmatprep.subr.mxu0 0.0
    %4819 = vmatpush1.xpose.msra.mxu0 0.0
    %4820 = vmatprep.subr.mxu0 0.0
    %4821 = vmatpush1.xpose.msra.mxu0 0.0
    %4822 = vmatprep.subr.mxu0 0.0
    %4823 = vmatpush1.xpose.msra.mxu0 0.0
    %4824 = vmatprep.subr.mxu0 0.0
    %4825 = vmatpush1.xpose.msra.mxu0 0.0
    %4826 = vmatprep.subr.mxu0 0.0
    %4827 = vmatpush1.xpose.msra.mxu0 0.0
    %4828 = vmatprep.subr.mxu0 0.0
    %4829 = vmatpush1.xpose.msra.mxu0 0.0
    %4830 = vmatprep.subr.mxu0 0.0
    %4831 = vmatpush1.xpose.msra.mxu0 0.0
    %4832 = vmatprep.subr.mxu0 0.0
    %4833 = vmatpush1.xpose.msra.mxu0 0.0
    %4834 = vmatprep.subr.mxu0 0.0
    %4835 = vmatpush1.xpose.msra.mxu0 0.0
    %4836 = vmatprep.subr.mxu0 0.0
    %4837 = vmatpush1.xpose.msra.mxu0 0.0
    %4838 = vmatprep.subr.mxu0 0.0
    %4839 = vmatpush1.xpose.msra.mxu0 0.0
    %4840 = vmatprep.subr.mxu0 0.0
    %4841 = vmatpush1.xpose.msra.mxu0 0.0
    %4842 = vmatprep.subr.mxu0 0.0
    %4843 = vmatpush1.xpose.msra.mxu0 0.0
    %4844 = vmatprep.subr.mxu0 0.0
    %4845 = vmatpush1.xpose.msra.mxu0 0.0
    %4846 = vmatprep.subr.mxu0 0.0
    %4847 = vmatpush1.xpose.msra.mxu0 0.0
    %4848 = vmatprep.subr.mxu0 0.0
    %4849 = vmatpush1.xpose.msra.mxu0 0.0
    %4850 = vmatprep.subr.mxu0 0.0
    %4851 = vmatpush1.xpose.msra.mxu0 0.0
    %4852 = vmatprep.subr.mxu0 0.0
    %4853 = vmatpush1.xpose.msra.mxu0 0.0
    %4854 = vmatprep.subr.mxu0 0.0
    %4855 = vmatpush1.xpose.msra.mxu0 0.0
    %4856 = vmatprep.subr.mxu0 0.0
    %4857 = vmatpush1.xpose.msra.mxu0 0.0
    %4858 = vmatprep.subr.mxu0 0.0
    %4859 = vmatpush1.xpose.msra.mxu0 0.0
    %4860 = vmatprep.subr.mxu0 0.0
    %4861 = vmatpush1.xpose.msra.mxu0 0.0
    %4862 = vmatprep.mubr.f32.mxu0 0.0
    %4863 = vmatmul.mubr.f32.gmra.mrb[0].mxu0 %v4790
    %v4864 = vpop.f32.mrb[0].mxu0
    %v4865 = vadd.f32 %v565, %v4864
    %v4866 = vpop.f32.mrb[0].mxu0
    %4867 = vmatprep.mubr.f32.mxu0 0.0
    %4868 = vmatmul.mubr.f32.gmra.mrb[0].mxu0 %v4792
    %v4869 = vpop.f32.mrb[0].mxu0
    %v4870 = vadd.f32 %v566, %v4869
    %v4871 = vpop.f32.mrb[0].mxu0
    %4872 = vdwg.mxu0
    %v4873 = vsel %vm1286, %v4228, -inf
    %4874 = vmax.xlane.f32.xlu0 %v4873
    %v4875 = vpop.xlane.xlu0 %4874
    %v4876 = vsel %vm1286, %v4233, -inf
    %4877 = vmax.xlane.f32.xlu0 %v4876
    %v4878 = vpop.xlane.xlu0 %4877
    %v4879 = vsel %vm1286, %v4319, -inf
    %4880 = vmax.xlane.f32.xlu0 %v4879
    %v4881 = vpop.xlane.xlu0 %4880
    %v4882 = vsel %vm1286, %v4324, -inf
    %4883 = vmax.xlane.f32.xlu0 %v4882
    %v4884 = vpop.xlane.xlu0 %4883
    %v4885 = vsel %vm1286, %v4410, -inf
    %4886 = vmax.xlane.f32.xlu0 %v4885
    %v4887 = vpop.xlane.xlu0 %4886
    %v4888 = vsel %vm1286, %v4415, -inf
    %4889 = vmax.xlane.f32.xlu0 %v4888
    %v4890 = vpop.xlane.xlu0 %4889
    %v4891 = vsel %vm1286, %v4501, -inf
    %4892 = vmax.xlane.f32.xlu0 %v4891
    %v4893 = vpop.xlane.xlu0 %4892
    %v4894 = vsel %vm1286, %v4506, -inf
    %4895 = vmax.xlane.f32.xlu0 %v4894
    %v4896 = vpop.xlane.xlu0 %4895
    %v4897 = vsel %vm1286, %v4592, -inf
    %4898 = vmax.xlane.f32.xlu0 %v4897
    %v4899 = vpop.xlane.xlu0 %4898
    %v4900 = vsel %vm1286, %v4597, -inf
    %4901 = vmax.xlane.f32.xlu0 %v4900
    %v4902 = vpop.xlane.xlu0 %4901
    %v4903 = vsel %vm1286, %v4683, -inf
    %4904 = vmax.xlane.f32.xlu0 %v4903
    %v4905 = vpop.xlane.xlu0 %4904
    %v4906 = vsel %vm1286, %v4688, -inf
    %4907 = vmax.xlane.f32.xlu0 %v4906
    %v4908 = vpop.xlane.xlu0 %4907
    %v4909 = vsel %vm1286, %v4774, -inf
    %4910 = vmax.xlane.f32.xlu0 %v4909
    %v4911 = vpop.xlane.xlu0 %4910
    %v4912 = vsel %vm1286, %v4779, -inf
    %4913 = vmax.xlane.f32.xlu0 %v4912
    %v4914 = vpop.xlane.xlu0 %4913
    %v4915 = vsel %vm1286, %v4865, -inf
    %4916 = vmax.xlane.f32.xlu0 %v4915
    %v4917 = vpop.xlane.xlu0 %4916
    %v4918 = vsel %vm1286, %v4870, -inf
    %4919 = vmax.xlane.f32.xlu0 %v4918
    %v4920 = vpop.xlane.xlu0 %4919
    %v4921 = vsub.f32 %v4228, %v4875
    %v4922 = vsub.f32 %v4233, %v4878
    %v4923 = vsub.f32 %v4319, %v4881
    %v4924 = vsub.f32 %v4324, %v4884
    %v4925 = vsub.f32 %v4410, %v4887
    %v4926 = vsub.f32 %v4415, %v4890
    %v4927 = vsub.f32 %v4501, %v4893
    %v4928 = vsub.f32 %v4506, %v4896
    %v4929 = vsub.f32 %v4592, %v4899
    %v4930 = vsub.f32 %v4597, %v4902
    %v4931 = vsub.f32 %v4683, %v4905
    %v4932 = vsub.f32 %v4688, %v4908
    %v4933 = vsub.f32 %v4774, %v4911
    %v4934 = vsub.f32 %v4779, %v4914
    %v4935 = vsub.f32 %v4865, %v4917
    %v4936 = vsub.f32 %v4870, %v4920
    %v4937 = vmul.f32 %v4921, 1.442695
    %v4938 = vpow.pop %v4937
    %v4939 = vmul.f32 %v4922, 1.442695
    %v4940 = vpow.pop %v4939
    %v4941 = vmul.f32 %v4923, 1.442695
    %v4942 = vpow.pop %v4941
    %v4943 = vmul.f32 %v4924, 1.442695
    %v4944 = vpow.pop %v4943
    %v4945 = vmul.f32 %v4925, 1.442695
    %v4946 = vpow.pop %v4945
    %v4947 = vmul.f32 %v4926, 1.442695
    %v4948 = vpow.pop %v4947
    %v4949 = vmul.f32 %v4927, 1.442695
    %v4950 = vpow.pop %v4949
    %v4951 = vmul.f32 %v4928, 1.442695
    %v4952 = vpow.pop %v4951
    %v4953 = vmul.f32 %v4929, 1.442695
    %v4954 = vpow.pop %v4953
    %v4955 = vmul.f32 %v4930, 1.442695
    %v4956 = vpow.pop %v4955
    %v4957 = vmul.f32 %v4931, 1.442695
    %v4958 = vpow.pop %v4957
    %v4959 = vmul.f32 %v4932, 1.442695
    %v4960 = vpow.pop %v4959
    %v4961 = vmul.f32 %v4933, 1.442695
    %v4962 = vpow.pop %v4961
    %v4963 = vmul.f32 %v4934, 1.442695
    %v4964 = vpow.pop %v4963
    %v4965 = vmul.f32 %v4935, 1.442695
    %v4966 = vpow.pop %v4965
    %v4967 = vmul.f32 %v4936, 1.442695
    %v4968 = vpow.pop %v4967
    %v4969 = vsel %vm1286, %v4938, 0.0
    %4970 = vadd.xlane.f32.xlu0 %v4969
    %v4971 = vpop.xlane.xlu0 %4970
    %v4972 = vsel %vm1286, %v4940, 0.0
    %4973 = vadd.xlane.f32.xlu0 %v4972
    %v4974 = vpop.xlane.xlu0 %4973
    %v4975 = vsel %vm1286, %v4942, 0.0
    %4976 = vadd.xlane.f32.xlu0 %v4975
    %v4977 = vpop.xlane.xlu0 %4976
    %v4978 = vsel %vm1286, %v4944, 0.0
    %4979 = vadd.xlane.f32.xlu0 %v4978
    %v4980 = vpop.xlane.xlu0 %4979
    %v4981 = vsel %vm1286, %v4946, 0.0
    %4982 = vadd.xlane.f32.xlu0 %v4981
    %v4983 = vpop.xlane.xlu0 %4982
    %v4984 = vsel %vm1286, %v4948, 0.0
    %4985 = vadd.xlane.f32.xlu0 %v4984
    %v4986 = vpop.xlane.xlu0 %4985
    %v4987 = vsel %vm1286, %v4950, 0.0
    %4988 = vadd.xlane.f32.xlu0 %v4987
    %v4989 = vpop.xlane.xlu0 %4988
    %v4990 = vsel %vm1286, %v4952, 0.0
    %4991 = vadd.xlane.f32.xlu0 %v4990
    %v4992 = vpop.xlane.xlu0 %4991
    %v4993 = vsel %vm1286, %v4954, 0.0
    %4994 = vadd.xlane.f32.xlu0 %v4993
    %v4995 = vpop.xlane.xlu0 %4994
    %v4996 = vsel %vm1286, %v4956, 0.0
    %4997 = vadd.xlane.f32.xlu0 %v4996
    %v4998 = vpop.xlane.xlu0 %4997
    %v4999 = vsel %vm1286, %v4958, 0.0
    %5000 = vadd.xlane.f32.xlu0 %v4999
    %v5001 = vpop.xlane.xlu0 %5000
    %v5002 = vsel %vm1286, %v4960, 0.0
    %5003 = vadd.xlane.f32.xlu0 %v5002
    %v5004 = vpop.xlane.xlu0 %5003
    %v5005 = vsel %vm1286, %v4962, 0.0
    %5006 = vadd.xlane.f32.xlu0 %v5005
    %v5007 = vpop.xlane.xlu0 %5006
    %v5008 = vsel %vm1286, %v4964, 0.0
    %5009 = vadd.xlane.f32.xlu0 %v5008
    %v5010 = vpop.xlane.xlu0 %5009
    %v5011 = vsel %vm1286, %v4966, 0.0
    %5012 = vadd.xlane.f32.xlu0 %v5011
    %v5013 = vpop.xlane.xlu0 %5012
    %v5014 = vsel %vm1286, %v4968, 0.0
    %5015 = vadd.xlane.f32.xlu0 %v5014
    %v5016 = vpop.xlane.xlu0 %5015
    %v5017 = vrcp.pop %v4971
    %v5018 = vmul.f32 %v4938, %v5017
    %v5019 = vrcp.pop %v4974
    %v5020 = vmul.f32 %v4940, %v5019
    %v5021 = vrcp.pop %v4977
    %v5022 = vmul.f32 %v4942, %v5021
    %v5023 = vrcp.pop %v4980
    %v5024 = vmul.f32 %v4944, %v5023
    %v5025 = vrcp.pop %v4983
    %v5026 = vmul.f32 %v4946, %v5025
    %v5027 = vrcp.pop %v4986
    %v5028 = vmul.f32 %v4948, %v5027
    %v5029 = vrcp.pop %v4989
    %v5030 = vmul.f32 %v4950, %v5029
    %v5031 = vrcp.pop %v4992
    %v5032 = vmul.f32 %v4952, %v5031
    %v5033 = vrcp.pop %v4995
    %v5034 = vmul.f32 %v4954, %v5033
    %v5035 = vrcp.pop %v4998
    %v5036 = vmul.f32 %v4956, %v5035
    %v5037 = vrcp.pop %v5001
    %v5038 = vmul.f32 %v4958, %v5037
    %v5039 = vrcp.pop %v5004
    %v5040 = vmul.f32 %v4960, %v5039
    %v5041 = vrcp.pop %v5007
    %v5042 = vmul.f32 %v4962, %v5041
    %v5043 = vrcp.pop %v5010
    %v5044 = vmul.f32 %v4964, %v5043
    %v5045 = vrcp.pop %v5013
    %v5046 = vmul.f32 %v4966, %v5045
    %v5047 = vrcp.pop %v5016
    %v5048 = vmul.f32 %v4968, %v5047
    %5049 = vrot.lane.b32.xlu0 %v483, 48
    %v5050 = vpop.permute.xlu0 %5049
    %5051 = vrot.lane.b32.xlu0 %v488, 48
    %v5052 = vpop.permute.xlu0 %5051
    %v5056 = vsel %vm1286, %v5018, 0
    %v5059 = vsel %vm1286, %v5020, 0
    %5061 = vmatprep.subr.mxu0 0.0
    %5062 = vmatpush1.msra.mxu0 %v5050
    %5063 = vmatprep.subr.mxu0 0.0
    %5064 = vmatpush1.msra.mxu0 %v5052
    %5065 = vmatprep.subr.mxu0 0.0
    %5066 = vmatpush1.msra.mxu0 0.0
    %5067 = vmatprep.subr.mxu0 0.0
    %5068 = vmatpush1.msra.mxu0 0.0
    %5069 = vmatprep.subr.mxu0 0.0
    %5070 = vmatpush1.msra.mxu0 0.0
    %5071 = vmatprep.subr.mxu0 0.0
    %5072 = vmatpush1.msra.mxu0 0.0
    %5073 = vmatprep.subr.mxu0 0.0
    %5074 = vmatpush1.msra.mxu0 0.0
    %5075 = vmatprep.subr.mxu0 0.0
    %5076 = vmatpush1.msra.mxu0 0.0
    %5077 = vmatprep.subr.mxu0 0.0
    %5078 = vmatpush1.msra.mxu0 0.0
    %5079 = vmatprep.subr.mxu0 0.0
    %5080 = vmatpush1.msra.mxu0 0.0
    %5081 = vmatprep.subr.mxu0 0.0
    %5082 = vmatpush1.msra.mxu0 0.0
    %5083 = vmatprep.subr.mxu0 0.0
    %5084 = vmatpush1.msra.mxu0 0.0
    %5085 = vmatprep.subr.mxu0 0.0
    %5086 = vmatpush1.msra.mxu0 0.0
    %5087 = vmatprep.subr.mxu0 0.0
    %5088 = vmatpush1.msra.mxu0 0.0
    %5089 = vmatprep.subr.mxu0 0.0
    %5090 = vmatpush1.msra.mxu0 0.0
    %5091 = vmatprep.subr.mxu0 0.0
    %5092 = vmatpush1.msra.mxu0 0.0
    %5093 = vmatprep.subr.mxu0 0.0
    %5094 = vmatpush1.msra.mxu0 0.0
    %5095 = vmatprep.subr.mxu0 0.0
    %5096 = vmatpush1.msra.mxu0 0.0
    %5097 = vmatprep.subr.mxu0 0.0
    %5098 = vmatpush1.msra.mxu0 0.0
    %5099 = vmatprep.subr.mxu0 0.0
    %5100 = vmatpush1.msra.mxu0 0.0
    %5101 = vmatprep.subr.mxu0 0.0
    %5102 = vmatpush1.msra.mxu0 0.0
    %5103 = vmatprep.subr.mxu0 0.0
    %5104 = vmatpush1.msra.mxu0 0.0
    %5105 = vmatprep.subr.mxu0 0.0
    %5106 = vmatpush1.msra.mxu0 0.0
    %5107 = vmatprep.subr.mxu0 0.0
    %5108 = vmatpush1.msra.mxu0 0.0
    %5109 = vmatprep.subr.mxu0 0.0
    %5110 = vmatpush1.msra.mxu0 0.0
    %5111 = vmatprep.subr.mxu0 0.0
    %5112 = vmatpush1.msra.mxu0 0.0
    %5113 = vmatprep.subr.mxu0 0.0
    %5114 = vmatpush1.msra.mxu0 0.0
    %5115 = vmatprep.subr.mxu0 0.0
    %5116 = vmatpush1.msra.mxu0 0.0
    %5117 = vmatprep.subr.mxu0 0.0
    %5118 = vmatpush1.msra.mxu0 0.0
    %5119 = vmatprep.subr.mxu0 0.0
    %5120 = vmatpush1.msra.mxu0 0.0
    %5121 = vmatprep.subr.mxu0 0.0
    %5122 = vmatpush1.msra.mxu0 0.0
    %5123 = vmatprep.subr.mxu0 0.0
    %5124 = vmatpush1.msra.mxu0 0.0
    %5125 = vmatprep.mubr.f32.mxu0 0.0
    %5126 = vmatmul.mubr.f32.gmra.mrb[0].mxu0 %v5056
    %v5127 = vpop.f32.mrb[0].mxu0
    %v5128 = vadd.f32 0.0, %v5127
    %v5129 = vpop.f32.mrb[0].mxu0
    %5130 = vmatprep.mubr.f32.mxu0 0.0
    %5131 = vmatmul.mubr.f32.gmra.mrb[0].mxu0 %v5059
    %v5132 = vpop.f32.mrb[0].mxu0
    %v5133 = vadd.f32 0.0, %v5132
    %v5134 = vpop.f32.mrb[0].mxu0
    %5135 = vdwg.mxu0
    %5136 = vrot.lane.b32.xlu0 %v493, 48
    %v5137 = vpop.permute.xlu0 %5136
    %5138 = vrot.lane.b32.xlu0 %v498, 48
    %v5139 = vpop.permute.xlu0 %5138
    %v5143 = vsel %vm1286, %v5022, 0
    %v5146 = vsel %vm1286, %v5024, 0
    %5148 = vmatprep.subr.mxu0 0.0
    %5149 = vmatpush1.msra.mxu0 %v5137
    %5150 = vmatprep.subr.mxu0 0.0
    %5151 = vmatpush1.msra.mxu0 %v5139
    %5152 = vmatprep.subr.mxu0 0.0
    %5153 = vmatpush1.msra.mxu0 0.0
    %5154 = vmatprep.subr.mxu0 0.0
    %5155 = vmatpush1.msra.mxu0 0.0
    %5156 = vmatprep.subr.mxu0 0.0
    %5157 = vmatpush1.msra.mxu0 0.0
    %5158 = vmatprep.subr.mxu0 0.0
    %5159 = vmatpush1.msra.mxu0 0.0
    %5160 = vmatprep.subr.mxu0 0.0
    %5161 = vmatpush1.msra.mxu0 0.0
    %5162 = vmatprep.subr.mxu0 0.0
    %5163 = vmatpush1.msra.mxu0 0.0
    %5164 = vmatprep.subr.mxu0 0.0
    %5165 = vmatpush1.msra.mxu0 0.0
    %5166 = vmatprep.subr.mxu0 0.0
    %5167 = vmatpush1.msra.mxu0 0.0
    %5168 = vmatprep.subr.mxu0 0.0
    %5169 = vmatpush1.msra.mxu0 0.0
    %5170 = vmatprep.subr.mxu0 0.0
    %5171 = vmatpush1.msra.mxu0 0.0
    %5172 = vmatprep.subr.mxu0 0.0
    %5173 = vmatpush1.msra.mxu0 0.0
    %5174 = vmatprep.subr.mxu0 0.0
    %5175 = vmatpush1.msra.mxu0 0.0
    %5176 = vmatprep.subr.mxu0 0.0
    %5177 = vmatpush1.msra.mxu0 0.0
    %5178 = vmatprep.subr.mxu0 0.0
    %5179 = vmatpush1.msra.mxu0 0.0
    %5180 = vmatprep.subr.mxu0 0.0
    %5181 = vmatpush1.msra.mxu0 0.0
    %5182 = vmatprep.subr.mxu0 0.0
    %5183 = vmatpush1.msra.mxu0 0.0
    %5184 = vmatprep.subr.mxu0 0.0
    %5185 = vmatpush1.msra.mxu0 0.0
    %5186 = vmatprep.subr.mxu0 0.0
    %5187 = vmatpush1.msra.mxu0 0.0
    %5188 = vmatprep.subr.mxu0 0.0
    %5189 = vmatpush1.msra.mxu0 0.0
    %5190 = vmatprep.subr.mxu0 0.0
    %5191 = vmatpush1.msra.mxu0 0.0
    %5192 = vmatprep.subr.mxu0 0.0
    %5193 = vmatpush1.msra.mxu0 0.0
    %5194 = vmatprep.subr.mxu0 0.0
    %5195 = vmatpush1.msra.mxu0 0.0
    %5196 = vmatprep.subr.mxu0 0.0
    %5197 = vmatpush1.msra.mxu0 0.0
    %5198 = vmatprep.subr.mxu0 0.0
    %5199 = vmatpush1.msra.mxu0 0.0
    %5200 = vmatprep.subr.mxu0 0.0
    %5201 = vmatpush1.msra.mxu0 0.0
    %5202 = vmatprep.subr.mxu0 0.0
    %5203 = vmatpush1.msra.mxu0 0.0
    %5204 = vmatprep.subr.mxu0 0.0
    %5205 = vmatpush1.msra.mxu0 0.0
    %5206 = vmatprep.subr.mxu0 0.0
    %5207 = vmatpush1.msra.mxu0 0.0
    %5208 = vmatprep.subr.mxu0 0.0
    %5209 = vmatpush1.msra.mxu0 0.0
    %5210 = vmatprep.subr.mxu0 0.0
    %5211 = vmatpush1.msra.mxu0 0.0
    %5212 = vmatprep.mubr.f32.mxu0 0.0
    %5213 = vmatmul.mubr.f32.gmra.mrb[0].mxu0 %v5143
    %v5214 = vpop.f32.mrb[0].mxu0
    %v5215 = vadd.f32 0.0, %v5214
    %v5216 = vpop.f32.mrb[0].mxu0
    %5217 = vmatprep.mubr.f32.mxu0 0.0
    %5218 = vmatmul.mubr.f32.gmra.mrb[0].mxu0 %v5146
    %v5219 = vpop.f32.mrb[0].mxu0
    %v5220 = vadd.f32 0.0, %v5219
    %v5221 = vpop.f32.mrb[0].mxu0
    %5222 = vdwg.mxu0
    %5223 = vrot.lane.b32.xlu0 %v503, 48
    %v5224 = vpop.permute.xlu0 %5223
    %5225 = vrot.lane.b32.xlu0 %v508, 48
    %v5226 = vpop.permute.xlu0 %5225
    %v5230 = vsel %vm1286, %v5026, 0
    %v5233 = vsel %vm1286, %v5028, 0
    %5235 = vmatprep.subr.mxu0 0.0
    %5236 = vmatpush1.msra.mxu0 %v5224
    %5237 = vmatprep.subr.mxu0 0.0
    %5238 = vmatpush1.msra.mxu0 %v5226
    %5239 = vmatprep.subr.mxu0 0.0
    %5240 = vmatpush1.msra.mxu0 0.0
    %5241 = vmatprep.subr.mxu0 0.0
    %5242 = vmatpush1.msra.mxu0 0.0
    %5243 = vmatprep.subr.mxu0 0.0
    %5244 = vmatpush1.msra.mxu0 0.0
    %5245 = vmatprep.subr.mxu0 0.0
    %5246 = vmatpush1.msra.mxu0 0.0
    %5247 = vmatprep.subr.mxu0 0.0
    %5248 = vmatpush1.msra.mxu0 0.0
    %5249 = vmatprep.subr.mxu0 0.0
    %5250 = vmatpush1.msra.mxu0 0.0
    %5251 = vmatprep.subr.mxu0 0.0
    %5252 = vmatpush1.msra.mxu0 0.0
    %5253 = vmatprep.subr.mxu0 0.0
    %5254 = vmatpush1.msra.mxu0 0.0
    %5255 = vmatprep.subr.mxu0 0.0
    %5256 = vmatpush1.msra.mxu0 0.0
    %5257 = vmatprep.subr.mxu0 0.0
    %5258 = vmatpush1.msra.mxu0 0.0
    %5259 = vmatprep.subr.mxu0 0.0
    %5260 = vmatpush1.msra.mxu0 0.0
    %5261 = vmatprep.subr.mxu0 0.0
    %5262 = vmatpush1.msra.mxu0 0.0
    %5263 = vmatprep.subr.mxu0 0.0
    %5264 = vmatpush1.msra.mxu0 0.0
    %5265 = vmatprep.subr.mxu0 0.0
    %5266 = vmatpush1.msra.mxu0 0.0
    %5267 = vmatprep.subr.mxu0 0.0
    %5268 = vmatpush1.msra.mxu0 0.0
    %5269 = vmatprep.subr.mxu0 0.0
    %5270 = vmatpush1.msra.mxu0 0.0
    %5271 = vmatprep.subr.mxu0 0.0
    %5272 = vmatpush1.msra.mxu0 0.0
    %5273 = vmatprep.subr.mxu0 0.0
    %5274 = vmatpush1.msra.mxu0 0.0
    %5275 = vmatprep.subr.mxu0 0.0
    %5276 = vmatpush1.msra.mxu0 0.0
    %5277 = vmatprep.subr.mxu0 0.0
    %5278 = vmatpush1.msra.mxu0 0.0
    %5279 = vmatprep.subr.mxu0 0.0
    %5280 = vmatpush1.msra.mxu0 0.0
    %5281 = vmatprep.subr.mxu0 0.0
    %5282 = vmatpush1.msra.mxu0 0.0
    %5283 = vmatprep.subr.mxu0 0.0
    %5284 = vmatpush1.msra.mxu0 0.0
    %5285 = vmatprep.subr.mxu0 0.0
    %5286 = vmatpush1.msra.mxu0 0.0
    %5287 = vmatprep.subr.mxu0 0.0
    %5288 = vmatpush1.msra.mxu0 0.0
    %5289 = vmatprep.subr.mxu0 0.0
    %5290 = vmatpush1.msra.mxu0 0.0
    %5291 = vmatprep.subr.mxu0 0.0
    %5292 = vmatpush1.msra.mxu0 0.0
    %5293 = vmatprep.subr.mxu0 0.0
    %5294 = vmatpush1.msra.mxu0 0.0
    %5295 = vmatprep.subr.mxu0 0.0
    %5296 = vmatpush1.msra.mxu0 0.0
    %5297 = vmatprep.subr.mxu0 0.0
    %5298 = vmatpush1.msra.mxu0 0.0
    %5299 = vmatprep.mubr.f32.mxu0 0.0
    %5300 = vmatmul.mubr.f32.gmra.mrb[0].mxu0 %v5230
    %v5301 = vpop.f32.mrb[0].mxu0
    %v5302 = vadd.f32 0.0, %v5301
    %v5303 = vpop.f32.mrb[0].mxu0
    %5304 = vmatprep.mubr.f32.mxu0 0.0
    %5305 = vmatmul.mubr.f32.gmra.mrb[0].mxu0 %v5233
    %v5306 = vpop.f32.mrb[0].mxu0
    %v5307 = vadd.f32 0.0, %v5306
    %v5308 = vpop.f32.mrb[0].mxu0
    %5309 = vdwg.mxu0
    %5310 = vrot.lane.b32.xlu0 %v513, 48
    %v5311 = vpop.permute.xlu0 %5310
    %5312 = vrot.lane.b32.xlu0 %v518, 48
    %v5313 = vpop.permute.xlu0 %5312
    %v5317 = vsel %vm1286, %v5030, 0
    %v5320 = vsel %vm1286, %v5032, 0
    %5322 = vmatprep.subr.mxu0 0.0
    %5323 = vmatpush1.msra.mxu0 %v5311
    %5324 = vmatprep.subr.mxu0 0.0
    %5325 = vmatpush1.msra.mxu0 %v5313
    %5326 = vmatprep.subr.mxu0 0.0
    %5327 = vmatpush1.msra.mxu0 0.0
    %5328 = vmatprep.subr.mxu0 0.0
    %5329 = vmatpush1.msra.mxu0 0.0
    %5330 = vmatprep.subr.mxu0 0.0
    %5331 = vmatpush1.msra.mxu0 0.0
    %5332 = vmatprep.subr.mxu0 0.0
    %5333 = vmatpush1.msra.mxu0 0.0
    %5334 = vmatprep.subr.mxu0 0.0
    %5335 = vmatpush1.msra.mxu0 0.0
    %5336 = vmatprep.subr.mxu0 0.0
    %5337 = vmatpush1.msra.mxu0 0.0
    %5338 = vmatprep.subr.mxu0 0.0
    %5339 = vmatpush1.msra.mxu0 0.0
    %5340 = vmatprep.subr.mxu0 0.0
    %5341 = vmatpush1.msra.mxu0 0.0
    %5342 = vmatprep.subr.mxu0 0.0
    %5343 = vmatpush1.msra.mxu0 0.0
    %5344 = vmatprep.subr.mxu0 0.0
    %5345 = vmatpush1.msra.mxu0 0.0
    %5346 = vmatprep.subr.mxu0 0.0
    %5347 = vmatpush1.msra.mxu0 0.0
    %5348 = vmatprep.subr.mxu0 0.0
    %5349 = vmatpush1.msra.mxu0 0.0
    %5350 = vmatprep.subr.mxu0 0.0
    %5351 = vmatpush1.msra.mxu0 0.0
    %5352 = vmatprep.subr.mxu0 0.0
    %5353 = vmatpush1.msra.mxu0 0.0
    %5354 = vmatprep.subr.mxu0 0.0
    %5355 = vmatpush1.msra.mxu0 0.0
    %5356 = vmatprep.subr.mxu0 0.0
    %5357 = vmatpush1.msra.mxu0 0.0
    %5358 = vmatprep.subr.mxu0 0.0
    %5359 = vmatpush1.msra.mxu0 0.0
    %5360 = vmatprep.subr.mxu0 0.0
    %5361 = vmatpush1.msra.mxu0 0.0
    %5362 = vmatprep.subr.mxu0 0.0
    %5363 = vmatpush1.msra.mxu0 0.0
    %5364 = vmatprep.subr.mxu0 0.0
    %5365 = vmatpush1.msra.mxu0 0.0
    %5366 = vmatprep.subr.mxu0 0.0
    %5367 = vmatpush1.msra.mxu0 0.0
    %5368 = vmatprep.subr.mxu0 0.0
    %5369 = vmatpush1.msra.mxu0 0.0
    %5370 = vmatprep.subr.mxu0 0.0
    %5371 = vmatpush1.msra.mxu0 0.0
    %5372 = vmatprep.subr.mxu0 0.0
    %5373 = vmatpush1.msra.mxu0 0.0
    %5374 = vmatprep.subr.mxu0 0.0
    %5375 = vmatpush1.msra.mxu0 0.0
    %5376 = vmatprep.subr.mxu0 0.0
    %5377 = vmatpush1.msra.mxu0 0.0
    %5378 = vmatprep.subr.mxu0 0.0
    %5379 = vmatpush1.msra.mxu0 0.0
    %5380 = vmatprep.subr.mxu0 0.0
    %5381 = vmatpush1.msra.mxu0 0.0
    %5382 = vmatprep.subr.mxu0 0.0
    %5383 = vmatpush1.msra.mxu0 0.0
    %5384 = vmatprep.subr.mxu0 0.0
    %5385 = vmatpush1.msra.mxu0 0.0
    %5386 = vmatprep.mubr.f32.mxu0 0.0
    %5387 = vmatmul.mubr.f32.gmra.mrb[0].mxu0 %v5317
    %v5388 = vpop.f32.mrb[0].mxu0
    %v5389 = vadd.f32 0.0, %v5388
    %v5390 = vpop.f32.mrb[0].mxu0
    %5391 = vmatprep.mubr.f32.mxu0 0.0
    %5392 = vmatmul.mubr.f32.gmra.mrb[0].mxu0 %v5320
    %v5393 = vpop.f32.mrb[0].mxu0
    %v5394 = vadd.f32 0.0, %v5393
    %v5395 = vpop.f32.mrb[0].mxu0
    %5396 = vdwg.mxu0
    %5397 = vrot.lane.b32.xlu0 %v523, 48
    %v5398 = vpop.permute.xlu0 %5397
    %5399 = vrot.lane.b32.xlu0 %v528, 48
    %v5400 = vpop.permute.xlu0 %5399
    %v5404 = vsel %vm1286, %v5034, 0
    %v5407 = vsel %vm1286, %v5036, 0
    %5409 = vmatprep.subr.mxu0 0.0
    %5410 = vmatpush1.msra.mxu0 %v5398
    %5411 = vmatprep.subr.mxu0 0.0
    %5412 = vmatpush1.msra.mxu0 %v5400
    %5413 = vmatprep.subr.mxu0 0.0
    %5414 = vmatpush1.msra.mxu0 0.0
    %5415 = vmatprep.subr.mxu0 0.0
    %5416 = vmatpush1.msra.mxu0 0.0
    %5417 = vmatprep.subr.mxu0 0.0
    %5418 = vmatpush1.msra.mxu0 0.0
    %5419 = vmatprep.subr.mxu0 0.0
    %5420 = vmatpush1.msra.mxu0 0.0
    %5421 = vmatprep.subr.mxu0 0.0
    %5422 = vmatpush1.msra.mxu0 0.0
    %5423 = vmatprep.subr.mxu0 0.0
    %5424 = vmatpush1.msra.mxu0 0.0
    %5425 = vmatprep.subr.mxu0 0.0
    %5426 = vmatpush1.msra.mxu0 0.0
    %5427 = vmatprep.subr.mxu0 0.0
    %5428 = vmatpush1.msra.mxu0 0.0
    %5429 = vmatprep.subr.mxu0 0.0
    %5430 = vmatpush1.msra.mxu0 0.0
    %5431 = vmatprep.subr.mxu0 0.0
    %5432 = vmatpush1.msra.mxu0 0.0
    %5433 = vmatprep.subr.mxu0 0.0
    %5434 = vmatpush1.msra.mxu0 0.0
    %5435 = vmatprep.subr.mxu0 0.0
    %5436 = vmatpush1.msra.mxu0 0.0
    %5437 = vmatprep.subr.mxu0 0.0
    %5438 = vmatpush1.msra.mxu0 0.0
    %5439 = vmatprep.subr.mxu0 0.0
    %5440 = vmatpush1.msra.mxu0 0.0
    %5441 = vmatprep.subr.mxu0 0.0
    %5442 = vmatpush1.msra.mxu0 0.0
    %5443 = vmatprep.subr.mxu0 0.0
    %5444 = vmatpush1.msra.mxu0 0.0
    %5445 = vmatprep.subr.mxu0 0.0
    %5446 = vmatpush1.msra.mxu0 0.0
    %5447 = vmatprep.subr.mxu0 0.0
    %5448 = vmatpush1.msra.mxu0 0.0
    %5449 = vmatprep.subr.mxu0 0.0
    %5450 = vmatpush1.msra.mxu0 0.0
    %5451 = vmatprep.subr.mxu0 0.0
    %5452 = vmatpush1.msra.mxu0 0.0
    %5453 = vmatprep.subr.mxu0 0.0
    %5454 = vmatpush1.msra.mxu0 0.0
    %5455 = vmatprep.subr.mxu0 0.0
    %5456 = vmatpush1.msra.mxu0 0.0
    %5457 = vmatprep.subr.mxu0 0.0
    %5458 = vmatpush1.msra.mxu0 0.0
    %5459 = vmatprep.subr.mxu0 0.0
    %5460 = vmatpush1.msra.mxu0 0.0
    %5461 = vmatprep.subr.mxu0 0.0
    %5462 = vmatpush1.msra.mxu0 0.0
    %5463 = vmatprep.subr.mxu0 0.0
    %5464 = vmatpush1.msra.mxu0 0.0
    %5465 = vmatprep.subr.mxu0 0.0
    %5466 = vmatpush1.msra.mxu0 0.0
    %5467 = vmatprep.subr.mxu0 0.0
    %5468 = vmatpush1.msra.mxu0 0.0
    %5469 = vmatprep.subr.mxu0 0.0
    %5470 = vmatpush1.msra.mxu0 0.0
    %5471 = vmatprep.subr.mxu0 0.0
    %5472 = vmatpush1.msra.mxu0 0.0
    %5473 = vmatprep.mubr.f32.mxu0 0.0
    %5474 = vmatmul.mubr.f32.gmra.mrb[0].mxu0 %v5404
    %v5475 = vpop.f32.mrb[0].mxu0
    %v5476 = vadd.f32 0.0, %v5475
    %v5477 = vpop.f32.mrb[0].mxu0
    %5478 = vmatprep.mubr.f32.mxu0 0.0
    %5479 = vmatmul.mubr.f32.gmra.mrb[0].mxu0 %v5407
    %v5480 = vpop.f32.mrb[0].mxu0
    %v5481 = vadd.f32 0.0, %v5480
    %v5482 = vpop.f32.mrb[0].mxu0
    %5483 = vdwg.mxu0
    %5484 = vrot.lane.b32.xlu0 %v533, 48
    %v5485 = vpop.permute.xlu0 %5484
    %5486 = vrot.lane.b32.xlu0 %v538, 48
    %v5487 = vpop.permute.xlu0 %5486
    %v5491 = vsel %vm1286, %v5038, 0
    %v5494 = vsel %vm1286, %v5040, 0
    %5496 = vmatprep.subr.mxu0 0.0
    %5497 = vmatpush1.msra.mxu0 %v5485
    %5498 = vmatprep.subr.mxu0 0.0
    %5499 = vmatpush1.msra.mxu0 %v5487
    %5500 = vmatprep.subr.mxu0 0.0
    %5501 = vmatpush1.msra.mxu0 0.0
    %5502 = vmatprep.subr.mxu0 0.0
    %5503 = vmatpush1.msra.mxu0 0.0
    %5504 = vmatprep.subr.mxu0 0.0
    %5505 = vmatpush1.msra.mxu0 0.0
    %5506 = vmatprep.subr.mxu0 0.0
    %5507 = vmatpush1.msra.mxu0 0.0
    %5508 = vmatprep.subr.mxu0 0.0
    %5509 = vmatpush1.msra.mxu0 0.0
    %5510 = vmatprep.subr.mxu0 0.0
    %5511 = vmatpush1.msra.mxu0 0.0
    %5512 = vmatprep.subr.mxu0 0.0
    %5513 = vmatpush1.msra.mxu0 0.0
    %5514 = vmatprep.subr.mxu0 0.0
    %5515 = vmatpush1.msra.mxu0 0.0
    %5516 = vmatprep.subr.mxu0 0.0
    %5517 = vmatpush1.msra.mxu0 0.0
    %5518 = vmatprep.subr.mxu0 0.0
    %5519 = vmatpush1.msra.mxu0 0.0
    %5520 = vmatprep.subr.mxu0 0.0
    %5521 = vmatpush1.msra.mxu0 0.0
    %5522 = vmatprep.subr.mxu0 0.0
    %5523 = vmatpush1.msra.mxu0 0.0
    %5524 = vmatprep.subr.mxu0 0.0
    %5525 = vmatpush1.msra.mxu0 0.0
    %5526 = vmatprep.subr.mxu0 0.0
    %5527 = vmatpush1.msra.mxu0 0.0
    %5528 = vmatprep.subr.mxu0 0.0
    %5529 = vmatpush1.msra.mxu0 0.0
    %5530 = vmatprep.subr.mxu0 0.0
    %5531 = vmatpush1.msra.mxu0 0.0
    %5532 = vmatprep.subr.mxu0 0.0
    %5533 = vmatpush1.msra.mxu0 0.0
    %5534 = vmatprep.subr.mxu0 0.0
    %5535 = vmatpush1.msra.mxu0 0.0
    %5536 = vmatprep.subr.mxu0 0.0
    %5537 = vmatpush1.msra.mxu0 0.0
    %5538 = vmatprep.subr.mxu0 0.0
    %5539 = vmatpush1.msra.mxu0 0.0
    %5540 = vmatprep.subr.mxu0 0.0
    %5541 = vmatpush1.msra.mxu0 0.0
    %5542 = vmatprep.subr.mxu0 0.0
    %5543 = vmatpush1.msra.mxu0 0.0
    %5544 = vmatprep.subr.mxu0 0.0
    %5545 = vmatpush1.msra.mxu0 0.0
    %5546 = vmatprep.subr.mxu0 0.0
    %5547 = vmatpush1.msra.mxu0 0.0
    %5548 = vmatprep.subr.mxu0 0.0
    %5549 = vmatpush1.msra.mxu0 0.0
    %5550 = vmatprep.subr.mxu0 0.0
    %5551 = vmatpush1.msra.mxu0 0.0
    %5552 = vmatprep.subr.mxu0 0.0
    %5553 = vmatpush1.msra.mxu0 0.0
    %5554 = vmatprep.subr.mxu0 0.0
    %5555 = vmatpush1.msra.mxu0 0.0
    %5556 = vmatprep.subr.mxu0 0.0
    %5557 = vmatpush1.msra.mxu0 0.0
    %5558 = vmatprep.subr.mxu0 0.0
    %5559 = vmatpush1.msra.mxu0 0.0
    %5560 = vmatprep.mubr.f32.mxu0 0.0
    %5561 = vmatmul.mubr.f32.gmra.mrb[0].mxu0 %v5491
    %v5562 = vpop.f32.mrb[0].mxu0
    %v5563 = vadd.f32 0.0, %v5562
    %v5564 = vpop.f32.mrb[0].mxu0
    %5565 = vmatprep.mubr.f32.mxu0 0.0
    %5566 = vmatmul.mubr.f32.gmra.mrb[0].mxu0 %v5494
    %v5567 = vpop.f32.mrb[0].mxu0
    %v5568 = vadd.f32 0.0, %v5567
    %v5569 = vpop.f32.mrb[0].mxu0
    %5570 = vdwg.mxu0
    %5571 = vrot.lane.b32.xlu0 %v543, 48
    %v5572 = vpop.permute.xlu0 %5571
    %5573 = vrot.lane.b32.xlu0 %v548, 48
    %v5574 = vpop.permute.xlu0 %5573
    %v5578 = vsel %vm1286, %v5042, 0
    %v5581 = vsel %vm1286, %v5044, 0
    %5583 = vmatprep.subr.mxu0 0.0
    %5584 = vmatpush1.msra.mxu0 %v5572
    %5585 = vmatprep.subr.mxu0 0.0
    %5586 = vmatpush1.msra.mxu0 %v5574
    %5587 = vmatprep.subr.mxu0 0.0
    %5588 = vmatpush1.msra.mxu0 0.0
    %5589 = vmatprep.subr.mxu0 0.0
    %5590 = vmatpush1.msra.mxu0 0.0
    %5591 = vmatprep.subr.mxu0 0.0
    %5592 = vmatpush1.msra.mxu0 0.0
    %5593 = vmatprep.subr.mxu0 0.0
    %5594 = vmatpush1.msra.mxu0 0.0
    %5595 = vmatprep.subr.mxu0 0.0
    %5596 = vmatpush1.msra.mxu0 0.0
    %5597 = vmatprep.subr.mxu0 0.0
    %5598 = vmatpush1.msra.mxu0 0.0
    %5599 = vmatprep.subr.mxu0 0.0
    %5600 = vmatpush1.msra.mxu0 0.0
    %5601 = vmatprep.subr.mxu0 0.0
    %5602 = vmatpush1.msra.mxu0 0.0
    %5603 = vmatprep.subr.mxu0 0.0
    %5604 = vmatpush1.msra.mxu0 0.0
    %5605 = vmatprep.subr.mxu0 0.0
    %5606 = vmatpush1.msra.mxu0 0.0
    %5607 = vmatprep.subr.mxu0 0.0
    %5608 = vmatpush1.msra.mxu0 0.0
    %5609 = vmatprep.subr.mxu0 0.0
    %5610 = vmatpush1.msra.mxu0 0.0
    %5611 = vmatprep.subr.mxu0 0.0
    %5612 = vmatpush1.msra.mxu0 0.0
    %5613 = vmatprep.subr.mxu0 0.0
    %5614 = vmatpush1.msra.mxu0 0.0
    %5615 = vmatprep.subr.mxu0 0.0
    %5616 = vmatpush1.msra.mxu0 0.0
    %5617 = vmatprep.subr.mxu0 0.0
    %5618 = vmatpush1.msra.mxu0 0.0
    %5619 = vmatprep.subr.mxu0 0.0
    %5620 = vmatpush1.msra.mxu0 0.0
    %5621 = vmatprep.subr.mxu0 0.0
    %5622 = vmatpush1.msra.mxu0 0.0
    %5623 = vmatprep.subr.mxu0 0.0
    %5624 = vmatpush1.msra.mxu0 0.0
    %5625 = vmatprep.subr.mxu0 0.0
    %5626 = vmatpush1.msra.mxu0 0.0
    %5627 = vmatprep.subr.mxu0 0.0
    %5628 = vmatpush1.msra.mxu0 0.0
    %5629 = vmatprep.subr.mxu0 0.0
    %5630 = vmatpush1.msra.mxu0 0.0
    %5631 = vmatprep.subr.mxu0 0.0
    %5632 = vmatpush1.msra.mxu0 0.0
    %5633 = vmatprep.subr.mxu0 0.0
    %5634 = vmatpush1.msra.mxu0 0.0
    %5635 = vmatprep.subr.mxu0 0.0
    %5636 = vmatpush1.msra.mxu0 0.0
    %5637 = vmatprep.subr.mxu0 0.0
    %5638 = vmatpush1.msra.mxu0 0.0
    %5639 = vmatprep.subr.mxu0 0.0
    %5640 = vmatpush1.msra.mxu0 0.0
    %5641 = vmatprep.subr.mxu0 0.0
    %5642 = vmatpush1.msra.mxu0 0.0
    %5643 = vmatprep.subr.mxu0 0.0
    %5644 = vmatpush1.msra.mxu0 0.0
    %5645 = vmatprep.subr.mxu0 0.0
    %5646 = vmatpush1.msra.mxu0 0.0
    %5647 = vmatprep.mubr.f32.mxu0 0.0
    %5648 = vmatmul.mubr.f32.gmra.mrb[0].mxu0 %v5578
    %v5649 = vpop.f32.mrb[0].mxu0
    %v5650 = vadd.f32 0.0, %v5649
    %v5651 = vpop.f32.mrb[0].mxu0
    %5652 = vmatprep.mubr.f32.mxu0 0.0
    %5653 = vmatmul.mubr.f32.gmra.mrb[0].mxu0 %v5581
    %v5654 = vpop.f32.mrb[0].mxu0
    %v5655 = vadd.f32 0.0, %v5654
    %v5656 = vpop.f32.mrb[0].mxu0
    %5657 = vdwg.mxu0
    %5658 = vrot.lane.b32.xlu0 %v553, 48
    %v5659 = vpop.permute.xlu0 %5658
    %5660 = vrot.lane.b32.xlu0 %v558, 48
    %v5661 = vpop.permute.xlu0 %5660
    %v5665 = vsel %vm1286, %v5046, 0
    %v5668 = vsel %vm1286, %v5048, 0
    %5670 = vmatprep.subr.mxu0 0.0
    %5671 = vmatpush1.msra.mxu0 %v5659
    %5672 = vmatprep.subr.mxu0 0.0
    %5673 = vmatpush1.msra.mxu0 %v5661
    %5674 = vmatprep.subr.mxu0 0.0
    %5675 = vmatpush1.msra.mxu0 0.0
    %5676 = vmatprep.subr.mxu0 0.0
    %5677 = vmatpush1.msra.mxu0 0.0
    %5678 = vmatprep.subr.mxu0 0.0
    %5679 = vmatpush1.msra.mxu0 0.0
    %5680 = vmatprep.subr.mxu0 0.0
    %5681 = vmatpush1.msra.mxu0 0.0
    %5682 = vmatprep.subr.mxu0 0.0
    %5683 = vmatpush1.msra.mxu0 0.0
    %5684 = vmatprep.subr.mxu0 0.0
    %5685 = vmatpush1.msra.mxu0 0.0
    %5686 = vmatprep.subr.mxu0 0.0
    %5687 = vmatpush1.msra.mxu0 0.0
    %5688 = vmatprep.subr.mxu0 0.0
    %5689 = vmatpush1.msra.mxu0 0.0
    %5690 = vmatprep.subr.mxu0 0.0
    %5691 = vmatpush1.msra.mxu0 0.0
    %5692 = vmatprep.subr.mxu0 0.0
    %5693 = vmatpush1.msra.mxu0 0.0
    %5694 = vmatprep.subr.mxu0 0.0
    %5695 = vmatpush1.msra.mxu0 0.0
    %5696 = vmatprep.subr.mxu0 0.0
    %5697 = vmatpush1.msra.mxu0 0.0
    %5698 = vmatprep.subr.mxu0 0.0
    %5699 = vmatpush1.msra.mxu0 0.0
    %5700 = vmatprep.subr.mxu0 0.0
    %5701 = vmatpush1.msra.mxu0 0.0
    %5702 = vmatprep.subr.mxu0 0.0
    %5703 = vmatpush1.msra.mxu0 0.0
    %5704 = vmatprep.subr.mxu0 0.0
    %5705 = vmatpush1.msra.mxu0 0.0
    %5706 = vmatprep.subr.mxu0 0.0
    %5707 = vmatpush1.msra.mxu0 0.0
    %5708 = vmatprep.subr.mxu0 0.0
    %5709 = vmatpush1.msra.mxu0 0.0
    %5710 = vmatprep.subr.mxu0 0.0
    %5711 = vmatpush1.msra.mxu0 0.0
    %5712 = vmatprep.subr.mxu0 0.0
    %5713 = vmatpush1.msra.mxu0 0.0
    %5714 = vmatprep.subr.mxu0 0.0
    %5715 = vmatpush1.msra.mxu0 0.0
    %5716 = vmatprep.subr.mxu0 0.0
    %5717 = vmatpush1.msra.mxu0 0.0
    %5718 = vmatprep.subr.mxu0 0.0
    %5719 = vmatpush1.msra.mxu0 0.0
    %5720 = vmatprep.subr.mxu0 0.0
    %5721 = vmatpush1.msra.mxu0 0.0
    %5722 = vmatprep.subr.mxu0 0.0
    %5723 = vmatpush1.msra.mxu0 0.0
    %5724 = vmatprep.subr.mxu0 0.0
    %5725 = vmatpush1.msra.mxu0 0.0
    %5726 = vmatprep.subr.mxu0 0.0
    %5727 = vmatpush1.msra.mxu0 0.0
    %5728 = vmatprep.subr.mxu0 0.0
    %5729 = vmatpush1.msra.mxu0 0.0
    %5730 = vmatprep.subr.mxu0 0.0
    %5731 = vmatpush1.msra.mxu0 0.0
    %5732 = vmatprep.subr.mxu0 0.0
    %5733 = vmatpush1.msra.mxu0 0.0
    %5734 = vmatprep.mubr.f32.mxu0 0.0
    %5735 = vmatmul.mubr.f32.gmra.mrb[0].mxu0 %v5665
    %v5736 = vpop.f32.mrb[0].mxu0
    %v5737 = vadd.f32 0.0, %v5736
    %v5738 = vpop.f32.mrb[0].mxu0
    %5739 = vmatprep.mubr.f32.mxu0 0.0
    %5740 = vmatmul.mubr.f32.gmra.mrb[0].mxu0 %v5668
    %v5741 = vpop.f32.mrb[0].mxu0
    %v5742 = vadd.f32 0.0, %v5741
    %v5743 = vpop.f32.mrb[0].mxu0
    %5744 = vdwg.mxu0
    %v5746 = vsel %vm579, %v5128, 0
    %v5749 = vsel %vm579, %v5133, 0
    %v5752 = vsel %vm579, %v5215, 0
    %v5755 = vsel %vm579, %v5220, 0
    %v5758 = vsel %vm579, %v5302, 0
    %v5761 = vsel %vm579, %v5307, 0
    %v5764 = vsel %vm579, %v5389, 0
    %v5767 = vsel %vm579, %v5394, 0
    %v5770 = vsel %vm579, %v5476, 0
    %v5773 = vsel %vm579, %v5481, 0
    %v5776 = vsel %vm579, %v5563, 0
    %v5779 = vsel %vm579, %v5568, 0
    %v5782 = vsel %vm579, %v5650, 0
    %v5785 = vsel %vm579, %v5655, 0
    %v5788 = vsel %vm579, %v5737, 0
    %v5791 = vsel %vm579, %v5742, 0
    %5793 = vmatprep.subr.mxu0 0.0
    %5794 = vmatpush1.msra.mxu0 %v571
    %5795 = vmatprep.subr.mxu0 0.0
    %5796 = vmatpush1.msra.mxu0 0.0
    %5797 = vmatprep.subr.mxu0 0.0
    %5798 = vmatpush1.msra.mxu0 0.0
    %5799 = vmatprep.subr.mxu0 0.0
    %5800 = vmatpush1.msra.mxu0 0.0
    %5801 = vmatprep.subr.mxu0 0.0
    %5802 = vmatpush1.msra.mxu0 0.0
    %5803 = vmatprep.subr.mxu0 0.0
    %5804 = vmatpush1.msra.mxu0 0.0
    %5805 = vmatprep.subr.mxu0 0.0
    %5806 = vmatpush1.msra.mxu0 0.0
    %5807 = vmatprep.subr.mxu0 0.0
    %5808 = vmatpush1.msra.mxu0 0.0
    %5809 = vmatprep.subr.mxu0 0.0
    %5810 = vmatpush1.msra.mxu0 0.0
    %5811 = vmatprep.subr.mxu0 0.0
    %5812 = vmatpush1.msra.mxu0 0.0
    %5813 = vmatprep.subr.mxu0 0.0
    %5814 = vmatpush1.msra.mxu0 0.0
    %5815 = vmatprep.subr.mxu0 0.0
    %5816 = vmatpush1.msra.mxu0 0.0
    %5817 = vmatprep.subr.mxu0 0.0
    %5818 = vmatpush1.msra.mxu0 0.0
    %5819 = vmatprep.subr.mxu0 0.0
    %5820 = vmatpush1.msra.mxu0 0.0
    %5821 = vmatprep.subr.mxu0 0.0
    %5822 = vmatpush1.msra.mxu0 0.0
    %5823 = vmatprep.subr.mxu0 0.0
    %5824 = vmatpush1.msra.mxu0 0.0
    %5825 = vmatprep.subr.mxu0 0.0
    %5826 = vmatpush1.msra.mxu0 0.0
    %5827 = vmatprep.subr.mxu0 0.0
    %5828 = vmatpush1.msra.mxu0 0.0
    %5829 = vmatprep.subr.mxu0 0.0
    %5830 = vmatpush1.msra.mxu0 0.0
    %5831 = vmatprep.subr.mxu0 0.0
    %5832 = vmatpush1.msra.mxu0 0.0
    %5833 = vmatprep.subr.mxu0 0.0
    %5834 = vmatpush1.msra.mxu0 0.0
    %5835 = vmatprep.subr.mxu0 0.0
    %5836 = vmatpush1.msra.mxu0 0.0
    %5837 = vmatprep.subr.mxu0 0.0
    %5838 = vmatpush1.msra.mxu0 0.0
    %5839 = vmatprep.subr.mxu0 0.0
    %5840 = vmatpush1.msra.mxu0 0.0
    %5841 = vmatprep.subr.mxu0 0.0
    %5842 = vmatpush1.msra.mxu0 0.0
    %5843 = vmatprep.subr.mxu0 0.0
    %5844 = vmatpush1.msra.mxu0 0.0
    %5845 = vmatprep.subr.mxu0 0.0
    %5846 = vmatpush1.msra.mxu0 0.0
    %5847 = vmatprep.subr.mxu0 0.0
    %5848 = vmatpush1.msra.mxu0 0.0
    %5849 = vmatprep.subr.mxu0 0.0
    %5850 = vmatpush1.msra.mxu0 0.0
    %5851 = vmatprep.subr.mxu0 0.0
    %5852 = vmatpush1.msra.mxu0 0.0
    %5853 = vmatprep.subr.mxu0 0.0
    %5854 = vmatpush1.msra.mxu0 0.0
    %5855 = vmatprep.subr.mxu0 0.0
    %5856 = vmatpush1.msra.mxu0 0.0
    %5857 = vmatprep.mubr.f32.mxu0 0.0
    %5858 = vmatmul.mubr.f32.gmra.mrb[0].mxu0 %v5746
    %v5859 = vpop.f32.mrb[0].mxu0
    %v5860 = vadd.f32 0.0, %v5859
    %v5861 = vpop.f32.mrb[0].mxu0
    %5862 = vmatprep.mubr.f32.mxu0 0.0
    %5863 = vmatmul.mubr.f32.gmra.mrb[0].mxu0 %v5749
    %v5864 = vpop.f32.mrb[0].mxu0
    %v5865 = vadd.f32 0.0, %v5864
    %v5866 = vpop.f32.mrb[0].mxu0
    %5867 = vmatprep.mubr.f32.mxu0 0.0
    %5868 = vmatmul.mubr.f32.gmra.mrb[0].mxu0 %v5752
    %v5869 = vpop.f32.mrb[0].mxu0
    %v5870 = vadd.f32 0.0, %v5869
    %v5871 = vpop.f32.mrb[0].mxu0
    %5872 = vmatprep.mubr.f32.mxu0 0.0
    %5873 = vmatmul.mubr.f32.gmra.mrb[0].mxu0 %v5755
    %v5874 = vpop.f32.mrb[0].mxu0
    %v5875 = vadd.f32 0.0, %v5874
    %v5876 = vpop.f32.mrb[0].mxu0
    %5877 = vmatprep.mubr.f32.mxu0 0.0
    %5878 = vmatmul.mubr.f32.gmra.mrb[0].mxu0 %v5758
    %v5879 = vpop.f32.mrb[0].mxu0
    %v5880 = vadd.f32 0.0, %v5879
    %v5881 = vpop.f32.mrb[0].mxu0
    %5882 = vmatprep.mubr.f32.mxu0 0.0
    %5883 = vmatmul.mubr.f32.gmra.mrb[0].mxu0 %v5761
    %v5884 = vpop.f32.mrb[0].mxu0
    %v5885 = vadd.f32 0.0, %v5884
    %v5886 = vpop.f32.mrb[0].mxu0
    %5887 = vmatprep.mubr.f32.mxu0 0.0
    %5888 = vmatmul.mubr.f32.gmra.mrb[0].mxu0 %v5764
    %v5889 = vpop.f32.mrb[0].mxu0
    %v5890 = vadd.f32 0.0, %v5889
    %v5891 = vpop.f32.mrb[0].mxu0
    %5892 = vmatprep.mubr.f32.mxu0 0.0
    %5893 = vmatmul.mubr.f32.gmra.mrb[0].mxu0 %v5767
    %v5894 = vpop.f32.mrb[0].mxu0
    %v5895 = vadd.f32 0.0, %v5894
    %v5896 = vpop.f32.mrb[0].mxu0
    %5897 = vmatprep.mubr.f32.mxu0 0.0
    %5898 = vmatmul.mubr.f32.gmra.mrb[0].mxu0 %v5770
    %v5899 = vpop.f32.mrb[0].mxu0
    %v5900 = vadd.f32 0.0, %v5899
    %v5901 = vpop.f32.mrb[0].mxu0
    %5902 = vmatprep.mubr.f32.mxu0 0.0
    %5903 = vmatmul.mubr.f32.gmra.mrb[0].mxu0 %v5773
    %v5904 = vpop.f32.mrb[0].mxu0
    %v5905 = vadd.f32 0.0, %v5904
    %v5906 = vpop.f32.mrb[0].mxu0
    %5907 = vmatprep.mubr.f32.mxu0 0.0
    %5908 = vmatmul.mubr.f32.gmra.mrb[0].mxu0 %v5776
    %v5909 = vpop.f32.mrb[0].mxu0
    %v5910 = vadd.f32 0.0, %v5909
    %v5911 = vpop.f32.mrb[0].mxu0
    %5912 = vmatprep.mubr.f32.mxu0 0.0
    %5913 = vmatmul.mubr.f32.gmra.mrb[0].mxu0 %v5779
    %v5914 = vpop.f32.mrb[0].mxu0
    %v5915 = vadd.f32 0.0, %v5914
    %v5916 = vpop.f32.mrb[0].mxu0
    %5917 = vmatprep.mubr.f32.mxu0 0.0
    %5918 = vmatmul.mubr.f32.gmra.mrb[0].mxu0 %v5782
    %v5919 = vpop.f32.mrb[0].mxu0
    %v5920 = vadd.f32 0.0, %v5919
    %v5921 = vpop.f32.mrb[0].mxu0
    %5922 = vmatprep.mubr.f32.mxu0 0.0
    %5923 = vmatmul.mubr.f32.gmra.mrb[0].mxu0 %v5785
    %v5924 = vpop.f32.mrb[0].mxu0
    %v5925 = vadd.f32 0.0, %v5924
    %v5926 = vpop.f32.mrb[0].mxu0
    %5927 = vmatprep.mubr.f32.mxu0 0.0
    %5928 = vmatmul.mubr.f32.gmra.mrb[0].mxu0 %v5788
    %v5929 = vpop.f32.mrb[0].mxu0
    %v5930 = vadd.f32 0.0, %v5929
    %v5931 = vpop.f32.mrb[0].mxu0
    %5932 = vmatprep.mubr.f32.mxu0 0.0
    %5933 = vmatmul.mubr.f32.gmra.mrb[0].mxu0 %v5791
    %v5934 = vpop.f32.mrb[0].mxu0
    %v5935 = vadd.f32 0.0, %v5934
    %v5936 = vpop.f32.mrb[0].mxu0
    %5937 = vdwg.mxu0
    %v5938 = vadd.f32 %v4067, %v5860
    %v5939 = vadd.f32 %v4072, %v5865
    %v5940 = vadd.f32 %v4077, %v5870
    %v5941 = vadd.f32 %v4082, %v5875
    %v5942 = vadd.f32 %v4087, %v5880
    %v5943 = vadd.f32 %v4092, %v5885
    %v5944 = vadd.f32 %v4097, %v5890
    %v5945 = vadd.f32 %v4102, %v5895
    %v5946 = vadd.f32 %v4107, %v5900
    %v5947 = vadd.f32 %v4112, %v5905
    %v5948 = vadd.f32 %v4117, %v5910
    %v5949 = vadd.f32 %v4122, %v5915
    %v5950 = vadd.f32 %v4127, %v5920
    %v5951 = vadd.f32 %v4132, %v5925
    %v5952 = vadd.f32 %v4137, %v5930
    %v5953 = vadd.f32 %v4142, %v5935
    %5954 = vrot.lane.b32.xlu0 %v483, 104
    %v5955 = vpop.permute.xlu0 %5954
    %5956 = vrot.lane.b32.xlu0 %v488, 104
    %v5957 = vpop.permute.xlu0 %5956
    %5958 = vrot.lane.b32.xlu0 %v483, 72
    %v5959 = vpop.permute.xlu0 %5958
    %5960 = vrot.lane.b32.xlu0 %v488, 72
    %v5961 = vpop.permute.xlu0 %5960
    %v5962 = vsel %vm579, %v5955, 0
    %v5964 = vsel %vm579, %v5957, 0
    %v5966 = vsel %vm579, %v5959, 0
    %v5968 = vsel %vm579, %v5961, 0
    %5970 = vmatprep.subr.mxu0 0.0
    %5971 = vmatpush1.xpose.msra.mxu0 %v5966
    %5972 = vmatprep.subr.mxu0 0.0
    %5973 = vmatpush1.xpose.msra.mxu0 %v5968
    %5974 = vmatprep.subr.mxu0 0.0
    %5975 = vmatpush1.xpose.msra.mxu0 0.0
    %5976 = vmatprep.subr.mxu0 0.0
    %5977 = vmatpush1.xpose.msra.mxu0 0.0
    %5978 = vmatprep.subr.mxu0 0.0
    %5979 = vmatpush1.xpose.msra.mxu0 0.0
    %5980 = vmatprep.subr.mxu0 0.0
    %5981 = vmatpush1.xpose.msra.mxu0 0.0
    %5982 = vmatprep.subr.mxu0 0.0
    %5983 = vmatpush1.xpose.msra.mxu0 0.0
    %5984 = vmatprep.subr.mxu0 0.0
    %5985 = vmatpush1.xpose.msra.mxu0 0.0
    %5986 = vmatprep.subr.mxu0 0.0
    %5987 = vmatpush1.xpose.msra.mxu0 0.0
    %5988 = vmatprep.subr.mxu0 0.0
    %5989 = vmatpush1.xpose.msra.mxu0 0.0
    %5990 = vmatprep.subr.mxu0 0.0
    %5991 = vmatpush1.xpose.msra.mxu0 0.0
    %5992 = vmatprep.subr.mxu0 0.0
    %5993 = vmatpush1.xpose.msra.mxu0 0.0
    %5994 = vmatprep.subr.mxu0 0.0
    %5995 = vmatpush1.xpose.msra.mxu0 0.0
    %5996 = vmatprep.subr.mxu0 0.0
    %5997 = vmatpush1.xpose.msra.mxu0 0.0
    %5998 = vmatprep.subr.mxu0 0.0
    %5999 = vmatpush1.xpose.msra.mxu0 0.0
    %6000 = vmatprep.subr.mxu0 0.0
    %6001 = vmatpush1.xpose.msra.mxu0 0.0
    %6002 = vmatprep.subr.mxu0 0.0
    %6003 = vmatpush1.xpose.msra.mxu0 0.0
    %6004 = vmatprep.subr.mxu0 0.0
    %6005 = vmatpush1.xpose.msra.mxu0 0.0
    %6006 = vmatprep.subr.mxu0 0.0
    %6007 = vmatpush1.xpose.msra.mxu0 0.0
    %6008 = vmatprep.subr.mxu0 0.0
    %6009 = vmatpush1.xpose.msra.mxu0 0.0
    %6010 = vmatprep.subr.mxu0 0.0
    %6011 = vmatpush1.xpose.msra.mxu0 0.0
    %6012 = vmatprep.subr.mxu0 0.0
    %6013 = vmatpush1.xpose.msra.mxu0 0.0
    %6014 = vmatprep.subr.mxu0 0.0
    %6015 = vmatpush1.xpose.msra.mxu0 0.0
    %6016 = vmatprep.subr.mxu0 0.0
    %6017 = vmatpush1.xpose.msra.mxu0 0.0
    %6018 = vmatprep.subr.mxu0 0.0
    %6019 = vmatpush1.xpose.msra.mxu0 0.0
    %6020 = vmatprep.subr.mxu0 0.0
    %6021 = vmatpush1.xpose.msra.mxu0 0.0
    %6022 = vmatprep.subr.mxu0 0.0
    %6023 = vmatpush1.xpose.msra.mxu0 0.0
    %6024 = vmatprep.subr.mxu0 0.0
    %6025 = vmatpush1.xpose.msra.mxu0 0.0
    %6026 = vmatprep.subr.mxu0 0.0
    %6027 = vmatpush1.xpose.msra.mxu0 0.0
    %6028 = vmatprep.subr.mxu0 0.0
    %6029 = vmatpush1.xpose.msra.mxu0 0.0
    %6030 = vmatprep.subr.mxu0 0.0
    %6031 = vmatpush1.xpose.msra.mxu0 0.0
    %6032 = vmatprep.subr.mxu0 0.0
    %6033 = vmatpush1.xpose.msra.mxu0 0.0
    %6034 = vmatprep.mubr.f32.mxu0 0.0
    %6035 = vmatmul.mubr.f32.gmra.mrb[0].mxu0 %v5962
    %v6036 = vpop.f32.mrb[0].mxu0
    %v6037 = vadd.f32 %v567, %v6036
    %v6038 = vpop.f32.mrb[0].mxu0
    %6039 = vmatprep.mubr.f32.mxu0 0.0
    %6040 = vmatmul.mubr.f32.gmra.mrb[0].mxu0 %v5964
    %v6041 = vpop.f32.mrb[0].mxu0
    %v6042 = vadd.f32 %v568, %v6041
    %v6043 = vpop.f32.mrb[0].mxu0
    %6044 = vdwg.mxu0
    %6045 = vrot.lane.b32.xlu0 %v493, 104
    %v6046 = vpop.permute.xlu0 %6045
    %6047 = vrot.lane.b32.xlu0 %v498, 104
    %v6048 = vpop.permute.xlu0 %6047
    %6049 = vrot.lane.b32.xlu0 %v493, 72
    %v6050 = vpop.permute.xlu0 %6049
    %6051 = vrot.lane.b32.xlu0 %v498, 72
    %v6052 = vpop.permute.xlu0 %6051
    %v6053 = vsel %vm579, %v6046, 0
    %v6055 = vsel %vm579, %v6048, 0
    %v6057 = vsel %vm579, %v6050, 0
    %v6059 = vsel %vm579, %v6052, 0
    %6061 = vmatprep.subr.mxu0 0.0
    %6062 = vmatpush1.xpose.msra.mxu0 %v6057
    %6063 = vmatprep.subr.mxu0 0.0
    %6064 = vmatpush1.xpose.msra.mxu0 %v6059
    %6065 = vmatprep.subr.mxu0 0.0
    %6066 = vmatpush1.xpose.msra.mxu0 0.0
    %6067 = vmatprep.subr.mxu0 0.0
    %6068 = vmatpush1.xpose.msra.mxu0 0.0
    %6069 = vmatprep.subr.mxu0 0.0
    %6070 = vmatpush1.xpose.msra.mxu0 0.0
    %6071 = vmatprep.subr.mxu0 0.0
    %6072 = vmatpush1.xpose.msra.mxu0 0.0
    %6073 = vmatprep.subr.mxu0 0.0
    %6074 = vmatpush1.xpose.msra.mxu0 0.0
    %6075 = vmatprep.subr.mxu0 0.0
    %6076 = vmatpush1.xpose.msra.mxu0 0.0
    %6077 = vmatprep.subr.mxu0 0.0
    %6078 = vmatpush1.xpose.msra.mxu0 0.0
    %6079 = vmatprep.subr.mxu0 0.0
    %6080 = vmatpush1.xpose.msra.mxu0 0.0
    %6081 = vmatprep.subr.mxu0 0.0
    %6082 = vmatpush1.xpose.msra.mxu0 0.0
    %6083 = vmatprep.subr.mxu0 0.0
    %6084 = vmatpush1.xpose.msra.mxu0 0.0
    %6085 = vmatprep.subr.mxu0 0.0
    %6086 = vmatpush1.xpose.msra.mxu0 0.0
    %6087 = vmatprep.subr.mxu0 0.0
    %6088 = vmatpush1.xpose.msra.mxu0 0.0
    %6089 = vmatprep.subr.mxu0 0.0
    %6090 = vmatpush1.xpose.msra.mxu0 0.0
    %6091 = vmatprep.subr.mxu0 0.0
    %6092 = vmatpush1.xpose.msra.mxu0 0.0
    %6093 = vmatprep.subr.mxu0 0.0
    %6094 = vmatpush1.xpose.msra.mxu0 0.0
    %6095 = vmatprep.subr.mxu0 0.0
    %6096 = vmatpush1.xpose.msra.mxu0 0.0
    %6097 = vmatprep.subr.mxu0 0.0
    %6098 = vmatpush1.xpose.msra.mxu0 0.0
    %6099 = vmatprep.subr.mxu0 0.0
    %6100 = vmatpush1.xpose.msra.mxu0 0.0
    %6101 = vmatprep.subr.mxu0 0.0
    %6102 = vmatpush1.xpose.msra.mxu0 0.0
    %6103 = vmatprep.subr.mxu0 0.0
    %6104 = vmatpush1.xpose.msra.mxu0 0.0
    %6105 = vmatprep.subr.mxu0 0.0
    %6106 = vmatpush1.xpose.msra.mxu0 0.0
    %6107 = vmatprep.subr.mxu0 0.0
    %6108 = vmatpush1.xpose.msra.mxu0 0.0
    %6109 = vmatprep.subr.mxu0 0.0
    %6110 = vmatpush1.xpose.msra.mxu0 0.0
    %6111 = vmatprep.subr.mxu0 0.0
    %6112 = vmatpush1.xpose.msra.mxu0 0.0
    %6113 = vmatprep.subr.mxu0 0.0
    %6114 = vmatpush1.xpose.msra.mxu0 0.0
    %6115 = vmatprep.subr.mxu0 0.0
    %6116 = vmatpush1.xpose.msra.mxu0 0.0
    %6117 = vmatprep.subr.mxu0 0.0
    %6118 = vmatpush1.xpose.msra.mxu0 0.0
    %6119 = vmatprep.subr.mxu0 0.0
    %6120 = vmatpush1.xpose.msra.mxu0 0.0
    %6121 = vmatprep.subr.mxu0 0.0
    %6122 = vmatpush1.xpose.msra.mxu0 0.0
    %6123 = vmatprep.subr.mxu0 0.0
    %6124 = vmatpush1.xpose.msra.mxu0 0.0
    %6125 = vmatprep.mubr.f32.mxu0 0.0
    %6126 = vmatmul.mubr.f32.gmra.mrb[0].mxu0 %v6053
    %v6127 = vpop.f32.mrb[0].mxu0
    %v6128 = vadd.f32 %v567, %v6127
    %v6129 = vpop.f32.mrb[0].mxu0
    %6130 = vmatprep.mubr.f32.mxu0 0.0
    %6131 = vmatmul.mubr.f32.gmra.mrb[0].mxu0 %v6055
    %v6132 = vpop.f32.mrb[0].mxu0
    %v6133 = vadd.f32 %v568, %v6132
    %v6134 = vpop.f32.mrb[0].mxu0
    %6135 = vdwg.mxu0
    %6136 = vrot.lane.b32.xlu0 %v503, 104
    %v6137 = vpop.permute.xlu0 %6136
    %6138 = vrot.lane.b32.xlu0 %v508, 104
    %v6139 = vpop.permute.xlu0 %6138
    %6140 = vrot.lane.b32.xlu0 %v503, 72
    %v6141 = vpop.permute.xlu0 %6140
    %6142 = vrot.lane.b32.xlu0 %v508, 72
    %v6143 = vpop.permute.xlu0 %6142
    %v6144 = vsel %vm579, %v6137, 0
    %v6146 = vsel %vm579, %v6139, 0
    %v6148 = vsel %vm579, %v6141, 0
    %v6150 = vsel %vm579, %v6143, 0
    %6152 = vmatprep.subr.mxu0 0.0
    %6153 = vmatpush1.xpose.msra.mxu0 %v6148
    %6154 = vmatprep.subr.mxu0 0.0
    %6155 = vmatpush1.xpose.msra.mxu0 %v6150
    %6156 = vmatprep.subr.mxu0 0.0
    %6157 = vmatpush1.xpose.msra.mxu0 0.0
    %6158 = vmatprep.subr.mxu0 0.0
    %6159 = vmatpush1.xpose.msra.mxu0 0.0
    %6160 = vmatprep.subr.mxu0 0.0
    %6161 = vmatpush1.xpose.msra.mxu0 0.0
    %6162 = vmatprep.subr.mxu0 0.0
    %6163 = vmatpush1.xpose.msra.mxu0 0.0
    %6164 = vmatprep.subr.mxu0 0.0
    %6165 = vmatpush1.xpose.msra.mxu0 0.0
    %6166 = vmatprep.subr.mxu0 0.0
    %6167 = vmatpush1.xpose.msra.mxu0 0.0
    %6168 = vmatprep.subr.mxu0 0.0
    %6169 = vmatpush1.xpose.msra.mxu0 0.0
    %6170 = vmatprep.subr.mxu0 0.0
    %6171 = vmatpush1.xpose.msra.mxu0 0.0
    %6172 = vmatprep.subr.mxu0 0.0
    %6173 = vmatpush1.xpose.msra.mxu0 0.0
    %6174 = vmatprep.subr.mxu0 0.0
    %6175 = vmatpush1.xpose.msra.mxu0 0.0
    %6176 = vmatprep.subr.mxu0 0.0
    %6177 = vmatpush1.xpose.msra.mxu0 0.0
    %6178 = vmatprep.subr.mxu0 0.0
    %6179 = vmatpush1.xpose.msra.mxu0 0.0
    %6180 = vmatprep.subr.mxu0 0.0
    %6181 = vmatpush1.xpose.msra.mxu0 0.0
    %6182 = vmatprep.subr.mxu0 0.0
    %6183 = vmatpush1.xpose.msra.mxu0 0.0
    %6184 = vmatprep.subr.mxu0 0.0
    %6185 = vmatpush1.xpose.msra.mxu0 0.0
    %6186 = vmatprep.subr.mxu0 0.0
    %6187 = vmatpush1.xpose.msra.mxu0 0.0
    %6188 = vmatprep.subr.mxu0 0.0
    %6189 = vmatpush1.xpose.msra.mxu0 0.0
    %6190 = vmatprep.subr.mxu0 0.0
    %6191 = vmatpush1.xpose.msra.mxu0 0.0
    %6192 = vmatprep.subr.mxu0 0.0
    %6193 = vmatpush1.xpose.msra.mxu0 0.0
    %6194 = vmatprep.subr.mxu0 0.0
    %6195 = vmatpush1.xpose.msra.mxu0 0.0
    %6196 = vmatprep.subr.mxu0 0.0
    %6197 = vmatpush1.xpose.msra.mxu0 0.0
    %6198 = vmatprep.subr.mxu0 0.0
    %6199 = vmatpush1.xpose.msra.mxu0 0.0
    %6200 = vmatprep.subr.mxu0 0.0
    %6201 = vmatpush1.xpose.msra.mxu0 0.0
    %6202 = vmatprep.subr.mxu0 0.0
    %6203 = vmatpush1.xpose.msra.mxu0 0.0
    %6204 = vmatprep.subr.mxu0 0.0
    %6205 = vmatpush1.xpose.msra.mxu0 0.0
    %6206 = vmatprep.subr.mxu0 0.0
    %6207 = vmatpush1.xpose.msra.mxu0 0.0
    %6208 = vmatprep.subr.mxu0 0.0
    %6209 = vmatpush1.xpose.msra.mxu0 0.0
    %6210 = vmatprep.subr.mxu0 0.0
    %6211 = vmatpush1.xpose.msra.mxu0 0.0
    %6212 = vmatprep.subr.mxu0 0.0
    %6213 = vmatpush1.xpose.msra.mxu0 0.0
    %6214 = vmatprep.subr.mxu0 0.0
    %6215 = vmatpush1.xpose.msra.mxu0 0.0
    %6216 = vmatprep.mubr.f32.mxu0 0.0
    %6217 = vmatmul.mubr.f32.gmra.mrb[0].mxu0 %v6144
    %v6218 = vpop.f32.mrb[0].mxu0
    %v6219 = vadd.f32 %v567, %v6218
    %v6220 = vpop.f32.mrb[0].mxu0
    %6221 = vmatprep.mubr.f32.mxu0 0.0
    %6222 = vmatmul.mubr.f32.gmra.mrb[0].mxu0 %v6146
    %v6223 = vpop.f32.mrb[0].mxu0
    %v6224 = vadd.f32 %v568, %v6223
    %v6225 = vpop.f32.mrb[0].mxu0
    %6226 = vdwg.mxu0
    %6227 = vrot.lane.b32.xlu0 %v513, 104
    %v6228 = vpop.permute.xlu0 %6227
    %6229 = vrot.lane.b32.xlu0 %v518, 104
    %v6230 = vpop.permute.xlu0 %6229
    %6231 = vrot.lane.b32.xlu0 %v513, 72
    %v6232 = vpop.permute.xlu0 %6231
    %6233 = vrot.lane.b32.xlu0 %v518, 72
    %v6234 = vpop.permute.xlu0 %6233
    %v6235 = vsel %vm579, %v6228, 0
    %v6237 = vsel %vm579, %v6230, 0
    %v6239 = vsel %vm579, %v6232, 0
    %v6241 = vsel %vm579, %v6234, 0
    %6243 = vmatprep.subr.mxu0 0.0
    %6244 = vmatpush1.xpose.msra.mxu0 %v6239
    %6245 = vmatprep.subr.mxu0 0.0
    %6246 = vmatpush1.xpose.msra.mxu0 %v6241
    %6247 = vmatprep.subr.mxu0 0.0
    %6248 = vmatpush1.xpose.msra.mxu0 0.0
    %6249 = vmatprep.subr.mxu0 0.0
    %6250 = vmatpush1.xpose.msra.mxu0 0.0
    %6251 = vmatprep.subr.mxu0 0.0
    %6252 = vmatpush1.xpose.msra.mxu0 0.0
    %6253 = vmatprep.subr.mxu0 0.0
    %6254 = vmatpush1.xpose.msra.mxu0 0.0
    %6255 = vmatprep.subr.mxu0 0.0
    %6256 = vmatpush1.xpose.msra.mxu0 0.0
    %6257 = vmatprep.subr.mxu0 0.0
    %6258 = vmatpush1.xpose.msra.mxu0 0.0
    %6259 = vmatprep.subr.mxu0 0.0
    %6260 = vmatpush1.xpose.msra.mxu0 0.0
    %6261 = vmatprep.subr.mxu0 0.0
    %6262 = vmatpush1.xpose.msra.mxu0 0.0
    %6263 = vmatprep.subr.mxu0 0.0
    %6264 = vmatpush1.xpose.msra.mxu0 0.0
    %6265 = vmatprep.subr.mxu0 0.0
    %6266 = vmatpush1.xpose.msra.mxu0 0.0
    %6267 = vmatprep.subr.mxu0 0.0
    %6268 = vmatpush1.xpose.msra.mxu0 0.0
    %6269 = vmatprep.subr.mxu0 0.0
    %6270 = vmatpush1.xpose.msra.mxu0 0.0
    %6271 = vmatprep.subr.mxu0 0.0
    %6272 = vmatpush1.xpose.msra.mxu0 0.0
    %6273 = vmatprep.subr.mxu0 0.0
    %6274 = vmatpush1.xpose.msra.mxu0 0.0
    %6275 = vmatprep.subr.mxu0 0.0
    %6276 = vmatpush1.xpose.msra.mxu0 0.0
    %6277 = vmatprep.subr.mxu0 0.0
    %6278 = vmatpush1.xpose.msra.mxu0 0.0
    %6279 = vmatprep.subr.mxu0 0.0
    %6280 = vmatpush1.xpose.msra.mxu0 0.0
    %6281 = vmatprep.subr.mxu0 0.0
    %6282 = vmatpush1.xpose.msra.mxu0 0.0
    %6283 = vmatprep.subr.mxu0 0.0
    %6284 = vmatpush1.xpose.msra.mxu0 0.0
    %6285 = vmatprep.subr.mxu0 0.0
    %6286 = vmatpush1.xpose.msra.mxu0 0.0
    %6287 = vmatprep.subr.mxu0 0.0
    %6288 = vmatpush1.xpose.msra.mxu0 0.0
    %6289 = vmatprep.subr.mxu0 0.0
    %6290 = vmatpush1.xpose.msra.mxu0 0.0
    %6291 = vmatprep.subr.mxu0 0.0
    %6292 = vmatpush1.xpose.msra.mxu0 0.0
    %6293 = vmatprep.subr.mxu0 0.0
    %6294 = vmatpush1.xpose.msra.mxu0 0.0
    %6295 = vmatprep.subr.mxu0 0.0
    %6296 = vmatpush1.xpose.msra.mxu0 0.0
    %6297 = vmatprep.subr.mxu0 0.0
    %6298 = vmatpush1.xpose.msra.mxu0 0.0
    %6299 = vmatprep.subr.mxu0 0.0
    %6300 = vmatpush1.xpose.msra.mxu0 0.0
    %6301 = vmatprep.subr.mxu0 0.0
    %6302 = vmatpush1.xpose.msra.mxu0 0.0
    %6303 = vmatprep.subr.mxu0 0.0
    %6304 = vmatpush1.xpose.msra.mxu0 0.0
    %6305 = vmatprep.subr.mxu0 0.0
    %6306 = vmatpush1.xpose.msra.mxu0 0.0
    %6307 = vmatprep.mubr.f32.mxu0 0.0
    %6308 = vmatmul.mubr.f32.gmra.mrb[0].mxu0 %v6235
    %v6309 = vpop.f32.mrb[0].mxu0
    %v6310 = vadd.f32 %v567, %v6309
    %v6311 = vpop.f32.mrb[0].mxu0
    %6312 = vmatprep.mubr.f32.mxu0 0.0
    %6313 = vmatmul.mubr.f32.gmra.mrb[0].mxu0 %v6237
    %v6314 = vpop.f32.mrb[0].mxu0
    %v6315 = vadd.f32 %v568, %v6314
    %v6316 = vpop.f32.mrb[0].mxu0
    %6317 = vdwg.mxu0
    %6318 = vrot.lane.b32.xlu0 %v523, 104
    %v6319 = vpop.permute.xlu0 %6318
    %6320 = vrot.lane.b32.xlu0 %v528, 104
    %v6321 = vpop.permute.xlu0 %6320
    %6322 = vrot.lane.b32.xlu0 %v523, 72
    %v6323 = vpop.permute.xlu0 %6322
    %6324 = vrot.lane.b32.xlu0 %v528, 72
    %v6325 = vpop.permute.xlu0 %6324
    %v6326 = vsel %vm579, %v6319, 0
    %v6328 = vsel %vm579, %v6321, 0
    %v6330 = vsel %vm579, %v6323, 0
    %v6332 = vsel %vm579, %v6325, 0
    %6334 = vmatprep.subr.mxu0 0.0
    %6335 = vmatpush1.xpose.msra.mxu0 %v6330
    %6336 = vmatprep.subr.mxu0 0.0
    %6337 = vmatpush1.xpose.msra.mxu0 %v6332
    %6338 = vmatprep.subr.mxu0 0.0
    %6339 = vmatpush1.xpose.msra.mxu0 0.0
    %6340 = vmatprep.subr.mxu0 0.0
    %6341 = vmatpush1.xpose.msra.mxu0 0.0
    %6342 = vmatprep.subr.mxu0 0.0
    %6343 = vmatpush1.xpose.msra.mxu0 0.0
    %6344 = vmatprep.subr.mxu0 0.0
    %6345 = vmatpush1.xpose.msra.mxu0 0.0
    %6346 = vmatprep.subr.mxu0 0.0
    %6347 = vmatpush1.xpose.msra.mxu0 0.0
    %6348 = vmatprep.subr.mxu0 0.0
    %6349 = vmatpush1.xpose.msra.mxu0 0.0
    %6350 = vmatprep.subr.mxu0 0.0
    %6351 = vmatpush1.xpose.msra.mxu0 0.0
    %6352 = vmatprep.subr.mxu0 0.0
    %6353 = vmatpush1.xpose.msra.mxu0 0.0
    %6354 = vmatprep.subr.mxu0 0.0
    %6355 = vmatpush1.xpose.msra.mxu0 0.0
    %6356 = vmatprep.subr.mxu0 0.0
    %6357 = vmatpush1.xpose.msra.mxu0 0.0
    %6358 = vmatprep.subr.mxu0 0.0
    %6359 = vmatpush1.xpose.msra.mxu0 0.0
    %6360 = vmatprep.subr.mxu0 0.0
    %6361 = vmatpush1.xpose.msra.mxu0 0.0
    %6362 = vmatprep.subr.mxu0 0.0
    %6363 = vmatpush1.xpose.msra.mxu0 0.0
    %6364 = vmatprep.subr.mxu0 0.0
    %6365 = vmatpush1.xpose.msra.mxu0 0.0
    %6366 = vmatprep.subr.mxu0 0.0
    %6367 = vmatpush1.xpose.msra.mxu0 0.0
    %6368 = vmatprep.subr.mxu0 0.0
    %6369 = vmatpush1.xpose.msra.mxu0 0.0
    %6370 = vmatprep.subr.mxu0 0.0
    %6371 = vmatpush1.xpose.msra.mxu0 0.0
    %6372 = vmatprep.subr.mxu0 0.0
    %6373 = vmatpush1.xpose.msra.mxu0 0.0
    %6374 = vmatprep.subr.mxu0 0.0
    %6375 = vmatpush1.xpose.msra.mxu0 0.0
    %6376 = vmatprep.subr.mxu0 0.0
    %6377 = vmatpush1.xpose.msra.mxu0 0.0
    %6378 = vmatprep.subr.mxu0 0.0
    %6379 = vmatpush1.xpose.msra.mxu0 0.0
    %6380 = vmatprep.subr.mxu0 0.0
    %6381 = vmatpush1.xpose.msra.mxu0 0.0
    %6382 = vmatprep.subr.mxu0 0.0
    %6383 = vmatpush1.xpose.msra.mxu0 0.0
    %6384 = vmatprep.subr.mxu0 0.0
    %6385 = vmatpush1.xpose.msra.mxu0 0.0
    %6386 = vmatprep.subr.mxu0 0.0
    %6387 = vmatpush1.xpose.msra.mxu0 0.0
    %6388 = vmatprep.subr.mxu0 0.0
    %6389 = vmatpush1.xpose.msra.mxu0 0.0
    %6390 = vmatprep.subr.mxu0 0.0
    %6391 = vmatpush1.xpose.msra.mxu0 0.0
    %6392 = vmatprep.subr.mxu0 0.0
    %6393 = vmatpush1.xpose.msra.mxu0 0.0
    %6394 = vmatprep.subr.mxu0 0.0
    %6395 = vmatpush1.xpose.msra.mxu0 0.0
    %6396 = vmatprep.subr.mxu0 0.0
    %6397 = vmatpush1.xpose.msra.mxu0 0.0
    %6398 = vmatprep.mubr.f32.mxu0 0.0
    %6399 = vmatmul.mubr.f32.gmra.mrb[0].mxu0 %v6326
    %v6400 = vpop.f32.mrb[0].mxu0
    %v6401 = vadd.f32 %v567, %v6400
    %v6402 = vpop.f32.mrb[0].mxu0
    %6403 = vmatprep.mubr.f32.mxu0 0.0
    %6404 = vmatmul.mubr.f32.gmra.mrb[0].mxu0 %v6328
    %v6405 = vpop.f32.mrb[0].mxu0
    %v6406 = vadd.f32 %v568, %v6405
    %v6407 = vpop.f32.mrb[0].mxu0
    %6408 = vdwg.mxu0
    %6409 = vrot.lane.b32.xlu0 %v533, 104
    %v6410 = vpop.permute.xlu0 %6409
    %6411 = vrot.lane.b32.xlu0 %v538, 104
    %v6412 = vpop.permute.xlu0 %6411
    %6413 = vrot.lane.b32.xlu0 %v533, 72
    %v6414 = vpop.permute.xlu0 %6413
    %6415 = vrot.lane.b32.xlu0 %v538, 72
    %v6416 = vpop.permute.xlu0 %6415
    %v6417 = vsel %vm579, %v6410, 0
    %v6419 = vsel %vm579, %v6412, 0
    %v6421 = vsel %vm579, %v6414, 0
    %v6423 = vsel %vm579, %v6416, 0
    %6425 = vmatprep.subr.mxu0 0.0
    %6426 = vmatpush1.xpose.msra.mxu0 %v6421
    %6427 = vmatprep.subr.mxu0 0.0
    %6428 = vmatpush1.xpose.msra.mxu0 %v6423
    %6429 = vmatprep.subr.mxu0 0.0
    %6430 = vmatpush1.xpose.msra.mxu0 0.0
    %6431 = vmatprep.subr.mxu0 0.0
    %6432 = vmatpush1.xpose.msra.mxu0 0.0
    %6433 = vmatprep.subr.mxu0 0.0
    %6434 = vmatpush1.xpose.msra.mxu0 0.0
    %6435 = vmatprep.subr.mxu0 0.0
    %6436 = vmatpush1.xpose.msra.mxu0 0.0
    %6437 = vmatprep.subr.mxu0 0.0
    %6438 = vmatpush1.xpose.msra.mxu0 0.0
    %6439 = vmatprep.subr.mxu0 0.0
    %6440 = vmatpush1.xpose.msra.mxu0 0.0
    %6441 = vmatprep.subr.mxu0 0.0
    %6442 = vmatpush1.xpose.msra.mxu0 0.0
    %6443 = vmatprep.subr.mxu0 0.0
    %6444 = vmatpush1.xpose.msra.mxu0 0.0
    %6445 = vmatprep.subr.mxu0 0.0
    %6446 = vmatpush1.xpose.msra.mxu0 0.0
    %6447 = vmatprep.subr.mxu0 0.0
    %6448 = vmatpush1.xpose.msra.mxu0 0.0
    %6449 = vmatprep.subr.mxu0 0.0
    %6450 = vmatpush1.xpose.msra.mxu0 0.0
    %6451 = vmatprep.subr.mxu0 0.0
    %6452 = vmatpush1.xpose.msra.mxu0 0.0
    %6453 = vmatprep.subr.mxu0 0.0
    %6454 = vmatpush1.xpose.msra.mxu0 0.0
    %6455 = vmatprep.subr.mxu0 0.0
    %6456 = vmatpush1.xpose.msra.mxu0 0.0
    %6457 = vmatprep.subr.mxu0 0.0
    %6458 = vmatpush1.xpose.msra.mxu0 0.0
    %6459 = vmatprep.subr.mxu0 0.0
    %6460 = vmatpush1.xpose.msra.mxu0 0.0
    %6461 = vmatprep.subr.mxu0 0.0
    %6462 = vmatpush1.xpose.msra.mxu0 0.0
    %6463 = vmatprep.subr.mxu0 0.0
    %6464 = vmatpush1.xpose.msra.mxu0 0.0
    %6465 = vmatprep.subr.mxu0 0.0
    %6466 = vmatpush1.xpose.msra.mxu0 0.0
    %6467 = vmatprep.subr.mxu0 0.0
    %6468 = vmatpush1.xpose.msra.mxu0 0.0
    %6469 = vmatprep.subr.mxu0 0.0
    %6470 = vmatpush1.xpose.msra.mxu0 0.0
    %6471 = vmatprep.subr.mxu0 0.0
    %6472 = vmatpush1.xpose.msra.mxu0 0.0
    %6473 = vmatprep.subr.mxu0 0.0
    %6474 = vmatpush1.xpose.msra.mxu0 0.0
    %6475 = vmatprep.subr.mxu0 0.0
    %6476 = vmatpush1.xpose.msra.mxu0 0.0
    %6477 = vmatprep.subr.mxu0 0.0
    %6478 = vmatpush1.xpose.msra.mxu0 0.0
    %6479 = vmatprep.subr.mxu0 0.0
    %6480 = vmatpush1.xpose.msra.mxu0 0.0
    %6481 = vmatprep.subr.mxu0 0.0
    %6482 = vmatpush1.xpose.msra.mxu0 0.0
    %6483 = vmatprep.subr.mxu0 0.0
    %6484 = vmatpush1.xpose.msra.mxu0 0.0
    %6485 = vmatprep.subr.mxu0 0.0
    %6486 = vmatpush1.xpose.msra.mxu0 0.0
    %6487 = vmatprep.subr.mxu0 0.0
    %6488 = vmatpush1.xpose.msra.mxu0 0.0
    %6489 = vmatprep.mubr.f32.mxu0 0.0
    %6490 = vmatmul.mubr.f32.gmra.mrb[0].mxu0 %v6417
    %v6491 = vpop.f32.mrb[0].mxu0
    %v6492 = vadd.f32 %v567, %v6491
    %v6493 = vpop.f32.mrb[0].mxu0
    %6494 = vmatprep.mubr.f32.mxu0 0.0
    %6495 = vmatmul.mubr.f32.gmra.mrb[0].mxu0 %v6419
    %v6496 = vpop.f32.mrb[0].mxu0
    %v6497 = vadd.f32 %v568, %v6496
    %v6498 = vpop.f32.mrb[0].mxu0
    %6499 = vdwg.mxu0
    %6500 = vrot.lane.b32.xlu0 %v543, 104
    %v6501 = vpop.permute.xlu0 %6500
    %6502 = vrot.lane.b32.xlu0 %v548, 104
    %v6503 = vpop.permute.xlu0 %6502
    %6504 = vrot.lane.b32.xlu0 %v543, 72
    %v6505 = vpop.permute.xlu0 %6504
    %6506 = vrot.lane.b32.xlu0 %v548, 72
    %v6507 = vpop.permute.xlu0 %6506
    %v6508 = vsel %vm579, %v6501, 0
    %v6510 = vsel %vm579, %v6503, 0
    %v6512 = vsel %vm579, %v6505, 0
    %v6514 = vsel %vm579, %v6507, 0
    %6516 = vmatprep.subr.mxu0 0.0
    %6517 = vmatpush1.xpose.msra.mxu0 %v6512
    %6518 = vmatprep.subr.mxu0 0.0
    %6519 = vmatpush1.xpose.msra.mxu0 %v6514
    %6520 = vmatprep.subr.mxu0 0.0
    %6521 = vmatpush1.xpose.msra.mxu0 0.0
    %6522 = vmatprep.subr.mxu0 0.0
    %6523 = vmatpush1.xpose.msra.mxu0 0.0
    %6524 = vmatprep.subr.mxu0 0.0
    %6525 = vmatpush1.xpose.msra.mxu0 0.0
    %6526 = vmatprep.subr.mxu0 0.0
    %6527 = vmatpush1.xpose.msra.mxu0 0.0
    %6528 = vmatprep.subr.mxu0 0.0
    %6529 = vmatpush1.xpose.msra.mxu0 0.0
    %6530 = vmatprep.subr.mxu0 0.0
    %6531 = vmatpush1.xpose.msra.mxu0 0.0
    %6532 = vmatprep.subr.mxu0 0.0
    %6533 = vmatpush1.xpose.msra.mxu0 0.0
    %6534 = vmatprep.subr.mxu0 0.0
    %6535 = vmatpush1.xpose.msra.mxu0 0.0
    %6536 = vmatprep.subr.mxu0 0.0
    %6537 = vmatpush1.xpose.msra.mxu0 0.0
    %6538 = vmatprep.subr.mxu0 0.0
    %6539 = vmatpush1.xpose.msra.mxu0 0.0
    %6540 = vmatprep.subr.mxu0 0.0
    %6541 = vmatpush1.xpose.msra.mxu0 0.0
    %6542 = vmatprep.subr.mxu0 0.0
    %6543 = vmatpush1.xpose.msra.mxu0 0.0
    %6544 = vmatprep.subr.mxu0 0.0
    %6545 = vmatpush1.xpose.msra.mxu0 0.0
    %6546 = vmatprep.subr.mxu0 0.0
    %6547 = vmatpush1.xpose.msra.mxu0 0.0
    %6548 = vmatprep.subr.mxu0 0.0
    %6549 = vmatpush1.xpose.msra.mxu0 0.0
    %6550 = vmatprep.subr.mxu0 0.0
    %6551 = vmatpush1.xpose.msra.mxu0 0.0
    %6552 = vmatprep.subr.mxu0 0.0
    %6553 = vmatpush1.xpose.msra.mxu0 0.0
    %6554 = vmatprep.subr.mxu0 0.0
    %6555 = vmatpush1.xpose.msra.mxu0 0.0
    %6556 = vmatprep.subr.mxu0 0.0
    %6557 = vmatpush1.xpose.msra.mxu0 0.0
    %6558 = vmatprep.subr.mxu0 0.0
    %6559 = vmatpush1.xpose.msra.mxu0 0.0
    %6560 = vmatprep.subr.mxu0 0.0
    %6561 = vmatpush1.xpose.msra.mxu0 0.0
    %6562 = vmatprep.subr.mxu0 0.0
    %6563 = vmatpush1.xpose.msra.mxu0 0.0
    %6564 = vmatprep.subr.mxu0 0.0
    %6565 = vmatpush1.xpose.msra.mxu0 0.0
    %6566 = vmatprep.subr.mxu0 0.0
    %6567 = vmatpush1.xpose.msra.mxu0 0.0
    %6568 = vmatprep.subr.mxu0 0.0
    %6569 = vmatpush1.xpose.msra.mxu0 0.0
    %6570 = vmatprep.subr.mxu0 0.0
    %6571 = vmatpush1.xpose.msra.mxu0 0.0
    %6572 = vmatprep.subr.mxu0 0.0
    %6573 = vmatpush1.xpose.msra.mxu0 0.0
    %6574 = vmatprep.subr.mxu0 0.0
    %6575 = vmatpush1.xpose.msra.mxu0 0.0
    %6576 = vmatprep.subr.mxu0 0.0
    %6577 = vmatpush1.xpose.msra.mxu0 0.0
    %6578 = vmatprep.subr.mxu0 0.0
    %6579 = vmatpush1.xpose.msra.mxu0 0.0
    %6580 = vmatprep.mubr.f32.mxu0 0.0
    %6581 = vmatmul.mubr.f32.gmra.mrb[0].mxu0 %v6508
    %v6582 = vpop.f32.mrb[0].mxu0
    %v6583 = vadd.f32 %v567, %v6582
    %v6584 = vpop.f32.mrb[0].mxu0
    %6585 = vmatprep.mubr.f32.mxu0 0.0
    %6586 = vmatmul.mubr.f32.gmra.mrb[0].mxu0 %v6510
    %v6587 = vpop.f32.mrb[0].mxu0
    %v6588 = vadd.f32 %v568, %v6587
    %v6589 = vpop.f32.mrb[0].mxu0
    %6590 = vdwg.mxu0
    %6591 = vrot.lane.b32.xlu0 %v553, 104
    %v6592 = vpop.permute.xlu0 %6591
    %6593 = vrot.lane.b32.xlu0 %v558, 104
    %v6594 = vpop.permute.xlu0 %6593
    %6595 = vrot.lane.b32.xlu0 %v553, 72
    %v6596 = vpop.permute.xlu0 %6595
    %6597 = vrot.lane.b32.xlu0 %v558, 72
    %v6598 = vpop.permute.xlu0 %6597
    %v6599 = vsel %vm579, %v6592, 0
    %v6601 = vsel %vm579, %v6594, 0
    %v6603 = vsel %vm579, %v6596, 0
    %v6605 = vsel %vm579, %v6598, 0
    %6607 = vmatprep.subr.mxu0 0.0
    %6608 = vmatpush1.xpose.msra.mxu0 %v6603
    %6609 = vmatprep.subr.mxu0 0.0
    %6610 = vmatpush1.xpose.msra.mxu0 %v6605
    %6611 = vmatprep.subr.mxu0 0.0
    %6612 = vmatpush1.xpose.msra.mxu0 0.0
    %6613 = vmatprep.subr.mxu0 0.0
    %6614 = vmatpush1.xpose.msra.mxu0 0.0
    %6615 = vmatprep.subr.mxu0 0.0
    %6616 = vmatpush1.xpose.msra.mxu0 0.0
    %6617 = vmatprep.subr.mxu0 0.0
    %6618 = vmatpush1.xpose.msra.mxu0 0.0
    %6619 = vmatprep.subr.mxu0 0.0
    %6620 = vmatpush1.xpose.msra.mxu0 0.0
    %6621 = vmatprep.subr.mxu0 0.0
    %6622 = vmatpush1.xpose.msra.mxu0 0.0
    %6623 = vmatprep.subr.mxu0 0.0
    %6624 = vmatpush1.xpose.msra.mxu0 0.0
    %6625 = vmatprep.subr.mxu0 0.0
    %6626 = vmatpush1.xpose.msra.mxu0 0.0
    %6627 = vmatprep.subr.mxu0 0.0
    %6628 = vmatpush1.xpose.msra.mxu0 0.0
    %6629 = vmatprep.subr.mxu0 0.0
    %6630 = vmatpush1.xpose.msra.mxu0 0.0
    %6631 = vmatprep.subr.mxu0 0.0
    %6632 = vmatpush1.xpose.msra.mxu0 0.0
    %6633 = vmatprep.subr.mxu0 0.0
    %6634 = vmatpush1.xpose.msra.mxu0 0.0
    %6635 = vmatprep.subr.mxu0 0.0
    %6636 = vmatpush1.xpose.msra.mxu0 0.0
    %6637 = vmatprep.subr.mxu0 0.0
    %6638 = vmatpush1.xpose.msra.mxu0 0.0
    %6639 = vmatprep.subr.mxu0 0.0
    %6640 = vmatpush1.xpose.msra.mxu0 0.0
    %6641 = vmatprep.subr.mxu0 0.0
    %6642 = vmatpush1.xpose.msra.mxu0 0.0
    %6643 = vmatprep.subr.mxu0 0.0
    %6644 = vmatpush1.xpose.msra.mxu0 0.0
    %6645 = vmatprep.subr.mxu0 0.0
    %6646 = vmatpush1.xpose.msra.mxu0 0.0
    %6647 = vmatprep.subr.mxu0 0.0
    %6648 = vmatpush1.xpose.msra.mxu0 0.0
    %6649 = vmatprep.subr.mxu0 0.0
    %6650 = vmatpush1.xpose.msra.mxu0 0.0
    %6651 = vmatprep.subr.mxu0 0.0
    %6652 = vmatpush1.xpose.msra.mxu0 0.0
    %6653 = vmatprep.subr.mxu0 0.0
    %6654 = vmatpush1.xpose.msra.mxu0 0.0
    %6655 = vmatprep.subr.mxu0 0.0
    %6656 = vmatpush1.xpose.msra.mxu0 0.0
    %6657 = vmatprep.subr.mxu0 0.0
    %6658 = vmatpush1.xpose.msra.mxu0 0.0
    %6659 = vmatprep.subr.mxu0 0.0
    %6660 = vmatpush1.xpose.msra.mxu0 0.0
    %6661 = vmatprep.subr.mxu0 0.0
    %6662 = vmatpush1.xpose.msra.mxu0 0.0
    %6663 = vmatprep.subr.mxu0 0.0
    %6664 = vmatpush1.xpose.msra.mxu0 0.0
    %6665 = vmatprep.subr.mxu0 0.0
    %6666 = vmatpush1.xpose.msra.mxu0 0.0
    %6667 = vmatprep.subr.mxu0 0.0
    %6668 = vmatpush1.xpose.msra.mxu0 0.0
    %6669 = vmatprep.subr.mxu0 0.0
    %6670 = vmatpush1.xpose.msra.mxu0 0.0
    %6671 = vmatprep.mubr.f32.mxu0 0.0
    %6672 = vmatmul.mubr.f32.gmra.mrb[0].mxu0 %v6599
    %v6673 = vpop.f32.mrb[0].mxu0
    %v6674 = vadd.f32 %v567, %v6673
    %v6675 = vpop.f32.mrb[0].mxu0
    %6676 = vmatprep.mubr.f32.mxu0 0.0
    %6677 = vmatmul.mubr.f32.gmra.mrb[0].mxu0 %v6601
    %v6678 = vpop.f32.mrb[0].mxu0
    %v6679 = vadd.f32 %v568, %v6678
    %v6680 = vpop.f32.mrb[0].mxu0
    %6681 = vdwg.mxu0
    %v6682 = vsel %vm1286, %v6037, -inf
    %6683 = vmax.xlane.f32.xlu0 %v6682
    %v6684 = vpop.xlane.xlu0 %6683
    %v6685 = vsel %vm1286, %v6042, -inf
    %6686 = vmax.xlane.f32.xlu0 %v6685
    %v6687 = vpop.xlane.xlu0 %6686
    %v6688 = vsel %vm1286, %v6128, -inf
    %6689 = vmax.xlane.f32.xlu0 %v6688
    %v6690 = vpop.xlane.xlu0 %6689
    %v6691 = vsel %vm1286, %v6133, -inf
    %6692 = vmax.xlane.f32.xlu0 %v6691
    %v6693 = vpop.xlane.xlu0 %6692
    %v6694 = vsel %vm1286, %v6219, -inf
    %6695 = vmax.xlane.f32.xlu0 %v6694
    %v6696 = vpop.xlane.xlu0 %6695
    %v6697 = vsel %vm1286, %v6224, -inf
    %6698 = vmax.xlane.f32.xlu0 %v6697
    %v6699 = vpop.xlane.xlu0 %6698
    %v6700 = vsel %vm1286, %v6310, -inf
    %6701 = vmax.xlane.f32.xlu0 %v6700
    %v6702 = vpop.xlane.xlu0 %6701
    %v6703 = vsel %vm1286, %v6315, -inf
    %6704 = vmax.xlane.f32.xlu0 %v6703
    %v6705 = vpop.xlane.xlu0 %6704
    %v6706 = vsel %vm1286, %v6401, -inf
    %6707 = vmax.xlane.f32.xlu0 %v6706
    %v6708 = vpop.xlane.xlu0 %6707
    %v6709 = vsel %vm1286, %v6406, -inf
    %6710 = vmax.xlane.f32.xlu0 %v6709
    %v6711 = vpop.xlane.xlu0 %6710
    %v6712 = vsel %vm1286, %v6492, -inf
    %6713 = vmax.xlane.f32.xlu0 %v6712
    %v6714 = vpop.xlane.xlu0 %6713
    %v6715 = vsel %vm1286, %v6497, -inf
    %6716 = vmax.xlane.f32.xlu0 %v6715
    %v6717 = vpop.xlane.xlu0 %6716
    %v6718 = vsel %vm1286, %v6583, -inf
    %6719 = vmax.xlane.f32.xlu0 %v6718
    %v6720 = vpop.xlane.xlu0 %6719
    %v6721 = vsel %vm1286, %v6588, -inf
    %6722 = vmax.xlane.f32.xlu0 %v6721
    %v6723 = vpop.xlane.xlu0 %6722
    %v6724 = vsel %vm1286, %v6674, -inf
    %6725 = vmax.xlane.f32.xlu0 %v6724
    %v6726 = vpop.xlane.xlu0 %6725
    %v6727 = vsel %vm1286, %v6679, -inf
    %6728 = vmax.xlane.f32.xlu0 %v6727
    %v6729 = vpop.xlane.xlu0 %6728
    %v6730 = vsub.f32 %v6037, %v6684
    %v6731 = vsub.f32 %v6042, %v6687
    %v6732 = vsub.f32 %v6128, %v6690
    %v6733 = vsub.f32 %v6133, %v6693
    %v6734 = vsub.f32 %v6219, %v6696
    %v6735 = vsub.f32 %v6224, %v6699
    %v6736 = vsub.f32 %v6310, %v6702
    %v6737 = vsub.f32 %v6315, %v6705
    %v6738 = vsub.f32 %v6401, %v6708
    %v6739 = vsub.f32 %v6406, %v6711
    %v6740 = vsub.f32 %v6492, %v6714
    %v6741 = vsub.f32 %v6497, %v6717
    %v6742 = vsub.f32 %v6583, %v6720
    %v6743 = vsub.f32 %v6588, %v6723
    %v6744 = vsub.f32 %v6674, %v6726
    %v6745 = vsub.f32 %v6679, %v6729
    %v6746 = vmul.f32 %v6730, 1.442695
    %v6747 = vpow.pop %v6746
    %v6748 = vmul.f32 %v6731, 1.442695
    %v6749 = vpow.pop %v6748
    %v6750 = vmul.f32 %v6732, 1.442695
    %v6751 = vpow.pop %v6750
    %v6752 = vmul.f32 %v6733, 1.442695
    %v6753 = vpow.pop %v6752
    %v6754 = vmul.f32 %v6734, 1.442695
    %v6755 = vpow.pop %v6754
    %v6756 = vmul.f32 %v6735, 1.442695
    %v6757 = vpow.pop %v6756
    %v6758 = vmul.f32 %v6736, 1.442695
    %v6759 = vpow.pop %v6758
    %v6760 = vmul.f32 %v6737, 1.442695
    %v6761 = vpow.pop %v6760
    %v6762 = vmul.f32 %v6738, 1.442695
    %v6763 = vpow.pop %v6762
    %v6764 = vmul.f32 %v6739, 1.442695
    %v6765 = vpow.pop %v6764
    %v6766 = vmul.f32 %v6740, 1.442695
    %v6767 = vpow.pop %v6766
    %v6768 = vmul.f32 %v6741, 1.442695
    %v6769 = vpow.pop %v6768
    %v6770 = vmul.f32 %v6742, 1.442695
    %v6771 = vpow.pop %v6770
    %v6772 = vmul.f32 %v6743, 1.442695
    %v6773 = vpow.pop %v6772
    %v6774 = vmul.f32 %v6744, 1.442695
    %v6775 = vpow.pop %v6774
    %v6776 = vmul.f32 %v6745, 1.442695
    %v6777 = vpow.pop %v6776
    %v6778 = vsel %vm1286, %v6747, 0.0
    %6779 = vadd.xlane.f32.xlu0 %v6778
    %v6780 = vpop.xlane.xlu0 %6779
    %v6781 = vsel %vm1286, %v6749, 0.0
    %6782 = vadd.xlane.f32.xlu0 %v6781
    %v6783 = vpop.xlane.xlu0 %6782
    %v6784 = vsel %vm1286, %v6751, 0.0
    %6785 = vadd.xlane.f32.xlu0 %v6784
    %v6786 = vpop.xlane.xlu0 %6785
    %v6787 = vsel %vm1286, %v6753, 0.0
    %6788 = vadd.xlane.f32.xlu0 %v6787
    %v6789 = vpop.xlane.xlu0 %6788
    %v6790 = vsel %vm1286, %v6755, 0.0
    %6791 = vadd.xlane.f32.xlu0 %v6790
    %v6792 = vpop.xlane.xlu0 %6791
    %v6793 = vsel %vm1286, %v6757, 0.0
    %6794 = vadd.xlane.f32.xlu0 %v6793
    %v6795 = vpop.xlane.xlu0 %6794
    %v6796 = vsel %vm1286, %v6759, 0.0
    %6797 = vadd.xlane.f32.xlu0 %v6796
    %v6798 = vpop.xlane.xlu0 %6797
    %v6799 = vsel %vm1286, %v6761, 0.0
    %6800 = vadd.xlane.f32.xlu0 %v6799
    %v6801 = vpop.xlane.xlu0 %6800
    %v6802 = vsel %vm1286, %v6763, 0.0
    %6803 = vadd.xlane.f32.xlu0 %v6802
    %v6804 = vpop.xlane.xlu0 %6803
    %v6805 = vsel %vm1286, %v6765, 0.0
    %6806 = vadd.xlane.f32.xlu0 %v6805
    %v6807 = vpop.xlane.xlu0 %6806
    %v6808 = vsel %vm1286, %v6767, 0.0
    %6809 = vadd.xlane.f32.xlu0 %v6808
    %v6810 = vpop.xlane.xlu0 %6809
    %v6811 = vsel %vm1286, %v6769, 0.0
    %6812 = vadd.xlane.f32.xlu0 %v6811
    %v6813 = vpop.xlane.xlu0 %6812
    %v6814 = vsel %vm1286, %v6771, 0.0
    %6815 = vadd.xlane.f32.xlu0 %v6814
    %v6816 = vpop.xlane.xlu0 %6815
    %v6817 = vsel %vm1286, %v6773, 0.0
    %6818 = vadd.xlane.f32.xlu0 %v6817
    %v6819 = vpop.xlane.xlu0 %6818
    %v6820 = vsel %vm1286, %v6775, 0.0
    %6821 = vadd.xlane.f32.xlu0 %v6820
    %v6822 = vpop.xlane.xlu0 %6821
    %v6823 = vsel %vm1286, %v6777, 0.0
    %6824 = vadd.xlane.f32.xlu0 %v6823
    %v6825 = vpop.xlane.xlu0 %6824
    %v6826 = vrcp.pop %v6780
    %v6827 = vmul.f32 %v6747, %v6826
    %v6828 = vrcp.pop %v6783
    %v6829 = vmul.f32 %v6749, %v6828
    %v6830 = vrcp.pop %v6786
    %v6831 = vmul.f32 %v6751, %v6830
    %v6832 = vrcp.pop %v6789
    %v6833 = vmul.f32 %v6753, %v6832
    %v6834 = vrcp.pop %v6792
    %v6835 = vmul.f32 %v6755, %v6834
    %v6836 = vrcp.pop %v6795
    %v6837 = vmul.f32 %v6757, %v6836
    %v6838 = vrcp.pop %v6798
    %v6839 = vmul.f32 %v6759, %v6838
    %v6840 = vrcp.pop %v6801
    %v6841 = vmul.f32 %v6761, %v6840
    %v6842 = vrcp.pop %v6804
    %v6843 = vmul.f32 %v6763, %v6842
    %v6844 = vrcp.pop %v6807
    %v6845 = vmul.f32 %v6765, %v6844
    %v6846 = vrcp.pop %v6810
    %v6847 = vmul.f32 %v6767, %v6846
    %v6848 = vrcp.pop %v6813
    %v6849 = vmul.f32 %v6769, %v6848
    %v6850 = vrcp.pop %v6816
    %v6851 = vmul.f32 %v6771, %v6850
    %v6852 = vrcp.pop %v6819
    %v6853 = vmul.f32 %v6773, %v6852
    %v6854 = vrcp.pop %v6822
    %v6855 = vmul.f32 %v6775, %v6854
    %v6856 = vrcp.pop %v6825
    %v6857 = vmul.f32 %v6777, %v6856
    %6858 = vrot.lane.b32.xlu0 %v483, 40
    %v6859 = vpop.permute.xlu0 %6858
    %6860 = vrot.lane.b32.xlu0 %v488, 40
    %v6861 = vpop.permute.xlu0 %6860
    %v6865 = vsel %vm1286, %v6827, 0
    %v6868 = vsel %vm1286, %v6829, 0
    %6870 = vmatprep.subr.mxu0 0.0
    %6871 = vmatpush1.msra.mxu0 %v6859
    %6872 = vmatprep.subr.mxu0 0.0
    %6873 = vmatpush1.msra.mxu0 %v6861
    %6874 = vmatprep.subr.mxu0 0.0
    %6875 = vmatpush1.msra.mxu0 0.0
    %6876 = vmatprep.subr.mxu0 0.0
    %6877 = vmatpush1.msra.mxu0 0.0
    %6878 = vmatprep.subr.mxu0 0.0
    %6879 = vmatpush1.msra.mxu0 0.0
    %6880 = vmatprep.subr.mxu0 0.0
    %6881 = vmatpush1.msra.mxu0 0.0
    %6882 = vmatprep.subr.mxu0 0.0
    %6883 = vmatpush1.msra.mxu0 0.0
    %6884 = vmatprep.subr.mxu0 0.0
    %6885 = vmatpush1.msra.mxu0 0.0
    %6886 = vmatprep.subr.mxu0 0.0
    %6887 = vmatpush1.msra.mxu0 0.0
    %6888 = vmatprep.subr.mxu0 0.0
    %6889 = vmatpush1.msra.mxu0 0.0
    %6890 = vmatprep.subr.mxu0 0.0
    %6891 = vmatpush1.msra.mxu0 0.0
    %6892 = vmatprep.subr.mxu0 0.0
    %6893 = vmatpush1.msra.mxu0 0.0
    %6894 = vmatprep.subr.mxu0 0.0
    %6895 = vmatpush1.msra.mxu0 0.0
    %6896 = vmatprep.subr.mxu0 0.0
    %6897 = vmatpush1.msra.mxu0 0.0
    %6898 = vmatprep.subr.mxu0 0.0
    %6899 = vmatpush1.msra.mxu0 0.0
    %6900 = vmatprep.subr.mxu0 0.0
    %6901 = vmatpush1.msra.mxu0 0.0
    %6902 = vmatprep.subr.mxu0 0.0
    %6903 = vmatpush1.msra.mxu0 0.0
    %6904 = vmatprep.subr.mxu0 0.0
    %6905 = vmatpush1.msra.mxu0 0.0
    %6906 = vmatprep.subr.mxu0 0.0
    %6907 = vmatpush1.msra.mxu0 0.0
    %6908 = vmatprep.subr.mxu0 0.0
    %6909 = vmatpush1.msra.mxu0 0.0
    %6910 = vmatprep.subr.mxu0 0.0
    %6911 = vmatpush1.msra.mxu0 0.0
    %6912 = vmatprep.subr.mxu0 0.0
    %6913 = vmatpush1.msra.mxu0 0.0
    %6914 = vmatprep.subr.mxu0 0.0
    %6915 = vmatpush1.msra.mxu0 0.0
    %6916 = vmatprep.subr.mxu0 0.0
    %6917 = vmatpush1.msra.mxu0 0.0
    %6918 = vmatprep.subr.mxu0 0.0
    %6919 = vmatpush1.msra.mxu0 0.0
    %6920 = vmatprep.subr.mxu0 0.0
    %6921 = vmatpush1.msra.mxu0 0.0
    %6922 = vmatprep.subr.mxu0 0.0
    %6923 = vmatpush1.msra.mxu0 0.0
    %6924 = vmatprep.subr.mxu0 0.0
    %6925 = vmatpush1.msra.mxu0 0.0
    %6926 = vmatprep.subr.mxu0 0.0
    %6927 = vmatpush1.msra.mxu0 0.0
    %6928 = vmatprep.subr.mxu0 0.0
    %6929 = vmatpush1.msra.mxu0 0.0
    %6930 = vmatprep.subr.mxu0 0.0
    %6931 = vmatpush1.msra.mxu0 0.0
    %6932 = vmatprep.subr.mxu0 0.0
    %6933 = vmatpush1.msra.mxu0 0.0
    %6934 = vmatprep.mubr.f32.mxu0 0.0
    %6935 = vmatmul.mubr.f32.gmra.mrb[0].mxu0 %v6865
    %v6936 = vpop.f32.mrb[0].mxu0
    %v6937 = vadd.f32 0.0, %v6936
    %v6938 = vpop.f32.mrb[0].mxu0
    %6939 = vmatprep.mubr.f32.mxu0 0.0
    %6940 = vmatmul.mubr.f32.gmra.mrb[0].mxu0 %v6868
    %v6941 = vpop.f32.mrb[0].mxu0
    %v6942 = vadd.f32 0.0, %v6941
    %v6943 = vpop.f32.mrb[0].mxu0
    %6944 = vdwg.mxu0
    %6945 = vrot.lane.b32.xlu0 %v493, 40
    %v6946 = vpop.permute.xlu0 %6945
    %6947 = vrot.lane.b32.xlu0 %v498, 40
    %v6948 = vpop.permute.xlu0 %6947
    %v6952 = vsel %vm1286, %v6831, 0
    %v6955 = vsel %vm1286, %v6833, 0
    %6957 = vmatprep.subr.mxu0 0.0
    %6958 = vmatpush1.msra.mxu0 %v6946
    %6959 = vmatprep.subr.mxu0 0.0
    %6960 = vmatpush1.msra.mxu0 %v6948
    %6961 = vmatprep.subr.mxu0 0.0
    %6962 = vmatpush1.msra.mxu0 0.0
    %6963 = vmatprep.subr.mxu0 0.0
    %6964 = vmatpush1.msra.mxu0 0.0
    %6965 = vmatprep.subr.mxu0 0.0
    %6966 = vmatpush1.msra.mxu0 0.0
    %6967 = vmatprep.subr.mxu0 0.0
    %6968 = vmatpush1.msra.mxu0 0.0
    %6969 = vmatprep.subr.mxu0 0.0
    %6970 = vmatpush1.msra.mxu0 0.0
    %6971 = vmatprep.subr.mxu0 0.0
    %6972 = vmatpush1.msra.mxu0 0.0
    %6973 = vmatprep.subr.mxu0 0.0
    %6974 = vmatpush1.msra.mxu0 0.0
    %6975 = vmatprep.subr.mxu0 0.0
    %6976 = vmatpush1.msra.mxu0 0.0
    %6977 = vmatprep.subr.mxu0 0.0
    %6978 = vmatpush1.msra.mxu0 0.0
    %6979 = vmatprep.subr.mxu0 0.0
    %6980 = vmatpush1.msra.mxu0 0.0
    %6981 = vmatprep.subr.mxu0 0.0
    %6982 = vmatpush1.msra.mxu0 0.0
    %6983 = vmatprep.subr.mxu0 0.0
    %6984 = vmatpush1.msra.mxu0 0.0
    %6985 = vmatprep.subr.mxu0 0.0
    %6986 = vmatpush1.msra.mxu0 0.0
    %6987 = vmatprep.subr.mxu0 0.0
    %6988 = vmatpush1.msra.mxu0 0.0
    %6989 = vmatprep.subr.mxu0 0.0
    %6990 = vmatpush1.msra.mxu0 0.0
    %6991 = vmatprep.subr.mxu0 0.0
    %6992 = vmatpush1.msra.mxu0 0.0
    %6993 = vmatprep.subr.mxu0 0.0
    %6994 = vmatpush1.msra.mxu0 0.0
    %6995 = vmatprep.subr.mxu0 0.0
    %6996 = vmatpush1.msra.mxu0 0.0
    %6997 = vmatprep.subr.mxu0 0.0
    %6998 = vmatpush1.msra.mxu0 0.0
    %6999 = vmatprep.subr.mxu0 0.0
    %7000 = vmatpush1.msra.mxu0 0.0
    %7001 = vmatprep.subr.mxu0 0.0
    %7002 = vmatpush1.msra.mxu0 0.0
    %7003 = vmatprep.subr.mxu0 0.0
    %7004 = vmatpush1.msra.mxu0 0.0
    %7005 = vmatprep.subr.mxu0 0.0
    %7006 = vmatpush1.msra.mxu0 0.0
    %7007 = vmatprep.subr.mxu0 0.0
    %7008 = vmatpush1.msra.mxu0 0.0
    %7009 = vmatprep.subr.mxu0 0.0
    %7010 = vmatpush1.msra.mxu0 0.0
    %7011 = vmatprep.subr.mxu0 0.0
    %7012 = vmatpush1.msra.mxu0 0.0
    %7013 = vmatprep.subr.mxu0 0.0
    %7014 = vmatpush1.msra.mxu0 0.0
    %7015 = vmatprep.subr.mxu0 0.0
    %7016 = vmatpush1.msra.mxu0 0.0
    %7017 = vmatprep.subr.mxu0 0.0
    %7018 = vmatpush1.msra.mxu0 0.0
    %7019 = vmatprep.subr.mxu0 0.0
    %7020 = vmatpush1.msra.mxu0 0.0
    %7021 = vmatprep.mubr.f32.mxu0 0.0
    %7022 = vmatmul.mubr.f32.gmra.mrb[0].mxu0 %v6952
    %v7023 = vpop.f32.mrb[0].mxu0
    %v7024 = vadd.f32 0.0, %v7023
    %v7025 = vpop.f32.mrb[0].mxu0
    %7026 = vmatprep.mubr.f32.mxu0 0.0
    %7027 = vmatmul.mubr.f32.gmra.mrb[0].mxu0 %v6955
    %v7028 = vpop.f32.mrb[0].mxu0
    %v7029 = vadd.f32 0.0, %v7028
    %v7030 = vpop.f32.mrb[0].mxu0
    %7031 = vdwg.mxu0
    %7032 = vrot.lane.b32.xlu0 %v503, 40
    %v7033 = vpop.permute.xlu0 %7032
    %7034 = vrot.lane.b32.xlu0 %v508, 40
    %v7035 = vpop.permute.xlu0 %7034
    %v7039 = vsel %vm1286, %v6835, 0
    %v7042 = vsel %vm1286, %v6837, 0
    %7044 = vmatprep.subr.mxu0 0.0
    %7045 = vmatpush1.msra.mxu0 %v7033
    %7046 = vmatprep.subr.mxu0 0.0
    %7047 = vmatpush1.msra.mxu0 %v7035
    %7048 = vmatprep.subr.mxu0 0.0
    %7049 = vmatpush1.msra.mxu0 0.0
    %7050 = vmatprep.subr.mxu0 0.0
    %7051 = vmatpush1.msra.mxu0 0.0
    %7052 = vmatprep.subr.mxu0 0.0
    %7053 = vmatpush1.msra.mxu0 0.0
    %7054 = vmatprep.subr.mxu0 0.0
    %7055 = vmatpush1.msra.mxu0 0.0
    %7056 = vmatprep.subr.mxu0 0.0
    %7057 = vmatpush1.msra.mxu0 0.0
    %7058 = vmatprep.subr.mxu0 0.0
    %7059 = vmatpush1.msra.mxu0 0.0
    %7060 = vmatprep.subr.mxu0 0.0
    %7061 = vmatpush1.msra.mxu0 0.0
    %7062 = vmatprep.subr.mxu0 0.0
    %7063 = vmatpush1.msra.mxu0 0.0
    %7064 = vmatprep.subr.mxu0 0.0
    %7065 = vmatpush1.msra.mxu0 0.0
    %7066 = vmatprep.subr.mxu0 0.0
    %7067 = vmatpush1.msra.mxu0 0.0
    %7068 = vmatprep.subr.mxu0 0.0
    %7069 = vmatpush1.msra.mxu0 0.0
    %7070 = vmatprep.subr.mxu0 0.0
    %7071 = vmatpush1.msra.mxu0 0.0
    %7072 = vmatprep.subr.mxu0 0.0
    %7073 = vmatpush1.msra.mxu0 0.0
    %7074 = vmatprep.subr.mxu0 0.0
    %7075 = vmatpush1.msra.mxu0 0.0
    %7076 = vmatprep.subr.mxu0 0.0
    %7077 = vmatpush1.msra.mxu0 0.0
    %7078 = vmatprep.subr.mxu0 0.0
    %7079 = vmatpush1.msra.mxu0 0.0
    %7080 = vmatprep.subr.mxu0 0.0
    %7081 = vmatpush1.msra.mxu0 0.0
    %7082 = vmatprep.subr.mxu0 0.0
    %7083 = vmatpush1.msra.mxu0 0.0
    %7084 = vmatprep.subr.mxu0 0.0
    %7085 = vmatpush1.msra.mxu0 0.0
    %7086 = vmatprep.subr.mxu0 0.0
    %7087 = vmatpush1.msra.mxu0 0.0
    %7088 = vmatprep.subr.mxu0 0.0
    %7089 = vmatpush1.msra.mxu0 0.0
    %7090 = vmatprep.subr.mxu0 0.0
    %7091 = vmatpush1.msra.mxu0 0.0
    %7092 = vmatprep.subr.mxu0 0.0
    %7093 = vmatpush1.msra.mxu0 0.0
    %7094 = vmatprep.subr.mxu0 0.0
    %7095 = vmatpush1.msra.mxu0 0.0
    %7096 = vmatprep.subr.mxu0 0.0
    %7097 = vmatpush1.msra.mxu0 0.0
    %7098 = vmatprep.subr.mxu0 0.0
    %7099 = vmatpush1.msra.mxu0 0.0
    %7100 = vmatprep.subr.mxu0 0.0
    %7101 = vmatpush1.msra.mxu0 0.0
    %7102 = vmatprep.subr.mxu0 0.0
    %7103 = vmatpush1.msra.mxu0 0.0
    %7104 = vmatprep.subr.mxu0 0.0
    %7105 = vmatpush1.msra.mxu0 0.0
    %7106 = vmatprep.subr.mxu0 0.0
    %7107 = vmatpush1.msra.mxu0 0.0
    %7108 = vmatprep.mubr.f32.mxu0 0.0
    %7109 = vmatmul.mubr.f32.gmra.mrb[0].mxu0 %v7039
    %v7110 = vpop.f32.mrb[0].mxu0
    %v7111 = vadd.f32 0.0, %v7110
    %v7112 = vpop.f32.mrb[0].mxu0
    %7113 = vmatprep.mubr.f32.mxu0 0.0
    %7114 = vmatmul.mubr.f32.gmra.mrb[0].mxu0 %v7042
    %v7115 = vpop.f32.mrb[0].mxu0
    %v7116 = vadd.f32 0.0, %v7115
    %v7117 = vpop.f32.mrb[0].mxu0
    %7118 = vdwg.mxu0
    %7119 = vrot.lane.b32.xlu0 %v513, 40
    %v7120 = vpop.permute.xlu0 %7119
    %7121 = vrot.lane.b32.xlu0 %v518, 40
    %v7122 = vpop.permute.xlu0 %7121
    %v7126 = vsel %vm1286, %v6839, 0
    %v7129 = vsel %vm1286, %v6841, 0
    %7131 = vmatprep.subr.mxu0 0.0
    %7132 = vmatpush1.msra.mxu0 %v7120
    %7133 = vmatprep.subr.mxu0 0.0
    %7134 = vmatpush1.msra.mxu0 %v7122
    %7135 = vmatprep.subr.mxu0 0.0
    %7136 = vmatpush1.msra.mxu0 0.0
    %7137 = vmatprep.subr.mxu0 0.0
    %7138 = vmatpush1.msra.mxu0 0.0
    %7139 = vmatprep.subr.mxu0 0.0
    %7140 = vmatpush1.msra.mxu0 0.0
    %7141 = vmatprep.subr.mxu0 0.0
    %7142 = vmatpush1.msra.mxu0 0.0
    %7143 = vmatprep.subr.mxu0 0.0
    %7144 = vmatpush1.msra.mxu0 0.0
    %7145 = vmatprep.subr.mxu0 0.0
    %7146 = vmatpush1.msra.mxu0 0.0
    %7147 = vmatprep.subr.mxu0 0.0
    %7148 = vmatpush1.msra.mxu0 0.0
    %7149 = vmatprep.subr.mxu0 0.0
    %7150 = vmatpush1.msra.mxu0 0.0
    %7151 = vmatprep.subr.mxu0 0.0
    %7152 = vmatpush1.msra.mxu0 0.0
    %7153 = vmatprep.subr.mxu0 0.0
    %7154 = vmatpush1.msra.mxu0 0.0
    %7155 = vmatprep.subr.mxu0 0.0
    %7156 = vmatpush1.msra.mxu0 0.0
    %7157 = vmatprep.subr.mxu0 0.0
    %7158 = vmatpush1.msra.mxu0 0.0
    %7159 = vmatprep.subr.mxu0 0.0
    %7160 = vmatpush1.msra.mxu0 0.0
    %7161 = vmatprep.subr.mxu0 0.0
    %7162 = vmatpush1.msra.mxu0 0.0
    %7163 = vmatprep.subr.mxu0 0.0
    %7164 = vmatpush1.msra.mxu0 0.0
    %7165 = vmatprep.subr.mxu0 0.0
    %7166 = vmatpush1.msra.mxu0 0.0
    %7167 = vmatprep.subr.mxu0 0.0
    %7168 = vmatpush1.msra.mxu0 0.0
    %7169 = vmatprep.subr.mxu0 0.0
    %7170 = vmatpush1.msra.mxu0 0.0
    %7171 = vmatprep.subr.mxu0 0.0
    %7172 = vmatpush1.msra.mxu0 0.0
    %7173 = vmatprep.subr.mxu0 0.0
    %7174 = vmatpush1.msra.mxu0 0.0
    %7175 = vmatprep.subr.mxu0 0.0
    %7176 = vmatpush1.msra.mxu0 0.0
    %7177 = vmatprep.subr.mxu0 0.0
    %7178 = vmatpush1.msra.mxu0 0.0
    %7179 = vmatprep.subr.mxu0 0.0
    %7180 = vmatpush1.msra.mxu0 0.0
    %7181 = vmatprep.subr.mxu0 0.0
    %7182 = vmatpush1.msra.mxu0 0.0
    %7183 = vmatprep.subr.mxu0 0.0
    %7184 = vmatpush1.msra.mxu0 0.0
    %7185 = vmatprep.subr.mxu0 0.0
    %7186 = vmatpush1.msra.mxu0 0.0
    %7187 = vmatprep.subr.mxu0 0.0
    %7188 = vmatpush1.msra.mxu0 0.0
    %7189 = vmatprep.subr.mxu0 0.0
    %7190 = vmatpush1.msra.mxu0 0.0
    %7191 = vmatprep.subr.mxu0 0.0
    %7192 = vmatpush1.msra.mxu0 0.0
    %7193 = vmatprep.subr.mxu0 0.0
    %7194 = vmatpush1.msra.mxu0 0.0
    %7195 = vmatprep.mubr.f32.mxu0 0.0
    %7196 = vmatmul.mubr.f32.gmra.mrb[0].mxu0 %v7126
    %v7197 = vpop.f32.mrb[0].mxu0
    %v7198 = vadd.f32 0.0, %v7197
    %v7199 = vpop.f32.mrb[0].mxu0
    %7200 = vmatprep.mubr.f32.mxu0 0.0
    %7201 = vmatmul.mubr.f32.gmra.mrb[0].mxu0 %v7129
    %v7202 = vpop.f32.mrb[0].mxu0
    %v7203 = vadd.f32 0.0, %v7202
    %v7204 = vpop.f32.mrb[0].mxu0
    %7205 = vdwg.mxu0
    %7206 = vrot.lane.b32.xlu0 %v523, 40
    %v7207 = vpop.permute.xlu0 %7206
    %7208 = vrot.lane.b32.xlu0 %v528, 40
    %v7209 = vpop.permute.xlu0 %7208
    %v7213 = vsel %vm1286, %v6843, 0
    %v7216 = vsel %vm1286, %v6845, 0
    %7218 = vmatprep.subr.mxu0 0.0
    %7219 = vmatpush1.msra.mxu0 %v7207
    %7220 = vmatprep.subr.mxu0 0.0
    %7221 = vmatpush1.msra.mxu0 %v7209
    %7222 = vmatprep.subr.mxu0 0.0
    %7223 = vmatpush1.msra.mxu0 0.0
    %7224 = vmatprep.subr.mxu0 0.0
    %7225 = vmatpush1.msra.mxu0 0.0
    %7226 = vmatprep.subr.mxu0 0.0
    %7227 = vmatpush1.msra.mxu0 0.0
    %7228 = vmatprep.subr.mxu0 0.0
    %7229 = vmatpush1.msra.mxu0 0.0
    %7230 = vmatprep.subr.mxu0 0.0
    %7231 = vmatpush1.msra.mxu0 0.0
    %7232 = vmatprep.subr.mxu0 0.0
    %7233 = vmatpush1.msra.mxu0 0.0
    %7234 = vmatprep.subr.mxu0 0.0
    %7235 = vmatpush1.msra.mxu0 0.0
    %7236 = vmatprep.subr.mxu0 0.0
    %7237 = vmatpush1.msra.mxu0 0.0
    %7238 = vmatprep.subr.mxu0 0.0
    %7239 = vmatpush1.msra.mxu0 0.0
    %7240 = vmatprep.subr.mxu0 0.0
    %7241 = vmatpush1.msra.mxu0 0.0
    %7242 = vmatprep.subr.mxu0 0.0
    %7243 = vmatpush1.msra.mxu0 0.0
    %7244 = vmatprep.subr.mxu0 0.0
    %7245 = vmatpush1.msra.mxu0 0.0
    %7246 = vmatprep.subr.mxu0 0.0
    %7247 = vmatpush1.msra.mxu0 0.0
    %7248 = vmatprep.subr.mxu0 0.0
    %7249 = vmatpush1.msra.mxu0 0.0
    %7250 = vmatprep.subr.mxu0 0.0
    %7251 = vmatpush1.msra.mxu0 0.0
    %7252 = vmatprep.subr.mxu0 0.0
    %7253 = vmatpush1.msra.mxu0 0.0
    %7254 = vmatprep.subr.mxu0 0.0
    %7255 = vmatpush1.msra.mxu0 0.0
    %7256 = vmatprep.subr.mxu0 0.0
    %7257 = vmatpush1.msra.mxu0 0.0
    %7258 = vmatprep.subr.mxu0 0.0
    %7259 = vmatpush1.msra.mxu0 0.0
    %7260 = vmatprep.subr.mxu0 0.0
    %7261 = vmatpush1.msra.mxu0 0.0
    %7262 = vmatprep.subr.mxu0 0.0
    %7263 = vmatpush1.msra.mxu0 0.0
    %7264 = vmatprep.subr.mxu0 0.0
    %7265 = vmatpush1.msra.mxu0 0.0
    %7266 = vmatprep.subr.mxu0 0.0
    %7267 = vmatpush1.msra.mxu0 0.0
    %7268 = vmatprep.subr.mxu0 0.0
    %7269 = vmatpush1.msra.mxu0 0.0
    %7270 = vmatprep.subr.mxu0 0.0
    %7271 = vmatpush1.msra.mxu0 0.0
    %7272 = vmatprep.subr.mxu0 0.0
    %7273 = vmatpush1.msra.mxu0 0.0
    %7274 = vmatprep.subr.mxu0 0.0
    %7275 = vmatpush1.msra.mxu0 0.0
    %7276 = vmatprep.subr.mxu0 0.0
    %7277 = vmatpush1.msra.mxu0 0.0
    %7278 = vmatprep.subr.mxu0 0.0
    %7279 = vmatpush1.msra.mxu0 0.0
    %7280 = vmatprep.subr.mxu0 0.0
    %7281 = vmatpush1.msra.mxu0 0.0
    %7282 = vmatprep.mubr.f32.mxu0 0.0
    %7283 = vmatmul.mubr.f32.gmra.mrb[0].mxu0 %v7213
    %v7284 = vpop.f32.mrb[0].mxu0
    %v7285 = vadd.f32 0.0, %v7284
    %v7286 = vpop.f32.mrb[0].mxu0
    %7287 = vmatprep.mubr.f32.mxu0 0.0
    %7288 = vmatmul.mubr.f32.gmra.mrb[0].mxu0 %v7216
    %v7289 = vpop.f32.mrb[0].mxu0
    %v7290 = vadd.f32 0.0, %v7289
    %v7291 = vpop.f32.mrb[0].mxu0
    %7292 = vdwg.mxu0
    %7293 = vrot.lane.b32.xlu0 %v533, 40
    %v7294 = vpop.permute.xlu0 %7293
    %7295 = vrot.lane.b32.xlu0 %v538, 40
    %v7296 = vpop.permute.xlu0 %7295
    %v7300 = vsel %vm1286, %v6847, 0
    %v7303 = vsel %vm1286, %v6849, 0
    %7305 = vmatprep.subr.mxu0 0.0
    %7306 = vmatpush1.msra.mxu0 %v7294
    %7307 = vmatprep.subr.mxu0 0.0
    %7308 = vmatpush1.msra.mxu0 %v7296
    %7309 = vmatprep.subr.mxu0 0.0
    %7310 = vmatpush1.msra.mxu0 0.0
    %7311 = vmatprep.subr.mxu0 0.0
    %7312 = vmatpush1.msra.mxu0 0.0
    %7313 = vmatprep.subr.mxu0 0.0
    %7314 = vmatpush1.msra.mxu0 0.0
    %7315 = vmatprep.subr.mxu0 0.0
    %7316 = vmatpush1.msra.mxu0 0.0
    %7317 = vmatprep.subr.mxu0 0.0
    %7318 = vmatpush1.msra.mxu0 0.0
    %7319 = vmatprep.subr.mxu0 0.0
    %7320 = vmatpush1.msra.mxu0 0.0
    %7321 = vmatprep.subr.mxu0 0.0
    %7322 = vmatpush1.msra.mxu0 0.0
    %7323 = vmatprep.subr.mxu0 0.0
    %7324 = vmatpush1.msra.mxu0 0.0
    %7325 = vmatprep.subr.mxu0 0.0
    %7326 = vmatpush1.msra.mxu0 0.0
    %7327 = vmatprep.subr.mxu0 0.0
    %7328 = vmatpush1.msra.mxu0 0.0
    %7329 = vmatprep.subr.mxu0 0.0
    %7330 = vmatpush1.msra.mxu0 0.0
    %7331 = vmatprep.subr.mxu0 0.0
    %7332 = vmatpush1.msra.mxu0 0.0
    %7333 = vmatprep.subr.mxu0 0.0
    %7334 = vmatpush1.msra.mxu0 0.0
    %7335 = vmatprep.subr.mxu0 0.0
    %7336 = vmatpush1.msra.mxu0 0.0
    %7337 = vmatprep.subr.mxu0 0.0
    %7338 = vmatpush1.msra.mxu0 0.0
    %7339 = vmatprep.subr.mxu0 0.0
    %7340 = vmatpush1.msra.mxu0 0.0
    %7341 = vmatprep.subr.mxu0 0.0
    %7342 = vmatpush1.msra.mxu0 0.0
    %7343 = vmatprep.subr.mxu0 0.0
    %7344 = vmatpush1.msra.mxu0 0.0
    %7345 = vmatprep.subr.mxu0 0.0
    %7346 = vmatpush1.msra.mxu0 0.0
    %7347 = vmatprep.subr.mxu0 0.0
    %7348 = vmatpush1.msra.mxu0 0.0
    %7349 = vmatprep.subr.mxu0 0.0
    %7350 = vmatpush1.msra.mxu0 0.0
    %7351 = vmatprep.subr.mxu0 0.0
    %7352 = vmatpush1.msra.mxu0 0.0
    %7353 = vmatprep.subr.mxu0 0.0
    %7354 = vmatpush1.msra.mxu0 0.0
    %7355 = vmatprep.subr.mxu0 0.0
    %7356 = vmatpush1.msra.mxu0 0.0
    %7357 = vmatprep.subr.mxu0 0.0
    %7358 = vmatpush1.msra.mxu0 0.0
    %7359 = vmatprep.subr.mxu0 0.0
    %7360 = vmatpush1.msra.mxu0 0.0
    %7361 = vmatprep.subr.mxu0 0.0
    %7362 = vmatpush1.msra.mxu0 0.0
    %7363 = vmatprep.subr.mxu0 0.0
    %7364 = vmatpush1.msra.mxu0 0.0
    %7365 = vmatprep.subr.mxu0 0.0
    %7366 = vmatpush1.msra.mxu0 0.0
    %7367 = vmatprep.subr.mxu0 0.0
    %7368 = vmatpush1.msra.mxu0 0.0
    %7369 = vmatprep.mubr.f32.mxu0 0.0
    %7370 = vmatmul.mubr.f32.gmra.mrb[0].mxu0 %v7300
    %v7371 = vpop.f32.mrb[0].mxu0
    %v7372 = vadd.f32 0.0, %v7371
    %v7373 = vpop.f32.mrb[0].mxu0
    %7374 = vmatprep.mubr.f32.mxu0 0.0
    %7375 = vmatmul.mubr.f32.gmra.mrb[0].mxu0 %v7303
    %v7376 = vpop.f32.mrb[0].mxu0
    %v7377 = vadd.f32 0.0, %v7376
    %v7378 = vpop.f32.mrb[0].mxu0
    %7379 = vdwg.mxu0
    %7380 = vrot.lane.b32.xlu0 %v543, 40
    %v7381 = vpop.permute.xlu0 %7380
    %7382 = vrot.lane.b32.xlu0 %v548, 40
    %v7383 = vpop.permute.xlu0 %7382
    %v7387 = vsel %vm1286, %v6851, 0
    %v7390 = vsel %vm1286, %v6853, 0
    %7392 = vmatprep.subr.mxu0 0.0
    %7393 = vmatpush1.msra.mxu0 %v7381
    %7394 = vmatprep.subr.mxu0 0.0
    %7395 = vmatpush1.msra.mxu0 %v7383
    %7396 = vmatprep.subr.mxu0 0.0
    %7397 = vmatpush1.msra.mxu0 0.0
    %7398 = vmatprep.subr.mxu0 0.0
    %7399 = vmatpush1.msra.mxu0 0.0
    %7400 = vmatprep.subr.mxu0 0.0
    %7401 = vmatpush1.msra.mxu0 0.0
    %7402 = vmatprep.subr.mxu0 0.0
    %7403 = vmatpush1.msra.mxu0 0.0
    %7404 = vmatprep.subr.mxu0 0.0
    %7405 = vmatpush1.msra.mxu0 0.0
    %7406 = vmatprep.subr.mxu0 0.0
    %7407 = vmatpush1.msra.mxu0 0.0
    %7408 = vmatprep.subr.mxu0 0.0
    %7409 = vmatpush1.msra.mxu0 0.0
    %7410 = vmatprep.subr.mxu0 0.0
    %7411 = vmatpush1.msra.mxu0 0.0
    %7412 = vmatprep.subr.mxu0 0.0
    %7413 = vmatpush1.msra.mxu0 0.0
    %7414 = vmatprep.subr.mxu0 0.0
    %7415 = vmatpush1.msra.mxu0 0.0
    %7416 = vmatprep.subr.mxu0 0.0
    %7417 = vmatpush1.msra.mxu0 0.0
    %7418 = vmatprep.subr.mxu0 0.0
    %7419 = vmatpush1.msra.mxu0 0.0
    %7420 = vmatprep.subr.mxu0 0.0
    %7421 = vmatpush1.msra.mxu0 0.0
    %7422 = vmatprep.subr.mxu0 0.0
    %7423 = vmatpush1.msra.mxu0 0.0
    %7424 = vmatprep.subr.mxu0 0.0
    %7425 = vmatpush1.msra.mxu0 0.0
    %7426 = vmatprep.subr.mxu0 0.0
    %7427 = vmatpush1.msra.mxu0 0.0
    %7428 = vmatprep.subr.mxu0 0.0
    %7429 = vmatpush1.msra.mxu0 0.0
    %7430 = vmatprep.subr.mxu0 0.0
    %7431 = vmatpush1.msra.mxu0 0.0
    %7432 = vmatprep.subr.mxu0 0.0
    %7433 = vmatpush1.msra.mxu0 0.0
    %7434 = vmatprep.subr.mxu0 0.0
    %7435 = vmatpush1.msra.mxu0 0.0
    %7436 = vmatprep.subr.mxu0 0.0
    %7437 = vmatpush1.msra.mxu0 0.0
    %7438 = vmatprep.subr.mxu0 0.0
    %7439 = vmatpush1.msra.mxu0 0.0
    %7440 = vmatprep.subr.mxu0 0.0
    %7441 = vmatpush1.msra.mxu0 0.0
    %7442 = vmatprep.subr.mxu0 0.0
    %7443 = vmatpush1.msra.mxu0 0.0
    %7444 = vmatprep.subr.mxu0 0.0
    %7445 = vmatpush1.msra.mxu0 0.0
    %7446 = vmatprep.subr.mxu0 0.0
    %7447 = vmatpush1.msra.mxu0 0.0
    %7448 = vmatprep.subr.mxu0 0.0
    %7449 = vmatpush1.msra.mxu0 0.0
    %7450 = vmatprep.subr.mxu0 0.0
    %7451 = vmatpush1.msra.mxu0 0.0
    %7452 = vmatprep.subr.mxu0 0.0
    %7453 = vmatpush1.msra.mxu0 0.0
    %7454 = vmatprep.subr.mxu0 0.0
    %7455 = vmatpush1.msra.mxu0 0.0
    %7456 = vmatprep.mubr.f32.mxu0 0.0
    %7457 = vmatmul.mubr.f32.gmra.mrb[0].mxu0 %v7387
    %v7458 = vpop.f32.mrb[0].mxu0
    %v7459 = vadd.f32 0.0, %v7458
    %v7460 = vpop.f32.mrb[0].mxu0
    %7461 = vmatprep.mubr.f32.mxu0 0.0
    %7462 = vmatmul.mubr.f32.gmra.mrb[0].mxu0 %v7390
    %v7463 = vpop.f32.mrb[0].mxu0
    %v7464 = vadd.f32 0.0, %v7463
    %v7465 = vpop.f32.mrb[0].mxu0
    %7466 = vdwg.mxu0
    %7467 = vrot.lane.b32.xlu0 %v553, 40
    %v7468 = vpop.permute.xlu0 %7467
    %7469 = vrot.lane.b32.xlu0 %v558, 40
    %v7470 = vpop.permute.xlu0 %7469
    %v7474 = vsel %vm1286, %v6855, 0
    %v7477 = vsel %vm1286, %v6857, 0
    %7479 = vmatprep.subr.mxu0 0.0
    %7480 = vmatpush1.msra.mxu0 %v7468
    %7481 = vmatprep.subr.mxu0 0.0
    %7482 = vmatpush1.msra.mxu0 %v7470
    %7483 = vmatprep.subr.mxu0 0.0
    %7484 = vmatpush1.msra.mxu0 0.0
    %7485 = vmatprep.subr.mxu0 0.0
    %7486 = vmatpush1.msra.mxu0 0.0
    %7487 = vmatprep.subr.mxu0 0.0
    %7488 = vmatpush1.msra.mxu0 0.0
    %7489 = vmatprep.subr.mxu0 0.0
    %7490 = vmatpush1.msra.mxu0 0.0
    %7491 = vmatprep.subr.mxu0 0.0
    %7492 = vmatpush1.msra.mxu0 0.0
    %7493 = vmatprep.subr.mxu0 0.0
    %7494 = vmatpush1.msra.mxu0 0.0
    %7495 = vmatprep.subr.mxu0 0.0
    %7496 = vmatpush1.msra.mxu0 0.0
    %7497 = vmatprep.subr.mxu0 0.0
    %7498 = vmatpush1.msra.mxu0 0.0
    %7499 = vmatprep.subr.mxu0 0.0
    %7500 = vmatpush1.msra.mxu0 0.0
    %7501 = vmatprep.subr.mxu0 0.0
    %7502 = vmatpush1.msra.mxu0 0.0
    %7503 = vmatprep.subr.mxu0 0.0
    %7504 = vmatpush1.msra.mxu0 0.0
    %7505 = vmatprep.subr.mxu0 0.0
    %7506 = vmatpush1.msra.mxu0 0.0
    %7507 = vmatprep.subr.mxu0 0.0
    %7508 = vmatpush1.msra.mxu0 0.0
    %7509 = vmatprep.subr.mxu0 0.0
    %7510 = vmatpush1.msra.mxu0 0.0
    %7511 = vmatprep.subr.mxu0 0.0
    %7512 = vmatpush1.msra.mxu0 0.0
    %7513 = vmatprep.subr.mxu0 0.0
    %7514 = vmatpush1.msra.mxu0 0.0
    %7515 = vmatprep.subr.mxu0 0.0
    %7516 = vmatpush1.msra.mxu0 0.0
    %7517 = vmatprep.subr.mxu0 0.0
    %7518 = vmatpush1.msra.mxu0 0.0
    %7519 = vmatprep.subr.mxu0 0.0
    %7520 = vmatpush1.msra.mxu0 0.0
    %7521 = vmatprep.subr.mxu0 0.0
    %7522 = vmatpush1.msra.mxu0 0.0
    %7523 = vmatprep.subr.mxu0 0.0
    %7524 = vmatpush1.msra.mxu0 0.0
    %7525 = vmatprep.subr.mxu0 0.0
    %7526 = vmatpush1.msra.mxu0 0.0
    %7527 = vmatprep.subr.mxu0 0.0
    %7528 = vmatpush1.msra.mxu0 0.0
    %7529 = vmatprep.subr.mxu0 0.0
    %7530 = vmatpush1.msra.mxu0 0.0
    %7531 = vmatprep.subr.mxu0 0.0
    %7532 = vmatpush1.msra.mxu0 0.0
    %7533 = vmatprep.subr.mxu0 0.0
    %7534 = vmatpush1.msra.mxu0 0.0
    %7535 = vmatprep.subr.mxu0 0.0
    %7536 = vmatpush1.msra.mxu0 0.0
    %7537 = vmatprep.subr.mxu0 0.0
    %7538 = vmatpush1.msra.mxu0 0.0
    %7539 = vmatprep.subr.mxu0 0.0
    %7540 = vmatpush1.msra.mxu0 0.0
    %7541 = vmatprep.subr.mxu0 0.0
    %7542 = vmatpush1.msra.mxu0 0.0
    %7543 = vmatprep.mubr.f32.mxu0 0.0
    %7544 = vmatmul.mubr.f32.gmra.mrb[0].mxu0 %v7474
    %v7545 = vpop.f32.mrb[0].mxu0
    %v7546 = vadd.f32 0.0, %v7545
    %v7547 = vpop.f32.mrb[0].mxu0
    %7548 = vmatprep.mubr.f32.mxu0 0.0
    %7549 = vmatmul.mubr.f32.gmra.mrb[0].mxu0 %v7477
    %v7550 = vpop.f32.mrb[0].mxu0
    %v7551 = vadd.f32 0.0, %v7550
    %v7552 = vpop.f32.mrb[0].mxu0
    %7553 = vdwg.mxu0
    %v7555 = vsel %vm579, %v6937, 0
    %v7558 = vsel %vm579, %v6942, 0
    %v7561 = vsel %vm579, %v7024, 0
    %v7564 = vsel %vm579, %v7029, 0
    %v7567 = vsel %vm579, %v7111, 0
    %v7570 = vsel %vm579, %v7116, 0
    %v7573 = vsel %vm579, %v7198, 0
    %v7576 = vsel %vm579, %v7203, 0
    %v7579 = vsel %vm579, %v7285, 0
    %v7582 = vsel %vm579, %v7290, 0
    %v7585 = vsel %vm579, %v7372, 0
    %v7588 = vsel %vm579, %v7377, 0
    %v7591 = vsel %vm579, %v7459, 0
    %v7594 = vsel %vm579, %v7464, 0
    %v7597 = vsel %vm579, %v7546, 0
    %v7600 = vsel %vm579, %v7551, 0
    %7602 = vmatprep.subr.mxu0 0.0
    %7603 = vmatpush1.msra.mxu0 %v572
    %7604 = vmatprep.subr.mxu0 0.0
    %7605 = vmatpush1.msra.mxu0 0.0
    %7606 = vmatprep.subr.mxu0 0.0
    %7607 = vmatpush1.msra.mxu0 0.0
    %7608 = vmatprep.subr.mxu0 0.0
    %7609 = vmatpush1.msra.mxu0 0.0
    %7610 = vmatprep.subr.mxu0 0.0
    %7611 = vmatpush1.msra.mxu0 0.0
    %7612 = vmatprep.subr.mxu0 0.0
    %7613 = vmatpush1.msra.mxu0 0.0
    %7614 = vmatprep.subr.mxu0 0.0
    %7615 = vmatpush1.msra.mxu0 0.0
    %7616 = vmatprep.subr.mxu0 0.0
    %7617 = vmatpush1.msra.mxu0 0.0
    %7618 = vmatprep.subr.mxu0 0.0
    %7619 = vmatpush1.msra.mxu0 0.0
    %7620 = vmatprep.subr.mxu0 0.0
    %7621 = vmatpush1.msra.mxu0 0.0
    %7622 = vmatprep.subr.mxu0 0.0
    %7623 = vmatpush1.msra.mxu0 0.0
    %7624 = vmatprep.subr.mxu0 0.0
    %7625 = vmatpush1.msra.mxu0 0.0
    %7626 = vmatprep.subr.mxu0 0.0
    %7627 = vmatpush1.msra.mxu0 0.0
    %7628 = vmatprep.subr.mxu0 0.0
    %7629 = vmatpush1.msra.mxu0 0.0
    %7630 = vmatprep.subr.mxu0 0.0
    %7631 = vmatpush1.msra.mxu0 0.0
    %7632 = vmatprep.subr.mxu0 0.0
    %7633 = vmatpush1.msra.mxu0 0.0
    %7634 = vmatprep.subr.mxu0 0.0
    %7635 = vmatpush1.msra.mxu0 0.0
    %7636 = vmatprep.subr.mxu0 0.0
    %7637 = vmatpush1.msra.mxu0 0.0
    %7638 = vmatprep.subr.mxu0 0.0
    %7639 = vmatpush1.msra.mxu0 0.0
    %7640 = vmatprep.subr.mxu0 0.0
    %7641 = vmatpush1.msra.mxu0 0.0
    %7642 = vmatprep.subr.mxu0 0.0
    %7643 = vmatpush1.msra.mxu0 0.0
    %7644 = vmatprep.subr.mxu0 0.0
    %7645 = vmatpush1.msra.mxu0 0.0
    %7646 = vmatprep.subr.mxu0 0.0
    %7647 = vmatpush1.msra.mxu0 0.0
    %7648 = vmatprep.subr.mxu0 0.0
    %7649 = vmatpush1.msra.mxu0 0.0
    %7650 = vmatprep.subr.mxu0 0.0
    %7651 = vmatpush1.msra.mxu0 0.0
    %7652 = vmatprep.subr.mxu0 0.0
    %7653 = vmatpush1.msra.mxu0 0.0
    %7654 = vmatprep.subr.mxu0 0.0
    %7655 = vmatpush1.msra.mxu0 0.0
    %7656 = vmatprep.subr.mxu0 0.0
    %7657 = vmatpush1.msra.mxu0 0.0
    %7658 = vmatprep.subr.mxu0 0.0
    %7659 = vmatpush1.msra.mxu0 0.0
    %7660 = vmatprep.subr.mxu0 0.0
    %7661 = vmatpush1.msra.mxu0 0.0
    %7662 = vmatprep.subr.mxu0 0.0
    %7663 = vmatpush1.msra.mxu0 0.0
    %7664 = vmatprep.subr.mxu0 0.0
    %7665 = vmatpush1.msra.mxu0 0.0
    %7666 = vmatprep.mubr.f32.mxu0 0.0
    %7667 = vmatmul.mubr.f32.gmra.mrb[0].mxu0 %v7555
    %v7668 = vpop.f32.mrb[0].mxu0
    %v7669 = vadd.f32 0.0, %v7668
    %v7670 = vpop.f32.mrb[0].mxu0
    %7671 = vmatprep.mubr.f32.mxu0 0.0
    %7672 = vmatmul.mubr.f32.gmra.mrb[0].mxu0 %v7558
    %v7673 = vpop.f32.mrb[0].mxu0
    %v7674 = vadd.f32 0.0, %v7673
    %v7675 = vpop.f32.mrb[0].mxu0
    %7676 = vmatprep.mubr.f32.mxu0 0.0
    %7677 = vmatmul.mubr.f32.gmra.mrb[0].mxu0 %v7561
    %v7678 = vpop.f32.mrb[0].mxu0
    %v7679 = vadd.f32 0.0, %v7678
    %v7680 = vpop.f32.mrb[0].mxu0
    %7681 = vmatprep.mubr.f32.mxu0 0.0
    %7682 = vmatmul.mubr.f32.gmra.mrb[0].mxu0 %v7564
    %v7683 = vpop.f32.mrb[0].mxu0
    %v7684 = vadd.f32 0.0, %v7683
    %v7685 = vpop.f32.mrb[0].mxu0
    %7686 = vmatprep.mubr.f32.mxu0 0.0
    %7687 = vmatmul.mubr.f32.gmra.mrb[0].mxu0 %v7567
    %v7688 = vpop.f32.mrb[0].mxu0
    %v7689 = vadd.f32 0.0, %v7688
    %v7690 = vpop.f32.mrb[0].mxu0
    %7691 = vmatprep.mubr.f32.mxu0 0.0
    %7692 = vmatmul.mubr.f32.gmra.mrb[0].mxu0 %v7570
    %v7693 = vpop.f32.mrb[0].mxu0
    %v7694 = vadd.f32 0.0, %v7693
    %v7695 = vpop.f32.mrb[0].mxu0
    %7696 = vmatprep.mubr.f32.mxu0 0.0
    %7697 = vmatmul.mubr.f32.gmra.mrb[0].mxu0 %v7573
    %v7698 = vpop.f32.mrb[0].mxu0
    %v7699 = vadd.f32 0.0, %v7698
    %v7700 = vpop.f32.mrb[0].mxu0
    %7701 = vmatprep.mubr.f32.mxu0 0.0
    %7702 = vmatmul.mubr.f32.gmra.mrb[0].mxu0 %v7576
    %v7703 = vpop.f32.mrb[0].mxu0
    %v7704 = vadd.f32 0.0, %v7703
    %v7705 = vpop.f32.mrb[0].mxu0
    %7706 = vmatprep.mubr.f32.mxu0 0.0
    %7707 = vmatmul.mubr.f32.gmra.mrb[0].mxu0 %v7579
    %v7708 = vpop.f32.mrb[0].mxu0
    %v7709 = vadd.f32 0.0, %v7708
    %v7710 = vpop.f32.mrb[0].mxu0
    %7711 = vmatprep.mubr.f32.mxu0 0.0
    %7712 = vmatmul.mubr.f32.gmra.mrb[0].mxu0 %v7582
    %v7713 = vpop.f32.mrb[0].mxu0
    %v7714 = vadd.f32 0.0, %v7713
    %v7715 = vpop.f32.mrb[0].mxu0
    %7716 = vmatprep.mubr.f32.mxu0 0.0
    %7717 = vmatmul.mubr.f32.gmra.mrb[0].mxu0 %v7585
    %v7718 = vpop.f32.mrb[0].mxu0
    %v7719 = vadd.f32 0.0, %v7718
    %v7720 = vpop.f32.mrb[0].mxu0
    %7721 = vmatprep.mubr.f32.mxu0 0.0
    %7722 = vmatmul.mubr.f32.gmra.mrb[0].mxu0 %v7588
    %v7723 = vpop.f32.mrb[0].mxu0
    %v7724 = vadd.f32 0.0, %v7723
    %v7725 = vpop.f32.mrb[0].mxu0
    %7726 = vmatprep.mubr.f32.mxu0 0.0
    %7727 = vmatmul.mubr.f32.gmra.mrb[0].mxu0 %v7591
    %v7728 = vpop.f32.mrb[0].mxu0
    %v7729 = vadd.f32 0.0, %v7728
    %v7730 = vpop.f32.mrb[0].mxu0
    %7731 = vmatprep.mubr.f32.mxu0 0.0
    %7732 = vmatmul.mubr.f32.gmra.mrb[0].mxu0 %v7594
    %v7733 = vpop.f32.mrb[0].mxu0
    %v7734 = vadd.f32 0.0, %v7733
    %v7735 = vpop.f32.mrb[0].mxu0
    %7736 = vmatprep.mubr.f32.mxu0 0.0
    %7737 = vmatmul.mubr.f32.gmra.mrb[0].mxu0 %v7597
    %v7738 = vpop.f32.mrb[0].mxu0
    %v7739 = vadd.f32 0.0, %v7738
    %v7740 = vpop.f32.mrb[0].mxu0
    %7741 = vmatprep.mubr.f32.mxu0 0.0
    %7742 = vmatmul.mubr.f32.gmra.mrb[0].mxu0 %v7600
    %v7743 = vpop.f32.mrb[0].mxu0
    %v7744 = vadd.f32 0.0, %v7743
    %v7745 = vpop.f32.mrb[0].mxu0
    %7746 = vdwg.mxu0
    %v7747 = vadd.f32 %v5938, %v7669
    %v7748 = vadd.f32 %v5939, %v7674
    %v7749 = vadd.f32 %v5940, %v7679
    %v7750 = vadd.f32 %v5941, %v7684
    %v7751 = vadd.f32 %v5942, %v7689
    %v7752 = vadd.f32 %v5943, %v7694
    %v7753 = vadd.f32 %v5944, %v7699
    %v7754 = vadd.f32 %v5945, %v7704
    %v7755 = vadd.f32 %v5946, %v7709
    %v7756 = vadd.f32 %v5947, %v7714
    %v7757 = vadd.f32 %v5948, %v7719
    %v7758 = vadd.f32 %v5949, %v7724
    %v7759 = vadd.f32 %v5950, %v7729
    %v7760 = vadd.f32 %v5951, %v7734
    %v7761 = vadd.f32 %v5952, %v7739
    %v7762 = vadd.f32 %v5953, %v7744
    %v7763 = vld [vmem:[%s6] sm:$0x1]
    %v7765 = vlaneseq
    %v7766 = vshrl.u32 %v7765, 7
    %v7767 = vsub.s32 0, %v7766
    %v7768 = vrot.slane %v7763, %v7767
    %v7770 = vadd.f32 %v7747, %v7768
    %v7771 = vadd.f32 %v7748, %v7768
    %v7772 = vadd.f32 %v7749, %v7768
    %v7773 = vadd.f32 %v7750, %v7768
    %v7774 = vadd.f32 %v7751, %v7768
    %v7775 = vadd.f32 %v7752, %v7768
    %v7776 = vadd.f32 %v7753, %v7768
    %v7777 = vadd.f32 %v7754, %v7768
    %v7778 = vadd.f32 %v7755, %v7768
    %v7779 = vadd.f32 %v7756, %v7768
    %v7780 = vadd.f32 %v7757, %v7768
    %v7781 = vadd.f32 %v7758, %v7768
    %v7782 = vadd.f32 %v7759, %v7768
    %v7783 = vadd.f32 %v7760, %v7768
    %v7784 = vadd.f32 %v7761, %v7768
    %v7785 = vadd.f32 %v7762, %v7768
    %7786 = vst.msk [vmem:[#allocation10] sm:$0xff] %vm101, %v7770
    %7787 = vst.msk [vmem:[#allocation10 + $0x8] sm:$0xff] %vm101, %v7771
    %7788 = vst.msk [vmem:[#allocation10 + $0x10] sm:$0xff] %vm101, %v7772
    %7789 = vst.msk [vmem:[#allocation10 + $0x18] sm:$0xff] %vm101, %v7773
    %7790 = vst.msk [vmem:[#allocation10 + $0x20] sm:$0xff] %vm101, %v7774
    %7791 = vst.msk [vmem:[#allocation10 + $0x28] sm:$0xff] %vm101, %v7775
    %7792 = vst.msk [vmem:[#allocation10 + $0x30] sm:$0xff] %vm101, %v7776
    %7793 = vst.msk [vmem:[#allocation10 + $0x38] sm:$0xff] %vm101, %v7777
    %7794 = vst.msk [vmem:[#allocation10 + $0x40] sm:$0xff] %vm101, %v7778
    %7795 = vst.msk [vmem:[#allocation10 + $0x48] sm:$0xff] %vm101, %v7779
    %7796 = vst.msk [vmem:[#allocation10 + $0x50] sm:$0xff] %vm101, %v7780
    %7797 = vst.msk [vmem:[#allocation10 + $0x58] sm:$0xff] %vm101, %v7781
    %7798 = vst.msk [vmem:[#allocation10 + $0x60] sm:$0xff] %vm101, %v7782
    %7799 = vst.msk [vmem:[#allocation10 + $0x68] sm:$0xff] %vm101, %v7783
    %7800 = vst.msk [vmem:[#allocation10 + $0x70] sm:$0xff] %vm101, %v7784
    %7801 = vst.msk [vmem:[#allocation10 + $0x78] sm:$0xff] %vm101, %v7785
    // Predicated region
    $region50: #{tpu_custom_call.1} parent=1 // pred_check
      _
    $region51: #{tpu_custom_call.1} parent=1 // pred_check_branch
      %7803 = sbr.rel (0) target = $region53
    $region52: #{tpu_custom_call.1} parent=1 // pred_region
      %s7805 = ssub.s32 2048, 2048
      %7806 = vsyncadd [#allocation4], %s7805
      %s7807 = sshll.u32 [#allocation10], 4
      %s7808 = int_to_ptr.vmem [resolvable:$true] %s7807
      %7813 = dma.vmem_to_hbm [thread:$0]  %s7808, 2048, %s8, [#allocation4], 128, 128, 8
    $region53: #{tpu_custom_call.1} parent=1 // pred_fallthru
      _
    // Predicated region
    $region54: #{tpu_custom_call.1} parent=1 // pred_check
      _
    $region55: #{tpu_custom_call.1} parent=1 // pred_check_branch
      %7815 = sbr.rel (0) target = $region57
    $region56: #{tpu_custom_call.1} parent=1 // pred_region
      %7816 = dma.done [#allocation4], 2048
    $region57: #{tpu_custom_call.1} parent=1 // pred_fallthru
      _
    %7817 = vsyncpa [#allocation3], 1
    %7818 = vsyncpa [#allocation6], 1
    %7819 = vsyncpa [#allocation9], 1
    %7820 = vsyncpa [#allocation4], 1

</llo_original>
